<compile_context>
chip_gen: v7x
topology: tpu7x:2x2x1
jax: 0.10.0
libtpu: 0.0.40
codegen_flags: <defaults>
</compile_context>

<pallas_src>
import functools

import jax
import jax.numpy as jnp
import numpy as np
from jax.experimental import pallas as pl
from jax.experimental.pallas import tpu as pltpu

# Cast MXU operands + inter-stage activations to bf16 (2x MXU rate, half the HBM bytes on
# v6e/v7x).  Off by default to keep f32-exact numerics vs. the PyTorch reference.
MXU_BF16 = False


def _round_up(x, m):
    return (x + m - 1) // m * m


def _pick_th(B, H, W, target_rows=512, min_steps=8):
    """Rows-per-block tile height.

    th | H, th*W <= target_rows (bounds VMEM / amortizes ~0.35us per grid step) and
    B*(H//th) >= min_steps when possible so the software pipeline (and v7x's two cores)
    have enough steps to overlap.
    """
    divs = sorted((d for d in range(1, H + 1) if H % d == 0), reverse=True)
    for th in divs:
        if th * W <= target_rows and B * (H // th) >= min_steps:
            return th
    for th in divs:
        if th * W <= target_rows:
            return th
    return 1


# ----------------------------------------------------------------------------
# Exact (erf-based) GELU using XLA's float32 erf rational approximation
# (Cephes/Eigen coefficients).  Only mul/add/min/max + one EUP reciprocal, so it lowers
# cleanly in Mosaic and matches PyTorch F.gelu(approximate='none') closely.
# (If a bundle dump ever shows VALU as the saturating slot, the tanh-form GELU moves most
#  of this to the EUP slot at ~1e-3 accuracy cost.)
# ----------------------------------------------------------------------------
_ERF_ALPHA = (-2.72614225801306e-10, 2.77068142495902e-08, -2.10102402082508e-06,
              -5.69250639462346e-05, -7.34990630326855e-04, -2.95459980854025e-03,
              -1.60960333262415e-02)
_ERF_BETA = (-1.45660718464996e-05, -2.13374055278905e-04, -1.68282697438203e-03,
             -7.37332916720468e-03, -1.42647390514189e-02)


def _erf_f32(x):
    x = jnp.clip(x, -4.0, 4.0)
    x2 = x * x
    num = jnp.full_like(x2, _ERF_ALPHA[0])
    for c in _ERF_ALPHA[1:]:
        num = num * x2 + c
    num = num * x
    den = jnp.full_like(x2, _ERF_BETA[0])
    for c in _ERF_BETA[1:]:
        den = den * x2 + c
    # EUP reciprocal instead of a VALU divide (separate VLIW slot -> ~free).
    return num * pl.reciprocal(den, approx=True)


def _gelu_erf(x):
    # PyTorch F.gelu default: 0.5 * x * (1 + erf(x / sqrt(2)))
    return 0.5 * x * (1.0 + _erf_f32(x * 0.7071067811865476))


def _layer_norm(y, gamma, beta, c_valid, eps):
    """LayerNorm over the true channel count; lane padding is masked out of mean AND var."""
    cp = y.shape[-1]
    inv_c = 1.0 / float(c_valid)
    if c_valid < cp:
        valid = jax.lax.broadcasted_iota(jnp.int32, y.shape, 1) < c_valid
        ym = jnp.where(valid, y, 0.0)
    else:
        valid, ym = None, y
    mu = jnp.sum(ym, axis=-1, keepdims=True) * inv_c
    cen = y - mu
    if valid is not None:
        cen = jnp.where(valid, cen, 0.0)
    var = jnp.sum(cen * cen, axis=-1, keepdims=True) * inv_c
    return cen * jax.lax.rsqrt(var + eps) * gamma + beta


# ----------------------------------------------------------------------------
# Stage A: k=1 Minkowski conv (channel matmul) + masked LayerNorm + GELU.
# Fully auto-pipelined lane-dense blocks; no scratch, output written once.
# ----------------------------------------------------------------------------
def _conv1x1_ln_gelu_kernel(x_ref, w_ref, g_ref, b_ref, o_ref, *, c_valid, eps):
    acc = jnp.dot(x_ref[...], w_ref[...], preferred_element_type=jnp.float32)
    y = _layer_norm(acc, g_ref[...], b_ref[...], c_valid, eps)
    o_ref[...] = _gelu_erf(y).astype(o_ref.dtype)


def _conv1x1_ln_gelu(x, w, gamma, beta, *, B, H, W, th, c_valid, eps, out_dtype):
    n_h = H // th
    rows = th * W
    cin_p, cout_p = w.shape
    return pl.pallas_call(
        functools.partial(_conv1x1_ln_gelu_kernel, c_valid=c_valid, eps=eps),
        out_shape=jax.ShapeDtypeStruct((B * H * W, cout_p), out_dtype),
        grid_spec=pltpu.PrefetchScalarGridSpec(
            num_scalar_prefetch=0,
            grid=(B, n_h),
            in_specs=[
                pl.BlockSpec((rows, cin_p), lambda b, i: (b * n_h + i, 0)),
                pl.BlockSpec((cin_p, cout_p), lambda b, i: (0, 0)),   # resident weights
                pl.BlockSpec((1, cout_p), lambda b, i: (0, 0)),       # gamma
                pl.BlockSpec((1, cout_p), lambda b, i: (0, 0)),       # beta
            ],
            out_specs=pl.BlockSpec((rows, cout_p), lambda b, i: (b * n_h + i, 0)),
        ),
        compiler_params=pltpu.CompilerParams(
            dimension_semantics=("parallel", "parallel")),
    )(x, w, gamma, beta)


# ----------------------------------------------------------------------------
# Stage B: k=3 Minkowski conv (9 MXU taps) + masked LayerNorm + optional residual + GELU.
#
# The zero-padded image stays in HBM (memory_space=pl.ANY).  Per grid step (b, i) we
# manually DMA three column-shifted halo slabs (dx = 0,1,2) of shape (th+2, W, Cin_p) into
# a double-buffered VMEM scratch.  Each of the 9 taps is then a leading-axis row slice of
# one slab, a layout-free reshape to (th*W, Cin_p) (W%8==0, Cin_p%128==0) and one MXU dot,
# accumulated in registers.  VMEM use is O(th*W*C), not O(H*W*C).
# ----------------------------------------------------------------------------
def _conv3x3_ln_gelu_kernel(x_hbm, w_ref, g_ref, b_ref, *rest,
                            th, W, n_h, c_valid, eps, add_residual):
    if add_residual:
        res_ref, o_ref, xbuf, sem = rest
    else:
        o_ref, xbuf, sem = rest

    b = pl.program_id(0)
    i = pl.program_id(1)
    rows = th * W
    cin_p = w_ref.shape[1]
    slot = jax.lax.rem(i, 2)

    def start_fetch(row_i, dst_slot):
        # buf[dx][r, w, :] = x_pad[b, row_i*th + r, w + dx, :]   (r < th+2, w < W)
        for dx in range(3):
            pltpu.make_async_copy(
                x_hbm.at[b, pl.ds(row_i * th, th + 2), pl.ds(dx, W)],
                xbuf.at[dst_slot, dx],
                sem.at[dst_slot, dx],
            ).start()

    def wait_fetch(dst_slot):
        for dx in range(3):
            pltpu.make_async_copy(
                x_hbm.at[b, pl.ds(i * th, th + 2), pl.ds(dx, W)],
                xbuf.at[dst_slot, dx],
                sem.at[dst_slot, dx],
            ).wait()

    # Prologue: each batch's row-stripe chain is self-contained (safe with the batch grid
    # axis marked "parallel" / megacore-sharded).
    @pl.when(i == 0)
    def _():
        start_fetch(i, slot)

    # Prefetch the next row stripe of the same batch into the other slot before waiting on
    # the current one, so the DMA overlaps this step's MXU work.
    @pl.when(i + 1 < n_h)
    def _():
        start_fetch(i + 1, 1 - slot)

    wait_fetch(slot)

    # 9 MXU taps accumulated in registers (f32).
    acc = None
    for dy in range(3):
        for dx in range(3):
            lhs = xbuf[slot, dx, pl.ds(dy, th)].reshape(rows, cin_p)
            part = jnp.dot(lhs, w_ref[dy * 3 + dx],
                           preferred_element_type=jnp.float32)
            acc = part if acc is None else acc + part

    y = _layer_norm(acc, g_ref[...], b_ref[...], c_valid, eps)
    if add_residual:
        y = y + res_ref[...].astype(jnp.float32)
    o_ref[...] = _gelu_erf(y).astype(o_ref.dtype)


def _conv3x3_ln_gelu(x_pad, w, gamma, beta, residual=None, *, B, H, W, th,
                     c_valid, eps, out_dtype):
    n_h = H // th
    rows = th * W
    ntaps, cin_p, cout_p = w.shape
    assert ntaps == 9
    add_res = residual is not None

    in_specs = [
        pl.BlockSpec(memory_space=pl.ANY),                              # padded image (HBM)
        pl.BlockSpec((9, cin_p, cout_p), lambda b, i: (0, 0, 0)),       # resident weights
        pl.BlockSpec((1, cout_p), lambda b, i: (0, 0)),                 # gamma
        pl.BlockSpec((1, cout_p), lambda b, i: (0, 0)),                 # beta
    ]
    args = [x_pad, w, gamma, beta]
    if add_res:
        in_specs.append(pl.BlockSpec((rows, cout_p), lambda b, i: (b * n_h + i, 0)))
        args.append(residual)

    kernel = functools.partial(
        _conv3x3_ln_gelu_kernel, th=th, W=W, n_h=n_h, c_valid=c_valid, eps=eps,
        add_residual=add_res)

    return pl.pallas_call(
        kernel,
        out_shape=jax.ShapeDtypeStruct((B * H * W, cout_p), out_dtype),
        grid_spec=pltpu.PrefetchScalarGridSpec(
            num_scalar_prefetch=0,
            grid=(B, n_h),
            in_specs=in_specs,
            out_specs=pl.BlockSpec((rows, cout_p), lambda b, i: (b * n_h + i, 0)),
            scratch_shapes=[
                pltpu.VMEM((2, 3, th + 2, W, cin_p), x_pad.dtype),   # double-buffered slabs
                pltpu.SemaphoreType.DMA((2, 3)),
            ],
        ),
        compiler_params=pltpu.CompilerParams(
            dimension_semantics=("parallel", "arbitrary")),
    )(*args)


# ----------------------------------------------------------------------------
# MinkNeXtBlock forward (inplanes == planes, stride=1, dilation=1, no downsample)
# ----------------------------------------------------------------------------
def _pad_vec(v, cp):
    return jnp.pad(v.reshape(1, -1), ((0, 0), (0, cp - v.shape[0]))).astype(jnp.float32)


def mink_next_block(x_nchw, params, *, eps=1e-6, mxu_bf16=MXU_BF16):
    B, Cin, H, W = x_nchw.shape
    planes = params["w_conv"].shape[1]
    hidden = 4 * planes
    assert Cin == planes, "residual add requires inplanes == planes (no downsample)"
    assert W % 8 == 0, "W must be a multiple of 8 for the tile-aligned (th,W,C) flatten"

    cin_p = _round_up(Cin, 128)
    pl_p = _round_up(planes, 128)        # == cin_p
    hid_p = _round_up(hidden, 128)
    th = _pick_th(B, H, W)

    op_dtype = jnp.bfloat16 if mxu_bf16 else jnp.float32   # MXU operands / inter-stage act

    # NCHW -> NHWC, zero-pad channels to the lane width, flatten to [N, C_p].
    feat = jnp.transpose(x_nchw, (0, 2, 3, 1)).astype(jnp.float32)
    feat = jnp.pad(feat, ((0, 0), (0, 0), (0, 0), (0, cin_p - Cin)))
    feat_flat = feat.reshape(B * H * W, cin_p)              # residual stays f32

    # Zero-pad parameters to lane-dense widths (padded gamma/beta/weight columns are zero so
    # padded lanes stay exactly zero across stages).  3x3 weights in (dy, dx) row-major tap
    # order: rows [t*Cin:(t+1)*Cin] for t = dy*3 + dx.
    # TODO(synk): real MinkowskiEngine kernel-offset ordering would need a tap permutation.
    w0 = jnp.pad(params["w_conv"],
                 ((0, cin_p - Cin), (0, pl_p - planes))).astype(op_dtype)
    w1 = jnp.pad(params["w_pw1"].reshape(9, planes, hidden),
                 ((0, 0), (0, pl_p - planes), (0, hid_p - hidden))).astype(op_dtype)
    w2 = jnp.pad(params["w_pw2"].reshape(9, hidden, planes),
                 ((0, 0), (0, hid_p - hidden), (0, pl_p - planes))).astype(op_dtype)
    g0, b0 = _pad_vec(params["g0"], pl_p), _pad_vec(params["b0"], pl_p)
    g1, b1 = _pad_vec(params["g1"], hid_p), _pad_vec(params["b1"], hid_p)
    g2, b2 = _pad_vec(params["g2"], pl_p), _pad_vec(params["b2"], pl_p)

    # conv (k=1, no bias) -> LayerNorm -> GELU
    out = _conv1x1_ln_gelu(feat_flat.astype(op_dtype), w0, g0, b0,
                           B=B, H=H, W=W, th=th, c_valid=planes, eps=eps,
                           out_dtype=op_dtype)

    # pwconv1 (k=3, no bias) -> LayerNorm -> GELU   (halo-slab DMA im2col)
    xpad = jnp.pad(out.reshape(B, H, W, pl_p), ((0, 0), (1, 1), (1, 1), (0, 0)))
    out = _conv3x3_ln_gelu(xpad, w1, g1, b1, B=B, H=H, W=W, th=th,
                           c_valid=hidden, eps=eps, out_dtype=op_dtype)

    # pwconv2 (k=3, no bias) -> LayerNorm -> (+ residual) -> GELU
    xpad = jnp.pad(out.reshape(B, H, W, hid_p), ((0, 0), (1, 1), (1, 1), (0, 0)))
    out = _conv3x3_ln_gelu(xpad, w2, g2, b2, residual=feat_flat,
                           B=B, H=H, W=W, th=th, c_valid=planes, eps=eps,
                           out_dtype=jnp.float32)

    # Un-pad the lanes, back to NCHW.
    out = out.reshape(B, H, W, pl_p)[..., :planes]
    return jnp.transpose(out, (0, 3, 1, 2))


# ----------------------------------------------------------------------------
# Pure-JAX reference (same dense-grid modeling) for a correctness check.
# ----------------------------------------------------------------------------
def _reference(x_nchw, params, eps=1e-6):
    hp = jax.lax.Precision.HIGHEST
    B, Cin, H, W = x_nchw.shape
    planes = params["w_conv"].shape[1]
    feat = jnp.transpose(x_nchw, (0, 2, 3, 1)).reshape(B * H * W, Cin)

    def ln(y, g, b):
        mu = jnp.mean(y, -1, keepdims=True)
        var = jnp.mean(jnp.square(y - mu), -1, keepdims=True)
        return (y - mu) * jax.lax.rsqrt(var + eps) * g + b

    def gelu(v):
        return jax.nn.gelu(v, approximate=False)

    def im2col(gf):
        Bb, Hh, Ww, Cc = gf.shape
        xp = jnp.pad(gf, ((0, 0), (1, 1), (1, 1), (0, 0)))
        cols = [xp[:, dy:dy + Hh, dx:dx + Ww, :] for dy in range(3) for dx in range(3)]
        return jnp.concatenate(cols, -1).reshape(Bb * Hh * Ww, 9 * Cc)

    out = gelu(ln(jnp.dot(feat, params["w_conv"], precision=hp),
                  params["g0"], params["b0"]))
    out = gelu(ln(jnp.dot(im2col(out.reshape(B, H, W, planes)), params["w_pw1"],
                          precision=hp), params["g1"], params["b1"]))
    out = gelu(ln(jnp.dot(im2col(out.reshape(B, H, W, 4 * planes)), params["w_pw2"],
                          precision=hp), params["g2"], params["b2"]) + feat)
    return jnp.transpose(out.reshape(B, H, W, planes), (0, 3, 1, 2))


if __name__ == "__main__":
    # TODO(synk): MinkowskiEngine coordinate_map_key / coordinate_manager bookkeeping has no
    # Pallas analogue; we model a fully-occupied dense voxel grid (dimension=2).
    key = jax.random.PRNGKey(0)
    B, C, H, W = 2, 4, 16, 16            # inplanes = planes = 4
    planes = C

    k_x, k_w0, k_w1, k_w2 = jax.random.split(key, 4)
    x = jax.random.normal(k_x, (B, C, H, W), jnp.float32)

    params = dict(
        w_conv=0.2 * jax.random.normal(k_w0, (C, planes), jnp.float32),
        w_pw1=0.1 * jax.random.normal(k_w1, (9 * planes, 4 * planes), jnp.float32),
        w_pw2=0.1 * jax.random.normal(k_w2, (9 * 4 * planes, planes), jnp.float32),
        g0=jnp.ones((planes,), jnp.float32), b0=jnp.zeros((planes,), jnp.float32),
        g1=jnp.ones((4 * planes,), jnp.float32), b1=jnp.zeros((4 * planes,), jnp.float32),
        g2=jnp.ones((planes,), jnp.float32), b2=jnp.zeros((planes,), jnp.float32),
    )

    out = jax.jit(mink_next_block)(x, params)
    jax.block_until_ready(out)
    assert out.shape == (B, planes, H, W) and out.dtype == jnp.float32

    # Loose tolerance: the only deliberate numeric deviation (with MXU_BF16 off) is the
    # approx EUP reciprocal inside the erf-GELU.
    ref = _reference(x, params)
    np.testing.assert_allclose(np.asarray(out), np.asarray(ref), atol=5e-2, rtol=0)

    print("KERNEL_OK")
</pallas_src>

<mosaic_0001>
module attributes {stable_mosaic.version = 11 : i64} {
  func.func @_conv1x1_ln_gelu_kernel(%arg0: i32, %arg1: i32, %arg2: memref<64x128xf32, #tpu.memory_space<vmem>>, %arg3: memref<128x128xf32, #tpu.memory_space<vmem>>, %arg4: memref<1x128xf32, #tpu.memory_space<vmem>>, %arg5: memref<1x128xf32, #tpu.memory_space<vmem>>, %arg6: memref<64x128xf32, #tpu.memory_space<vmem>>) attributes {dimension_semantics = [#tpu.dimension_semantics<parallel>, #tpu.dimension_semantics<parallel>], iteration_bounds = array<i64: 2, 4>, scalar_prefetch = 0 : i64, scratch_operands = 0 : i64, tpu.core_type = #tpu.core_type<tc>, window_params = [{transform_indices = @transform_0, window_bounds = array<i64: 64, 128>}, {pipeline_mode = #tpu.pipeline_mode<synchronous>, transform_indices = @transform_1, window_bounds = array<i64: 128, 128>}, {pipeline_mode = #tpu.pipeline_mode<synchronous>, transform_indices = @transform_2, window_bounds = array<i64: 1, 128>}, {pipeline_mode = #tpu.pipeline_mode<synchronous>, transform_indices = @transform_3, window_bounds = array<i64: 1, 128>}, {transform_indices = @transform_4, window_bounds = array<i64: 64, 128>}]} {
    %c0 = arith.constant 0 : index
    %c0_0 = arith.constant 0 : index
    %0 = vector.load %arg2[%c0, %c0_0] : memref<64x128xf32, #tpu.memory_space<vmem>>, vector<64x128xf32>
    %c0_1 = arith.constant 0 : index
    %c0_2 = arith.constant 0 : index
    %1 = vector.load %arg3[%c0_1, %c0_2] : memref<128x128xf32, #tpu.memory_space<vmem>>, vector<128x128xf32>
    %cst = arith.constant dense<0.000000e+00> : vector<64x128xf32>
    %2 = tpu.matmul %0, %1, %cst {dimension_numbers = #tpu.dot_dimension_numbers<[1], [0], [0], [1], [0, 0, 1, 1], [], []>} : vector<64x128xf32>, vector<128x128xf32>, vector<64x128xf32> -> vector<64x128xf32>
    %c0_3 = arith.constant 0 : index
    %c0_4 = arith.constant 0 : index
    %3 = vector.load %arg4[%c0_3, %c0_4] : memref<1x128xf32, #tpu.memory_space<vmem>>, vector<1x128xf32>
    %c0_5 = arith.constant 0 : index
    %c0_6 = arith.constant 0 : index
    %4 = vector.load %arg5[%c0_5, %c0_6] : memref<1x128xf32, #tpu.memory_space<vmem>>, vector<1x128xf32>
    %5 = tpu.iota {dimensions = array<i32: 1>} : vector<64x128xi32>
    %c4_i32 = arith.constant 4 : i32
    %6 = vector.broadcast %c4_i32 : i32 to vector<64x128xi32>
    %7 = arith.cmpi slt, %5, %6 : vector<64x128xi32>
    %cst_7 = arith.constant 0.000000e+00 : f32
    %8 = vector.broadcast %cst_7 : f32 to vector<64x128xf32>
    %9 = arith.select %7, %2, %8 : vector<64x128xi1>, vector<64x128xf32>
    %cst_8 = arith.constant dense<0.000000e+00> : vector<64xf32>
    %10 = vector.multi_reduction <add>, %9, %cst_8 [1] : vector<64x128xf32> to vector<64xf32>
    %11 = vector.shape_cast %10 : vector<64xf32> to vector<64x1xf32>
    %cst_9 = arith.constant 2.500000e-01 : f32
    %12 = vector.broadcast %cst_9 : f32 to vector<64x1xf32>
    %13 = arith.mulf %11, %12 : vector<64x1xf32>
    %14 = vector.broadcast %13 : vector<64x1xf32> to vector<64x128xf32>
    %15 = arith.subf %2, %14 : vector<64x128xf32>
    %cst_10 = arith.constant 0.000000e+00 : f32
    %16 = vector.broadcast %cst_10 : f32 to vector<64x128xf32>
    %17 = arith.select %7, %15, %16 : vector<64x128xi1>, vector<64x128xf32>
    %18 = arith.mulf %17, %17 : vector<64x128xf32>
    %cst_11 = arith.constant dense<0.000000e+00> : vector<64xf32>
    %19 = vector.multi_reduction <add>, %18, %cst_11 [1] : vector<64x128xf32> to vector<64xf32>
    %20 = vector.shape_cast %19 : vector<64xf32> to vector<64x1xf32>
    %cst_12 = arith.constant 2.500000e-01 : f32
    %21 = vector.broadcast %cst_12 : f32 to vector<64x1xf32>
    %22 = arith.mulf %20, %21 : vector<64x1xf32>
    %cst_13 = arith.constant 9.99999997E-7 : f32
    %23 = vector.broadcast %cst_13 : f32 to vector<64x1xf32>
    %24 = arith.addf %22, %23 : vector<64x1xf32>
    %25 = math.rsqrt %24 : vector<64x1xf32>
    %26 = vector.broadcast %25 : vector<64x1xf32> to vector<64x128xf32>
    %27 = arith.mulf %17, %26 : vector<64x128xf32>
    %28 = vector.broadcast %3 : vector<1x128xf32> to vector<64x128xf32>
    %29 = arith.mulf %27, %28 : vector<64x128xf32>
    %30 = vector.broadcast %4 : vector<1x128xf32> to vector<64x128xf32>
    %31 = arith.addf %29, %30 : vector<64x128xf32>
    %cst_14 = arith.constant 5.000000e-01 : f32
    %32 = vector.broadcast %cst_14 : f32 to vector<64x128xf32>
    %33 = arith.mulf %32, %31 : vector<64x128xf32>
    %cst_15 = arith.constant 0.707106769 : f32
    %34 = vector.broadcast %cst_15 : f32 to vector<64x128xf32>
    %35 = arith.mulf %31, %34 : vector<64x128xf32>
    %cst_16 = arith.constant -4.000000e+00 : f32
    %cst_17 = arith.constant 4.000000e+00 : f32
    %36 = vector.broadcast %cst_16 : f32 to vector<64x128xf32>
    %37 = arith.maximumf %36, %35 : vector<64x128xf32>
    %38 = vector.broadcast %cst_17 : f32 to vector<64x128xf32>
    %39 = arith.minimumf %38, %37 : vector<64x128xf32>
    %40 = arith.mulf %39, %39 : vector<64x128xf32>
    %cst_18 = arith.constant -2.72614237E-10 : f32
    %41 = vector.broadcast %cst_18 : f32 to vector<64x128xf32>
    %42 = arith.mulf %41, %40 : vector<64x128xf32>
    %cst_19 = arith.constant 2.77068146E-8 : f32
    %43 = vector.broadcast %cst_19 : f32 to vector<64x128xf32>
    %44 = arith.addf %42, %43 : vector<64x128xf32>
    %45 = arith.mulf %44, %40 : vector<64x128xf32>
    %cst_20 = arith.constant -2.10102394E-6 : f32
    %46 = vector.broadcast %cst_20 : f32 to vector<64x128xf32>
    %47 = arith.addf %45, %46 : vector<64x128xf32>
    %48 = arith.mulf %47, %40 : vector<64x128xf32>
    %cst_21 = arith.constant -5.69250624E-5 : f32
    %49 = vector.broadcast %cst_21 : f32 to vector<64x128xf32>
    %50 = arith.addf %48, %49 : vector<64x128xf32>
    %51 = arith.mulf %50, %40 : vector<64x128xf32>
    %cst_22 = arith.constant -7.34990637E-4 : f32
    %52 = vector.broadcast %cst_22 : f32 to vector<64x128xf32>
    %53 = arith.addf %51, %52 : vector<64x128xf32>
    %54 = arith.mulf %53, %40 : vector<64x128xf32>
    %cst_23 = arith.constant -2.954600e-03 : f32
    %55 = vector.broadcast %cst_23 : f32 to vector<64x128xf32>
    %56 = arith.addf %54, %55 : vector<64x128xf32>
    %57 = arith.mulf %56, %40 : vector<64x128xf32>
    %cst_24 = arith.constant -0.0160960332 : f32
    %58 = vector.broadcast %cst_24 : f32 to vector<64x128xf32>
    %59 = arith.addf %57, %58 : vector<64x128xf32>
    %60 = arith.mulf %59, %39 : vector<64x128xf32>
    %cst_25 = arith.constant -1.45660715E-5 : f32
    %61 = vector.broadcast %cst_25 : f32 to vector<64x128xf32>
    %62 = arith.mulf %61, %40 : vector<64x128xf32>
    %cst_26 = arith.constant -2.13374049E-4 : f32
    %63 = vector.broadcast %cst_26 : f32 to vector<64x128xf32>
    %64 = arith.addf %62, %63 : vector<64x128xf32>
    %65 = arith.mulf %64, %40 : vector<64x128xf32>
    %cst_27 = arith.constant -0.00168282702 : f32
    %66 = vector.broadcast %cst_27 : f32 to vector<64x128xf32>
    %67 = arith.addf %65, %66 : vector<64x128xf32>
    %68 = arith.mulf %67, %40 : vector<64x128xf32>
    %cst_28 = arith.constant -0.00737332925 : f32
    %69 = vector.broadcast %cst_28 : f32 to vector<64x128xf32>
    %70 = arith.addf %68, %69 : vector<64x128xf32>
    %71 = arith.mulf %70, %40 : vector<64x128xf32>
    %cst_29 = arith.constant -0.0142647391 : f32
    %72 = vector.broadcast %cst_29 : f32 to vector<64x128xf32>
    %73 = arith.addf %71, %72 : vector<64x128xf32>
    %74 = tpu.reciprocal %73 {approx = true} : vector<64x128xf32> -> vector<64x128xf32>
    %75 = arith.mulf %60, %74 : vector<64x128xf32>
    %cst_30 = arith.constant 1.000000e+00 : f32
    %76 = vector.broadcast %cst_30 : f32 to vector<64x128xf32>
    %77 = arith.addf %76, %75 : vector<64x128xf32>
    %78 = arith.mulf %33, %77 : vector<64x128xf32>
    %c0_31 = arith.constant 0 : index
    %c0_32 = arith.constant 0 : index
    %79 = vector.load %arg6[%c0_31, %c0_32] : memref<64x128xf32, #tpu.memory_space<vmem>>, vector<64x128xf32>
    tpu.vector_store %arg6[%c0_31, %c0_32], %78 {strides = array<i32>} : memref<64x128xf32, #tpu.memory_space<vmem>>, vector<64x128xf32>,
    return
  }
  func.func @transform_0(%arg0: i32, %arg1: i32) -> (i32, i32) {
    %c4_i32 = arith.constant 4 : i32
    %0 = arith.muli %arg0, %c4_i32 : i32
    %1 = arith.addi %0, %arg1 : i32
    %c0_i32 = arith.constant 0 : i32
    %c0_i32_0 = arith.constant 0 : i32
    return %1, %c0_i32 : i32, i32
  }
  func.func @transform_1(%arg0: i32, %arg1: i32) -> (i32, i32) {
    %c0_i32 = arith.constant 0 : i32
    %c0_i32_0 = arith.constant 0 : i32
    %c0_i32_1 = arith.constant 0 : i32
    return %c0_i32, %c0_i32_0 : i32, i32
  }
  func.func @transform_2(%arg0: i32, %arg1: i32) -> (i32, i32) {
    %c0_i32 = arith.constant 0 : i32
    %c0_i32_0 = arith.constant 0 : i32
    %c0_i32_1 = arith.constant 0 : i32
    return %c0_i32, %c0_i32_0 : i32, i32
  }
  func.func @transform_3(%arg0: i32, %arg1: i32) -> (i32, i32) {
    %c0_i32 = arith.constant 0 : i32
    %c0_i32_0 = arith.constant 0 : i32
    %c0_i32_1 = arith.constant 0 : i32
    return %c0_i32, %c0_i32_0 : i32, i32
  }
  func.func @transform_4(%arg0: i32, %arg1: i32) -> (i32, i32) {
    %c4_i32 = arith.constant 4 : i32
    %0 = arith.muli %arg0, %c4_i32 : i32
    %1 = arith.addi %0, %arg1 : i32
    %c0_i32 = arith.constant 0 : i32
    %c0_i32_0 = arith.constant 0 : i32
    return %1, %c0_i32 : i32, i32
  }
}

module attributes {stable_mosaic.version = 11 : i64} {
  func.func @_conv3x3_ln_gelu_kernel(%arg0: i32, %arg1: i32, %arg2: memref<2x18x18x128xf32, #tpu.memory_space<any>>, %arg3: memref<9x128x128xf32, #tpu.memory_space<vmem>>, %arg4: memref<1x128xf32, #tpu.memory_space<vmem>>, %arg5: memref<1x128xf32, #tpu.memory_space<vmem>>, %arg6: memref<64x128xf32, #tpu.memory_space<vmem>>, %arg7: memref<2x3x6x16x128xf32, #tpu.memory_space<vmem>>, %arg8: memref<2x3x!tpu.dma_semaphore, #tpu.memory_space<semaphore_mem>>) attributes {dimension_semantics = [#tpu.dimension_semantics<parallel>, #tpu.dimension_semantics<arbitrary>], iteration_bounds = array<i64: 2, 4>, scalar_prefetch = 0 : i64, scratch_operands = 2 : i64, tpu.core_type = #tpu.core_type<tc>, window_params = [{}, {pipeline_mode = #tpu.pipeline_mode<synchronous>, transform_indices = @transform_1, window_bounds = array<i64: 9, 128, 128>}, {pipeline_mode = #tpu.pipeline_mode<synchronous>, transform_indices = @transform_2, window_bounds = array<i64: 1, 128>}, {pipeline_mode = #tpu.pipeline_mode<synchronous>, transform_indices = @transform_3, window_bounds = array<i64: 1, 128>}, {transform_indices = @transform_4, window_bounds = array<i64: 64, 128>}]} {
    %c2_i32 = arith.constant 2 : i32
    %0 = arith.remsi %arg1, %c2_i32 : i32
    %c0_i32 = arith.constant 0 : i32
    %1 = arith.cmpi eq, %arg1, %c0_i32 : i32
    %2 = arith.extui %1 : i1 to i32
    %c0_i32_0 = arith.constant 0 : i32
    %3 = arith.cmpi ne, %2, %c0_i32_0 : i32
    scf.if %3 {
      %c4_i32_118 = arith.constant 4 : i32
      %177 = arith.muli %arg1, %c4_i32_118 : i32
      %c0_i32_119 = arith.constant 0 : i32
      %c0_i32_120 = arith.constant 0 : i32
      %c0_i32_121 = arith.constant 0 : i32
      %c0_i32_122 = arith.constant 0 : i32
      %178 = tpu.memref_slice %arg2[%arg0, %177, %c0_i32_121, %c0_i32_122] : memref<2x18x18x128xf32, #tpu.memory_space<any>> -> memref<1x6x16x128xf32, #tpu.memory_space<any>>
      %179 = tpu.memref_squeeze %178 : memref<1x6x16x128xf32, #tpu.memory_space<any>> -> memref<6x16x128xf32, #tpu.memory_space<any>>
      %c0_i32_123 = arith.constant 0 : i32
      %c0_i32_124 = arith.constant 0 : i32
      %c0_i32_125 = arith.constant 0 : i32
      %180 = tpu.memref_slice %arg7[%0, %c0_i32_119, %c0_i32_123, %c0_i32_124, %c0_i32_125] : memref<2x3x6x16x128xf32, #tpu.memory_space<vmem>> -> memref<1x1x6x16x128xf32, #tpu.memory_space<vmem>>
      %181 = tpu.memref_squeeze %180 : memref<1x1x6x16x128xf32, #tpu.memory_space<vmem>> -> memref<6x16x128xf32, #tpu.memory_space<vmem>>
      %182 = tpu.memref_slice %arg8[%0, %c0_i32_120] : memref<2x3x!tpu.dma_semaphore, #tpu.memory_space<semaphore_mem>> -> memref<1x1x!tpu.dma_semaphore, #tpu.memory_space<semaphore_mem>>
      %183 = tpu.memref_squeeze %182 : memref<1x1x!tpu.dma_semaphore, #tpu.memory_space<semaphore_mem>> -> memref<!tpu.dma_semaphore, #tpu.memory_space<semaphore_mem>>
      tpu.enqueue_dma source(%179 : memref<6x16x128xf32, #tpu.memory_space<any>>) target(%181 : memref<6x16x128xf32, #tpu.memory_space<vmem>>) target_semaphore(%183 : memref<!tpu.dma_semaphore, #tpu.memory_space<semaphore_mem>>)
      %c4_i32_126 = arith.constant 4 : i32
      %184 = arith.muli %arg1, %c4_i32_126 : i32
      %c1_i32_127 = arith.constant 1 : i32
      %c1_i32_128 = arith.constant 1 : i32
      %c1_i32_129 = arith.constant 1 : i32
      %c0_i32_130 = arith.constant 0 : i32
      %185 = tpu.memref_slice %arg2[%arg0, %184, %c1_i32_129, %c0_i32_130] : memref<2x18x18x128xf32, #tpu.memory_space<any>> -> memref<1x6x16x128xf32, #tpu.memory_space<any>>
      %186 = tpu.memref_squeeze %185 : memref<1x6x16x128xf32, #tpu.memory_space<any>> -> memref<6x16x128xf32, #tpu.memory_space<any>>
      %c0_i32_131 = arith.constant 0 : i32
      %c0_i32_132 = arith.constant 0 : i32
      %c0_i32_133 = arith.constant 0 : i32
      %187 = tpu.memref_slice %arg7[%0, %c1_i32_127, %c0_i32_131, %c0_i32_132, %c0_i32_133] : memref<2x3x6x16x128xf32, #tpu.memory_space<vmem>> -> memref<1x1x6x16x128xf32, #tpu.memory_space<vmem>>
      %188 = tpu.memref_squeeze %187 : memref<1x1x6x16x128xf32, #tpu.memory_space<vmem>> -> memref<6x16x128xf32, #tpu.memory_space<vmem>>
      %189 = tpu.memref_slice %arg8[%0, %c1_i32_128] : memref<2x3x!tpu.dma_semaphore, #tpu.memory_space<semaphore_mem>> -> memref<1x1x!tpu.dma_semaphore, #tpu.memory_space<semaphore_mem>>
      %190 = tpu.memref_squeeze %189 : memref<1x1x!tpu.dma_semaphore, #tpu.memory_space<semaphore_mem>> -> memref<!tpu.dma_semaphore, #tpu.memory_space<semaphore_mem>>
      tpu.enqueue_dma source(%186 : memref<6x16x128xf32, #tpu.memory_space<any>>) target(%188 : memref<6x16x128xf32, #tpu.memory_space<vmem>>) target_semaphore(%190 : memref<!tpu.dma_semaphore, #tpu.memory_space<semaphore_mem>>)
      %c4_i32_134 = arith.constant 4 : i32
      %191 = arith.muli %arg1, %c4_i32_134 : i32
      %c2_i32_135 = arith.constant 2 : i32
      %c2_i32_136 = arith.constant 2 : i32
      %c2_i32_137 = arith.constant 2 : i32
      %c0_i32_138 = arith.constant 0 : i32
      %192 = tpu.memref_slice %arg2[%arg0, %191, %c2_i32_137, %c0_i32_138] : memref<2x18x18x128xf32, #tpu.memory_space<any>> -> memref<1x6x16x128xf32, #tpu.memory_space<any>>
      %193 = tpu.memref_squeeze %192 : memref<1x6x16x128xf32, #tpu.memory_space<any>> -> memref<6x16x128xf32, #tpu.memory_space<any>>
      %c0_i32_139 = arith.constant 0 : i32
      %c0_i32_140 = arith.constant 0 : i32
      %c0_i32_141 = arith.constant 0 : i32
      %194 = tpu.memref_slice %arg7[%0, %c2_i32_135, %c0_i32_139, %c0_i32_140, %c0_i32_141] : memref<2x3x6x16x128xf32, #tpu.memory_space<vmem>> -> memref<1x1x6x16x128xf32, #tpu.memory_space<vmem>>
      %195 = tpu.memref_squeeze %194 : memref<1x1x6x16x128xf32, #tpu.memory_space<vmem>> -> memref<6x16x128xf32, #tpu.memory_space<vmem>>
      %196 = tpu.memref_slice %arg8[%0, %c2_i32_136] : memref<2x3x!tpu.dma_semaphore, #tpu.memory_space<semaphore_mem>> -> memref<1x1x!tpu.dma_semaphore, #tpu.memory_space<semaphore_mem>>
      %197 = tpu.memref_squeeze %196 : memref<1x1x!tpu.dma_semaphore, #tpu.memory_space<semaphore_mem>> -> memref<!tpu.dma_semaphore, #tpu.memory_space<semaphore_mem>>
      tpu.enqueue_dma source(%193 : memref<6x16x128xf32, #tpu.memory_space<any>>) target(%195 : memref<6x16x128xf32, #tpu.memory_space<vmem>>) target_semaphore(%197 : memref<!tpu.dma_semaphore, #tpu.memory_space<semaphore_mem>>)
    } else {
    }
    %c1_i32 = arith.constant 1 : i32
    %4 = arith.addi %arg1, %c1_i32 : i32
    %c4_i32 = arith.constant 4 : i32
    %5 = arith.cmpi slt, %4, %c4_i32 : i32
    %6 = arith.extui %5 : i1 to i32
    %c0_i32_1 = arith.constant 0 : i32
    %7 = arith.cmpi ne, %6, %c0_i32_1 : i32
    scf.if %7 {
      %c1_i32_118 = arith.constant 1 : i32
      %177 = arith.addi %arg1, %c1_i32_118 : i32
      %c1_i32_119 = arith.constant 1 : i32
      %178 = arith.subi %c1_i32_119, %0 : i32
      %c4_i32_120 = arith.constant 4 : i32
      %179 = arith.muli %177, %c4_i32_120 : i32
      %c0_i32_121 = arith.constant 0 : i32
      %c0_i32_122 = arith.constant 0 : i32
      %c0_i32_123 = arith.constant 0 : i32
      %c0_i32_124 = arith.constant 0 : i32
      %180 = tpu.memref_slice %arg2[%arg0, %179, %c0_i32_123, %c0_i32_124] : memref<2x18x18x128xf32, #tpu.memory_space<any>> -> memref<1x6x16x128xf32, #tpu.memory_space<any>>
      %181 = tpu.memref_squeeze %180 : memref<1x6x16x128xf32, #tpu.memory_space<any>> -> memref<6x16x128xf32, #tpu.memory_space<any>>
      %c0_i32_125 = arith.constant 0 : i32
      %c0_i32_126 = arith.constant 0 : i32
      %c0_i32_127 = arith.constant 0 : i32
      %182 = tpu.memref_slice %arg7[%178, %c0_i32_121, %c0_i32_125, %c0_i32_126, %c0_i32_127] : memref<2x3x6x16x128xf32, #tpu.memory_space<vmem>> -> memref<1x1x6x16x128xf32, #tpu.memory_space<vmem>>
      %183 = tpu.memref_squeeze %182 : memref<1x1x6x16x128xf32, #tpu.memory_space<vmem>> -> memref<6x16x128xf32, #tpu.memory_space<vmem>>
      %184 = tpu.memref_slice %arg8[%178, %c0_i32_122] : memref<2x3x!tpu.dma_semaphore, #tpu.memory_space<semaphore_mem>> -> memref<1x1x!tpu.dma_semaphore, #tpu.memory_space<semaphore_mem>>
      %185 = tpu.memref_squeeze %184 : memref<1x1x!tpu.dma_semaphore, #tpu.memory_space<semaphore_mem>> -> memref<!tpu.dma_semaphore, #tpu.memory_space<semaphore_mem>>
      tpu.enqueue_dma source(%181 : memref<6x16x128xf32, #tpu.memory_space<any>>) target(%183 : memref<6x16x128xf32, #tpu.memory_space<vmem>>) target_semaphore(%185 : memref<!tpu.dma_semaphore, #tpu.memory_space<semaphore_mem>>)
      %c4_i32_128 = arith.constant 4 : i32
      %186 = arith.muli %177, %c4_i32_128 : i32
      %c1_i32_129 = arith.constant 1 : i32
      %c1_i32_130 = arith.constant 1 : i32
      %c1_i32_131 = arith.constant 1 : i32
      %c0_i32_132 = arith.constant 0 : i32
      %187 = tpu.memref_slice %arg2[%arg0, %186, %c1_i32_131, %c0_i32_132] : memref<2x18x18x128xf32, #tpu.memory_space<any>> -> memref<1x6x16x128xf32, #tpu.memory_space<any>>
      %188 = tpu.memref_squeeze %187 : memref<1x6x16x128xf32, #tpu.memory_space<any>> -> memref<6x16x128xf32, #tpu.memory_space<any>>
      %c0_i32_133 = arith.constant 0 : i32
      %c0_i32_134 = arith.constant 0 : i32
      %c0_i32_135 = arith.constant 0 : i32
      %189 = tpu.memref_slice %arg7[%178, %c1_i32_129, %c0_i32_133, %c0_i32_134, %c0_i32_135] : memref<2x3x6x16x128xf32, #tpu.memory_space<vmem>> -> memref<1x1x6x16x128xf32, #tpu.memory_space<vmem>>
      %190 = tpu.memref_squeeze %189 : memref<1x1x6x16x128xf32, #tpu.memory_space<vmem>> -> memref<6x16x128xf32, #tpu.memory_space<vmem>>
      %191 = tpu.memref_slice %arg8[%178, %c1_i32_130] : memref<2x3x!tpu.dma_semaphore, #tpu.memory_space<semaphore_mem>> -> memref<1x1x!tpu.dma_semaphore, #tpu.memory_space<semaphore_mem>>
      %192 = tpu.memref_squeeze %191 : memref<1x1x!tpu.dma_semaphore, #tpu.memory_space<semaphore_mem>> -> memref<!tpu.dma_semaphore, #tpu.memory_space<semaphore_mem>>
      tpu.enqueue_dma source(%188 : memref<6x16x128xf32, #tpu.memory_space<any>>) target(%190 : memref<6x16x128xf32, #tpu.memory_space<vmem>>) target_semaphore(%192 : memref<!tpu.dma_semaphore, #tpu.memory_space<semaphore_mem>>)
      %c4_i32_136 = arith.constant 4 : i32
      %193 = arith.muli %177, %c4_i32_136 : i32
      %c2_i32_137 = arith.constant 2 : i32
      %c2_i32_138 = arith.constant 2 : i32
      %c2_i32_139 = arith.constant 2 : i32
      %c0_i32_140 = arith.constant 0 : i32
      %194 = tpu.memref_slice %arg2[%arg0, %193, %c2_i32_139, %c0_i32_140] : memref<2x18x18x128xf32, #tpu.memory_space<any>> -> memref<1x6x16x128xf32, #tpu.memory_space<any>>
      %195 = tpu.memref_squeeze %194 : memref<1x6x16x128xf32, #tpu.memory_space<any>> -> memref<6x16x128xf32, #tpu.memory_space<any>>
      %c0_i32_141 = arith.constant 0 : i32
      %c0_i32_142 = arith.constant 0 : i32
      %c0_i32_143 = arith.constant 0 : i32
      %196 = tpu.memref_slice %arg7[%178, %c2_i32_137, %c0_i32_141, %c0_i32_142, %c0_i32_143] : memref<2x3x6x16x128xf32, #tpu.memory_space<vmem>> -> memref<1x1x6x16x128xf32, #tpu.memory_space<vmem>>
      %197 = tpu.memref_squeeze %196 : memref<1x1x6x16x128xf32, #tpu.memory_space<vmem>> -> memref<6x16x128xf32, #tpu.memory_space<vmem>>
      %198 = tpu.memref_slice %arg8[%178, %c2_i32_138] : memref<2x3x!tpu.dma_semaphore, #tpu.memory_space<semaphore_mem>> -> memref<1x1x!tpu.dma_semaphore, #tpu.memory_space<semaphore_mem>>
      %199 = tpu.memref_squeeze %198 : memref<1x1x!tpu.dma_semaphore, #tpu.memory_space<semaphore_mem>> -> memref<!tpu.dma_semaphore, #tpu.memory_space<semaphore_mem>>
      tpu.enqueue_dma source(%195 : memref<6x16x128xf32, #tpu.memory_space<any>>) target(%197 : memref<6x16x128xf32, #tpu.memory_space<vmem>>) target_semaphore(%199 : memref<!tpu.dma_semaphore, #tpu.memory_space<semaphore_mem>>)
    } else {
    }
    %c4_i32_2 = arith.constant 4 : i32
    %8 = arith.muli %arg1, %c4_i32_2 : i32
    %c0_i32_3 = arith.constant 0 : i32
    %c0_i32_4 = arith.constant 0 : i32
    %c0_i32_5 = arith.constant 0 : i32
    %c0_i32_6 = arith.constant 0 : i32
    %9 = tpu.memref_slice %arg2[%arg0, %8, %c0_i32_5, %c0_i32_6] : memref<2x18x18x128xf32, #tpu.memory_space<any>> -> memref<1x6x16x128xf32, #tpu.memory_space<any>>
    %10 = tpu.memref_squeeze %9 : memref<1x6x16x128xf32, #tpu.memory_space<any>> -> memref<6x16x128xf32, #tpu.memory_space<any>>
    %c0_i32_7 = arith.constant 0 : i32
    %c0_i32_8 = arith.constant 0 : i32
    %c0_i32_9 = arith.constant 0 : i32
    %11 = tpu.memref_slice %arg7[%0, %c0_i32_3, %c0_i32_7, %c0_i32_8, %c0_i32_9] : memref<2x3x6x16x128xf32, #tpu.memory_space<vmem>> -> memref<1x1x6x16x128xf32, #tpu.memory_space<vmem>>
    %12 = tpu.memref_squeeze %11 : memref<1x1x6x16x128xf32, #tpu.memory_space<vmem>> -> memref<6x16x128xf32, #tpu.memory_space<vmem>>
    %13 = tpu.memref_slice %arg8[%0, %c0_i32_4] : memref<2x3x!tpu.dma_semaphore, #tpu.memory_space<semaphore_mem>> -> memref<1x1x!tpu.dma_semaphore, #tpu.memory_space<semaphore_mem>>
    %14 = tpu.memref_squeeze %13 : memref<1x1x!tpu.dma_semaphore, #tpu.memory_space<semaphore_mem>> -> memref<!tpu.dma_semaphore, #tpu.memory_space<semaphore_mem>>
    tpu.wait_dma2 semaphore(%14 : memref<!tpu.dma_semaphore, #tpu.memory_space<semaphore_mem>>) src(%10 : memref<6x16x128xf32, #tpu.memory_space<any>>) dst(%12 : memref<6x16x128xf32, #tpu.memory_space<vmem>>)
    %c4_i32_10 = arith.constant 4 : i32
    %15 = arith.muli %arg1, %c4_i32_10 : i32
    %c1_i32_11 = arith.constant 1 : i32
    %c1_i32_12 = arith.constant 1 : i32
    %c1_i32_13 = arith.constant 1 : i32
    %c0_i32_14 = arith.constant 0 : i32
    %16 = tpu.memref_slice %arg2[%arg0, %15, %c1_i32_13, %c0_i32_14] : memref<2x18x18x128xf32, #tpu.memory_space<any>> -> memref<1x6x16x128xf32, #tpu.memory_space<any>>
    %17 = tpu.memref_squeeze %16 : memref<1x6x16x128xf32, #tpu.memory_space<any>> -> memref<6x16x128xf32, #tpu.memory_space<any>>
    %c0_i32_15 = arith.constant 0 : i32
    %c0_i32_16 = arith.constant 0 : i32
    %c0_i32_17 = arith.constant 0 : i32
    %18 = tpu.memref_slice %arg7[%0, %c1_i32_11, %c0_i32_15, %c0_i32_16, %c0_i32_17] : memref<2x3x6x16x128xf32, #tpu.memory_space<vmem>> -> memref<1x1x6x16x128xf32, #tpu.memory_space<vmem>>
    %19 = tpu.memref_squeeze %18 : memref<1x1x6x16x128xf32, #tpu.memory_space<vmem>> -> memref<6x16x128xf32, #tpu.memory_space<vmem>>
    %20 = tpu.memref_slice %arg8[%0, %c1_i32_12] : memref<2x3x!tpu.dma_semaphore, #tpu.memory_space<semaphore_mem>> -> memref<1x1x!tpu.dma_semaphore, #tpu.memory_space<semaphore_mem>>
    %21 = tpu.memref_squeeze %20 : memref<1x1x!tpu.dma_semaphore, #tpu.memory_space<semaphore_mem>> -> memref<!tpu.dma_semaphore, #tpu.memory_space<semaphore_mem>>
    tpu.wait_dma2 semaphore(%21 : memref<!tpu.dma_semaphore, #tpu.memory_space<semaphore_mem>>) src(%17 : memref<6x16x128xf32, #tpu.memory_space<any>>) dst(%19 : memref<6x16x128xf32, #tpu.memory_space<vmem>>)
    %c4_i32_18 = arith.constant 4 : i32
    %22 = arith.muli %arg1, %c4_i32_18 : i32
    %c2_i32_19 = arith.constant 2 : i32
    %c2_i32_20 = arith.constant 2 : i32
    %c2_i32_21 = arith.constant 2 : i32
    %c0_i32_22 = arith.constant 0 : i32
    %23 = tpu.memref_slice %arg2[%arg0, %22, %c2_i32_21, %c0_i32_22] : memref<2x18x18x128xf32, #tpu.memory_space<any>> -> memref<1x6x16x128xf32, #tpu.memory_space<any>>
    %24 = tpu.memref_squeeze %23 : memref<1x6x16x128xf32, #tpu.memory_space<any>> -> memref<6x16x128xf32, #tpu.memory_space<any>>
    %c0_i32_23 = arith.constant 0 : i32
    %c0_i32_24 = arith.constant 0 : i32
    %c0_i32_25 = arith.constant 0 : i32
    %25 = tpu.memref_slice %arg7[%0, %c2_i32_19, %c0_i32_23, %c0_i32_24, %c0_i32_25] : memref<2x3x6x16x128xf32, #tpu.memory_space<vmem>> -> memref<1x1x6x16x128xf32, #tpu.memory_space<vmem>>
    %26 = tpu.memref_squeeze %25 : memref<1x1x6x16x128xf32, #tpu.memory_space<vmem>> -> memref<6x16x128xf32, #tpu.memory_space<vmem>>
    %27 = tpu.memref_slice %arg8[%0, %c2_i32_20] : memref<2x3x!tpu.dma_semaphore, #tpu.memory_space<semaphore_mem>> -> memref<1x1x!tpu.dma_semaphore, #tpu.memory_space<semaphore_mem>>
    %28 = tpu.memref_squeeze %27 : memref<1x1x!tpu.dma_semaphore, #tpu.memory_space<semaphore_mem>> -> memref<!tpu.dma_semaphore, #tpu.memory_space<semaphore_mem>>
    tpu.wait_dma2 semaphore(%28 : memref<!tpu.dma_semaphore, #tpu.memory_space<semaphore_mem>>) src(%24 : memref<6x16x128xf32, #tpu.memory_space<any>>) dst(%26 : memref<6x16x128xf32, #tpu.memory_space<vmem>>)
    %29 = arith.index_cast %0 : i32 to index
    %c0 = arith.constant 0 : index
    %c0_26 = arith.constant 0 : index
    %c0_27 = arith.constant 0 : index
    %c0_28 = arith.constant 0 : index
    %30 = vector.load %arg7[%29, %c0, %c0_26, %c0_27, %c0_28] : memref<2x3x6x16x128xf32, #tpu.memory_space<vmem>>, vector<1x1x4x16x128xf32>
    %31 = vector.shape_cast %30 : vector<1x1x4x16x128xf32> to vector<4x16x128xf32>
    %32 = vector.shape_cast %31 : vector<4x16x128xf32> to vector<64x128xf32>
    %c0_29 = arith.constant 0 : index
    %c0_30 = arith.constant 0 : index
    %c0_31 = arith.constant 0 : index
    %33 = vector.load %arg3[%c0_29, %c0_30, %c0_31] : memref<9x128x128xf32, #tpu.memory_space<vmem>>, vector<1x128x128xf32>
    %34 = vector.shape_cast %33 : vector<1x128x128xf32> to vector<128x128xf32>
    %cst = arith.constant dense<0.000000e+00> : vector<64x128xf32>
    %35 = tpu.matmul %32, %34, %cst {dimension_numbers = #tpu.dot_dimension_numbers<[1], [0], [0], [1], [0, 0, 1, 1], [], []>} : vector<64x128xf32>, vector<128x128xf32>, vector<64x128xf32> -> vector<64x128xf32>
    %36 = arith.index_cast %0 : i32 to index
    %c1 = arith.constant 1 : index
    %c0_32 = arith.constant 0 : index
    %c0_33 = arith.constant 0 : index
    %c0_34 = arith.constant 0 : index
    %37 = vector.load %arg7[%36, %c1, %c0_32, %c0_33, %c0_34] : memref<2x3x6x16x128xf32, #tpu.memory_space<vmem>>, vector<1x1x4x16x128xf32>
    %38 = vector.shape_cast %37 : vector<1x1x4x16x128xf32> to vector<4x16x128xf32>
    %39 = vector.shape_cast %38 : vector<4x16x128xf32> to vector<64x128xf32>
    %c1_35 = arith.constant 1 : index
    %c0_36 = arith.constant 0 : index
    %c0_37 = arith.constant 0 : index
    %40 = vector.load %arg3[%c1_35, %c0_36, %c0_37] : memref<9x128x128xf32, #tpu.memory_space<vmem>>, vector<1x128x128xf32>
    %41 = vector.shape_cast %40 : vector<1x128x128xf32> to vector<128x128xf32>
    %cst_38 = arith.constant dense<0.000000e+00> : vector<64x128xf32>
    %42 = tpu.matmul %39, %41, %cst_38 {dimension_numbers = #tpu.dot_dimension_numbers<[1], [0], [0], [1], [0, 0, 1, 1], [], []>} : vector<64x128xf32>, vector<128x128xf32>, vector<64x128xf32> -> vector<64x128xf32>
    %43 = arith.addf %35, %42 : vector<64x128xf32>
    %44 = arith.index_cast %0 : i32 to index
    %c2 = arith.constant 2 : index
    %c0_39 = arith.constant 0 : index
    %c0_40 = arith.constant 0 : index
    %c0_41 = arith.constant 0 : index
    %45 = vector.load %arg7[%44, %c2, %c0_39, %c0_40, %c0_41] : memref<2x3x6x16x128xf32, #tpu.memory_space<vmem>>, vector<1x1x4x16x128xf32>
    %46 = vector.shape_cast %45 : vector<1x1x4x16x128xf32> to vector<4x16x128xf32>
    %47 = vector.shape_cast %46 : vector<4x16x128xf32> to vector<64x128xf32>
    %c2_42 = arith.constant 2 : index
    %c0_43 = arith.constant 0 : index
    %c0_44 = arith.constant 0 : index
    %48 = vector.load %arg3[%c2_42, %c0_43, %c0_44] : memref<9x128x128xf32, #tpu.memory_space<vmem>>, vector<1x128x128xf32>
    %49 = vector.shape_cast %48 : vector<1x128x128xf32> to vector<128x128xf32>
    %cst_45 = arith.constant dense<0.000000e+00> : vector<64x128xf32>
    %50 = tpu.matmul %47, %49, %cst_45 {dimension_numbers = #tpu.dot_dimension_numbers<[1], [0], [0], [1], [0, 0, 1, 1], [], []>} : vector<64x128xf32>, vector<128x128xf32>, vector<64x128xf32> -> vector<64x128xf32>
    %51 = arith.addf %43, %50 : vector<64x128xf32>
    %52 = arith.index_cast %0 : i32 to index
    %c0_46 = arith.constant 0 : index
    %c1_47 = arith.constant 1 : index
    %c0_48 = arith.constant 0 : index
    %c0_49 = arith.constant 0 : index
    %53 = vector.load %arg7[%52, %c0_46, %c1_47, %c0_48, %c0_49] : memref<2x3x6x16x128xf32, #tpu.memory_space<vmem>>, vector<1x1x4x16x128xf32>
    %54 = vector.shape_cast %53 : vector<1x1x4x16x128xf32> to vector<4x16x128xf32>
    %55 = vector.shape_cast %54 : vector<4x16x128xf32> to vector<64x128xf32>
    %c3 = arith.constant 3 : index
    %c0_50 = arith.constant 0 : index
    %c0_51 = arith.constant 0 : index
    %56 = vector.load %arg3[%c3, %c0_50, %c0_51] : memref<9x128x128xf32, #tpu.memory_space<vmem>>, vector<1x128x128xf32>
    %57 = vector.shape_cast %56 : vector<1x128x128xf32> to vector<128x128xf32>
    %cst_52 = arith.constant dense<0.000000e+00> : vector<64x128xf32>
    %58 = tpu.matmul %55, %57, %cst_52 {dimension_numbers = #tpu.dot_dimension_numbers<[1], [0], [0], [1], [0, 0, 1, 1], [], []>} : vector<64x128xf32>, vector<128x128xf32>, vector<64x128xf32> -> vector<64x128xf32>
    %59 = arith.addf %51, %58 : vector<64x128xf32>
    %60 = arith.index_cast %0 : i32 to index
    %c1_53 = arith.constant 1 : index
    %c1_54 = arith.constant 1 : index
    %c0_55 = arith.constant 0 : index
    %c0_56 = arith.constant 0 : index
    %61 = vector.load %arg7[%60, %c1_53, %c1_54, %c0_55, %c0_56] : memref<2x3x6x16x128xf32, #tpu.memory_space<vmem>>, vector<1x1x4x16x128xf32>
    %62 = vector.shape_cast %61 : vector<1x1x4x16x128xf32> to vector<4x16x128xf32>
    %63 = vector.shape_cast %62 : vector<4x16x128xf32> to vector<64x128xf32>
    %c4 = arith.constant 4 : index
    %c0_57 = arith.constant 0 : index
    %c0_58 = arith.constant 0 : index
    %64 = vector.load %arg3[%c4, %c0_57, %c0_58] : memref<9x128x128xf32, #tpu.memory_space<vmem>>, vector<1x128x128xf32>
    %65 = vector.shape_cast %64 : vector<1x128x128xf32> to vector<128x128xf32>
    %cst_59 = arith.constant dense<0.000000e+00> : vector<64x128xf32>
    %66 = tpu.matmul %63, %65, %cst_59 {dimension_numbers = #tpu.dot_dimension_numbers<[1], [0], [0], [1], [0, 0, 1, 1], [], []>} : vector<64x128xf32>, vector<128x128xf32>, vector<64x128xf32> -> vector<64x128xf32>
    %67 = arith.addf %59, %66 : vector<64x128xf32>
    %68 = arith.index_cast %0 : i32 to index
    %c2_60 = arith.constant 2 : index
    %c1_61 = arith.constant 1 : index
    %c0_62 = arith.constant 0 : index
    %c0_63 = arith.constant 0 : index
    %69 = vector.load %arg7[%68, %c2_60, %c1_61, %c0_62, %c0_63] : memref<2x3x6x16x128xf32, #tpu.memory_space<vmem>>, vector<1x1x4x16x128xf32>
    %70 = vector.shape_cast %69 : vector<1x1x4x16x128xf32> to vector<4x16x128xf32>
    %71 = vector.shape_cast %70 : vector<4x16x128xf32> to vector<64x128xf32>
    %c5 = arith.constant 5 : index
    %c0_64 = arith.constant 0 : index
    %c0_65 = arith.constant 0 : index
    %72 = vector.load %arg3[%c5, %c0_64, %c0_65] : memref<9x128x128xf32, #tpu.memory_space<vmem>>, vector<1x128x128xf32>
    %73 = vector.shape_cast %72 : vector<1x128x128xf32> to vector<128x128xf32>
    %cst_66 = arith.constant dense<0.000000e+00> : vector<64x128xf32>
    %74 = tpu.matmul %71, %73, %cst_66 {dimension_numbers = #tpu.dot_dimension_numbers<[1], [0], [0], [1], [0, 0, 1, 1], [], []>} : vector<64x128xf32>, vector<128x128xf32>, vector<64x128xf32> -> vector<64x128xf32>
    %75 = arith.addf %67, %74 : vector<64x128xf32>
    %76 = arith.index_cast %0 : i32 to index
    %c0_67 = arith.constant 0 : index
    %c2_68 = arith.constant 2 : index
    %c0_69 = arith.constant 0 : index
    %c0_70 = arith.constant 0 : index
    %77 = vector.load %arg7[%76, %c0_67, %c2_68, %c0_69, %c0_70] : memref<2x3x6x16x128xf32, #tpu.memory_space<vmem>>, vector<1x1x4x16x128xf32>
    %78 = vector.shape_cast %77 : vector<1x1x4x16x128xf32> to vector<4x16x128xf32>
    %79 = vector.shape_cast %78 : vector<4x16x128xf32> to vector<64x128xf32>
    %c6 = arith.constant 6 : index
    %c0_71 = arith.constant 0 : index
    %c0_72 = arith.constant 0 : index
    %80 = vector.load %arg3[%c6, %c0_71, %c0_72] : memref<9x128x128xf32, #tpu.memory_space<vmem>>, vector<1x128x128xf32>
    %81 = vector.shape_cast %80 : vector<1x128x128xf32> to vector<128x128xf32>
    %cst_73 = arith.constant dense<0.000000e+00> : vector<64x128xf32>
    %82 = tpu.matmul %79, %81, %cst_73 {dimension_numbers = #tpu.dot_dimension_numbers<[1], [0], [0], [1], [0, 0, 1, 1], [], []>} : vector<64x128xf32>, vector<128x128xf32>, vector<64x128xf32> -> vector<64x128xf32>
    %83 = arith.addf %75, %82 : vector<64x128xf32>
    %84 = arith.index_cast %0 : i32 to index
    %c1_74 = arith.constant 1 : index
    %c2_75 = arith.constant 2 : index
    %c0_76 = arith.constant 0 : index
    %c0_77 = arith.constant 0 : index
    %85 = vector.load %arg7[%84, %c1_74, %c2_75, %c0_76, %c0_77] : memref<2x3x6x16x128xf32, #tpu.memory_space<vmem>>, vector<1x1x4x16x128xf32>
    %86 = vector.shape_cast %85 : vector<1x1x4x16x128xf32> to vector<4x16x128xf32>
    %87 = vector.shape_cast %86 : vector<4x16x128xf32> to vector<64x128xf32>
    %c7 = arith.constant 7 : index
    %c0_78 = arith.constant 0 : index
    %c0_79 = arith.constant 0 : index
    %88 = vector.load %arg3[%c7, %c0_78, %c0_79] : memref<9x128x128xf32, #tpu.memory_space<vmem>>, vector<1x128x128xf32>
    %89 = vector.shape_cast %88 : vector<1x128x128xf32> to vector<128x128xf32>
    %cst_80 = arith.constant dense<0.000000e+00> : vector<64x128xf32>
    %90 = tpu.matmul %87, %89, %cst_80 {dimension_numbers = #tpu.dot_dimension_numbers<[1], [0], [0], [1], [0, 0, 1, 1], [], []>} : vector<64x128xf32>, vector<128x128xf32>, vector<64x128xf32> -> vector<64x128xf32>
    %91 = arith.addf %83, %90 : vector<64x128xf32>
    %92 = arith.index_cast %0 : i32 to index
    %c2_81 = arith.constant 2 : index
    %c2_82 = arith.constant 2 : index
    %c0_83 = arith.constant 0 : index
    %c0_84 = arith.constant 0 : index
    %93 = vector.load %arg7[%92, %c2_81, %c2_82, %c0_83, %c0_84] : memref<2x3x6x16x128xf32, #tpu.memory_space<vmem>>, vector<1x1x4x16x128xf32>
    %94 = vector.shape_cast %93 : vector<1x1x4x16x128xf32> to vector<4x16x128xf32>
    %95 = vector.shape_cast %94 : vector<4x16x128xf32> to vector<64x128xf32>
    %c8 = arith.constant 8 : index
    %c0_85 = arith.constant 0 : index
    %c0_86 = arith.constant 0 : index
    %96 = vector.load %arg3[%c8, %c0_85, %c0_86] : memref<9x128x128xf32, #tpu.memory_space<vmem>>, vector<1x128x128xf32>
    %97 = vector.shape_cast %96 : vector<1x128x128xf32> to vector<128x128xf32>
    %cst_87 = arith.constant dense<0.000000e+00> : vector<64x128xf32>
    %98 = tpu.matmul %95, %97, %cst_87 {dimension_numbers = #tpu.dot_dimension_numbers<[1], [0], [0], [1], [0, 0, 1, 1], [], []>} : vector<64x128xf32>, vector<128x128xf32>, vector<64x128xf32> -> vector<64x128xf32>
    %99 = arith.addf %91, %98 : vector<64x128xf32>
    %c0_88 = arith.constant 0 : index
    %c0_89 = arith.constant 0 : index
    %100 = vector.load %arg4[%c0_88, %c0_89] : memref<1x128xf32, #tpu.memory_space<vmem>>, vector<1x128xf32>
    %c0_90 = arith.constant 0 : index
    %c0_91 = arith.constant 0 : index
    %101 = vector.load %arg5[%c0_90, %c0_91] : memref<1x128xf32, #tpu.memory_space<vmem>>, vector<1x128xf32>
    %102 = tpu.iota {dimensions = array<i32: 1>} : vector<64x128xi32>
    %c16_i32 = arith.constant 16 : i32
    %103 = vector.broadcast %c16_i32 : i32 to vector<64x128xi32>
    %104 = arith.cmpi slt, %102, %103 : vector<64x128xi32>
    %cst_92 = arith.constant 0.000000e+00 : f32
    %105 = vector.broadcast %cst_92 : f32 to vector<64x128xf32>
    %106 = arith.select %104, %99, %105 : vector<64x128xi1>, vector<64x128xf32>
    %cst_93 = arith.constant dense<0.000000e+00> : vector<64xf32>
    %107 = vector.multi_reduction <add>, %106, %cst_93 [1] : vector<64x128xf32> to vector<64xf32>
    %108 = vector.shape_cast %107 : vector<64xf32> to vector<64x1xf32>
    %cst_94 = arith.constant 6.250000e-02 : f32
    %109 = vector.broadcast %cst_94 : f32 to vector<64x1xf32>
    %110 = arith.mulf %108, %109 : vector<64x1xf32>
    %111 = vector.broadcast %110 : vector<64x1xf32> to vector<64x128xf32>
    %112 = arith.subf %99, %111 : vector<64x128xf32>
    %cst_95 = arith.constant 0.000000e+00 : f32
    %113 = vector.broadcast %cst_95 : f32 to vector<64x128xf32>
    %114 = arith.select %104, %112, %113 : vector<64x128xi1>, vector<64x128xf32>
    %115 = arith.mulf %114, %114 : vector<64x128xf32>
    %cst_96 = arith.constant dense<0.000000e+00> : vector<64xf32>
    %116 = vector.multi_reduction <add>, %115, %cst_96 [1] : vector<64x128xf32> to vector<64xf32>
    %117 = vector.shape_cast %116 : vector<64xf32> to vector<64x1xf32>
    %cst_97 = arith.constant 6.250000e-02 : f32
    %118 = vector.broadcast %cst_97 : f32 to vector<64x1xf32>
    %119 = arith.mulf %117, %118 : vector<64x1xf32>
    %cst_98 = arith.constant 9.99999997E-7 : f32
    %120 = vector.broadcast %cst_98 : f32 to vector<64x1xf32>
    %121 = arith.addf %119, %120 : vector<64x1xf32>
    %122 = math.rsqrt %121 : vector<64x1xf32>
    %123 = vector.broadcast %122 : vector<64x1xf32> to vector<64x128xf32>
    %124 = arith.mulf %114, %123 : vector<64x128xf32>
    %125 = vector.broadcast %100 : vector<1x128xf32> to vector<64x128xf32>
    %126 = arith.mulf %124, %125 : vector<64x128xf32>
    %127 = vector.broadcast %101 : vector<1x128xf32> to vector<64x128xf32>
    %128 = arith.addf %126, %127 : vector<64x128xf32>
    %cst_99 = arith.constant 5.000000e-01 : f32
    %129 = vector.broadcast %cst_99 : f32 to vector<64x128xf32>
    %130 = arith.mulf %129, %128 : vector<64x128xf32>
    %cst_100 = arith.constant 0.707106769 : f32
    %131 = vector.broadcast %cst_100 : f32 to vector<64x128xf32>
    %132 = arith.mulf %128, %131 : vector<64x128xf32>
    %cst_101 = arith.constant -4.000000e+00 : f32
    %cst_102 = arith.constant 4.000000e+00 : f32
    %133 = vector.broadcast %cst_101 : f32 to vector<64x128xf32>
    %134 = arith.maximumf %133, %132 : vector<64x128xf32>
    %135 = vector.broadcast %cst_102 : f32 to vector<64x128xf32>
    %136 = arith.minimumf %135, %134 : vector<64x128xf32>
    %137 = arith.mulf %136, %136 : vector<64x128xf32>
    %cst_103 = arith.constant -2.72614237E-10 : f32
    %138 = vector.broadcast %cst_103 : f32 to vector<64x128xf32>
    %139 = arith.mulf %138, %137 : vector<64x128xf32>
    %cst_104 = arith.constant 2.77068146E-8 : f32
    %140 = vector.broadcast %cst_104 : f32 to vector<64x128xf32>
    %141 = arith.addf %139, %140 : vector<64x128xf32>
    %142 = arith.mulf %141, %137 : vector<64x128xf32>
    %cst_105 = arith.constant -2.10102394E-6 : f32
    %143 = vector.broadcast %cst_105 : f32 to vector<64x128xf32>
    %144 = arith.addf %142, %143 : vector<64x128xf32>
    %145 = arith.mulf %144, %137 : vector<64x128xf32>
    %cst_106 = arith.constant -5.69250624E-5 : f32
    %146 = vector.broadcast %cst_106 : f32 to vector<64x128xf32>
    %147 = arith.addf %145, %146 : vector<64x128xf32>
    %148 = arith.mulf %147, %137 : vector<64x128xf32>
    %cst_107 = arith.constant -7.34990637E-4 : f32
    %149 = vector.broadcast %cst_107 : f32 to vector<64x128xf32>
    %150 = arith.addf %148, %149 : vector<64x128xf32>
    %151 = arith.mulf %150, %137 : vector<64x128xf32>
    %cst_108 = arith.constant -2.954600e-03 : f32
    %152 = vector.broadcast %cst_108 : f32 to vector<64x128xf32>
    %153 = arith.addf %151, %152 : vector<64x128xf32>
    %154 = arith.mulf %153, %137 : vector<64x128xf32>
    %cst_109 = arith.constant -0.0160960332 : f32
    %155 = vector.broadcast %cst_109 : f32 to vector<64x128xf32>
    %156 = arith.addf %154, %155 : vector<64x128xf32>
    %157 = arith.mulf %156, %136 : vector<64x128xf32>
    %cst_110 = arith.constant -1.45660715E-5 : f32
    %158 = vector.broadcast %cst_110 : f32 to vector<64x128xf32>
    %159 = arith.mulf %158, %137 : vector<64x128xf32>
    %cst_111 = arith.constant -2.13374049E-4 : f32
    %160 = vector.broadcast %cst_111 : f32 to vector<64x128xf32>
    %161 = arith.addf %159, %160 : vector<64x128xf32>
    %162 = arith.mulf %161, %137 : vector<64x128xf32>
    %cst_112 = arith.constant -0.00168282702 : f32
    %163 = vector.broadcast %cst_112 : f32 to vector<64x128xf32>
    %164 = arith.addf %162, %163 : vector<64x128xf32>
    %165 = arith.mulf %164, %137 : vector<64x128xf32>
    %cst_113 = arith.constant -0.00737332925 : f32
    %166 = vector.broadcast %cst_113 : f32 to vector<64x128xf32>
    %167 = arith.addf %165, %166 : vector<64x128xf32>
    %168 = arith.mulf %167, %137 : vector<64x128xf32>
    %cst_114 = arith.constant -0.0142647391 : f32
    %169 = vector.broadcast %cst_114 : f32 to vector<64x128xf32>
    %170 = arith.addf %168, %169 : vector<64x128xf32>
    %171 = tpu.reciprocal %170 {approx = true} : vector<64x128xf32> -> vector<64x128xf32>
    %172 = arith.mulf %157, %171 : vector<64x128xf32>
    %cst_115 = arith.constant 1.000000e+00 : f32
    %173 = vector.broadcast %cst_115 : f32 to vector<64x128xf32>
    %174 = arith.addf %173, %172 : vector<64x128xf32>
    %175 = arith.mulf %130, %174 : vector<64x128xf32>
    %c0_116 = arith.constant 0 : index
    %c0_117 = arith.constant 0 : index
    %176 = vector.load %arg6[%c0_116, %c0_117] : memref<64x128xf32, #tpu.memory_space<vmem>>, vector<64x128xf32>
    tpu.vector_store %arg6[%c0_116, %c0_117], %175 {strides = array<i32>} : memref<64x128xf32, #tpu.memory_space<vmem>>, vector<64x128xf32>,
    return
  }
  func.func @transform_1(%arg0: i32, %arg1: i32) -> (i32, i32, i32) {
    %c0_i32 = arith.constant 0 : i32
    %c0_i32_0 = arith.constant 0 : i32
    %c0_i32_1 = arith.constant 0 : i32
    %c0_i32_2 = arith.constant 0 : i32
    return %c0_i32, %c0_i32_0, %c0_i32_1 : i32, i32, i32
  }
  func.func @transform_2(%arg0: i32, %arg1: i32) -> (i32, i32) {
    %c0_i32 = arith.constant 0 : i32
    %c0_i32_0 = arith.constant 0 : i32
    %c0_i32_1 = arith.constant 0 : i32
    return %c0_i32, %c0_i32_0 : i32, i32
  }
  func.func @transform_3(%arg0: i32, %arg1: i32) -> (i32, i32) {
    %c0_i32 = arith.constant 0 : i32
    %c0_i32_0 = arith.constant 0 : i32
    %c0_i32_1 = arith.constant 0 : i32
    return %c0_i32, %c0_i32_0 : i32, i32
  }
  func.func @transform_4(%arg0: i32, %arg1: i32) -> (i32, i32) {
    %c4_i32 = arith.constant 4 : i32
    %0 = arith.muli %arg0, %c4_i32 : i32
    %1 = arith.addi %0, %arg1 : i32
    %c0_i32 = arith.constant 0 : i32
    %c0_i32_0 = arith.constant 0 : i32
    return %1, %c0_i32 : i32, i32
  }
}

module attributes {stable_mosaic.version = 11 : i64} {
  func.func @_conv3x3_ln_gelu_kernel(%arg0: i32, %arg1: i32, %arg2: memref<2x18x18x128xf32, #tpu.memory_space<any>>, %arg3: memref<9x128x128xf32, #tpu.memory_space<vmem>>, %arg4: memref<1x128xf32, #tpu.memory_space<vmem>>, %arg5: memref<1x128xf32, #tpu.memory_space<vmem>>, %arg6: memref<64x128xf32, #tpu.memory_space<vmem>>, %arg7: memref<64x128xf32, #tpu.memory_space<vmem>>, %arg8: memref<2x3x6x16x128xf32, #tpu.memory_space<vmem>>, %arg9: memref<2x3x!tpu.dma_semaphore, #tpu.memory_space<semaphore_mem>>) attributes {dimension_semantics = [#tpu.dimension_semantics<parallel>, #tpu.dimension_semantics<arbitrary>], iteration_bounds = array<i64: 2, 4>, scalar_prefetch = 0 : i64, scratch_operands = 2 : i64, tpu.core_type = #tpu.core_type<tc>, window_params = [{}, {pipeline_mode = #tpu.pipeline_mode<synchronous>, transform_indices = @transform_1, window_bounds = array<i64: 9, 128, 128>}, {pipeline_mode = #tpu.pipeline_mode<synchronous>, transform_indices = @transform_2, window_bounds = array<i64: 1, 128>}, {pipeline_mode = #tpu.pipeline_mode<synchronous>, transform_indices = @transform_3, window_bounds = array<i64: 1, 128>}, {transform_indices = @transform_4, window_bounds = array<i64: 64, 128>}, {transform_indices = @transform_5, window_bounds = array<i64: 64, 128>}]} {
    %c2_i32 = arith.constant 2 : i32
    %0 = arith.remsi %arg1, %c2_i32 : i32
    %c0_i32 = arith.constant 0 : i32
    %1 = arith.cmpi eq, %arg1, %c0_i32 : i32
    %2 = arith.extui %1 : i1 to i32
    %c0_i32_0 = arith.constant 0 : i32
    %3 = arith.cmpi ne, %2, %c0_i32_0 : i32
    scf.if %3 {
      %c4_i32_121 = arith.constant 4 : i32
      %179 = arith.muli %arg1, %c4_i32_121 : i32
      %c0_i32_122 = arith.constant 0 : i32
      %c0_i32_123 = arith.constant 0 : i32
      %c0_i32_124 = arith.constant 0 : i32
      %c0_i32_125 = arith.constant 0 : i32
      %180 = tpu.memref_slice %arg2[%arg0, %179, %c0_i32_124, %c0_i32_125] : memref<2x18x18x128xf32, #tpu.memory_space<any>> -> memref<1x6x16x128xf32, #tpu.memory_space<any>>
      %181 = tpu.memref_squeeze %180 : memref<1x6x16x128xf32, #tpu.memory_space<any>> -> memref<6x16x128xf32, #tpu.memory_space<any>>
      %c0_i32_126 = arith.constant 0 : i32
      %c0_i32_127 = arith.constant 0 : i32
      %c0_i32_128 = arith.constant 0 : i32
      %182 = tpu.memref_slice %arg8[%0, %c0_i32_122, %c0_i32_126, %c0_i32_127, %c0_i32_128] : memref<2x3x6x16x128xf32, #tpu.memory_space<vmem>> -> memref<1x1x6x16x128xf32, #tpu.memory_space<vmem>>
      %183 = tpu.memref_squeeze %182 : memref<1x1x6x16x128xf32, #tpu.memory_space<vmem>> -> memref<6x16x128xf32, #tpu.memory_space<vmem>>
      %184 = tpu.memref_slice %arg9[%0, %c0_i32_123] : memref<2x3x!tpu.dma_semaphore, #tpu.memory_space<semaphore_mem>> -> memref<1x1x!tpu.dma_semaphore, #tpu.memory_space<semaphore_mem>>
      %185 = tpu.memref_squeeze %184 : memref<1x1x!tpu.dma_semaphore, #tpu.memory_space<semaphore_mem>> -> memref<!tpu.dma_semaphore, #tpu.memory_space<semaphore_mem>>
      tpu.enqueue_dma source(%181 : memref<6x16x128xf32, #tpu.memory_space<any>>) target(%183 : memref<6x16x128xf32, #tpu.memory_space<vmem>>) target_semaphore(%185 : memref<!tpu.dma_semaphore, #tpu.memory_space<semaphore_mem>>)
      %c4_i32_129 = arith.constant 4 : i32
      %186 = arith.muli %arg1, %c4_i32_129 : i32
      %c1_i32_130 = arith.constant 1 : i32
      %c1_i32_131 = arith.constant 1 : i32
      %c1_i32_132 = arith.constant 1 : i32
      %c0_i32_133 = arith.constant 0 : i32
      %187 = tpu.memref_slice %arg2[%arg0, %186, %c1_i32_132, %c0_i32_133] : memref<2x18x18x128xf32, #tpu.memory_space<any>> -> memref<1x6x16x128xf32, #tpu.memory_space<any>>
      %188 = tpu.memref_squeeze %187 : memref<1x6x16x128xf32, #tpu.memory_space<any>> -> memref<6x16x128xf32, #tpu.memory_space<any>>
      %c0_i32_134 = arith.constant 0 : i32
      %c0_i32_135 = arith.constant 0 : i32
      %c0_i32_136 = arith.constant 0 : i32
      %189 = tpu.memref_slice %arg8[%0, %c1_i32_130, %c0_i32_134, %c0_i32_135, %c0_i32_136] : memref<2x3x6x16x128xf32, #tpu.memory_space<vmem>> -> memref<1x1x6x16x128xf32, #tpu.memory_space<vmem>>
      %190 = tpu.memref_squeeze %189 : memref<1x1x6x16x128xf32, #tpu.memory_space<vmem>> -> memref<6x16x128xf32, #tpu.memory_space<vmem>>
      %191 = tpu.memref_slice %arg9[%0, %c1_i32_131] : memref<2x3x!tpu.dma_semaphore, #tpu.memory_space<semaphore_mem>> -> memref<1x1x!tpu.dma_semaphore, #tpu.memory_space<semaphore_mem>>
      %192 = tpu.memref_squeeze %191 : memref<1x1x!tpu.dma_semaphore, #tpu.memory_space<semaphore_mem>> -> memref<!tpu.dma_semaphore, #tpu.memory_space<semaphore_mem>>
      tpu.enqueue_dma source(%188 : memref<6x16x128xf32, #tpu.memory_space<any>>) target(%190 : memref<6x16x128xf32, #tpu.memory_space<vmem>>) target_semaphore(%192 : memref<!tpu.dma_semaphore, #tpu.memory_space<semaphore_mem>>)
      %c4_i32_137 = arith.constant 4 : i32
      %193 = arith.muli %arg1, %c4_i32_137 : i32
      %c2_i32_138 = arith.constant 2 : i32
      %c2_i32_139 = arith.constant 2 : i32
      %c2_i32_140 = arith.constant 2 : i32
      %c0_i32_141 = arith.constant 0 : i32
      %194 = tpu.memref_slice %arg2[%arg0, %193, %c2_i32_140, %c0_i32_141] : memref<2x18x18x128xf32, #tpu.memory_space<any>> -> memref<1x6x16x128xf32, #tpu.memory_space<any>>
      %195 = tpu.memref_squeeze %194 : memref<1x6x16x128xf32, #tpu.memory_space<any>> -> memref<6x16x128xf32, #tpu.memory_space<any>>
      %c0_i32_142 = arith.constant 0 : i32
      %c0_i32_143 = arith.constant 0 : i32
      %c0_i32_144 = arith.constant 0 : i32
      %196 = tpu.memref_slice %arg8[%0, %c2_i32_138, %c0_i32_142, %c0_i32_143, %c0_i32_144] : memref<2x3x6x16x128xf32, #tpu.memory_space<vmem>> -> memref<1x1x6x16x128xf32, #tpu.memory_space<vmem>>
      %197 = tpu.memref_squeeze %196 : memref<1x1x6x16x128xf32, #tpu.memory_space<vmem>> -> memref<6x16x128xf32, #tpu.memory_space<vmem>>
      %198 = tpu.memref_slice %arg9[%0, %c2_i32_139] : memref<2x3x!tpu.dma_semaphore, #tpu.memory_space<semaphore_mem>> -> memref<1x1x!tpu.dma_semaphore, #tpu.memory_space<semaphore_mem>>
      %199 = tpu.memref_squeeze %198 : memref<1x1x!tpu.dma_semaphore, #tpu.memory_space<semaphore_mem>> -> memref<!tpu.dma_semaphore, #tpu.memory_space<semaphore_mem>>
      tpu.enqueue_dma source(%195 : memref<6x16x128xf32, #tpu.memory_space<any>>) target(%197 : memref<6x16x128xf32, #tpu.memory_space<vmem>>) target_semaphore(%199 : memref<!tpu.dma_semaphore, #tpu.memory_space<semaphore_mem>>)
    } else {
    }
    %c1_i32 = arith.constant 1 : i32
    %4 = arith.addi %arg1, %c1_i32 : i32
    %c4_i32 = arith.constant 4 : i32
    %5 = arith.cmpi slt, %4, %c4_i32 : i32
    %6 = arith.extui %5 : i1 to i32
    %c0_i32_1 = arith.constant 0 : i32
    %7 = arith.cmpi ne, %6, %c0_i32_1 : i32
    scf.if %7 {
      %c1_i32_121 = arith.constant 1 : i32
      %179 = arith.addi %arg1, %c1_i32_121 : i32
      %c1_i32_122 = arith.constant 1 : i32
      %180 = arith.subi %c1_i32_122, %0 : i32
      %c4_i32_123 = arith.constant 4 : i32
      %181 = arith.muli %179, %c4_i32_123 : i32
      %c0_i32_124 = arith.constant 0 : i32
      %c0_i32_125 = arith.constant 0 : i32
      %c0_i32_126 = arith.constant 0 : i32
      %c0_i32_127 = arith.constant 0 : i32
      %182 = tpu.memref_slice %arg2[%arg0, %181, %c0_i32_126, %c0_i32_127] : memref<2x18x18x128xf32, #tpu.memory_space<any>> -> memref<1x6x16x128xf32, #tpu.memory_space<any>>
      %183 = tpu.memref_squeeze %182 : memref<1x6x16x128xf32, #tpu.memory_space<any>> -> memref<6x16x128xf32, #tpu.memory_space<any>>
      %c0_i32_128 = arith.constant 0 : i32
      %c0_i32_129 = arith.constant 0 : i32
      %c0_i32_130 = arith.constant 0 : i32
      %184 = tpu.memref_slice %arg8[%180, %c0_i32_124, %c0_i32_128, %c0_i32_129, %c0_i32_130] : memref<2x3x6x16x128xf32, #tpu.memory_space<vmem>> -> memref<1x1x6x16x128xf32, #tpu.memory_space<vmem>>
      %185 = tpu.memref_squeeze %184 : memref<1x1x6x16x128xf32, #tpu.memory_space<vmem>> -> memref<6x16x128xf32, #tpu.memory_space<vmem>>
      %186 = tpu.memref_slice %arg9[%180, %c0_i32_125] : memref<2x3x!tpu.dma_semaphore, #tpu.memory_space<semaphore_mem>> -> memref<1x1x!tpu.dma_semaphore, #tpu.memory_space<semaphore_mem>>
      %187 = tpu.memref_squeeze %186 : memref<1x1x!tpu.dma_semaphore, #tpu.memory_space<semaphore_mem>> -> memref<!tpu.dma_semaphore, #tpu.memory_space<semaphore_mem>>
      tpu.enqueue_dma source(%183 : memref<6x16x128xf32, #tpu.memory_space<any>>) target(%185 : memref<6x16x128xf32, #tpu.memory_space<vmem>>) target_semaphore(%187 : memref<!tpu.dma_semaphore, #tpu.memory_space<semaphore_mem>>)
      %c4_i32_131 = arith.constant 4 : i32
      %188 = arith.muli %179, %c4_i32_131 : i32
      %c1_i32_132 = arith.constant 1 : i32
      %c1_i32_133 = arith.constant 1 : i32
      %c1_i32_134 = arith.constant 1 : i32
      %c0_i32_135 = arith.constant 0 : i32
      %189 = tpu.memref_slice %arg2[%arg0, %188, %c1_i32_134, %c0_i32_135] : memref<2x18x18x128xf32, #tpu.memory_space<any>> -> memref<1x6x16x128xf32, #tpu.memory_space<any>>
      %190 = tpu.memref_squeeze %189 : memref<1x6x16x128xf32, #tpu.memory_space<any>> -> memref<6x16x128xf32, #tpu.memory_space<any>>
      %c0_i32_136 = arith.constant 0 : i32
      %c0_i32_137 = arith.constant 0 : i32
      %c0_i32_138 = arith.constant 0 : i32
      %191 = tpu.memref_slice %arg8[%180, %c1_i32_132, %c0_i32_136, %c0_i32_137, %c0_i32_138] : memref<2x3x6x16x128xf32, #tpu.memory_space<vmem>> -> memref<1x1x6x16x128xf32, #tpu.memory_space<vmem>>
      %192 = tpu.memref_squeeze %191 : memref<1x1x6x16x128xf32, #tpu.memory_space<vmem>> -> memref<6x16x128xf32, #tpu.memory_space<vmem>>
      %193 = tpu.memref_slice %arg9[%180, %c1_i32_133] : memref<2x3x!tpu.dma_semaphore, #tpu.memory_space<semaphore_mem>> -> memref<1x1x!tpu.dma_semaphore, #tpu.memory_space<semaphore_mem>>
      %194 = tpu.memref_squeeze %193 : memref<1x1x!tpu.dma_semaphore, #tpu.memory_space<semaphore_mem>> -> memref<!tpu.dma_semaphore, #tpu.memory_space<semaphore_mem>>
      tpu.enqueue_dma source(%190 : memref<6x16x128xf32, #tpu.memory_space<any>>) target(%192 : memref<6x16x128xf32, #tpu.memory_space<vmem>>) target_semaphore(%194 : memref<!tpu.dma_semaphore, #tpu.memory_space<semaphore_mem>>)
      %c4_i32_139 = arith.constant 4 : i32
      %195 = arith.muli %179, %c4_i32_139 : i32
      %c2_i32_140 = arith.constant 2 : i32
      %c2_i32_141 = arith.constant 2 : i32
      %c2_i32_142 = arith.constant 2 : i32
      %c0_i32_143 = arith.constant 0 : i32
      %196 = tpu.memref_slice %arg2[%arg0, %195, %c2_i32_142, %c0_i32_143] : memref<2x18x18x128xf32, #tpu.memory_space<any>> -> memref<1x6x16x128xf32, #tpu.memory_space<any>>
      %197 = tpu.memref_squeeze %196 : memref<1x6x16x128xf32, #tpu.memory_space<any>> -> memref<6x16x128xf32, #tpu.memory_space<any>>
      %c0_i32_144 = arith.constant 0 : i32
      %c0_i32_145 = arith.constant 0 : i32
      %c0_i32_146 = arith.constant 0 : i32
      %198 = tpu.memref_slice %arg8[%180, %c2_i32_140, %c0_i32_144, %c0_i32_145, %c0_i32_146] : memref<2x3x6x16x128xf32, #tpu.memory_space<vmem>> -> memref<1x1x6x16x128xf32, #tpu.memory_space<vmem>>
      %199 = tpu.memref_squeeze %198 : memref<1x1x6x16x128xf32, #tpu.memory_space<vmem>> -> memref<6x16x128xf32, #tpu.memory_space<vmem>>
      %200 = tpu.memref_slice %arg9[%180, %c2_i32_141] : memref<2x3x!tpu.dma_semaphore, #tpu.memory_space<semaphore_mem>> -> memref<1x1x!tpu.dma_semaphore, #tpu.memory_space<semaphore_mem>>
      %201 = tpu.memref_squeeze %200 : memref<1x1x!tpu.dma_semaphore, #tpu.memory_space<semaphore_mem>> -> memref<!tpu.dma_semaphore, #tpu.memory_space<semaphore_mem>>
      tpu.enqueue_dma source(%197 : memref<6x16x128xf32, #tpu.memory_space<any>>) target(%199 : memref<6x16x128xf32, #tpu.memory_space<vmem>>) target_semaphore(%201 : memref<!tpu.dma_semaphore, #tpu.memory_space<semaphore_mem>>)
    } else {
    }
    %c4_i32_2 = arith.constant 4 : i32
    %8 = arith.muli %arg1, %c4_i32_2 : i32
    %c0_i32_3 = arith.constant 0 : i32
    %c0_i32_4 = arith.constant 0 : i32
    %c0_i32_5 = arith.constant 0 : i32
    %c0_i32_6 = arith.constant 0 : i32
    %9 = tpu.memref_slice %arg2[%arg0, %8, %c0_i32_5, %c0_i32_6] : memref<2x18x18x128xf32, #tpu.memory_space<any>> -> memref<1x6x16x128xf32, #tpu.memory_space<any>>
    %10 = tpu.memref_squeeze %9 : memref<1x6x16x128xf32, #tpu.memory_space<any>> -> memref<6x16x128xf32, #tpu.memory_space<any>>
    %c0_i32_7 = arith.constant 0 : i32
    %c0_i32_8 = arith.constant 0 : i32
    %c0_i32_9 = arith.constant 0 : i32
    %11 = tpu.memref_slice %arg8[%0, %c0_i32_3, %c0_i32_7, %c0_i32_8, %c0_i32_9] : memref<2x3x6x16x128xf32, #tpu.memory_space<vmem>> -> memref<1x1x6x16x128xf32, #tpu.memory_space<vmem>>
    %12 = tpu.memref_squeeze %11 : memref<1x1x6x16x128xf32, #tpu.memory_space<vmem>> -> memref<6x16x128xf32, #tpu.memory_space<vmem>>
    %13 = tpu.memref_slice %arg9[%0, %c0_i32_4] : memref<2x3x!tpu.dma_semaphore, #tpu.memory_space<semaphore_mem>> -> memref<1x1x!tpu.dma_semaphore, #tpu.memory_space<semaphore_mem>>
    %14 = tpu.memref_squeeze %13 : memref<1x1x!tpu.dma_semaphore, #tpu.memory_space<semaphore_mem>> -> memref<!tpu.dma_semaphore, #tpu.memory_space<semaphore_mem>>
    tpu.wait_dma2 semaphore(%14 : memref<!tpu.dma_semaphore, #tpu.memory_space<semaphore_mem>>) src(%10 : memref<6x16x128xf32, #tpu.memory_space<any>>) dst(%12 : memref<6x16x128xf32, #tpu.memory_space<vmem>>)
    %c4_i32_10 = arith.constant 4 : i32
    %15 = arith.muli %arg1, %c4_i32_10 : i32
    %c1_i32_11 = arith.constant 1 : i32
    %c1_i32_12 = arith.constant 1 : i32
    %c1_i32_13 = arith.constant 1 : i32
    %c0_i32_14 = arith.constant 0 : i32
    %16 = tpu.memref_slice %arg2[%arg0, %15, %c1_i32_13, %c0_i32_14] : memref<2x18x18x128xf32, #tpu.memory_space<any>> -> memref<1x6x16x128xf32, #tpu.memory_space<any>>
    %17 = tpu.memref_squeeze %16 : memref<1x6x16x128xf32, #tpu.memory_space<any>> -> memref<6x16x128xf32, #tpu.memory_space<any>>
    %c0_i32_15 = arith.constant 0 : i32
    %c0_i32_16 = arith.constant 0 : i32
    %c0_i32_17 = arith.constant 0 : i32
    %18 = tpu.memref_slice %arg8[%0, %c1_i32_11, %c0_i32_15, %c0_i32_16, %c0_i32_17] : memref<2x3x6x16x128xf32, #tpu.memory_space<vmem>> -> memref<1x1x6x16x128xf32, #tpu.memory_space<vmem>>
    %19 = tpu.memref_squeeze %18 : memref<1x1x6x16x128xf32, #tpu.memory_space<vmem>> -> memref<6x16x128xf32, #tpu.memory_space<vmem>>
    %20 = tpu.memref_slice %arg9[%0, %c1_i32_12] : memref<2x3x!tpu.dma_semaphore, #tpu.memory_space<semaphore_mem>> -> memref<1x1x!tpu.dma_semaphore, #tpu.memory_space<semaphore_mem>>
    %21 = tpu.memref_squeeze %20 : memref<1x1x!tpu.dma_semaphore, #tpu.memory_space<semaphore_mem>> -> memref<!tpu.dma_semaphore, #tpu.memory_space<semaphore_mem>>
    tpu.wait_dma2 semaphore(%21 : memref<!tpu.dma_semaphore, #tpu.memory_space<semaphore_mem>>) src(%17 : memref<6x16x128xf32, #tpu.memory_space<any>>) dst(%19 : memref<6x16x128xf32, #tpu.memory_space<vmem>>)
    %c4_i32_18 = arith.constant 4 : i32
    %22 = arith.muli %arg1, %c4_i32_18 : i32
    %c2_i32_19 = arith.constant 2 : i32
    %c2_i32_20 = arith.constant 2 : i32
    %c2_i32_21 = arith.constant 2 : i32
    %c0_i32_22 = arith.constant 0 : i32
    %23 = tpu.memref_slice %arg2[%arg0, %22, %c2_i32_21, %c0_i32_22] : memref<2x18x18x128xf32, #tpu.memory_space<any>> -> memref<1x6x16x128xf32, #tpu.memory_space<any>>
    %24 = tpu.memref_squeeze %23 : memref<1x6x16x128xf32, #tpu.memory_space<any>> -> memref<6x16x128xf32, #tpu.memory_space<any>>
    %c0_i32_23 = arith.constant 0 : i32
    %c0_i32_24 = arith.constant 0 : i32
    %c0_i32_25 = arith.constant 0 : i32
    %25 = tpu.memref_slice %arg8[%0, %c2_i32_19, %c0_i32_23, %c0_i32_24, %c0_i32_25] : memref<2x3x6x16x128xf32, #tpu.memory_space<vmem>> -> memref<1x1x6x16x128xf32, #tpu.memory_space<vmem>>
    %26 = tpu.memref_squeeze %25 : memref<1x1x6x16x128xf32, #tpu.memory_space<vmem>> -> memref<6x16x128xf32, #tpu.memory_space<vmem>>
    %27 = tpu.memref_slice %arg9[%0, %c2_i32_20] : memref<2x3x!tpu.dma_semaphore, #tpu.memory_space<semaphore_mem>> -> memref<1x1x!tpu.dma_semaphore, #tpu.memory_space<semaphore_mem>>
    %28 = tpu.memref_squeeze %27 : memref<1x1x!tpu.dma_semaphore, #tpu.memory_space<semaphore_mem>> -> memref<!tpu.dma_semaphore, #tpu.memory_space<semaphore_mem>>
    tpu.wait_dma2 semaphore(%28 : memref<!tpu.dma_semaphore, #tpu.memory_space<semaphore_mem>>) src(%24 : memref<6x16x128xf32, #tpu.memory_space<any>>) dst(%26 : memref<6x16x128xf32, #tpu.memory_space<vmem>>)
    %29 = arith.index_cast %0 : i32 to index
    %c0 = arith.constant 0 : index
    %c0_26 = arith.constant 0 : index
    %c0_27 = arith.constant 0 : index
    %c0_28 = arith.constant 0 : index
    %30 = vector.load %arg8[%29, %c0, %c0_26, %c0_27, %c0_28] : memref<2x3x6x16x128xf32, #tpu.memory_space<vmem>>, vector<1x1x4x16x128xf32>
    %31 = vector.shape_cast %30 : vector<1x1x4x16x128xf32> to vector<4x16x128xf32>
    %32 = vector.shape_cast %31 : vector<4x16x128xf32> to vector<64x128xf32>
    %c0_29 = arith.constant 0 : index
    %c0_30 = arith.constant 0 : index
    %c0_31 = arith.constant 0 : index
    %33 = vector.load %arg3[%c0_29, %c0_30, %c0_31] : memref<9x128x128xf32, #tpu.memory_space<vmem>>, vector<1x128x128xf32>
    %34 = vector.shape_cast %33 : vector<1x128x128xf32> to vector<128x128xf32>
    %cst = arith.constant dense<0.000000e+00> : vector<64x128xf32>
    %35 = tpu.matmul %32, %34, %cst {dimension_numbers = #tpu.dot_dimension_numbers<[1], [0], [0], [1], [0, 0, 1, 1], [], []>} : vector<64x128xf32>, vector<128x128xf32>, vector<64x128xf32> -> vector<64x128xf32>
    %36 = arith.index_cast %0 : i32 to index
    %c1 = arith.constant 1 : index
    %c0_32 = arith.constant 0 : index
    %c0_33 = arith.constant 0 : index
    %c0_34 = arith.constant 0 : index
    %37 = vector.load %arg8[%36, %c1, %c0_32, %c0_33, %c0_34] : memref<2x3x6x16x128xf32, #tpu.memory_space<vmem>>, vector<1x1x4x16x128xf32>
    %38 = vector.shape_cast %37 : vector<1x1x4x16x128xf32> to vector<4x16x128xf32>
    %39 = vector.shape_cast %38 : vector<4x16x128xf32> to vector<64x128xf32>
    %c1_35 = arith.constant 1 : index
    %c0_36 = arith.constant 0 : index
    %c0_37 = arith.constant 0 : index
    %40 = vector.load %arg3[%c1_35, %c0_36, %c0_37] : memref<9x128x128xf32, #tpu.memory_space<vmem>>, vector<1x128x128xf32>
    %41 = vector.shape_cast %40 : vector<1x128x128xf32> to vector<128x128xf32>
    %cst_38 = arith.constant dense<0.000000e+00> : vector<64x128xf32>
    %42 = tpu.matmul %39, %41, %cst_38 {dimension_numbers = #tpu.dot_dimension_numbers<[1], [0], [0], [1], [0, 0, 1, 1], [], []>} : vector<64x128xf32>, vector<128x128xf32>, vector<64x128xf32> -> vector<64x128xf32>
    %43 = arith.addf %35, %42 : vector<64x128xf32>
    %44 = arith.index_cast %0 : i32 to index
    %c2 = arith.constant 2 : index
    %c0_39 = arith.constant 0 : index
    %c0_40 = arith.constant 0 : index
    %c0_41 = arith.constant 0 : index
    %45 = vector.load %arg8[%44, %c2, %c0_39, %c0_40, %c0_41] : memref<2x3x6x16x128xf32, #tpu.memory_space<vmem>>, vector<1x1x4x16x128xf32>
    %46 = vector.shape_cast %45 : vector<1x1x4x16x128xf32> to vector<4x16x128xf32>
    %47 = vector.shape_cast %46 : vector<4x16x128xf32> to vector<64x128xf32>
    %c2_42 = arith.constant 2 : index
    %c0_43 = arith.constant 0 : index
    %c0_44 = arith.constant 0 : index
    %48 = vector.load %arg3[%c2_42, %c0_43, %c0_44] : memref<9x128x128xf32, #tpu.memory_space<vmem>>, vector<1x128x128xf32>
    %49 = vector.shape_cast %48 : vector<1x128x128xf32> to vector<128x128xf32>
    %cst_45 = arith.constant dense<0.000000e+00> : vector<64x128xf32>
    %50 = tpu.matmul %47, %49, %cst_45 {dimension_numbers = #tpu.dot_dimension_numbers<[1], [0], [0], [1], [0, 0, 1, 1], [], []>} : vector<64x128xf32>, vector<128x128xf32>, vector<64x128xf32> -> vector<64x128xf32>
    %51 = arith.addf %43, %50 : vector<64x128xf32>
    %52 = arith.index_cast %0 : i32 to index
    %c0_46 = arith.constant 0 : index
    %c1_47 = arith.constant 1 : index
    %c0_48 = arith.constant 0 : index
    %c0_49 = arith.constant 0 : index
    %53 = vector.load %arg8[%52, %c0_46, %c1_47, %c0_48, %c0_49] : memref<2x3x6x16x128xf32, #tpu.memory_space<vmem>>, vector<1x1x4x16x128xf32>
    %54 = vector.shape_cast %53 : vector<1x1x4x16x128xf32> to vector<4x16x128xf32>
    %55 = vector.shape_cast %54 : vector<4x16x128xf32> to vector<64x128xf32>
    %c3 = arith.constant 3 : index
    %c0_50 = arith.constant 0 : index
    %c0_51 = arith.constant 0 : index
    %56 = vector.load %arg3[%c3, %c0_50, %c0_51] : memref<9x128x128xf32, #tpu.memory_space<vmem>>, vector<1x128x128xf32>
    %57 = vector.shape_cast %56 : vector<1x128x128xf32> to vector<128x128xf32>
    %cst_52 = arith.constant dense<0.000000e+00> : vector<64x128xf32>
    %58 = tpu.matmul %55, %57, %cst_52 {dimension_numbers = #tpu.dot_dimension_numbers<[1], [0], [0], [1], [0, 0, 1, 1], [], []>} : vector<64x128xf32>, vector<128x128xf32>, vector<64x128xf32> -> vector<64x128xf32>
    %59 = arith.addf %51, %58 : vector<64x128xf32>
    %60 = arith.index_cast %0 : i32 to index
    %c1_53 = arith.constant 1 : index
    %c1_54 = arith.constant 1 : index
    %c0_55 = arith.constant 0 : index
    %c0_56 = arith.constant 0 : index
    %61 = vector.load %arg8[%60, %c1_53, %c1_54, %c0_55, %c0_56] : memref<2x3x6x16x128xf32, #tpu.memory_space<vmem>>, vector<1x1x4x16x128xf32>
    %62 = vector.shape_cast %61 : vector<1x1x4x16x128xf32> to vector<4x16x128xf32>
    %63 = vector.shape_cast %62 : vector<4x16x128xf32> to vector<64x128xf32>
    %c4 = arith.constant 4 : index
    %c0_57 = arith.constant 0 : index
    %c0_58 = arith.constant 0 : index
    %64 = vector.load %arg3[%c4, %c0_57, %c0_58] : memref<9x128x128xf32, #tpu.memory_space<vmem>>, vector<1x128x128xf32>
    %65 = vector.shape_cast %64 : vector<1x128x128xf32> to vector<128x128xf32>
    %cst_59 = arith.constant dense<0.000000e+00> : vector<64x128xf32>
    %66 = tpu.matmul %63, %65, %cst_59 {dimension_numbers = #tpu.dot_dimension_numbers<[1], [0], [0], [1], [0, 0, 1, 1], [], []>} : vector<64x128xf32>, vector<128x128xf32>, vector<64x128xf32> -> vector<64x128xf32>
    %67 = arith.addf %59, %66 : vector<64x128xf32>
    %68 = arith.index_cast %0 : i32 to index
    %c2_60 = arith.constant 2 : index
    %c1_61 = arith.constant 1 : index
    %c0_62 = arith.constant 0 : index
    %c0_63 = arith.constant 0 : index
    %69 = vector.load %arg8[%68, %c2_60, %c1_61, %c0_62, %c0_63] : memref<2x3x6x16x128xf32, #tpu.memory_space<vmem>>, vector<1x1x4x16x128xf32>
    %70 = vector.shape_cast %69 : vector<1x1x4x16x128xf32> to vector<4x16x128xf32>
    %71 = vector.shape_cast %70 : vector<4x16x128xf32> to vector<64x128xf32>
    %c5 = arith.constant 5 : index
    %c0_64 = arith.constant 0 : index
    %c0_65 = arith.constant 0 : index
    %72 = vector.load %arg3[%c5, %c0_64, %c0_65] : memref<9x128x128xf32, #tpu.memory_space<vmem>>, vector<1x128x128xf32>
    %73 = vector.shape_cast %72 : vector<1x128x128xf32> to vector<128x128xf32>
    %cst_66 = arith.constant dense<0.000000e+00> : vector<64x128xf32>
    %74 = tpu.matmul %71, %73, %cst_66 {dimension_numbers = #tpu.dot_dimension_numbers<[1], [0], [0], [1], [0, 0, 1, 1], [], []>} : vector<64x128xf32>, vector<128x128xf32>, vector<64x128xf32> -> vector<64x128xf32>
    %75 = arith.addf %67, %74 : vector<64x128xf32>
    %76 = arith.index_cast %0 : i32 to index
    %c0_67 = arith.constant 0 : index
    %c2_68 = arith.constant 2 : index
    %c0_69 = arith.constant 0 : index
    %c0_70 = arith.constant 0 : index
    %77 = vector.load %arg8[%76, %c0_67, %c2_68, %c0_69, %c0_70] : memref<2x3x6x16x128xf32, #tpu.memory_space<vmem>>, vector<1x1x4x16x128xf32>
    %78 = vector.shape_cast %77 : vector<1x1x4x16x128xf32> to vector<4x16x128xf32>
    %79 = vector.shape_cast %78 : vector<4x16x128xf32> to vector<64x128xf32>
    %c6 = arith.constant 6 : index
    %c0_71 = arith.constant 0 : index
    %c0_72 = arith.constant 0 : index
    %80 = vector.load %arg3[%c6, %c0_71, %c0_72] : memref<9x128x128xf32, #tpu.memory_space<vmem>>, vector<1x128x128xf32>
    %81 = vector.shape_cast %80 : vector<1x128x128xf32> to vector<128x128xf32>
    %cst_73 = arith.constant dense<0.000000e+00> : vector<64x128xf32>
    %82 = tpu.matmul %79, %81, %cst_73 {dimension_numbers = #tpu.dot_dimension_numbers<[1], [0], [0], [1], [0, 0, 1, 1], [], []>} : vector<64x128xf32>, vector<128x128xf32>, vector<64x128xf32> -> vector<64x128xf32>
    %83 = arith.addf %75, %82 : vector<64x128xf32>
    %84 = arith.index_cast %0 : i32 to index
    %c1_74 = arith.constant 1 : index
    %c2_75 = arith.constant 2 : index
    %c0_76 = arith.constant 0 : index
    %c0_77 = arith.constant 0 : index
    %85 = vector.load %arg8[%84, %c1_74, %c2_75, %c0_76, %c0_77] : memref<2x3x6x16x128xf32, #tpu.memory_space<vmem>>, vector<1x1x4x16x128xf32>
    %86 = vector.shape_cast %85 : vector<1x1x4x16x128xf32> to vector<4x16x128xf32>
    %87 = vector.shape_cast %86 : vector<4x16x128xf32> to vector<64x128xf32>
    %c7 = arith.constant 7 : index
    %c0_78 = arith.constant 0 : index
    %c0_79 = arith.constant 0 : index
    %88 = vector.load %arg3[%c7, %c0_78, %c0_79] : memref<9x128x128xf32, #tpu.memory_space<vmem>>, vector<1x128x128xf32>
    %89 = vector.shape_cast %88 : vector<1x128x128xf32> to vector<128x128xf32>
    %cst_80 = arith.constant dense<0.000000e+00> : vector<64x128xf32>
    %90 = tpu.matmul %87, %89, %cst_80 {dimension_numbers = #tpu.dot_dimension_numbers<[1], [0], [0], [1], [0, 0, 1, 1], [], []>} : vector<64x128xf32>, vector<128x128xf32>, vector<64x128xf32> -> vector<64x128xf32>
    %91 = arith.addf %83, %90 : vector<64x128xf32>
    %92 = arith.index_cast %0 : i32 to index
    %c2_81 = arith.constant 2 : index
    %c2_82 = arith.constant 2 : index
    %c0_83 = arith.constant 0 : index
    %c0_84 = arith.constant 0 : index
    %93 = vector.load %arg8[%92, %c2_81, %c2_82, %c0_83, %c0_84] : memref<2x3x6x16x128xf32, #tpu.memory_space<vmem>>, vector<1x1x4x16x128xf32>
    %94 = vector.shape_cast %93 : vector<1x1x4x16x128xf32> to vector<4x16x128xf32>
    %95 = vector.shape_cast %94 : vector<4x16x128xf32> to vector<64x128xf32>
    %c8 = arith.constant 8 : index
    %c0_85 = arith.constant 0 : index
    %c0_86 = arith.constant 0 : index
    %96 = vector.load %arg3[%c8, %c0_85, %c0_86] : memref<9x128x128xf32, #tpu.memory_space<vmem>>, vector<1x128x128xf32>
    %97 = vector.shape_cast %96 : vector<1x128x128xf32> to vector<128x128xf32>
    %cst_87 = arith.constant dense<0.000000e+00> : vector<64x128xf32>
    %98 = tpu.matmul %95, %97, %cst_87 {dimension_numbers = #tpu.dot_dimension_numbers<[1], [0], [0], [1], [0, 0, 1, 1], [], []>} : vector<64x128xf32>, vector<128x128xf32>, vector<64x128xf32> -> vector<64x128xf32>
    %99 = arith.addf %91, %98 : vector<64x128xf32>
    %c0_88 = arith.constant 0 : index
    %c0_89 = arith.constant 0 : index
    %100 = vector.load %arg4[%c0_88, %c0_89] : memref<1x128xf32, #tpu.memory_space<vmem>>, vector<1x128xf32>
    %c0_90 = arith.constant 0 : index
    %c0_91 = arith.constant 0 : index
    %101 = vector.load %arg5[%c0_90, %c0_91] : memref<1x128xf32, #tpu.memory_space<vmem>>, vector<1x128xf32>
    %102 = tpu.iota {dimensions = array<i32: 1>} : vector<64x128xi32>
    %c4_i32_92 = arith.constant 4 : i32
    %103 = vector.broadcast %c4_i32_92 : i32 to vector<64x128xi32>
    %104 = arith.cmpi slt, %102, %103 : vector<64x128xi32>
    %cst_93 = arith.constant 0.000000e+00 : f32
    %105 = vector.broadcast %cst_93 : f32 to vector<64x128xf32>
    %106 = arith.select %104, %99, %105 : vector<64x128xi1>, vector<64x128xf32>
    %cst_94 = arith.constant dense<0.000000e+00> : vector<64xf32>
    %107 = vector.multi_reduction <add>, %106, %cst_94 [1] : vector<64x128xf32> to vector<64xf32>
    %108 = vector.shape_cast %107 : vector<64xf32> to vector<64x1xf32>
    %cst_95 = arith.constant 2.500000e-01 : f32
    %109 = vector.broadcast %cst_95 : f32 to vector<64x1xf32>
    %110 = arith.mulf %108, %109 : vector<64x1xf32>
    %111 = vector.broadcast %110 : vector<64x1xf32> to vector<64x128xf32>
    %112 = arith.subf %99, %111 : vector<64x128xf32>
    %cst_96 = arith.constant 0.000000e+00 : f32
    %113 = vector.broadcast %cst_96 : f32 to vector<64x128xf32>
    %114 = arith.select %104, %112, %113 : vector<64x128xi1>, vector<64x128xf32>
    %115 = arith.mulf %114, %114 : vector<64x128xf32>
    %cst_97 = arith.constant dense<0.000000e+00> : vector<64xf32>
    %116 = vector.multi_reduction <add>, %115, %cst_97 [1] : vector<64x128xf32> to vector<64xf32>
    %117 = vector.shape_cast %116 : vector<64xf32> to vector<64x1xf32>
    %cst_98 = arith.constant 2.500000e-01 : f32
    %118 = vector.broadcast %cst_98 : f32 to vector<64x1xf32>
    %119 = arith.mulf %117, %118 : vector<64x1xf32>
    %cst_99 = arith.constant 9.99999997E-7 : f32
    %120 = vector.broadcast %cst_99 : f32 to vector<64x1xf32>
    %121 = arith.addf %119, %120 : vector<64x1xf32>
    %122 = math.rsqrt %121 : vector<64x1xf32>
    %123 = vector.broadcast %122 : vector<64x1xf32> to vector<64x128xf32>
    %124 = arith.mulf %114, %123 : vector<64x128xf32>
    %125 = vector.broadcast %100 : vector<1x128xf32> to vector<64x128xf32>
    %126 = arith.mulf %124, %125 : vector<64x128xf32>
    %127 = vector.broadcast %101 : vector<1x128xf32> to vector<64x128xf32>
    %128 = arith.addf %126, %127 : vector<64x128xf32>
    %c0_100 = arith.constant 0 : index
    %c0_101 = arith.constant 0 : index
    %129 = vector.load %arg6[%c0_100, %c0_101] : memref<64x128xf32, #tpu.memory_space<vmem>>, vector<64x128xf32>
    %130 = arith.addf %128, %129 : vector<64x128xf32>
    %cst_102 = arith.constant 5.000000e-01 : f32
    %131 = vector.broadcast %cst_102 : f32 to vector<64x128xf32>
    %132 = arith.mulf %131, %130 : vector<64x128xf32>
    %cst_103 = arith.constant 0.707106769 : f32
    %133 = vector.broadcast %cst_103 : f32 to vector<64x128xf32>
    %134 = arith.mulf %130, %133 : vector<64x128xf32>
    %cst_104 = arith.constant -4.000000e+00 : f32
    %cst_105 = arith.constant 4.000000e+00 : f32
    %135 = vector.broadcast %cst_104 : f32 to vector<64x128xf32>
    %136 = arith.maximumf %135, %134 : vector<64x128xf32>
    %137 = vector.broadcast %cst_105 : f32 to vector<64x128xf32>
    %138 = arith.minimumf %137, %136 : vector<64x128xf32>
    %139 = arith.mulf %138, %138 : vector<64x128xf32>
    %cst_106 = arith.constant -2.72614237E-10 : f32
    %140 = vector.broadcast %cst_106 : f32 to vector<64x128xf32>
    %141 = arith.mulf %140, %139 : vector<64x128xf32>
    %cst_107 = arith.constant 2.77068146E-8 : f32
    %142 = vector.broadcast %cst_107 : f32 to vector<64x128xf32>
    %143 = arith.addf %141, %142 : vector<64x128xf32>
    %144 = arith.mulf %143, %139 : vector<64x128xf32>
    %cst_108 = arith.constant -2.10102394E-6 : f32
    %145 = vector.broadcast %cst_108 : f32 to vector<64x128xf32>
    %146 = arith.addf %144, %145 : vector<64x128xf32>
    %147 = arith.mulf %146, %139 : vector<64x128xf32>
    %cst_109 = arith.constant -5.69250624E-5 : f32
    %148 = vector.broadcast %cst_109 : f32 to vector<64x128xf32>
    %149 = arith.addf %147, %148 : vector<64x128xf32>
    %150 = arith.mulf %149, %139 : vector<64x128xf32>
    %cst_110 = arith.constant -7.34990637E-4 : f32
    %151 = vector.broadcast %cst_110 : f32 to vector<64x128xf32>
    %152 = arith.addf %150, %151 : vector<64x128xf32>
    %153 = arith.mulf %152, %139 : vector<64x128xf32>
    %cst_111 = arith.constant -2.954600e-03 : f32
    %154 = vector.broadcast %cst_111 : f32 to vector<64x128xf32>
    %155 = arith.addf %153, %154 : vector<64x128xf32>
    %156 = arith.mulf %155, %139 : vector<64x128xf32>
    %cst_112 = arith.constant -0.0160960332 : f32
    %157 = vector.broadcast %cst_112 : f32 to vector<64x128xf32>
    %158 = arith.addf %156, %157 : vector<64x128xf32>
    %159 = arith.mulf %158, %138 : vector<64x128xf32>
    %cst_113 = arith.constant -1.45660715E-5 : f32
    %160 = vector.broadcast %cst_113 : f32 to vector<64x128xf32>
    %161 = arith.mulf %160, %139 : vector<64x128xf32>
    %cst_114 = arith.constant -2.13374049E-4 : f32
    %162 = vector.broadcast %cst_114 : f32 to vector<64x128xf32>
    %163 = arith.addf %161, %162 : vector<64x128xf32>
    %164 = arith.mulf %163, %139 : vector<64x128xf32>
    %cst_115 = arith.constant -0.00168282702 : f32
    %165 = vector.broadcast %cst_115 : f32 to vector<64x128xf32>
    %166 = arith.addf %164, %165 : vector<64x128xf32>
    %167 = arith.mulf %166, %139 : vector<64x128xf32>
    %cst_116 = arith.constant -0.00737332925 : f32
    %168 = vector.broadcast %cst_116 : f32 to vector<64x128xf32>
    %169 = arith.addf %167, %168 : vector<64x128xf32>
    %170 = arith.mulf %169, %139 : vector<64x128xf32>
    %cst_117 = arith.constant -0.0142647391 : f32
    %171 = vector.broadcast %cst_117 : f32 to vector<64x128xf32>
    %172 = arith.addf %170, %171 : vector<64x128xf32>
    %173 = tpu.reciprocal %172 {approx = true} : vector<64x128xf32> -> vector<64x128xf32>
    %174 = arith.mulf %159, %173 : vector<64x128xf32>
    %cst_118 = arith.constant 1.000000e+00 : f32
    %175 = vector.broadcast %cst_118 : f32 to vector<64x128xf32>
    %176 = arith.addf %175, %174 : vector<64x128xf32>
    %177 = arith.mulf %132, %176 : vector<64x128xf32>
    %c0_119 = arith.constant 0 : index
    %c0_120 = arith.constant 0 : index
    %178 = vector.load %arg7[%c0_119, %c0_120] : memref<64x128xf32, #tpu.memory_space<vmem>>, vector<64x128xf32>
    tpu.vector_store %arg7[%c0_119, %c0_120], %177 {strides = array<i32>} : memref<64x128xf32, #tpu.memory_space<vmem>>, vector<64x128xf32>,
    return
  }
  func.func @transform_1(%arg0: i32, %arg1: i32) -> (i32, i32, i32) {
    %c0_i32 = arith.constant 0 : i32
    %c0_i32_0 = arith.constant 0 : i32
    %c0_i32_1 = arith.constant 0 : i32
    %c0_i32_2 = arith.constant 0 : i32
    return %c0_i32, %c0_i32_0, %c0_i32_1 : i32, i32, i32
  }
  func.func @transform_2(%arg0: i32, %arg1: i32) -> (i32, i32) {
    %c0_i32 = arith.constant 0 : i32
    %c0_i32_0 = arith.constant 0 : i32
    %c0_i32_1 = arith.constant 0 : i32
    return %c0_i32, %c0_i32_0 : i32, i32
  }
  func.func @transform_3(%arg0: i32, %arg1: i32) -> (i32, i32) {
    %c0_i32 = arith.constant 0 : i32
    %c0_i32_0 = arith.constant 0 : i32
    %c0_i32_1 = arith.constant 0 : i32
    return %c0_i32, %c0_i32_0 : i32, i32
  }
  func.func @transform_4(%arg0: i32, %arg1: i32) -> (i32, i32) {
    %c4_i32 = arith.constant 4 : i32
    %0 = arith.muli %arg0, %c4_i32 : i32
    %1 = arith.addi %0, %arg1 : i32
    %c0_i32 = arith.constant 0 : i32
    %c0_i32_0 = arith.constant 0 : i32
    return %1, %c0_i32 : i32, i32
  }
  func.func @transform_5(%arg0: i32, %arg1: i32) -> (i32, i32) {
    %c4_i32 = arith.constant 4 : i32
    %0 = arith.muli %arg0, %c4_i32 : i32
    %1 = arith.addi %0, %arg1 : i32
    %c0_i32 = arith.constant 0 : i32
    %c0_i32_0 = arith.constant 0 : i32
    return %1, %c0_i32 : i32, i32
  }
}

</mosaic_0001>

<llo_original>
// kernel: mink_next_block.3
$region0: #{mink_next_block.3}
  #allocation0 [shape = 'u32[]', space=smem, size = 0x4, offset = 0x4, fixed_abs, tag = 'smem constant byte address 0x4 - core index']
  #allocation1 [shape = 'u32[144,128]{1,0:T(1,128)}', space=vmem, size = 0x12000, scoped, tag = 'internal scratch']
  %s0 = inlined_call_operand.vmem [shape: f32[512,128], index: 0, kind: input, shape index: {}]
  %s1 = inlined_call_operand.vmem [shape: f32[128,128], index: 1, kind: input, shape index: {}]
  %s2 = inlined_call_operand.vmem [shape: f32[1,128], index: 2, kind: input, shape index: {}]
  %s3 = inlined_call_operand.vmem [shape: f32[1,128], index: 3, kind: input, shape index: {}]
  %s4 = inlined_call_operand.vmem [shape: f32[512,128], index: 4, kind: output, shape index: {}]
  %s5 = sld [smem:[#allocation0]]
  $region49: #{mink_next_block.3} parent=0
    _
  %s7 = ssub.s32 1, %s5
  %s8 = scalar_select 0, %s7, %s5
  loop: start=0, step=1, limit=10
  $region2: #{mink_next_block.3} parent=0 // loop_pre_header
    _
  $region3: #{mink_next_block.3} parent=0 // loop_header
    %s10 = sphi 0, %s14
    %p11 = scmp.ge.s32.totalorder %s10, 10
    %s17 = sphi 0, %s29
    %s18 = sphi 0, %s25
    %s19 = sphi 0, %s17
    %s20 = sphi 0, %s18
    %s21 = sphi 0, %s19
    %s22 = sphi 0, %s20
    %s36 = sphi 0, %s38
    %s39 = sphi 0, %s36
    %s40 = sphi 0, %s39
    %s56 = sphi 0, %s40
    %s60 = sphi 0, %s60
    %s62 = sphi 0, %s60
    %s63 = sphi 0, %s62
    %s77 = sphi 0, %s63
    %s81 = sphi 0, %s81
    %s83 = sphi 0, %s81
    %s84 = sphi 0, %s83
    %s98 = sphi 0, %s84
    %s102 = sphi 0, %s102
    %s104 = sphi 0, %s102
    %s105 = sphi 0, %s104
    %s119 = sphi 0, %s105
    %s129 = sphi 0, %s131
    %s132 = sphi 0, %s129
    %s133 = sphi 0, %s132
    %s149 = sphi 0, %s133
  $region4: #{mink_next_block.3} parent=0 // loop_header_branch
    %13 = sbr.rel (%p11) target = $region8
  $region5: #{mink_next_block.3} parent=0 // loop_body
    %s15 = ssub.s32 %s10, 1
    %s16 = ssub.s32 %s10, 2
    %s23 = sadd.s32 1, %s18
    %p24 = scmp.ge.s32.totalorder %s23, 4
    %s25 = scalar_select %p24, 0, %s23
    %s26 = sadd.s32 1, %s17
    %s27 = scalar_select %p24, %s26, %s17
    %p28 = scmp.ge.s32.totalorder %s27, 2
    %s29 = scalar_select %p28, 0, %s27
    %s30 = smul.u32 %s17, 4
    %s31 = sadd.s32 %s30, %s18
    %s32 = smul.u32 %s29, 4
    %s33 = sadd.s32 %s32, %s25
    %s34 = ssub.s32 %s31, %s33
    %p35 = scmp.eq.s32.totalorder %s34, 0
    %s37 = sadd.s32 %s36, 1
    %s38 = scalar_select %p35, %s36, %s37
    %p41 = pneg %p35
    %p42 = scmp.eq.s32.totalorder %s10, 7
    %p43 = por %p41, %p42
    %p44 = scmp.ne.s32.totalorder %s36, %s39
    %p45 = scmp.eq.s32.totalorder %s10, 0
    %p46 = por %p44, %p45
    %p47 = scmp.ne.s32.totalorder %s36, %s39
    %p48 = scmp.eq.s32.totalorder %s15, 7
    %p49 = por %p47, %p48
    %p50 = scmp.ne.s32.totalorder %s39, %s40
    %p51 = scmp.eq.s32.totalorder %s15, 0
    %p52 = por %p50, %p51
    %p53 = scmp.ne.s32.totalorder %s39, %s40
    %p54 = scmp.eq.s32.totalorder %s16, 7
    %p55 = por %p53, %p54
    %p57 = scmp.ne.s32.totalorder %s40, %s56
    %p58 = scmp.eq.s32.totalorder %s16, 0
    %p59 = por %p57, %p58
    %s61 = sadd.s32 %s60, 1
    %p64 = scmp.eq.s32.totalorder %s10, 7
    %p65 = scmp.ne.s32.totalorder %s60, %s62
    %p66 = scmp.eq.s32.totalorder %s10, 0
    %p67 = por %p65, %p66
    %p68 = scmp.ne.s32.totalorder %s60, %s62
    %p69 = scmp.eq.s32.totalorder %s15, 7
    %p70 = por %p68, %p69
    %p71 = scmp.ne.s32.totalorder %s62, %s63
    %p72 = scmp.eq.s32.totalorder %s15, 0
    %p73 = por %p71, %p72
    %p74 = scmp.ne.s32.totalorder %s62, %s63
    %p75 = scmp.eq.s32.totalorder %s16, 7
    %p76 = por %p74, %p75
    %p78 = scmp.ne.s32.totalorder %s63, %s77
    %p79 = scmp.eq.s32.totalorder %s16, 0
    %p80 = por %p78, %p79
    %s82 = sadd.s32 %s81, 1
    %p85 = scmp.eq.s32.totalorder %s10, 7
    %p86 = scmp.ne.s32.totalorder %s81, %s83
    %p87 = scmp.eq.s32.totalorder %s10, 0
    %p88 = por %p86, %p87
    %p89 = scmp.ne.s32.totalorder %s81, %s83
    %p90 = scmp.eq.s32.totalorder %s15, 7
    %p91 = por %p89, %p90
    %p92 = scmp.ne.s32.totalorder %s83, %s84
    %p93 = scmp.eq.s32.totalorder %s15, 0
    %p94 = por %p92, %p93
    %p95 = scmp.ne.s32.totalorder %s83, %s84
    %p96 = scmp.eq.s32.totalorder %s16, 7
    %p97 = por %p95, %p96
    %p99 = scmp.ne.s32.totalorder %s84, %s98
    %p100 = scmp.eq.s32.totalorder %s16, 0
    %p101 = por %p99, %p100
    %s103 = sadd.s32 %s102, 1
    %p106 = scmp.eq.s32.totalorder %s10, 7
    %p107 = scmp.ne.s32.totalorder %s102, %s104
    %p108 = scmp.eq.s32.totalorder %s10, 0
    %p109 = por %p107, %p108
    %p110 = scmp.ne.s32.totalorder %s102, %s104
    %p111 = scmp.eq.s32.totalorder %s15, 7
    %p112 = por %p110, %p111
    %p113 = scmp.ne.s32.totalorder %s104, %s105
    %p114 = scmp.eq.s32.totalorder %s15, 0
    %p115 = por %p113, %p114
    %p116 = scmp.ne.s32.totalorder %s104, %s105
    %p117 = scmp.eq.s32.totalorder %s16, 7
    %p118 = por %p116, %p117
    %p120 = scmp.ne.s32.totalorder %s105, %s119
    %p121 = scmp.eq.s32.totalorder %s16, 0
    %p122 = por %p120, %p121
    %s123 = smul.u32 %s17, 4
    %s124 = sadd.s32 %s123, %s18
    %s125 = smul.u32 %s29, 4
    %s126 = sadd.s32 %s125, %s25
    %s127 = ssub.s32 %s124, %s126
    %p128 = scmp.eq.s32.totalorder %s127, 0
    %s130 = sadd.s32 %s129, 1
    %s131 = scalar_select %p128, %s129, %s130
    %p134 = pneg %p128
    %p135 = scmp.eq.s32.totalorder %s10, 7
    %p136 = por %p134, %p135
    %p137 = scmp.ne.s32.totalorder %s129, %s132
    %p138 = scmp.eq.s32.totalorder %s10, 0
    %p139 = por %p137, %p138
    %p140 = scmp.ne.s32.totalorder %s129, %s132
    %p141 = scmp.eq.s32.totalorder %s15, 7
    %p142 = por %p140, %p141
    %p143 = scmp.ne.s32.totalorder %s132, %s133
    %p144 = scmp.eq.s32.totalorder %s15, 0
    %p145 = por %p143, %p144
    %p146 = scmp.ne.s32.totalorder %s132, %s133
    %p147 = scmp.eq.s32.totalorder %s16, 7
    %p148 = por %p146, %p147
    %p150 = scmp.ne.s32.totalorder %s133, %s149
    %p151 = scmp.eq.s32.totalorder %s16, 0
    %p152 = por %p150, %p151
    %p153 = scmp.le.s32.totalorder 1, %s10
    %p154 = scmp.lt.s32.totalorder %s10, 9
    %p155 = pnand %p153, %p154
    %p156 = pneg %p155
    // Predicated region
    $region9: #{mink_next_block.3} parent=5 // pred_check
      _
    $region10: #{mink_next_block.3} parent=5 // pred_check_branch
      %158 = sbr.rel (%p155) target = $region12
    $region11: #{mink_next_block.3} parent=5 // pred_region
      %s159 = ssub.s32 %s10, 1
      // Predicated region
      $region13: #{mink_next_block.3} parent=11 // pred_check
        %p160 = pneg %p73
      $region14: #{mink_next_block.3} parent=11 // pred_check_branch
        %162 = sbr.rel (%p160) target = $region16
      $region15: #{mink_next_block.3} parent=11 // pred_region
        _
      $region16: #{mink_next_block.3} parent=11 // pred_fallthru
        _
      // Predicated region
      $region17: #{mink_next_block.3} parent=11 // pred_check
        %p163 = pneg %p94
      $region18: #{mink_next_block.3} parent=11 // pred_check_branch
        %165 = sbr.rel (%p163) target = $region20
      $region19: #{mink_next_block.3} parent=11 // pred_region
        _
      $region20: #{mink_next_block.3} parent=11 // pred_fallthru
        _
      // Predicated region
      $region21: #{mink_next_block.3} parent=11 // pred_check
        %p166 = pneg %p115
      $region22: #{mink_next_block.3} parent=11 // pred_check_branch
        %168 = sbr.rel (%p166) target = $region24
      $region23: #{mink_next_block.3} parent=11 // pred_region
        _
      $region24: #{mink_next_block.3} parent=11 // pred_fallthru
        _
    $region12: #{mink_next_block.3} parent=5 // pred_fallthru
      _
    %p169 = scmp.lt.s32.totalorder %s10, 8
    // Predicated region
    $region25: #{mink_next_block.3} parent=5 // pred_check
      %p170 = pneg %p169
    $region26: #{mink_next_block.3} parent=5 // pred_check_branch
      %172 = sbr.rel (%p170) target = $region28
    $region27: #{mink_next_block.3} parent=5 // pred_region
      // Predicated region
      $region29: #{mink_next_block.3} parent=27 // pred_check
        %p173 = pneg %p46
      $region30: #{mink_next_block.3} parent=27 // pred_check_branch
        %175 = sbr.rel (%p173) target = $region32
      $region31: #{mink_next_block.3} parent=27 // pred_region
        %s176 = smul.u32 %s17, 4
        %s177 = sadd.s32 %s176, %s18
        %s178 = smul.u32 8, %s177
        %p179 = scmp.lt.s32.totalorder %s178, 63
        %s180 = scalar_select %p179, %s178, 63
        %s181 = smul.addr %s180, 8
        %s182 = scalar_lea.vmem %s0, %s181
        %s183 = smul.u32 %s17, 4
        %s184 = sadd.s32 %s183, %s18
        %s185 = smul.u32 8, %s184
      $region32: #{mink_next_block.3} parent=27 // pred_fallthru
        _
    $region28: #{mink_next_block.3} parent=5 // pred_fallthru
      _
    %p186 = scmp.le.s32.totalorder 1, %s10
    %p187 = scmp.lt.s32.totalorder %s10, 9
    %p188 = pnand %p186, %p187
    %p189 = pneg %p188
    // Predicated region
    $region33: #{mink_next_block.3} parent=5 // pred_check
      _
    $region34: #{mink_next_block.3} parent=5 // pred_check_branch
      %191 = sbr.rel (%p188) target = $region36
    $region35: #{mink_next_block.3} parent=5 // pred_region
      %s192 = ssub.s32 %s10, 1
      %s193 = smul.u32 %s19, 4
      %s194 = sadd.s32 %s193, %s20
      %s195 = smul.u32 8, %s194
      %p196 = scmp.lt.s32.totalorder %s195, 63
      %s197 = scalar_select %p196, %s195, 63
      %s198 = smul.addr %s197, 8
      %s199 = scalar_lea.vmem %s0, %s198
      %p200 = pneg %p52
      %p201 = pneg %p49
      %p202 = pneg %p73
      %p203 = pneg %p70
      %p204 = pneg %p94
      %p205 = pneg %p91
      %p206 = pneg %p115
      %p207 = pneg %p112
      %p208 = pneg %p145
      %p209 = pneg %p142
      %s210 = smul.u32 %s19, 4
      %s211 = sadd.s32 %s210, %s20
      %s212 = smul.u32 8, %s211
      %p213 = scmp.lt.s32.totalorder %s212, 63
      %s214 = scalar_select %p213, %s212, 63
      %s215 = smul.addr %s214, 8
      %s216 = scalar_lea.vmem %s4, %s215
      %s217 = smul.u32 %s19, 4
      %s218 = sadd.s32 %s217, %s20
      %s219 = smul.u32 8, %s218
      %p220 = scmp.lt.s32.totalorder %s219, 63
      %s221 = scalar_select %p220, %s219, 63
      %s222 = smul.addr %s221, 8
      %s223 = scalar_lea.vmem %s0, %s222
      %s224 = smul.u32 %s19, 4
      %s225 = sadd.s32 %s224, %s20
      %s226 = smul.u32 8, %s225
      %s227 = smul.u32 %s19, 4
      %s228 = sadd.s32 %s227, %s20
      %s229 = smul.u32 8, %s228
      %p230 = scmp.lt.s32.totalorder %s229, 63
      %s231 = scalar_select %p230, %s229, 63
      %s232 = smul.addr %s231, 8
      %s233 = scalar_lea.vmem %s4, %s232
      %s234 = smul.u32 %s19, 4
      %s235 = sadd.s32 %s234, %s20
      %s236 = smul.u32 8, %s235
      %v237 = vld [vmem:[%s223] sm:$0xff]
      %v238 = vld [vmem:[%s223 + $0x8] sm:$0xff]
      %v239 = vld [vmem:[%s223 + $0x10] sm:$0xff]
      %v240 = vld [vmem:[%s223 + $0x18] sm:$0xff]
      %v241 = vld [vmem:[%s223 + $0x20] sm:$0xff]
      %v242 = vld [vmem:[%s223 + $0x28] sm:$0xff]
      %v243 = vld [vmem:[%s223 + $0x30] sm:$0xff]
      %v244 = vld [vmem:[%s223 + $0x38] sm:$0xff]
      %v245 = vld [vmem:[%s1] sm:$0xff]
      %v246 = vld [vmem:[%s1 + $0x8] sm:$0xff]
      %v247 = vld [vmem:[%s1 + $0x10] sm:$0xff]
      %v248 = vld [vmem:[%s1 + $0x18] sm:$0xff]
      %v249 = vld [vmem:[%s1 + $0x20] sm:$0xff]
      %v250 = vld [vmem:[%s1 + $0x28] sm:$0xff]
      %v251 = vld [vmem:[%s1 + $0x30] sm:$0xff]
      %v252 = vld [vmem:[%s1 + $0x38] sm:$0xff]
      %v253 = vld [vmem:[%s1 + $0x40] sm:$0xff]
      %v254 = vld [vmem:[%s1 + $0x48] sm:$0xff]
      %v255 = vld [vmem:[%s1 + $0x50] sm:$0xff]
      %v256 = vld [vmem:[%s1 + $0x58] sm:$0xff]
      %v257 = vld [vmem:[%s1 + $0x60] sm:$0xff]
      %v258 = vld [vmem:[%s1 + $0x68] sm:$0xff]
      %v259 = vld [vmem:[%s1 + $0x70] sm:$0xff]
      %v260 = vld [vmem:[%s1 + $0x78] sm:$0xff]
      %261 = vmatprep.subr.mxu0 0.0
      %262 = vmatpush1.msra.mxu0 %v245
      %263 = vmatprep.subr.mxu0 0.0
      %264 = vmatpush1.msra.mxu0 %v246
      %265 = vmatprep.subr.mxu0 0.0
      %266 = vmatpush1.msra.mxu0 %v247
      %267 = vmatprep.subr.mxu0 0.0
      %268 = vmatpush1.msra.mxu0 %v248
      %269 = vmatprep.subr.mxu0 0.0
      %270 = vmatpush1.msra.mxu0 %v249
      %271 = vmatprep.subr.mxu0 0.0
      %272 = vmatpush1.msra.mxu0 %v250
      %273 = vmatprep.subr.mxu0 0.0
      %274 = vmatpush1.msra.mxu0 %v251
      %275 = vmatprep.subr.mxu0 0.0
      %276 = vmatpush1.msra.mxu0 %v252
      %277 = vmatprep.subr.mxu0 0.0
      %278 = vmatpush1.msra.mxu0 %v253
      %279 = vmatprep.subr.mxu0 0.0
      %280 = vmatpush1.msra.mxu0 %v254
      %281 = vmatprep.subr.mxu0 0.0
      %282 = vmatpush1.msra.mxu0 %v255
      %283 = vmatprep.subr.mxu0 0.0
      %284 = vmatpush1.msra.mxu0 %v256
      %285 = vmatprep.subr.mxu0 0.0
      %286 = vmatpush1.msra.mxu0 %v257
      %287 = vmatprep.subr.mxu0 0.0
      %288 = vmatpush1.msra.mxu0 %v258
      %289 = vmatprep.subr.mxu0 0.0
      %290 = vmatpush1.msra.mxu0 %v259
      %291 = vmatprep.subr.mxu0 0.0
      %292 = vmatpush1.msra.mxu0 %v260
      %293 = vmatprep.subr.mxu0 0.0
      %294 = vmatpush1.msra.mxu0 0.0
      %295 = vmatprep.subr.mxu0 0.0
      %296 = vmatpush1.msra.mxu0 0.0
      %297 = vmatprep.subr.mxu0 0.0
      %298 = vmatpush1.msra.mxu0 0.0
      %299 = vmatprep.subr.mxu0 0.0
      %300 = vmatpush1.msra.mxu0 0.0
      %301 = vmatprep.subr.mxu0 0.0
      %302 = vmatpush1.msra.mxu0 0.0
      %303 = vmatprep.subr.mxu0 0.0
      %304 = vmatpush1.msra.mxu0 0.0
      %305 = vmatprep.subr.mxu0 0.0
      %306 = vmatpush1.msra.mxu0 0.0
      %307 = vmatprep.subr.mxu0 0.0
      %308 = vmatpush1.msra.mxu0 0.0
      %309 = vmatprep.subr.mxu0 0.0
      %310 = vmatpush1.msra.mxu0 0.0
      %311 = vmatprep.subr.mxu0 0.0
      %312 = vmatpush1.msra.mxu0 0.0
      %313 = vmatprep.subr.mxu0 0.0
      %314 = vmatpush1.msra.mxu0 0.0
      %315 = vmatprep.subr.mxu0 0.0
      %316 = vmatpush1.msra.mxu0 0.0
      %317 = vmatprep.subr.mxu0 0.0
      %318 = vmatpush1.msra.mxu0 0.0
      %319 = vmatprep.subr.mxu0 0.0
      %320 = vmatpush1.msra.mxu0 0.0
      %321 = vmatprep.subr.mxu0 0.0
      %322 = vmatpush1.msra.mxu0 0.0
      %323 = vmatprep.subr.mxu0 0.0
      %324 = vmatpush1.msra.mxu0 0.0
      %325 = vmatprep.mubr.f32.mxu0 0.0
      %326 = vmatmul.mubr.f32.gmra.mrb[0].mxu0 %v237
      %v327 = vpop.f32.mrb[0].mxu0
      %v328 = vadd.f32 0.0, %v327
      %v329 = vpop.f32.mrb[0].mxu0
      %330 = vmatprep.mubr.f32.mxu0 0.0
      %331 = vmatmul.mubr.f32.gmra.mrb[0].mxu0 %v238
      %v332 = vpop.f32.mrb[0].mxu0
      %v333 = vadd.f32 0.0, %v332
      %v334 = vpop.f32.mrb[0].mxu0
      %335 = vmatprep.mubr.f32.mxu0 0.0
      %336 = vmatmul.mubr.f32.gmra.mrb[0].mxu0 %v239
      %v337 = vpop.f32.mrb[0].mxu0
      %v338 = vadd.f32 0.0, %v337
      %v339 = vpop.f32.mrb[0].mxu0
      %340 = vmatprep.mubr.f32.mxu0 0.0
      %341 = vmatmul.mubr.f32.gmra.mrb[0].mxu0 %v240
      %v342 = vpop.f32.mrb[0].mxu0
      %v343 = vadd.f32 0.0, %v342
      %v344 = vpop.f32.mrb[0].mxu0
      %345 = vmatprep.mubr.f32.mxu0 0.0
      %346 = vmatmul.mubr.f32.gmra.mrb[0].mxu0 %v241
      %v347 = vpop.f32.mrb[0].mxu0
      %v348 = vadd.f32 0.0, %v347
      %v349 = vpop.f32.mrb[0].mxu0
      %350 = vmatprep.mubr.f32.mxu0 0.0
      %351 = vmatmul.mubr.f32.gmra.mrb[0].mxu0 %v242
      %v352 = vpop.f32.mrb[0].mxu0
      %v353 = vadd.f32 0.0, %v352
      %v354 = vpop.f32.mrb[0].mxu0
      %355 = vmatprep.mubr.f32.mxu0 0.0
      %356 = vmatmul.mubr.f32.gmra.mrb[0].mxu0 %v243
      %v357 = vpop.f32.mrb[0].mxu0
      %v358 = vadd.f32 0.0, %v357
      %v359 = vpop.f32.mrb[0].mxu0
      %360 = vmatprep.mubr.f32.mxu0 0.0
      %361 = vmatmul.mubr.f32.gmra.mrb[0].mxu0 %v244
      %v362 = vpop.f32.mrb[0].mxu0
      %v363 = vadd.f32 0.0, %v362
      %v364 = vpop.f32.mrb[0].mxu0
      %365 = vdwg.mxu0
      %v366 = vld [vmem:[%s2] sm:$0x1]
      %v367 = vld [vmem:[%s3] sm:$0x1]
      %v368 = vlaneseq
      %v369 = vand.u32 %v368, 127
      %vm370 = vcmp.lt.s32.totalorder %v369, 4
      %v371 = vsel %vm370, %v328, 0.0
      %v372 = vsel %vm370, %v333, 0.0
      %v373 = vsel %vm370, %v338, 0.0
      %v374 = vsel %vm370, %v343, 0.0
      %v375 = vsel %vm370, %v348, 0.0
      %v376 = vsel %vm370, %v353, 0.0
      %v377 = vsel %vm370, %v358, 0.0
      %v378 = vsel %vm370, %v363, 0.0
      %379 = vadd.xlane.f32.xlu0 %v371
      %v380 = vpop.xlane.xlu0 %379
      %381 = vadd.xlane.f32.xlu0 %v372
      %v382 = vpop.xlane.xlu0 %381
      %383 = vadd.xlane.f32.xlu0 %v373
      %v384 = vpop.xlane.xlu0 %383
      %385 = vadd.xlane.f32.xlu0 %v374
      %v386 = vpop.xlane.xlu0 %385
      %387 = vadd.xlane.f32.xlu0 %v375
      %v388 = vpop.xlane.xlu0 %387
      %389 = vadd.xlane.f32.xlu0 %v376
      %v390 = vpop.xlane.xlu0 %389
      %391 = vadd.xlane.f32.xlu0 %v377
      %v392 = vpop.xlane.xlu0 %391
      %393 = vadd.xlane.f32.xlu0 %v378
      %v394 = vpop.xlane.xlu0 %393
      %v395 = vmul.f32 %v380, 0.25
      %v396 = vmul.f32 %v382, 0.25
      %v397 = vmul.f32 %v384, 0.25
      %v398 = vmul.f32 %v386, 0.25
      %v399 = vmul.f32 %v388, 0.25
      %v400 = vmul.f32 %v390, 0.25
      %v401 = vmul.f32 %v392, 0.25
      %v402 = vmul.f32 %v394, 0.25
      %v403 = vsub.f32 %v328, %v395
      %v404 = vsub.f32 %v333, %v396
      %v405 = vsub.f32 %v338, %v397
      %v406 = vsub.f32 %v343, %v398
      %v407 = vsub.f32 %v348, %v399
      %v408 = vsub.f32 %v353, %v400
      %v409 = vsub.f32 %v358, %v401
      %v410 = vsub.f32 %v363, %v402
      %v411 = vsel %vm370, %v403, 0.0
      %v412 = vsel %vm370, %v404, 0.0
      %v413 = vsel %vm370, %v405, 0.0
      %v414 = vsel %vm370, %v406, 0.0
      %v415 = vsel %vm370, %v407, 0.0
      %v416 = vsel %vm370, %v408, 0.0
      %v417 = vsel %vm370, %v409, 0.0
      %v418 = vsel %vm370, %v410, 0.0
      %v419 = vmul.f32 %v411, %v411
      %v420 = vmul.f32 %v412, %v412
      %v421 = vmul.f32 %v413, %v413
      %v422 = vmul.f32 %v414, %v414
      %v423 = vmul.f32 %v415, %v415
      %v424 = vmul.f32 %v416, %v416
      %v425 = vmul.f32 %v417, %v417
      %v426 = vmul.f32 %v418, %v418
      %427 = vadd.xlane.f32.xlu0 %v419
      %v428 = vpop.xlane.xlu0 %427
      %429 = vadd.xlane.f32.xlu0 %v420
      %v430 = vpop.xlane.xlu0 %429
      %431 = vadd.xlane.f32.xlu0 %v421
      %v432 = vpop.xlane.xlu0 %431
      %433 = vadd.xlane.f32.xlu0 %v422
      %v434 = vpop.xlane.xlu0 %433
      %435 = vadd.xlane.f32.xlu0 %v423
      %v436 = vpop.xlane.xlu0 %435
      %437 = vadd.xlane.f32.xlu0 %v424
      %v438 = vpop.xlane.xlu0 %437
      %439 = vadd.xlane.f32.xlu0 %v425
      %v440 = vpop.xlane.xlu0 %439
      %441 = vadd.xlane.f32.xlu0 %v426
      %v442 = vpop.xlane.xlu0 %441
      %v443 = vmul.f32 %v428, 0.25
      %v444 = vmul.f32 %v430, 0.25
      %v445 = vmul.f32 %v432, 0.25
      %v446 = vmul.f32 %v434, 0.25
      %v447 = vmul.f32 %v436, 0.25
      %v448 = vmul.f32 %v438, 0.25
      %v449 = vmul.f32 %v440, 0.25
      %v450 = vmul.f32 %v442, 0.25
      %v451 = vadd.f32 %v443, 1e-06
      %v452 = vadd.f32 %v444, 1e-06
      %v453 = vadd.f32 %v445, 1e-06
      %v454 = vadd.f32 %v446, 1e-06
      %v455 = vadd.f32 %v447, 1e-06
      %v456 = vadd.f32 %v448, 1e-06
      %v457 = vadd.f32 %v449, 1e-06
      %v458 = vadd.f32 %v450, 1e-06
      %v459 = vrsqrt.pop %v451
      %v460 = vrsqrt.pop %v452
      %v461 = vrsqrt.pop %v453
      %v462 = vrsqrt.pop %v454
      %v463 = vrsqrt.pop %v455
      %v464 = vrsqrt.pop %v456
      %v465 = vrsqrt.pop %v457
      %v466 = vrsqrt.pop %v458
      %v467 = vmul.f32 %v411, %v459
      %v468 = vmul.f32 %v412, %v460
      %v469 = vmul.f32 %v413, %v461
      %v470 = vmul.f32 %v414, %v462
      %v471 = vmul.f32 %v415, %v463
      %v472 = vmul.f32 %v416, %v464
      %v473 = vmul.f32 %v417, %v465
      %v474 = vmul.f32 %v418, %v466
      %v476 = vlaneseq
      %v477 = vshrl.u32 %v476, 7
      %v478 = vsub.s32 0, %v477
      %v479 = vrot.slane %v366, %v478
      %v481 = vmul.f32 %v467, %v479
      %v482 = vmul.f32 %v468, %v479
      %v483 = vmul.f32 %v469, %v479
      %v484 = vmul.f32 %v470, %v479
      %v485 = vmul.f32 %v471, %v479
      %v486 = vmul.f32 %v472, %v479
      %v487 = vmul.f32 %v473, %v479
      %v488 = vmul.f32 %v474, %v479
      %v490 = vlaneseq
      %v491 = vshrl.u32 %v490, 7
      %v492 = vsub.s32 0, %v491
      %v493 = vrot.slane %v367, %v492
      %v495 = vadd.f32 %v481, %v493
      %v496 = vadd.f32 %v482, %v493
      %v497 = vadd.f32 %v483, %v493
      %v498 = vadd.f32 %v484, %v493
      %v499 = vadd.f32 %v485, %v493
      %v500 = vadd.f32 %v486, %v493
      %v501 = vadd.f32 %v487, %v493
      %v502 = vadd.f32 %v488, %v493
      %v503 = vmul.f32 %v495, 0.5
      %v504 = vmul.f32 %v496, 0.5
      %v505 = vmul.f32 %v497, 0.5
      %v506 = vmul.f32 %v498, 0.5
      %v507 = vmul.f32 %v499, 0.5
      %v508 = vmul.f32 %v500, 0.5
      %v509 = vmul.f32 %v501, 0.5
      %v510 = vmul.f32 %v502, 0.5
      %v511 = vmul.f32 %v495, 0.70710677
      %v512 = vmul.f32 %v496, 0.70710677
      %v513 = vmul.f32 %v497, 0.70710677
      %v514 = vmul.f32 %v498, 0.70710677
      %v515 = vmul.f32 %v499, 0.70710677
      %v516 = vmul.f32 %v500, 0.70710677
      %v517 = vmul.f32 %v501, 0.70710677
      %v518 = vmul.f32 %v502, 0.70710677
      %v519 = vmax.f32 %v511, -4.0
      %v520 = vmax.f32 %v512, -4.0
      %v521 = vmax.f32 %v513, -4.0
      %v522 = vmax.f32 %v514, -4.0
      %v523 = vmax.f32 %v515, -4.0
      %v524 = vmax.f32 %v516, -4.0
      %v525 = vmax.f32 %v517, -4.0
      %v526 = vmax.f32 %v518, -4.0
      %v527 = vmin.f32 %v519, 4.0
      %v528 = vmin.f32 %v520, 4.0
      %v529 = vmin.f32 %v521, 4.0
      %v530 = vmin.f32 %v522, 4.0
      %v531 = vmin.f32 %v523, 4.0
      %v532 = vmin.f32 %v524, 4.0
      %v533 = vmin.f32 %v525, 4.0
      %v534 = vmin.f32 %v526, 4.0
      %v535 = vmul.f32 %v527, %v527
      %v536 = vmul.f32 %v528, %v528
      %v537 = vmul.f32 %v529, %v529
      %v538 = vmul.f32 %v530, %v530
      %v539 = vmul.f32 %v531, %v531
      %v540 = vmul.f32 %v532, %v532
      %v541 = vmul.f32 %v533, %v533
      %v542 = vmul.f32 %v534, %v534
      %v543 = vmul.f32 %v535, -2.7261424e-10
      %v544 = vmul.f32 %v536, -2.7261424e-10
      %v545 = vmul.f32 %v537, -2.7261424e-10
      %v546 = vmul.f32 %v538, -2.7261424e-10
      %v547 = vmul.f32 %v539, -2.7261424e-10
      %v548 = vmul.f32 %v540, -2.7261424e-10
      %v549 = vmul.f32 %v541, -2.7261424e-10
      %v550 = vmul.f32 %v542, -2.7261424e-10
      %v551 = vadd.f32 %v543, 2.7706815e-08
      %v552 = vadd.f32 %v544, 2.7706815e-08
      %v553 = vadd.f32 %v545, 2.7706815e-08
      %v554 = vadd.f32 %v546, 2.7706815e-08
      %v555 = vadd.f32 %v547, 2.7706815e-08
      %v556 = vadd.f32 %v548, 2.7706815e-08
      %v557 = vadd.f32 %v549, 2.7706815e-08
      %v558 = vadd.f32 %v550, 2.7706815e-08
      %v559 = vmul.f32 %v551, %v535
      %v560 = vmul.f32 %v552, %v536
      %v561 = vmul.f32 %v553, %v537
      %v562 = vmul.f32 %v554, %v538
      %v563 = vmul.f32 %v555, %v539
      %v564 = vmul.f32 %v556, %v540
      %v565 = vmul.f32 %v557, %v541
      %v566 = vmul.f32 %v558, %v542
      %v567 = vadd.f32 %v559, -2.101024e-06
      %v568 = vadd.f32 %v560, -2.101024e-06
      %v569 = vadd.f32 %v561, -2.101024e-06
      %v570 = vadd.f32 %v562, -2.101024e-06
      %v571 = vadd.f32 %v563, -2.101024e-06
      %v572 = vadd.f32 %v564, -2.101024e-06
      %v573 = vadd.f32 %v565, -2.101024e-06
      %v574 = vadd.f32 %v566, -2.101024e-06
      %v575 = vmul.f32 %v567, %v535
      %v576 = vmul.f32 %v568, %v536
      %v577 = vmul.f32 %v569, %v537
      %v578 = vmul.f32 %v570, %v538
      %v579 = vmul.f32 %v571, %v539
      %v580 = vmul.f32 %v572, %v540
      %v581 = vmul.f32 %v573, %v541
      %v582 = vmul.f32 %v574, %v542
      %v583 = vadd.f32 %v575, -5.6925062e-05
      %v584 = vadd.f32 %v576, -5.6925062e-05
      %v585 = vadd.f32 %v577, -5.6925062e-05
      %v586 = vadd.f32 %v578, -5.6925062e-05
      %v587 = vadd.f32 %v579, -5.6925062e-05
      %v588 = vadd.f32 %v580, -5.6925062e-05
      %v589 = vadd.f32 %v581, -5.6925062e-05
      %v590 = vadd.f32 %v582, -5.6925062e-05
      %v591 = vmul.f32 %v583, %v535
      %v592 = vmul.f32 %v584, %v536
      %v593 = vmul.f32 %v585, %v537
      %v594 = vmul.f32 %v586, %v538
      %v595 = vmul.f32 %v587, %v539
      %v596 = vmul.f32 %v588, %v540
      %v597 = vmul.f32 %v589, %v541
      %v598 = vmul.f32 %v590, %v542
      %v599 = vadd.f32 %v591, -0.00073499064
      %v600 = vadd.f32 %v592, -0.00073499064
      %v601 = vadd.f32 %v593, -0.00073499064
      %v602 = vadd.f32 %v594, -0.00073499064
      %v603 = vadd.f32 %v595, -0.00073499064
      %v604 = vadd.f32 %v596, -0.00073499064
      %v605 = vadd.f32 %v597, -0.00073499064
      %v606 = vadd.f32 %v598, -0.00073499064
      %v607 = vmul.f32 %v599, %v535
      %v608 = vmul.f32 %v600, %v536
      %v609 = vmul.f32 %v601, %v537
      %v610 = vmul.f32 %v602, %v538
      %v611 = vmul.f32 %v603, %v539
      %v612 = vmul.f32 %v604, %v540
      %v613 = vmul.f32 %v605, %v541
      %v614 = vmul.f32 %v606, %v542
      %v615 = vadd.f32 %v607, -0.0029546
      %v616 = vadd.f32 %v608, -0.0029546
      %v617 = vadd.f32 %v609, -0.0029546
      %v618 = vadd.f32 %v610, -0.0029546
      %v619 = vadd.f32 %v611, -0.0029546
      %v620 = vadd.f32 %v612, -0.0029546
      %v621 = vadd.f32 %v613, -0.0029546
      %v622 = vadd.f32 %v614, -0.0029546
      %v623 = vmul.f32 %v615, %v535
      %v624 = vmul.f32 %v616, %v536
      %v625 = vmul.f32 %v617, %v537
      %v626 = vmul.f32 %v618, %v538
      %v627 = vmul.f32 %v619, %v539
      %v628 = vmul.f32 %v620, %v540
      %v629 = vmul.f32 %v621, %v541
      %v630 = vmul.f32 %v622, %v542
      %v631 = vadd.f32 %v623, -0.016096033
      %v632 = vadd.f32 %v624, -0.016096033
      %v633 = vadd.f32 %v625, -0.016096033
      %v634 = vadd.f32 %v626, -0.016096033
      %v635 = vadd.f32 %v627, -0.016096033
      %v636 = vadd.f32 %v628, -0.016096033
      %v637 = vadd.f32 %v629, -0.016096033
      %v638 = vadd.f32 %v630, -0.016096033
      %v639 = vmul.f32 %v631, %v527
      %v640 = vmul.f32 %v632, %v528
      %v641 = vmul.f32 %v633, %v529
      %v642 = vmul.f32 %v634, %v530
      %v643 = vmul.f32 %v635, %v531
      %v644 = vmul.f32 %v636, %v532
      %v645 = vmul.f32 %v637, %v533
      %v646 = vmul.f32 %v638, %v534
      %v647 = vmul.f32 %v535, -1.45660715e-05
      %v648 = vmul.f32 %v536, -1.45660715e-05
      %v649 = vmul.f32 %v537, -1.45660715e-05
      %v650 = vmul.f32 %v538, -1.45660715e-05
      %v651 = vmul.f32 %v539, -1.45660715e-05
      %v652 = vmul.f32 %v540, -1.45660715e-05
      %v653 = vmul.f32 %v541, -1.45660715e-05
      %v654 = vmul.f32 %v542, -1.45660715e-05
      %v655 = vadd.f32 %v647, -0.00021337405
      %v656 = vadd.f32 %v648, -0.00021337405
      %v657 = vadd.f32 %v649, -0.00021337405
      %v658 = vadd.f32 %v650, -0.00021337405
      %v659 = vadd.f32 %v651, -0.00021337405
      %v660 = vadd.f32 %v652, -0.00021337405
      %v661 = vadd.f32 %v653, -0.00021337405
      %v662 = vadd.f32 %v654, -0.00021337405
      %v663 = vmul.f32 %v655, %v535
      %v664 = vmul.f32 %v656, %v536
      %v665 = vmul.f32 %v657, %v537
      %v666 = vmul.f32 %v658, %v538
      %v667 = vmul.f32 %v659, %v539
      %v668 = vmul.f32 %v660, %v540
      %v669 = vmul.f32 %v661, %v541
      %v670 = vmul.f32 %v662, %v542
      %v671 = vadd.f32 %v663, -0.001682827
      %v672 = vadd.f32 %v664, -0.001682827
      %v673 = vadd.f32 %v665, -0.001682827
      %v674 = vadd.f32 %v666, -0.001682827
      %v675 = vadd.f32 %v667, -0.001682827
      %v676 = vadd.f32 %v668, -0.001682827
      %v677 = vadd.f32 %v669, -0.001682827
      %v678 = vadd.f32 %v670, -0.001682827
      %v679 = vmul.f32 %v671, %v535
      %v680 = vmul.f32 %v672, %v536
      %v681 = vmul.f32 %v673, %v537
      %v682 = vmul.f32 %v674, %v538
      %v683 = vmul.f32 %v675, %v539
      %v684 = vmul.f32 %v676, %v540
      %v685 = vmul.f32 %v677, %v541
      %v686 = vmul.f32 %v678, %v542
      %v687 = vadd.f32 %v679, -0.0073733293
      %v688 = vadd.f32 %v680, -0.0073733293
      %v689 = vadd.f32 %v681, -0.0073733293
      %v690 = vadd.f32 %v682, -0.0073733293
      %v691 = vadd.f32 %v683, -0.0073733293
      %v692 = vadd.f32 %v684, -0.0073733293
      %v693 = vadd.f32 %v685, -0.0073733293
      %v694 = vadd.f32 %v686, -0.0073733293
      %v695 = vmul.f32 %v687, %v535
      %v696 = vmul.f32 %v688, %v536
      %v697 = vmul.f32 %v689, %v537
      %v698 = vmul.f32 %v690, %v538
      %v699 = vmul.f32 %v691, %v539
      %v700 = vmul.f32 %v692, %v540
      %v701 = vmul.f32 %v693, %v541
      %v702 = vmul.f32 %v694, %v542
      %v703 = vadd.f32 %v695, -0.014264739
      %v704 = vadd.f32 %v696, -0.014264739
      %v705 = vadd.f32 %v697, -0.014264739
      %v706 = vadd.f32 %v698, -0.014264739
      %v707 = vadd.f32 %v699, -0.014264739
      %v708 = vadd.f32 %v700, -0.014264739
      %v709 = vadd.f32 %v701, -0.014264739
      %v710 = vadd.f32 %v702, -0.014264739
      %v711 = vrcp.pop %v703
      %v712 = vrcp.pop %v704
      %v713 = vrcp.pop %v705
      %v714 = vrcp.pop %v706
      %v715 = vrcp.pop %v707
      %v716 = vrcp.pop %v708
      %v717 = vrcp.pop %v709
      %v718 = vrcp.pop %v710
      %v719 = vmul.f32 %v639, %v711
      %v720 = vmul.f32 %v640, %v712
      %v721 = vmul.f32 %v641, %v713
      %v722 = vmul.f32 %v642, %v714
      %v723 = vmul.f32 %v643, %v715
      %v724 = vmul.f32 %v644, %v716
      %v725 = vmul.f32 %v645, %v717
      %v726 = vmul.f32 %v646, %v718
      %v727 = vadd.f32 %v719, 1.0
      %v728 = vadd.f32 %v720, 1.0
      %v729 = vadd.f32 %v721, 1.0
      %v730 = vadd.f32 %v722, 1.0
      %v731 = vadd.f32 %v723, 1.0
      %v732 = vadd.f32 %v724, 1.0
      %v733 = vadd.f32 %v725, 1.0
      %v734 = vadd.f32 %v726, 1.0
      %v735 = vmul.f32 %v503, %v727
      %v736 = vmul.f32 %v504, %v728
      %v737 = vmul.f32 %v505, %v729
      %v738 = vmul.f32 %v506, %v730
      %v739 = vmul.f32 %v507, %v731
      %v740 = vmul.f32 %v508, %v732
      %v741 = vmul.f32 %v509, %v733
      %v742 = vmul.f32 %v510, %v734
      %743 = vst [vmem:[%s233] sm:$0xff] %v735
      %744 = vst [vmem:[%s233 + $0x8] sm:$0xff] %v736
      %745 = vst [vmem:[%s233 + $0x10] sm:$0xff] %v737
      %746 = vst [vmem:[%s233 + $0x18] sm:$0xff] %v738
      %747 = vst [vmem:[%s233 + $0x20] sm:$0xff] %v739
      %748 = vst [vmem:[%s233 + $0x28] sm:$0xff] %v740
      %749 = vst [vmem:[%s233 + $0x30] sm:$0xff] %v741
      %750 = vst [vmem:[%s233 + $0x38] sm:$0xff] %v742
      %s751 = smul.u32 %s19, 4
      %s752 = sadd.s32 %s751, %s20
      %s753 = smul.u32 8, %s752
      %p754 = scmp.lt.s32.totalorder %s753, 63
      %s755 = scalar_select %p754, %s753, 63
      %s756 = smul.addr %s755, 8
      %s757 = scalar_lea.vmem %s4, %s756
      // Predicated region
      $region37: #{mink_next_block.3} parent=35 // pred_check
        %p758 = pneg %p142
      $region38: #{mink_next_block.3} parent=35 // pred_check_branch
        %760 = sbr.rel (%p758) target = $region40
      $region39: #{mink_next_block.3} parent=35 // pred_region
        %s761 = smul.u32 %s19, 4
        %s762 = sadd.s32 %s761, %s20
        %s763 = smul.u32 8, %s762
      $region40: #{mink_next_block.3} parent=35 // pred_fallthru
        _
    $region36: #{mink_next_block.3} parent=5 // pred_fallthru
      _
    %p764 = scmp.le.s32.totalorder 2, %s10
    // Predicated region
    $region41: #{mink_next_block.3} parent=5 // pred_check
      %p765 = pneg %p764
    $region42: #{mink_next_block.3} parent=5 // pred_check_branch
      %767 = sbr.rel (%p765) target = $region44
    $region43: #{mink_next_block.3} parent=5 // pred_region
      %s768 = ssub.s32 %s10, 2
      // Predicated region
      $region45: #{mink_next_block.3} parent=43 // pred_check
        %p769 = pneg %p148
      $region46: #{mink_next_block.3} parent=43 // pred_check_branch
        %771 = sbr.rel (%p769) target = $region48
      $region47: #{mink_next_block.3} parent=43 // pred_region
        %s772 = smul.u32 %s21, 4
        %s773 = sadd.s32 %s772, %s22
        %s774 = smul.u32 8, %s773
        %p775 = scmp.lt.s32.totalorder %s774, 63
        %s776 = scalar_select %p775, %s774, 63
        %s777 = smul.addr %s776, 8
        %s778 = scalar_lea.vmem %s4, %s777
      $region48: #{mink_next_block.3} parent=43 // pred_fallthru
        _
    $region44: #{mink_next_block.3} parent=5 // pred_fallthru
      _
  $region6: #{mink_next_block.3} parent=0 // loop_footer
    %s14 = sadd.s32 1, %s10
  $region7: #{mink_next_block.3} parent=0 // loop_footer_branch
    %9 = sbr.rel target = $region3
  $region8: #{mink_next_block.3} parent=0 // loop_exit
    _

// kernel: mink_next_block.4
$region0: #{mink_next_block.4}
  #allocation0 [shape = 'u32[]', space=smem, size = 0x4, offset = 0x4, fixed_abs, tag = 'smem constant byte address 0x4 - core index']
  #allocation1 [shape = 'u32[144,128]{1,0:T(1,128)}', space=vmem, size = 0x12000, scoped, tag = 'internal scratch']
  #allocation2 [shape = 'f32[2,3,6,16,128]{4,3,2,1,0:T(8,128)}', space=vmem, size = 0x48000, scoped, tag = 'scratch operand']
  #allocation3 [shape = 's32[6]{0}', space=sflag, size = 0x18, scoped, tag = 'scratch operand']
  #allocation4 [shape = 's32[]', space=sflag, size = 0x4, offset = 0, fixed_abs, tag = 'sflag constant byte address 0x0 - dummy sync flag']
  #allocation5 [shape = 's32[]', space=sflag, size = 0x4, offset = 0, fixed_abs, tag = 'sflag constant byte address 0x0 - dummy sync flag']
  #allocation6 [shape = 's32[]', space=sflag, size = 0x4, offset = 0, fixed_abs, tag = 'sflag constant byte address 0x0 - dummy sync flag']
  #allocation7 [shape = 's32[]', space=sflag, size = 0x4, offset = 0, fixed_abs, tag = 'sflag constant byte address 0x0 - dummy sync flag']
  #allocation8 [shape = 's32[]', space=sflag, size = 0x4, offset = 0, fixed_abs, tag = 'sflag constant byte address 0x0 - dummy sync flag']
  #allocation9 [shape = 's32[]', space=sflag, size = 0x4, offset = 0, fixed_abs, tag = 'sflag constant byte address 0x0 - dummy sync flag']
  %s0 = inlined_call_operand.vmem [shape: f32[2,18,18,128], index: 0, kind: input, shape index: {}]
  %s1 = inlined_call_operand.vmem [shape: f32[9,128,128], index: 1, kind: input, shape index: {}]
  %s2 = inlined_call_operand.vmem [shape: f32[1,128], index: 2, kind: input, shape index: {}]
  %s3 = inlined_call_operand.vmem [shape: f32[1,128], index: 3, kind: input, shape index: {}]
  %s4 = inlined_call_operand.vmem [shape: f32[512,128], index: 4, kind: output, shape index: {}]
  %s5 = sld [smem:[#allocation0]]
  $region257: #{mink_next_block.4} parent=0
    _
  %s7 = ssub.s32 1, %s5
  %s8 = scalar_select 0, %s7, %s5
  loop: start=0, step=1, limit=10
  $region2: #{mink_next_block.4} parent=0 // loop_pre_header
    _
  $region3: #{mink_next_block.4} parent=0 // loop_header
    %s10 = sphi 0, %s14
    %p11 = scmp.ge.s32.totalorder %s10, 10
    %s17 = sphi 0, %s29
    %s18 = sphi 0, %s25
    %s19 = sphi 0, %s17
    %s20 = sphi 0, %s18
    %s21 = sphi 0, %s19
    %s22 = sphi 0, %s20
    %s30 = sphi 0, %s30
    %s32 = sphi 0, %s30
    %s33 = sphi 0, %s32
    %s47 = sphi 0, %s33
    %s51 = sphi 0, %s51
    %s53 = sphi 0, %s51
    %s54 = sphi 0, %s53
    %s68 = sphi 0, %s54
    %s72 = sphi 0, %s72
    %s74 = sphi 0, %s72
    %s75 = sphi 0, %s74
    %s89 = sphi 0, %s75
    %s99 = sphi 0, %s101
    %s102 = sphi 0, %s99
    %s103 = sphi 0, %s102
    %s119 = sphi 0, %s103
  $region4: #{mink_next_block.4} parent=0 // loop_header_branch
    %13 = sbr.rel (%p11) target = $region8
  $region5: #{mink_next_block.4} parent=0 // loop_body
    %s15 = ssub.s32 %s10, 1
    %s16 = ssub.s32 %s10, 2
    %s23 = sadd.s32 1, %s18
    %p24 = scmp.ge.s32.totalorder %s23, 4
    %s25 = scalar_select %p24, 0, %s23
    %s26 = sadd.s32 1, %s17
    %s27 = scalar_select %p24, %s26, %s17
    %p28 = scmp.ge.s32.totalorder %s27, 2
    %s29 = scalar_select %p28, 0, %s27
    %s31 = sadd.s32 %s30, 1
    %p34 = scmp.eq.s32.totalorder %s10, 7
    %p35 = scmp.ne.s32.totalorder %s30, %s32
    %p36 = scmp.eq.s32.totalorder %s10, 0
    %p37 = por %p35, %p36
    %p38 = scmp.ne.s32.totalorder %s30, %s32
    %p39 = scmp.eq.s32.totalorder %s15, 7
    %p40 = por %p38, %p39
    %p41 = scmp.ne.s32.totalorder %s32, %s33
    %p42 = scmp.eq.s32.totalorder %s15, 0
    %p43 = por %p41, %p42
    %p44 = scmp.ne.s32.totalorder %s32, %s33
    %p45 = scmp.eq.s32.totalorder %s16, 7
    %p46 = por %p44, %p45
    %p48 = scmp.ne.s32.totalorder %s33, %s47
    %p49 = scmp.eq.s32.totalorder %s16, 0
    %p50 = por %p48, %p49
    %s52 = sadd.s32 %s51, 1
    %p55 = scmp.eq.s32.totalorder %s10, 7
    %p56 = scmp.ne.s32.totalorder %s51, %s53
    %p57 = scmp.eq.s32.totalorder %s10, 0
    %p58 = por %p56, %p57
    %p59 = scmp.ne.s32.totalorder %s51, %s53
    %p60 = scmp.eq.s32.totalorder %s15, 7
    %p61 = por %p59, %p60
    %p62 = scmp.ne.s32.totalorder %s53, %s54
    %p63 = scmp.eq.s32.totalorder %s15, 0
    %p64 = por %p62, %p63
    %p65 = scmp.ne.s32.totalorder %s53, %s54
    %p66 = scmp.eq.s32.totalorder %s16, 7
    %p67 = por %p65, %p66
    %p69 = scmp.ne.s32.totalorder %s54, %s68
    %p70 = scmp.eq.s32.totalorder %s16, 0
    %p71 = por %p69, %p70
    %s73 = sadd.s32 %s72, 1
    %p76 = scmp.eq.s32.totalorder %s10, 7
    %p77 = scmp.ne.s32.totalorder %s72, %s74
    %p78 = scmp.eq.s32.totalorder %s10, 0
    %p79 = por %p77, %p78
    %p80 = scmp.ne.s32.totalorder %s72, %s74
    %p81 = scmp.eq.s32.totalorder %s15, 7
    %p82 = por %p80, %p81
    %p83 = scmp.ne.s32.totalorder %s74, %s75
    %p84 = scmp.eq.s32.totalorder %s15, 0
    %p85 = por %p83, %p84
    %p86 = scmp.ne.s32.totalorder %s74, %s75
    %p87 = scmp.eq.s32.totalorder %s16, 7
    %p88 = por %p86, %p87
    %p90 = scmp.ne.s32.totalorder %s75, %s89
    %p91 = scmp.eq.s32.totalorder %s16, 0
    %p92 = por %p90, %p91
    %s93 = smul.u32 %s17, 4
    %s94 = sadd.s32 %s93, %s18
    %s95 = smul.u32 %s29, 4
    %s96 = sadd.s32 %s95, %s25
    %s97 = ssub.s32 %s94, %s96
    %p98 = scmp.eq.s32.totalorder %s97, 0
    %s100 = sadd.s32 %s99, 1
    %s101 = scalar_select %p98, %s99, %s100
    %p104 = pneg %p98
    %p105 = scmp.eq.s32.totalorder %s10, 7
    %p106 = por %p104, %p105
    %p107 = scmp.ne.s32.totalorder %s99, %s102
    %p108 = scmp.eq.s32.totalorder %s10, 0
    %p109 = por %p107, %p108
    %p110 = scmp.ne.s32.totalorder %s99, %s102
    %p111 = scmp.eq.s32.totalorder %s15, 7
    %p112 = por %p110, %p111
    %p113 = scmp.ne.s32.totalorder %s102, %s103
    %p114 = scmp.eq.s32.totalorder %s15, 0
    %p115 = por %p113, %p114
    %p116 = scmp.ne.s32.totalorder %s102, %s103
    %p117 = scmp.eq.s32.totalorder %s16, 7
    %p118 = por %p116, %p117
    %p120 = scmp.ne.s32.totalorder %s103, %s119
    %p121 = scmp.eq.s32.totalorder %s16, 0
    %p122 = por %p120, %p121
    %p123 = scmp.le.s32.totalorder 1, %s10
    %p124 = scmp.lt.s32.totalorder %s10, 9
    %p125 = pnand %p123, %p124
    %p126 = pneg %p125
    // Predicated region
    $region9: #{mink_next_block.4} parent=5 // pred_check
      _
    $region10: #{mink_next_block.4} parent=5 // pred_check_branch
      %128 = sbr.rel (%p125) target = $region12
    $region11: #{mink_next_block.4} parent=5 // pred_region
      %s129 = ssub.s32 %s10, 1
      // Predicated region
      $region13: #{mink_next_block.4} parent=11 // pred_check
        %p130 = pneg %p43
      $region14: #{mink_next_block.4} parent=11 // pred_check_branch
        %132 = sbr.rel (%p130) target = $region16
      $region15: #{mink_next_block.4} parent=11 // pred_region
        _
      $region16: #{mink_next_block.4} parent=11 // pred_fallthru
        _
      // Predicated region
      $region17: #{mink_next_block.4} parent=11 // pred_check
        %p133 = pneg %p64
      $region18: #{mink_next_block.4} parent=11 // pred_check_branch
        %135 = sbr.rel (%p133) target = $region20
      $region19: #{mink_next_block.4} parent=11 // pred_region
        _
      $region20: #{mink_next_block.4} parent=11 // pred_fallthru
        _
      // Predicated region
      $region21: #{mink_next_block.4} parent=11 // pred_check
        %p136 = pneg %p85
      $region22: #{mink_next_block.4} parent=11 // pred_check_branch
        %138 = sbr.rel (%p136) target = $region24
      $region23: #{mink_next_block.4} parent=11 // pred_region
        _
      $region24: #{mink_next_block.4} parent=11 // pred_fallthru
        _
    $region12: #{mink_next_block.4} parent=5 // pred_fallthru
      _
    %p139 = scmp.lt.s32.totalorder %s10, 8
    // Predicated region
    $region25: #{mink_next_block.4} parent=5 // pred_check
      %p140 = pneg %p139
    $region26: #{mink_next_block.4} parent=5 // pred_check_branch
      %142 = sbr.rel (%p140) target = $region28
    $region27: #{mink_next_block.4} parent=5 // pred_region
      _
    $region28: #{mink_next_block.4} parent=5 // pred_fallthru
      _
    %p143 = scmp.le.s32.totalorder 1, %s10
    %p144 = scmp.lt.s32.totalorder %s10, 9
    %p145 = pnand %p143, %p144
    %p146 = pneg %p145
    // Predicated region
    $region29: #{mink_next_block.4} parent=5 // pred_check
      _
    $region30: #{mink_next_block.4} parent=5 // pred_check_branch
      %148 = sbr.rel (%p145) target = $region32
    $region31: #{mink_next_block.4} parent=5 // pred_region
      %s149 = ssub.s32 %s10, 1
      %p150 = pneg %p43
      %p151 = pneg %p40
      %p152 = pneg %p64
      %p153 = pneg %p61
      %p154 = pneg %p85
      %p155 = pneg %p82
      %p156 = pneg %p115
      %p157 = pneg %p112
      %s158 = smul.u32 %s19, 4
      %s159 = sadd.s32 %s158, %s20
      %s160 = smul.u32 8, %s159
      %p161 = scmp.lt.s32.totalorder %s160, 63
      %s162 = scalar_select %p161, %s160, 63
      %s163 = smul.addr %s162, 8
      %s164 = scalar_lea.vmem %s4, %s163
      %s165 = smul.u32 %s19, 4
      %s166 = sadd.s32 %s165, %s20
      %s167 = smul.u32 8, %s166
      %p168 = scmp.lt.s32.totalorder %s167, 63
      %s169 = scalar_select %p168, %s167, 63
      %s170 = smul.addr %s169, 8
      %s171 = scalar_lea.vmem %s4, %s170
      %s172 = smul.u32 %s19, 4
      %s173 = sadd.s32 %s172, %s20
      %s174 = smul.u32 8, %s173
      %p175 = scmp.lt.s32.totalorder %s20, 0
      %s176 = ssub.s32 0, %s20
      %s177 = scalar_select %p175, %s176, %s20
      %s178 = sand.u32 %s177, 1
      %s179 = ssub.s32 0, %s178
      %s180 = scalar_select %p175, %s179, %s178
      %p181 = scmp.eq.s32.totalorder %s20, 0
      // Predicated region
      $region33: #{mink_next_block.4} parent=31 // pred_check
        %p182 = pneg %p181
      $region34: #{mink_next_block.4} parent=31 // pred_check_branch
        %184 = sbr.rel (%p182) target = $region36
      $region35: #{mink_next_block.4} parent=31 // pred_region
        %s185 = smul.u32 %s20, 4
        %s186 = smul.u32 %s185, 24
        %s187 = smul.u32 %s19, 432
        %s188 = sadd.s32 %s186, %s187
        %s189 = scalar_lea.vmem %s0, %s188
        %s190 = smul.u32 %s180, 288
        %s191 = scalar_lea.vmem [#allocation2], %s190
        %s192 = smul.u32 %s180, 3
        %s193 = scalar_lea.sflag [#allocation3], %s192
        %p195 = scmp.lt.u32.totalorder 16, 8
        %p196 = pneg %p195
        // Predicated region
        $region37: #{mink_next_block.4} parent=35 // pred_check
          _
        $region38: #{mink_next_block.4} parent=35 // pred_check_branch
          %198 = sbr.rel (%p195) target = $region40
        $region39: #{mink_next_block.4} parent=35 // pred_region
          %s223 = sand.u32 16, 7
          %p224 = scmp.eq.s32.totalorder %s223, 0
          // Predicated region
          $region52: #{mink_next_block.4} parent=39 // pred_check
            %p225 = pneg %p224
          $region53: #{mink_next_block.4} parent=39 // pred_check_branch
            %227 = sbr.rel (%p225) target = $region55
          $region54: #{mink_next_block.4} parent=39 // pred_region
            loop: start=0, step=1, limit=1
            $region56: #{mink_next_block.4} parent=54 // loop_pre_header
              _
            $region57: #{mink_next_block.4} parent=54 // loop_header
              %s229 = sphi 0, %s233
              %p230 = scmp.ge.s32.totalorder %s229, 1
              %s234 = sphi %s189, %s189
              %s235 = sphi %s191, %s191
            $region58: #{mink_next_block.4} parent=54 // loop_header_branch
              %232 = sbr.rel (%p230) target = $region62
            $region59: #{mink_next_block.4} parent=54 // loop_body
              %v236 = vld [vmem:[%s234] sm:$0xff]
              %237 = vst [vmem:[%s235] sm:$0xff] %v236
              %v238 = vld [vmem:[%s234 + $0x8] sm:$0xff]
              %239 = vst [vmem:[%s235 + $0x8] sm:$0xff] %v238
              %v240 = vld [vmem:[%s234 + $0x18] sm:$0xff]
              %241 = vst [vmem:[%s235 + $0x10] sm:$0xff] %v240
              %v242 = vld [vmem:[%s234 + $0x20] sm:$0xff]
              %243 = vst [vmem:[%s235 + $0x18] sm:$0xff] %v242
              %v244 = vld [vmem:[%s234 + $0x30] sm:$0xff]
              %245 = vst [vmem:[%s235 + $0x20] sm:$0xff] %v244
              %v246 = vld [vmem:[%s234 + $0x38] sm:$0xff]
              %247 = vst [vmem:[%s235 + $0x28] sm:$0xff] %v246
              %v248 = vld [vmem:[%s234 + $0x48] sm:$0xff]
              %249 = vst [vmem:[%s235 + $0x30] sm:$0xff] %v248
              %v250 = vld [vmem:[%s234 + $0x50] sm:$0xff]
              %251 = vst [vmem:[%s235 + $0x38] sm:$0xff] %v250
              %v252 = vld [vmem:[%s234 + $0x60] sm:$0xff]
              %253 = vst [vmem:[%s235 + $0x40] sm:$0xff] %v252
              %v254 = vld [vmem:[%s234 + $0x68] sm:$0xff]
              %255 = vst [vmem:[%s235 + $0x48] sm:$0xff] %v254
              %v256 = vld [vmem:[%s234 + $0x78] sm:$0xff]
              %257 = vst [vmem:[%s235 + $0x50] sm:$0xff] %v256
              %v258 = vld [vmem:[%s234 + $0x80] sm:$0xff]
              %259 = vst [vmem:[%s235 + $0x58] sm:$0xff] %v258
            $region60: #{mink_next_block.4} parent=54 // loop_footer
              %s233 = sadd.s32 1, %s229
            $region61: #{mink_next_block.4} parent=54 // loop_footer_branch
              %228 = sbr.rel target = $region57
            $region62: #{mink_next_block.4} parent=54 // loop_exit
              _
          $region55: #{mink_next_block.4} parent=39 // pred_fallthru
            _
          %p260 = pneg %p224
          // Predicated region
          $region63: #{mink_next_block.4} parent=39 // pred_check
            _
          $region64: #{mink_next_block.4} parent=39 // pred_check_branch
            %262 = sbr.rel (%p224) target = $region66
          $region65: #{mink_next_block.4} parent=39 // pred_region
            %s263 = sand.u32 16, 7
          $region66: #{mink_next_block.4} parent=39 // pred_fallthru
            _
        $region40: #{mink_next_block.4} parent=35 // pred_fallthru
          _
        // Predicated region
        $region41: #{mink_next_block.4} parent=35 // pred_check
          %p199 = pneg %p195
        $region42: #{mink_next_block.4} parent=35 // pred_check_branch
          %201 = sbr.rel (%p199) target = $region44
        $region43: #{mink_next_block.4} parent=35 // pred_region
          %s202 = sshllo.u32 0, 16
          loop: start=0, step=1, limit=1
          $region45: #{mink_next_block.4} parent=43 // loop_pre_header
            _
          $region46: #{mink_next_block.4} parent=43 // loop_header
            %s204 = sphi 0, %s208
            %p205 = scmp.ge.s32.totalorder %s204, 1
            %s209 = sphi %s189, %s189
            %s210 = sphi %s191, %s191
          $region47: #{mink_next_block.4} parent=43 // loop_header_branch
            %207 = sbr.rel (%p205) target = $region51
          $region48: #{mink_next_block.4} parent=43 // loop_body
            %v211 = vld [vmem:[%s209] sm:%s202]
            %212 = vst [vmem:[%s210] sm:%s202] %v211
            %v213 = vld [vmem:[%s209 + $0x18] sm:%s202]
            %214 = vst [vmem:[%s210 + $0x10] sm:%s202] %v213
            %v215 = vld [vmem:[%s209 + $0x30] sm:%s202]
            %216 = vst [vmem:[%s210 + $0x20] sm:%s202] %v215
            %v217 = vld [vmem:[%s209 + $0x48] sm:%s202]
            %218 = vst [vmem:[%s210 + $0x30] sm:%s202] %v217
            %v219 = vld [vmem:[%s209 + $0x60] sm:%s202]
            %220 = vst [vmem:[%s210 + $0x40] sm:%s202] %v219
            %v221 = vld [vmem:[%s209 + $0x78] sm:%s202]
            %222 = vst [vmem:[%s210 + $0x50] sm:%s202] %v221
          $region49: #{mink_next_block.4} parent=43 // loop_footer
            %s208 = sadd.s32 1, %s204
          $region50: #{mink_next_block.4} parent=43 // loop_footer_branch
            %203 = sbr.rel target = $region46
          $region51: #{mink_next_block.4} parent=43 // loop_exit
            _
        $region44: #{mink_next_block.4} parent=35 // pred_fallthru
          _
        // Predicated region
        $region67: #{mink_next_block.4} parent=35 // pred_check
          _
        $region68: #{mink_next_block.4} parent=35 // pred_check_branch
          %266 = sbr.rel (0) target = $region70
        $region69: #{mink_next_block.4} parent=35 // pred_region
          %267 = vsyncadd %s193, 1536
        $region70: #{mink_next_block.4} parent=35 // pred_fallthru
          _
        %s268 = sadd.s32 1, %s186
        %s269 = sadd.s32 %s268, %s187
        %s270 = scalar_lea.vmem %s0, %s269
        %s271 = sadd.s32 96, %s190
        %s272 = scalar_lea.vmem [#allocation2], %s271
        %s273 = sadd.s32 1, %s192
        %s274 = scalar_lea.sflag [#allocation3], %s273
        %p276 = scmp.lt.u32.totalorder 16, 8
        %p277 = pneg %p276
        // Predicated region
        $region71: #{mink_next_block.4} parent=35 // pred_check
          _
        $region72: #{mink_next_block.4} parent=35 // pred_check_branch
          %279 = sbr.rel (%p276) target = $region74
        $region73: #{mink_next_block.4} parent=35 // pred_region
          %s304 = sand.u32 16, 7
          %p305 = scmp.eq.s32.totalorder %s304, 0
          // Predicated region
          $region86: #{mink_next_block.4} parent=73 // pred_check
            %p306 = pneg %p305
          $region87: #{mink_next_block.4} parent=73 // pred_check_branch
            %308 = sbr.rel (%p306) target = $region89
          $region88: #{mink_next_block.4} parent=73 // pred_region
            loop: start=0, step=1, limit=1
            $region90: #{mink_next_block.4} parent=88 // loop_pre_header
              _
            $region91: #{mink_next_block.4} parent=88 // loop_header
              %s310 = sphi 0, %s314
              %p311 = scmp.ge.s32.totalorder %s310, 1
              %s315 = sphi %s270, %s270
              %s316 = sphi %s272, %s272
            $region92: #{mink_next_block.4} parent=88 // loop_header_branch
              %313 = sbr.rel (%p311) target = $region96
            $region93: #{mink_next_block.4} parent=88 // loop_body
              %v317 = vld [vmem:[%s315] sm:$0xff]
              %318 = vst [vmem:[%s316] sm:$0xff] %v317
              %v319 = vld [vmem:[%s315 + $0x8] sm:$0xff]
              %320 = vst [vmem:[%s316 + $0x8] sm:$0xff] %v319
              %v321 = vld [vmem:[%s315 + $0x18] sm:$0xff]
              %322 = vst [vmem:[%s316 + $0x10] sm:$0xff] %v321
              %v323 = vld [vmem:[%s315 + $0x20] sm:$0xff]
              %324 = vst [vmem:[%s316 + $0x18] sm:$0xff] %v323
              %v325 = vld [vmem:[%s315 + $0x30] sm:$0xff]
              %326 = vst [vmem:[%s316 + $0x20] sm:$0xff] %v325
              %v327 = vld [vmem:[%s315 + $0x38] sm:$0xff]
              %328 = vst [vmem:[%s316 + $0x28] sm:$0xff] %v327
              %v329 = vld [vmem:[%s315 + $0x48] sm:$0xff]
              %330 = vst [vmem:[%s316 + $0x30] sm:$0xff] %v329
              %v331 = vld [vmem:[%s315 + $0x50] sm:$0xff]
              %332 = vst [vmem:[%s316 + $0x38] sm:$0xff] %v331
              %v333 = vld [vmem:[%s315 + $0x60] sm:$0xff]
              %334 = vst [vmem:[%s316 + $0x40] sm:$0xff] %v333
              %v335 = vld [vmem:[%s315 + $0x68] sm:$0xff]
              %336 = vst [vmem:[%s316 + $0x48] sm:$0xff] %v335
              %v337 = vld [vmem:[%s315 + $0x78] sm:$0xff]
              %338 = vst [vmem:[%s316 + $0x50] sm:$0xff] %v337
              %v339 = vld [vmem:[%s315 + $0x80] sm:$0xff]
              %340 = vst [vmem:[%s316 + $0x58] sm:$0xff] %v339
            $region94: #{mink_next_block.4} parent=88 // loop_footer
              %s314 = sadd.s32 1, %s310
            $region95: #{mink_next_block.4} parent=88 // loop_footer_branch
              %309 = sbr.rel target = $region91
            $region96: #{mink_next_block.4} parent=88 // loop_exit
              _
          $region89: #{mink_next_block.4} parent=73 // pred_fallthru
            _
          %p341 = pneg %p305
          // Predicated region
          $region97: #{mink_next_block.4} parent=73 // pred_check
            _
          $region98: #{mink_next_block.4} parent=73 // pred_check_branch
            %343 = sbr.rel (%p305) target = $region100
          $region99: #{mink_next_block.4} parent=73 // pred_region
            %s344 = sand.u32 16, 7
          $region100: #{mink_next_block.4} parent=73 // pred_fallthru
            _
        $region74: #{mink_next_block.4} parent=35 // pred_fallthru
          _
        // Predicated region
        $region75: #{mink_next_block.4} parent=35 // pred_check
          %p280 = pneg %p276
        $region76: #{mink_next_block.4} parent=35 // pred_check_branch
          %282 = sbr.rel (%p280) target = $region78
        $region77: #{mink_next_block.4} parent=35 // pred_region
          %s283 = sshllo.u32 0, 16
          loop: start=0, step=1, limit=1
          $region79: #{mink_next_block.4} parent=77 // loop_pre_header
            _
          $region80: #{mink_next_block.4} parent=77 // loop_header
            %s285 = sphi 0, %s289
            %p286 = scmp.ge.s32.totalorder %s285, 1
            %s290 = sphi %s270, %s270
            %s291 = sphi %s272, %s272
          $region81: #{mink_next_block.4} parent=77 // loop_header_branch
            %288 = sbr.rel (%p286) target = $region85
          $region82: #{mink_next_block.4} parent=77 // loop_body
            %v292 = vld [vmem:[%s290] sm:%s283]
            %293 = vst [vmem:[%s291] sm:%s283] %v292
            %v294 = vld [vmem:[%s290 + $0x18] sm:%s283]
            %295 = vst [vmem:[%s291 + $0x10] sm:%s283] %v294
            %v296 = vld [vmem:[%s290 + $0x30] sm:%s283]
            %297 = vst [vmem:[%s291 + $0x20] sm:%s283] %v296
            %v298 = vld [vmem:[%s290 + $0x48] sm:%s283]
            %299 = vst [vmem:[%s291 + $0x30] sm:%s283] %v298
            %v300 = vld [vmem:[%s290 + $0x60] sm:%s283]
            %301 = vst [vmem:[%s291 + $0x40] sm:%s283] %v300
            %v302 = vld [vmem:[%s290 + $0x78] sm:%s283]
            %303 = vst [vmem:[%s291 + $0x50] sm:%s283] %v302
          $region83: #{mink_next_block.4} parent=77 // loop_footer
            %s289 = sadd.s32 1, %s285
          $region84: #{mink_next_block.4} parent=77 // loop_footer_branch
            %284 = sbr.rel target = $region80
          $region85: #{mink_next_block.4} parent=77 // loop_exit
            _
        $region78: #{mink_next_block.4} parent=35 // pred_fallthru
          _
        // Predicated region
        $region101: #{mink_next_block.4} parent=35 // pred_check
          _
        $region102: #{mink_next_block.4} parent=35 // pred_check_branch
          %347 = sbr.rel (0) target = $region104
        $region103: #{mink_next_block.4} parent=35 // pred_region
          %348 = vsyncadd %s274, 1536
        $region104: #{mink_next_block.4} parent=35 // pred_fallthru
          _
        %s349 = sadd.s32 2, %s186
        %s350 = sadd.s32 %s349, %s187
        %s351 = scalar_lea.vmem %s0, %s350
        %s352 = sadd.s32 192, %s190
        %s353 = scalar_lea.vmem [#allocation2], %s352
        %s354 = sadd.s32 2, %s192
        %s355 = scalar_lea.sflag [#allocation3], %s354
        %p357 = scmp.lt.u32.totalorder 16, 8
        %p358 = pneg %p357
        // Predicated region
        $region105: #{mink_next_block.4} parent=35 // pred_check
          _
        $region106: #{mink_next_block.4} parent=35 // pred_check_branch
          %360 = sbr.rel (%p357) target = $region108
        $region107: #{mink_next_block.4} parent=35 // pred_region
          %s385 = sand.u32 16, 7
          %p386 = scmp.eq.s32.totalorder %s385, 0
          // Predicated region
          $region120: #{mink_next_block.4} parent=107 // pred_check
            %p387 = pneg %p386
          $region121: #{mink_next_block.4} parent=107 // pred_check_branch
            %389 = sbr.rel (%p387) target = $region123
          $region122: #{mink_next_block.4} parent=107 // pred_region
            loop: start=0, step=1, limit=1
            $region124: #{mink_next_block.4} parent=122 // loop_pre_header
              _
            $region125: #{mink_next_block.4} parent=122 // loop_header
              %s391 = sphi 0, %s395
              %p392 = scmp.ge.s32.totalorder %s391, 1
              %s396 = sphi %s351, %s351
              %s397 = sphi %s353, %s353
            $region126: #{mink_next_block.4} parent=122 // loop_header_branch
              %394 = sbr.rel (%p392) target = $region130
            $region127: #{mink_next_block.4} parent=122 // loop_body
              %v398 = vld [vmem:[%s396] sm:$0xff]
              %399 = vst [vmem:[%s397] sm:$0xff] %v398
              %v400 = vld [vmem:[%s396 + $0x8] sm:$0xff]
              %401 = vst [vmem:[%s397 + $0x8] sm:$0xff] %v400
              %v402 = vld [vmem:[%s396 + $0x18] sm:$0xff]
              %403 = vst [vmem:[%s397 + $0x10] sm:$0xff] %v402
              %v404 = vld [vmem:[%s396 + $0x20] sm:$0xff]
              %405 = vst [vmem:[%s397 + $0x18] sm:$0xff] %v404
              %v406 = vld [vmem:[%s396 + $0x30] sm:$0xff]
              %407 = vst [vmem:[%s397 + $0x20] sm:$0xff] %v406
              %v408 = vld [vmem:[%s396 + $0x38] sm:$0xff]
              %409 = vst [vmem:[%s397 + $0x28] sm:$0xff] %v408
              %v410 = vld [vmem:[%s396 + $0x48] sm:$0xff]
              %411 = vst [vmem:[%s397 + $0x30] sm:$0xff] %v410
              %v412 = vld [vmem:[%s396 + $0x50] sm:$0xff]
              %413 = vst [vmem:[%s397 + $0x38] sm:$0xff] %v412
              %v414 = vld [vmem:[%s396 + $0x60] sm:$0xff]
              %415 = vst [vmem:[%s397 + $0x40] sm:$0xff] %v414
              %v416 = vld [vmem:[%s396 + $0x68] sm:$0xff]
              %417 = vst [vmem:[%s397 + $0x48] sm:$0xff] %v416
              %v418 = vld [vmem:[%s396 + $0x78] sm:$0xff]
              %419 = vst [vmem:[%s397 + $0x50] sm:$0xff] %v418
              %v420 = vld [vmem:[%s396 + $0x80] sm:$0xff]
              %421 = vst [vmem:[%s397 + $0x58] sm:$0xff] %v420
            $region128: #{mink_next_block.4} parent=122 // loop_footer
              %s395 = sadd.s32 1, %s391
            $region129: #{mink_next_block.4} parent=122 // loop_footer_branch
              %390 = sbr.rel target = $region125
            $region130: #{mink_next_block.4} parent=122 // loop_exit
              _
          $region123: #{mink_next_block.4} parent=107 // pred_fallthru
            _
          %p422 = pneg %p386
          // Predicated region
          $region131: #{mink_next_block.4} parent=107 // pred_check
            _
          $region132: #{mink_next_block.4} parent=107 // pred_check_branch
            %424 = sbr.rel (%p386) target = $region134
          $region133: #{mink_next_block.4} parent=107 // pred_region
            %s425 = sand.u32 16, 7
          $region134: #{mink_next_block.4} parent=107 // pred_fallthru
            _
        $region108: #{mink_next_block.4} parent=35 // pred_fallthru
          _
        // Predicated region
        $region109: #{mink_next_block.4} parent=35 // pred_check
          %p361 = pneg %p357
        $region110: #{mink_next_block.4} parent=35 // pred_check_branch
          %363 = sbr.rel (%p361) target = $region112
        $region111: #{mink_next_block.4} parent=35 // pred_region
          %s364 = sshllo.u32 0, 16
          loop: start=0, step=1, limit=1
          $region113: #{mink_next_block.4} parent=111 // loop_pre_header
            _
          $region114: #{mink_next_block.4} parent=111 // loop_header
            %s366 = sphi 0, %s370
            %p367 = scmp.ge.s32.totalorder %s366, 1
            %s371 = sphi %s351, %s351
            %s372 = sphi %s353, %s353
          $region115: #{mink_next_block.4} parent=111 // loop_header_branch
            %369 = sbr.rel (%p367) target = $region119
          $region116: #{mink_next_block.4} parent=111 // loop_body
            %v373 = vld [vmem:[%s371] sm:%s364]
            %374 = vst [vmem:[%s372] sm:%s364] %v373
            %v375 = vld [vmem:[%s371 + $0x18] sm:%s364]
            %376 = vst [vmem:[%s372 + $0x10] sm:%s364] %v375
            %v377 = vld [vmem:[%s371 + $0x30] sm:%s364]
            %378 = vst [vmem:[%s372 + $0x20] sm:%s364] %v377
            %v379 = vld [vmem:[%s371 + $0x48] sm:%s364]
            %380 = vst [vmem:[%s372 + $0x30] sm:%s364] %v379
            %v381 = vld [vmem:[%s371 + $0x60] sm:%s364]
            %382 = vst [vmem:[%s372 + $0x40] sm:%s364] %v381
            %v383 = vld [vmem:[%s371 + $0x78] sm:%s364]
            %384 = vst [vmem:[%s372 + $0x50] sm:%s364] %v383
          $region117: #{mink_next_block.4} parent=111 // loop_footer
            %s370 = sadd.s32 1, %s366
          $region118: #{mink_next_block.4} parent=111 // loop_footer_branch
            %365 = sbr.rel target = $region114
          $region119: #{mink_next_block.4} parent=111 // loop_exit
            _
        $region112: #{mink_next_block.4} parent=35 // pred_fallthru
          _
        // Predicated region
        $region135: #{mink_next_block.4} parent=35 // pred_check
          _
        $region136: #{mink_next_block.4} parent=35 // pred_check_branch
          %428 = sbr.rel (0) target = $region138
        $region137: #{mink_next_block.4} parent=35 // pred_region
          %429 = vsyncadd %s355, 1536
        $region138: #{mink_next_block.4} parent=35 // pred_fallthru
          _
      $region36: #{mink_next_block.4} parent=31 // pred_fallthru
        _
      %s430 = sadd.s32 %s20, 1
      %p431 = scmp.lt.s32.totalorder %s430, 4
      // Predicated region
      $region139: #{mink_next_block.4} parent=31 // pred_check
        %p432 = pneg %p431
      $region140: #{mink_next_block.4} parent=31 // pred_check_branch
        %434 = sbr.rel (%p432) target = $region142
      $region141: #{mink_next_block.4} parent=31 // pred_region
        %s435 = ssub.s32 1, %s180
        %s436 = smul.u32 %s430, 4
        %s437 = smul.u32 %s436, 24
        %s438 = smul.u32 %s19, 432
        %s439 = sadd.s32 %s437, %s438
        %s440 = scalar_lea.vmem %s0, %s439
        %s441 = smul.u32 %s435, 288
        %s442 = scalar_lea.vmem [#allocation2], %s441
        %s443 = smul.u32 %s435, 3
        %s444 = scalar_lea.sflag [#allocation3], %s443
        %p446 = scmp.lt.u32.totalorder 16, 8
        %p447 = pneg %p446
        // Predicated region
        $region143: #{mink_next_block.4} parent=141 // pred_check
          _
        $region144: #{mink_next_block.4} parent=141 // pred_check_branch
          %449 = sbr.rel (%p446) target = $region146
        $region145: #{mink_next_block.4} parent=141 // pred_region
          %s474 = sand.u32 16, 7
          %p475 = scmp.eq.s32.totalorder %s474, 0
          // Predicated region
          $region158: #{mink_next_block.4} parent=145 // pred_check
            %p476 = pneg %p475
          $region159: #{mink_next_block.4} parent=145 // pred_check_branch
            %478 = sbr.rel (%p476) target = $region161
          $region160: #{mink_next_block.4} parent=145 // pred_region
            loop: start=0, step=1, limit=1
            $region162: #{mink_next_block.4} parent=160 // loop_pre_header
              _
            $region163: #{mink_next_block.4} parent=160 // loop_header
              %s480 = sphi 0, %s484
              %p481 = scmp.ge.s32.totalorder %s480, 1
              %s485 = sphi %s440, %s440
              %s486 = sphi %s442, %s442
            $region164: #{mink_next_block.4} parent=160 // loop_header_branch
              %483 = sbr.rel (%p481) target = $region168
            $region165: #{mink_next_block.4} parent=160 // loop_body
              %v487 = vld [vmem:[%s485] sm:$0xff]
              %488 = vst [vmem:[%s486] sm:$0xff] %v487
              %v489 = vld [vmem:[%s485 + $0x8] sm:$0xff]
              %490 = vst [vmem:[%s486 + $0x8] sm:$0xff] %v489
              %v491 = vld [vmem:[%s485 + $0x18] sm:$0xff]
              %492 = vst [vmem:[%s486 + $0x10] sm:$0xff] %v491
              %v493 = vld [vmem:[%s485 + $0x20] sm:$0xff]
              %494 = vst [vmem:[%s486 + $0x18] sm:$0xff] %v493
              %v495 = vld [vmem:[%s485 + $0x30] sm:$0xff]
              %496 = vst [vmem:[%s486 + $0x20] sm:$0xff] %v495
              %v497 = vld [vmem:[%s485 + $0x38] sm:$0xff]
              %498 = vst [vmem:[%s486 + $0x28] sm:$0xff] %v497
              %v499 = vld [vmem:[%s485 + $0x48] sm:$0xff]
              %500 = vst [vmem:[%s486 + $0x30] sm:$0xff] %v499
              %v501 = vld [vmem:[%s485 + $0x50] sm:$0xff]
              %502 = vst [vmem:[%s486 + $0x38] sm:$0xff] %v501
              %v503 = vld [vmem:[%s485 + $0x60] sm:$0xff]
              %504 = vst [vmem:[%s486 + $0x40] sm:$0xff] %v503
              %v505 = vld [vmem:[%s485 + $0x68] sm:$0xff]
              %506 = vst [vmem:[%s486 + $0x48] sm:$0xff] %v505
              %v507 = vld [vmem:[%s485 + $0x78] sm:$0xff]
              %508 = vst [vmem:[%s486 + $0x50] sm:$0xff] %v507
              %v509 = vld [vmem:[%s485 + $0x80] sm:$0xff]
              %510 = vst [vmem:[%s486 + $0x58] sm:$0xff] %v509
            $region166: #{mink_next_block.4} parent=160 // loop_footer
              %s484 = sadd.s32 1, %s480
            $region167: #{mink_next_block.4} parent=160 // loop_footer_branch
              %479 = sbr.rel target = $region163
            $region168: #{mink_next_block.4} parent=160 // loop_exit
              _
          $region161: #{mink_next_block.4} parent=145 // pred_fallthru
            _
          %p511 = pneg %p475
          // Predicated region
          $region169: #{mink_next_block.4} parent=145 // pred_check
            _
          $region170: #{mink_next_block.4} parent=145 // pred_check_branch
            %513 = sbr.rel (%p475) target = $region172
          $region171: #{mink_next_block.4} parent=145 // pred_region
            %s514 = sand.u32 16, 7
          $region172: #{mink_next_block.4} parent=145 // pred_fallthru
            _
        $region146: #{mink_next_block.4} parent=141 // pred_fallthru
          _
        // Predicated region
        $region147: #{mink_next_block.4} parent=141 // pred_check
          %p450 = pneg %p446
        $region148: #{mink_next_block.4} parent=141 // pred_check_branch
          %452 = sbr.rel (%p450) target = $region150
        $region149: #{mink_next_block.4} parent=141 // pred_region
          %s453 = sshllo.u32 0, 16
          loop: start=0, step=1, limit=1
          $region151: #{mink_next_block.4} parent=149 // loop_pre_header
            _
          $region152: #{mink_next_block.4} parent=149 // loop_header
            %s455 = sphi 0, %s459
            %p456 = scmp.ge.s32.totalorder %s455, 1
            %s460 = sphi %s440, %s440
            %s461 = sphi %s442, %s442
          $region153: #{mink_next_block.4} parent=149 // loop_header_branch
            %458 = sbr.rel (%p456) target = $region157
          $region154: #{mink_next_block.4} parent=149 // loop_body
            %v462 = vld [vmem:[%s460] sm:%s453]
            %463 = vst [vmem:[%s461] sm:%s453] %v462
            %v464 = vld [vmem:[%s460 + $0x18] sm:%s453]
            %465 = vst [vmem:[%s461 + $0x10] sm:%s453] %v464
            %v466 = vld [vmem:[%s460 + $0x30] sm:%s453]
            %467 = vst [vmem:[%s461 + $0x20] sm:%s453] %v466
            %v468 = vld [vmem:[%s460 + $0x48] sm:%s453]
            %469 = vst [vmem:[%s461 + $0x30] sm:%s453] %v468
            %v470 = vld [vmem:[%s460 + $0x60] sm:%s453]
            %471 = vst [vmem:[%s461 + $0x40] sm:%s453] %v470
            %v472 = vld [vmem:[%s460 + $0x78] sm:%s453]
            %473 = vst [vmem:[%s461 + $0x50] sm:%s453] %v472
          $region155: #{mink_next_block.4} parent=149 // loop_footer
            %s459 = sadd.s32 1, %s455
          $region156: #{mink_next_block.4} parent=149 // loop_footer_branch
            %454 = sbr.rel target = $region152
          $region157: #{mink_next_block.4} parent=149 // loop_exit
            _
        $region150: #{mink_next_block.4} parent=141 // pred_fallthru
          _
        // Predicated region
        $region173: #{mink_next_block.4} parent=141 // pred_check
          _
        $region174: #{mink_next_block.4} parent=141 // pred_check_branch
          %517 = sbr.rel (0) target = $region176
        $region175: #{mink_next_block.4} parent=141 // pred_region
          %518 = vsyncadd %s444, 1536
        $region176: #{mink_next_block.4} parent=141 // pred_fallthru
          _
        %s519 = sadd.s32 1, %s437
        %s520 = sadd.s32 %s519, %s438
        %s521 = scalar_lea.vmem %s0, %s520
        %s522 = sadd.s32 96, %s441
        %s523 = scalar_lea.vmem [#allocation2], %s522
        %s524 = sadd.s32 1, %s443
        %s525 = scalar_lea.sflag [#allocation3], %s524
        %p527 = scmp.lt.u32.totalorder 16, 8
        %p528 = pneg %p527
        // Predicated region
        $region177: #{mink_next_block.4} parent=141 // pred_check
          _
        $region178: #{mink_next_block.4} parent=141 // pred_check_branch
          %530 = sbr.rel (%p527) target = $region180
        $region179: #{mink_next_block.4} parent=141 // pred_region
          %s555 = sand.u32 16, 7
          %p556 = scmp.eq.s32.totalorder %s555, 0
          // Predicated region
          $region192: #{mink_next_block.4} parent=179 // pred_check
            %p557 = pneg %p556
          $region193: #{mink_next_block.4} parent=179 // pred_check_branch
            %559 = sbr.rel (%p557) target = $region195
          $region194: #{mink_next_block.4} parent=179 // pred_region
            loop: start=0, step=1, limit=1
            $region196: #{mink_next_block.4} parent=194 // loop_pre_header
              _
            $region197: #{mink_next_block.4} parent=194 // loop_header
              %s561 = sphi 0, %s565
              %p562 = scmp.ge.s32.totalorder %s561, 1
              %s566 = sphi %s521, %s521
              %s567 = sphi %s523, %s523
            $region198: #{mink_next_block.4} parent=194 // loop_header_branch
              %564 = sbr.rel (%p562) target = $region202
            $region199: #{mink_next_block.4} parent=194 // loop_body
              %v568 = vld [vmem:[%s566] sm:$0xff]
              %569 = vst [vmem:[%s567] sm:$0xff] %v568
              %v570 = vld [vmem:[%s566 + $0x8] sm:$0xff]
              %571 = vst [vmem:[%s567 + $0x8] sm:$0xff] %v570
              %v572 = vld [vmem:[%s566 + $0x18] sm:$0xff]
              %573 = vst [vmem:[%s567 + $0x10] sm:$0xff] %v572
              %v574 = vld [vmem:[%s566 + $0x20] sm:$0xff]
              %575 = vst [vmem:[%s567 + $0x18] sm:$0xff] %v574
              %v576 = vld [vmem:[%s566 + $0x30] sm:$0xff]
              %577 = vst [vmem:[%s567 + $0x20] sm:$0xff] %v576
              %v578 = vld [vmem:[%s566 + $0x38] sm:$0xff]
              %579 = vst [vmem:[%s567 + $0x28] sm:$0xff] %v578
              %v580 = vld [vmem:[%s566 + $0x48] sm:$0xff]
              %581 = vst [vmem:[%s567 + $0x30] sm:$0xff] %v580
              %v582 = vld [vmem:[%s566 + $0x50] sm:$0xff]
              %583 = vst [vmem:[%s567 + $0x38] sm:$0xff] %v582
              %v584 = vld [vmem:[%s566 + $0x60] sm:$0xff]
              %585 = vst [vmem:[%s567 + $0x40] sm:$0xff] %v584
              %v586 = vld [vmem:[%s566 + $0x68] sm:$0xff]
              %587 = vst [vmem:[%s567 + $0x48] sm:$0xff] %v586
              %v588 = vld [vmem:[%s566 + $0x78] sm:$0xff]
              %589 = vst [vmem:[%s567 + $0x50] sm:$0xff] %v588
              %v590 = vld [vmem:[%s566 + $0x80] sm:$0xff]
              %591 = vst [vmem:[%s567 + $0x58] sm:$0xff] %v590
            $region200: #{mink_next_block.4} parent=194 // loop_footer
              %s565 = sadd.s32 1, %s561
            $region201: #{mink_next_block.4} parent=194 // loop_footer_branch
              %560 = sbr.rel target = $region197
            $region202: #{mink_next_block.4} parent=194 // loop_exit
              _
          $region195: #{mink_next_block.4} parent=179 // pred_fallthru
            _
          %p592 = pneg %p556
          // Predicated region
          $region203: #{mink_next_block.4} parent=179 // pred_check
            _
          $region204: #{mink_next_block.4} parent=179 // pred_check_branch
            %594 = sbr.rel (%p556) target = $region206
          $region205: #{mink_next_block.4} parent=179 // pred_region
            %s595 = sand.u32 16, 7
          $region206: #{mink_next_block.4} parent=179 // pred_fallthru
            _
        $region180: #{mink_next_block.4} parent=141 // pred_fallthru
          _
        // Predicated region
        $region181: #{mink_next_block.4} parent=141 // pred_check
          %p531 = pneg %p527
        $region182: #{mink_next_block.4} parent=141 // pred_check_branch
          %533 = sbr.rel (%p531) target = $region184
        $region183: #{mink_next_block.4} parent=141 // pred_region
          %s534 = sshllo.u32 0, 16
          loop: start=0, step=1, limit=1
          $region185: #{mink_next_block.4} parent=183 // loop_pre_header
            _
          $region186: #{mink_next_block.4} parent=183 // loop_header
            %s536 = sphi 0, %s540
            %p537 = scmp.ge.s32.totalorder %s536, 1
            %s541 = sphi %s521, %s521
            %s542 = sphi %s523, %s523
          $region187: #{mink_next_block.4} parent=183 // loop_header_branch
            %539 = sbr.rel (%p537) target = $region191
          $region188: #{mink_next_block.4} parent=183 // loop_body
            %v543 = vld [vmem:[%s541] sm:%s534]
            %544 = vst [vmem:[%s542] sm:%s534] %v543
            %v545 = vld [vmem:[%s541 + $0x18] sm:%s534]
            %546 = vst [vmem:[%s542 + $0x10] sm:%s534] %v545
            %v547 = vld [vmem:[%s541 + $0x30] sm:%s534]
            %548 = vst [vmem:[%s542 + $0x20] sm:%s534] %v547
            %v549 = vld [vmem:[%s541 + $0x48] sm:%s534]
            %550 = vst [vmem:[%s542 + $0x30] sm:%s534] %v549
            %v551 = vld [vmem:[%s541 + $0x60] sm:%s534]
            %552 = vst [vmem:[%s542 + $0x40] sm:%s534] %v551
            %v553 = vld [vmem:[%s541 + $0x78] sm:%s534]
            %554 = vst [vmem:[%s542 + $0x50] sm:%s534] %v553
          $region189: #{mink_next_block.4} parent=183 // loop_footer
            %s540 = sadd.s32 1, %s536
          $region190: #{mink_next_block.4} parent=183 // loop_footer_branch
            %535 = sbr.rel target = $region186
          $region191: #{mink_next_block.4} parent=183 // loop_exit
            _
        $region184: #{mink_next_block.4} parent=141 // pred_fallthru
          _
        // Predicated region
        $region207: #{mink_next_block.4} parent=141 // pred_check
          _
        $region208: #{mink_next_block.4} parent=141 // pred_check_branch
          %598 = sbr.rel (0) target = $region210
        $region209: #{mink_next_block.4} parent=141 // pred_region
          %599 = vsyncadd %s525, 1536
        $region210: #{mink_next_block.4} parent=141 // pred_fallthru
          _
        %s600 = sadd.s32 2, %s437
        %s601 = sadd.s32 %s600, %s438
        %s602 = scalar_lea.vmem %s0, %s601
        %s603 = sadd.s32 192, %s441
        %s604 = scalar_lea.vmem [#allocation2], %s603
        %s605 = sadd.s32 2, %s443
        %s606 = scalar_lea.sflag [#allocation3], %s605
        %p608 = scmp.lt.u32.totalorder 16, 8
        %p609 = pneg %p608
        // Predicated region
        $region211: #{mink_next_block.4} parent=141 // pred_check
          _
        $region212: #{mink_next_block.4} parent=141 // pred_check_branch
          %611 = sbr.rel (%p608) target = $region214
        $region213: #{mink_next_block.4} parent=141 // pred_region
          %s636 = sand.u32 16, 7
          %p637 = scmp.eq.s32.totalorder %s636, 0
          // Predicated region
          $region226: #{mink_next_block.4} parent=213 // pred_check
            %p638 = pneg %p637
          $region227: #{mink_next_block.4} parent=213 // pred_check_branch
            %640 = sbr.rel (%p638) target = $region229
          $region228: #{mink_next_block.4} parent=213 // pred_region
            loop: start=0, step=1, limit=1
            $region230: #{mink_next_block.4} parent=228 // loop_pre_header
              _
            $region231: #{mink_next_block.4} parent=228 // loop_header
              %s642 = sphi 0, %s646
              %p643 = scmp.ge.s32.totalorder %s642, 1
              %s647 = sphi %s602, %s602
              %s648 = sphi %s604, %s604
            $region232: #{mink_next_block.4} parent=228 // loop_header_branch
              %645 = sbr.rel (%p643) target = $region236
            $region233: #{mink_next_block.4} parent=228 // loop_body
              %v649 = vld [vmem:[%s647] sm:$0xff]
              %650 = vst [vmem:[%s648] sm:$0xff] %v649
              %v651 = vld [vmem:[%s647 + $0x8] sm:$0xff]
              %652 = vst [vmem:[%s648 + $0x8] sm:$0xff] %v651
              %v653 = vld [vmem:[%s647 + $0x18] sm:$0xff]
              %654 = vst [vmem:[%s648 + $0x10] sm:$0xff] %v653
              %v655 = vld [vmem:[%s647 + $0x20] sm:$0xff]
              %656 = vst [vmem:[%s648 + $0x18] sm:$0xff] %v655
              %v657 = vld [vmem:[%s647 + $0x30] sm:$0xff]
              %658 = vst [vmem:[%s648 + $0x20] sm:$0xff] %v657
              %v659 = vld [vmem:[%s647 + $0x38] sm:$0xff]
              %660 = vst [vmem:[%s648 + $0x28] sm:$0xff] %v659
              %v661 = vld [vmem:[%s647 + $0x48] sm:$0xff]
              %662 = vst [vmem:[%s648 + $0x30] sm:$0xff] %v661
              %v663 = vld [vmem:[%s647 + $0x50] sm:$0xff]
              %664 = vst [vmem:[%s648 + $0x38] sm:$0xff] %v663
              %v665 = vld [vmem:[%s647 + $0x60] sm:$0xff]
              %666 = vst [vmem:[%s648 + $0x40] sm:$0xff] %v665
              %v667 = vld [vmem:[%s647 + $0x68] sm:$0xff]
              %668 = vst [vmem:[%s648 + $0x48] sm:$0xff] %v667
              %v669 = vld [vmem:[%s647 + $0x78] sm:$0xff]
              %670 = vst [vmem:[%s648 + $0x50] sm:$0xff] %v669
              %v671 = vld [vmem:[%s647 + $0x80] sm:$0xff]
              %672 = vst [vmem:[%s648 + $0x58] sm:$0xff] %v671
            $region234: #{mink_next_block.4} parent=228 // loop_footer
              %s646 = sadd.s32 1, %s642
            $region235: #{mink_next_block.4} parent=228 // loop_footer_branch
              %641 = sbr.rel target = $region231
            $region236: #{mink_next_block.4} parent=228 // loop_exit
              _
          $region229: #{mink_next_block.4} parent=213 // pred_fallthru
            _
          %p673 = pneg %p637
          // Predicated region
          $region237: #{mink_next_block.4} parent=213 // pred_check
            _
          $region238: #{mink_next_block.4} parent=213 // pred_check_branch
            %675 = sbr.rel (%p637) target = $region240
          $region239: #{mink_next_block.4} parent=213 // pred_region
            %s676 = sand.u32 16, 7
          $region240: #{mink_next_block.4} parent=213 // pred_fallthru
            _
        $region214: #{mink_next_block.4} parent=141 // pred_fallthru
          _
        // Predicated region
        $region215: #{mink_next_block.4} parent=141 // pred_check
          %p612 = pneg %p608
        $region216: #{mink_next_block.4} parent=141 // pred_check_branch
          %614 = sbr.rel (%p612) target = $region218
        $region217: #{mink_next_block.4} parent=141 // pred_region
          %s615 = sshllo.u32 0, 16
          loop: start=0, step=1, limit=1
          $region219: #{mink_next_block.4} parent=217 // loop_pre_header
            _
          $region220: #{mink_next_block.4} parent=217 // loop_header
            %s617 = sphi 0, %s621
            %p618 = scmp.ge.s32.totalorder %s617, 1
            %s622 = sphi %s602, %s602
            %s623 = sphi %s604, %s604
          $region221: #{mink_next_block.4} parent=217 // loop_header_branch
            %620 = sbr.rel (%p618) target = $region225
          $region222: #{mink_next_block.4} parent=217 // loop_body
            %v624 = vld [vmem:[%s622] sm:%s615]
            %625 = vst [vmem:[%s623] sm:%s615] %v624
            %v626 = vld [vmem:[%s622 + $0x18] sm:%s615]
            %627 = vst [vmem:[%s623 + $0x10] sm:%s615] %v626
            %v628 = vld [vmem:[%s622 + $0x30] sm:%s615]
            %629 = vst [vmem:[%s623 + $0x20] sm:%s615] %v628
            %v630 = vld [vmem:[%s622 + $0x48] sm:%s615]
            %631 = vst [vmem:[%s623 + $0x30] sm:%s615] %v630
            %v632 = vld [vmem:[%s622 + $0x60] sm:%s615]
            %633 = vst [vmem:[%s623 + $0x40] sm:%s615] %v632
            %v634 = vld [vmem:[%s622 + $0x78] sm:%s615]
            %635 = vst [vmem:[%s623 + $0x50] sm:%s615] %v634
          $region223: #{mink_next_block.4} parent=217 // loop_footer
            %s621 = sadd.s32 1, %s617
          $region224: #{mink_next_block.4} parent=217 // loop_footer_branch
            %616 = sbr.rel target = $region220
          $region225: #{mink_next_block.4} parent=217 // loop_exit
            _
        $region218: #{mink_next_block.4} parent=141 // pred_fallthru
          _
        // Predicated region
        $region241: #{mink_next_block.4} parent=141 // pred_check
          _
        $region242: #{mink_next_block.4} parent=141 // pred_check_branch
          %679 = sbr.rel (0) target = $region244
        $region243: #{mink_next_block.4} parent=141 // pred_region
          %680 = vsyncadd %s606, 1536
        $region244: #{mink_next_block.4} parent=141 // pred_fallthru
          _
      $region142: #{mink_next_block.4} parent=31 // pred_fallthru
        _
      %s681 = smul.u32 %s180, 3
      %s682 = scalar_lea.sflag [#allocation3], %s681
      %s683 = smul.u32 6, 16
      %s684 = smul.u32 %s683, 1
      %s685 = sshll.u32 %s684, 4
      %686 = dma.done %s682, %s685
      %s687 = sadd.s32 1, %s681
      %s688 = scalar_lea.sflag [#allocation3], %s687
      %s689 = sshll.u32 %s684, 4
      %690 = dma.done %s688, %s689
      %s691 = sadd.s32 2, %s681
      %s692 = scalar_lea.sflag [#allocation3], %s691
      %s693 = sshll.u32 %s684, 4
      %694 = dma.done %s692, %s693
      %s695 = smul.u32 %s180, 288
      %s696 = scalar_lea.vmem [#allocation2], %s695
      %v697 = vld [vmem:[%s696] sm:$0xff]
      %v698 = vld [vmem:[%s696 + $0x8] sm:$0xff]
      %v699 = vld [vmem:[%s696 + $0x10] sm:$0xff]
      %v700 = vld [vmem:[%s696 + $0x18] sm:$0xff]
      %v701 = vld [vmem:[%s696 + $0x20] sm:$0xff]
      %v702 = vld [vmem:[%s696 + $0x28] sm:$0xff]
      %v703 = vld [vmem:[%s696 + $0x30] sm:$0xff]
      %v704 = vld [vmem:[%s696 + $0x38] sm:$0xff]
      %v705 = vld [vmem:[%s1] sm:$0xff]
      %v706 = vld [vmem:[%s1 + $0x8] sm:$0xff]
      %v707 = vld [vmem:[%s1 + $0x10] sm:$0xff]
      %v708 = vld [vmem:[%s1 + $0x18] sm:$0xff]
      %v709 = vld [vmem:[%s1 + $0x20] sm:$0xff]
      %v710 = vld [vmem:[%s1 + $0x28] sm:$0xff]
      %v711 = vld [vmem:[%s1 + $0x30] sm:$0xff]
      %v712 = vld [vmem:[%s1 + $0x38] sm:$0xff]
      %v713 = vld [vmem:[%s1 + $0x40] sm:$0xff]
      %v714 = vld [vmem:[%s1 + $0x48] sm:$0xff]
      %v715 = vld [vmem:[%s1 + $0x50] sm:$0xff]
      %v716 = vld [vmem:[%s1 + $0x58] sm:$0xff]
      %v717 = vld [vmem:[%s1 + $0x60] sm:$0xff]
      %v718 = vld [vmem:[%s1 + $0x68] sm:$0xff]
      %v719 = vld [vmem:[%s1 + $0x70] sm:$0xff]
      %v720 = vld [vmem:[%s1 + $0x78] sm:$0xff]
      %s721 = sadd.s32 96, %s695
      %s722 = scalar_lea.vmem [#allocation2], %s721
      %v723 = vld [vmem:[%s722] sm:$0xff]
      %v724 = vld [vmem:[%s722 + $0x8] sm:$0xff]
      %v725 = vld [vmem:[%s722 + $0x10] sm:$0xff]
      %v726 = vld [vmem:[%s722 + $0x18] sm:$0xff]
      %v727 = vld [vmem:[%s722 + $0x20] sm:$0xff]
      %v728 = vld [vmem:[%s722 + $0x28] sm:$0xff]
      %v729 = vld [vmem:[%s722 + $0x30] sm:$0xff]
      %v730 = vld [vmem:[%s722 + $0x38] sm:$0xff]
      %s731 = scalar_lea.vmem %s1, 128
      %v732 = vld [vmem:[%s731] sm:$0xff]
      %v733 = vld [vmem:[%s731 + $0x8] sm:$0xff]
      %v734 = vld [vmem:[%s731 + $0x10] sm:$0xff]
      %v735 = vld [vmem:[%s731 + $0x18] sm:$0xff]
      %v736 = vld [vmem:[%s731 + $0x20] sm:$0xff]
      %v737 = vld [vmem:[%s731 + $0x28] sm:$0xff]
      %v738 = vld [vmem:[%s731 + $0x30] sm:$0xff]
      %v739 = vld [vmem:[%s731 + $0x38] sm:$0xff]
      %v740 = vld [vmem:[%s731 + $0x40] sm:$0xff]
      %v741 = vld [vmem:[%s731 + $0x48] sm:$0xff]
      %v742 = vld [vmem:[%s731 + $0x50] sm:$0xff]
      %v743 = vld [vmem:[%s731 + $0x58] sm:$0xff]
      %v744 = vld [vmem:[%s731 + $0x60] sm:$0xff]
      %v745 = vld [vmem:[%s731 + $0x68] sm:$0xff]
      %v746 = vld [vmem:[%s731 + $0x70] sm:$0xff]
      %v747 = vld [vmem:[%s731 + $0x78] sm:$0xff]
      %748 = vmatprep.subr.mxu0 0.0
      %749 = vmatpush1.msra.mxu0 %v732
      %750 = vmatprep.subr.mxu0 0.0
      %751 = vmatpush1.msra.mxu0 %v733
      %752 = vmatprep.subr.mxu0 0.0
      %753 = vmatpush1.msra.mxu0 %v734
      %754 = vmatprep.subr.mxu0 0.0
      %755 = vmatpush1.msra.mxu0 %v735
      %756 = vmatprep.subr.mxu0 0.0
      %757 = vmatpush1.msra.mxu0 %v736
      %758 = vmatprep.subr.mxu0 0.0
      %759 = vmatpush1.msra.mxu0 %v737
      %760 = vmatprep.subr.mxu0 0.0
      %761 = vmatpush1.msra.mxu0 %v738
      %762 = vmatprep.subr.mxu0 0.0
      %763 = vmatpush1.msra.mxu0 %v739
      %764 = vmatprep.subr.mxu0 0.0
      %765 = vmatpush1.msra.mxu0 %v740
      %766 = vmatprep.subr.mxu0 0.0
      %767 = vmatpush1.msra.mxu0 %v741
      %768 = vmatprep.subr.mxu0 0.0
      %769 = vmatpush1.msra.mxu0 %v742
      %770 = vmatprep.subr.mxu0 0.0
      %771 = vmatpush1.msra.mxu0 %v743
      %772 = vmatprep.subr.mxu0 0.0
      %773 = vmatpush1.msra.mxu0 %v744
      %774 = vmatprep.subr.mxu0 0.0
      %775 = vmatpush1.msra.mxu0 %v745
      %776 = vmatprep.subr.mxu0 0.0
      %777 = vmatpush1.msra.mxu0 %v746
      %778 = vmatprep.subr.mxu0 0.0
      %779 = vmatpush1.msra.mxu0 %v747
      %780 = vmatprep.subr.mxu0 0.0
      %781 = vmatpush1.msra.mxu0 0.0
      %782 = vmatprep.subr.mxu0 0.0
      %783 = vmatpush1.msra.mxu0 0.0
      %784 = vmatprep.subr.mxu0 0.0
      %785 = vmatpush1.msra.mxu0 0.0
      %786 = vmatprep.subr.mxu0 0.0
      %787 = vmatpush1.msra.mxu0 0.0
      %788 = vmatprep.subr.mxu0 0.0
      %789 = vmatpush1.msra.mxu0 0.0
      %790 = vmatprep.subr.mxu0 0.0
      %791 = vmatpush1.msra.mxu0 0.0
      %792 = vmatprep.subr.mxu0 0.0
      %793 = vmatpush1.msra.mxu0 0.0
      %794 = vmatprep.subr.mxu0 0.0
      %795 = vmatpush1.msra.mxu0 0.0
      %796 = vmatprep.subr.mxu0 0.0
      %797 = vmatpush1.msra.mxu0 0.0
      %798 = vmatprep.subr.mxu0 0.0
      %799 = vmatpush1.msra.mxu0 0.0
      %800 = vmatprep.subr.mxu0 0.0
      %801 = vmatpush1.msra.mxu0 0.0
      %802 = vmatprep.subr.mxu0 0.0
      %803 = vmatpush1.msra.mxu0 0.0
      %804 = vmatprep.subr.mxu0 0.0
      %805 = vmatpush1.msra.mxu0 0.0
      %806 = vmatprep.subr.mxu0 0.0
      %807 = vmatpush1.msra.mxu0 0.0
      %808 = vmatprep.subr.mxu0 0.0
      %809 = vmatpush1.msra.mxu0 0.0
      %810 = vmatprep.subr.mxu0 0.0
      %811 = vmatpush1.msra.mxu0 0.0
      %812 = vmatprep.mubr.f32.mxu0 0.0
      %813 = vmatmul.mubr.f32.gmra.mrb[0].mxu0 %v723
      %v814 = vpop.f32.mrb[0].mxu0
      %v815 = vadd.f32 0.0, %v814
      %v816 = vpop.f32.mrb[0].mxu0
      %817 = vmatprep.mubr.f32.mxu0 0.0
      %818 = vmatmul.mubr.f32.gmra.mrb[0].mxu0 %v724
      %v819 = vpop.f32.mrb[0].mxu0
      %v820 = vadd.f32 0.0, %v819
      %v821 = vpop.f32.mrb[0].mxu0
      %822 = vmatprep.mubr.f32.mxu0 0.0
      %823 = vmatmul.mubr.f32.gmra.mrb[0].mxu0 %v725
      %v824 = vpop.f32.mrb[0].mxu0
      %v825 = vadd.f32 0.0, %v824
      %v826 = vpop.f32.mrb[0].mxu0
      %827 = vmatprep.mubr.f32.mxu0 0.0
      %828 = vmatmul.mubr.f32.gmra.mrb[0].mxu0 %v726
      %v829 = vpop.f32.mrb[0].mxu0
      %v830 = vadd.f32 0.0, %v829
      %v831 = vpop.f32.mrb[0].mxu0
      %832 = vmatprep.mubr.f32.mxu0 0.0
      %833 = vmatmul.mubr.f32.gmra.mrb[0].mxu0 %v727
      %v834 = vpop.f32.mrb[0].mxu0
      %v835 = vadd.f32 0.0, %v834
      %v836 = vpop.f32.mrb[0].mxu0
      %837 = vmatprep.mubr.f32.mxu0 0.0
      %838 = vmatmul.mubr.f32.gmra.mrb[0].mxu0 %v728
      %v839 = vpop.f32.mrb[0].mxu0
      %v840 = vadd.f32 0.0, %v839
      %v841 = vpop.f32.mrb[0].mxu0
      %842 = vmatprep.mubr.f32.mxu0 0.0
      %843 = vmatmul.mubr.f32.gmra.mrb[0].mxu0 %v729
      %v844 = vpop.f32.mrb[0].mxu0
      %v845 = vadd.f32 0.0, %v844
      %v846 = vpop.f32.mrb[0].mxu0
      %847 = vmatprep.mubr.f32.mxu0 0.0
      %848 = vmatmul.mubr.f32.gmra.mrb[0].mxu0 %v730
      %v849 = vpop.f32.mrb[0].mxu0
      %v850 = vadd.f32 0.0, %v849
      %v851 = vpop.f32.mrb[0].mxu0
      %852 = vdwg.mxu0
      %853 = vmatprep.subr.mxu0 0.0
      %854 = vmatpush1.msra.mxu0 %v705
      %855 = vmatprep.subr.mxu0 0.0
      %856 = vmatpush1.msra.mxu0 %v706
      %857 = vmatprep.subr.mxu0 0.0
      %858 = vmatpush1.msra.mxu0 %v707
      %859 = vmatprep.subr.mxu0 0.0
      %860 = vmatpush1.msra.mxu0 %v708
      %861 = vmatprep.subr.mxu0 0.0
      %862 = vmatpush1.msra.mxu0 %v709
      %863 = vmatprep.subr.mxu0 0.0
      %864 = vmatpush1.msra.mxu0 %v710
      %865 = vmatprep.subr.mxu0 0.0
      %866 = vmatpush1.msra.mxu0 %v711
      %867 = vmatprep.subr.mxu0 0.0
      %868 = vmatpush1.msra.mxu0 %v712
      %869 = vmatprep.subr.mxu0 0.0
      %870 = vmatpush1.msra.mxu0 %v713
      %871 = vmatprep.subr.mxu0 0.0
      %872 = vmatpush1.msra.mxu0 %v714
      %873 = vmatprep.subr.mxu0 0.0
      %874 = vmatpush1.msra.mxu0 %v715
      %875 = vmatprep.subr.mxu0 0.0
      %876 = vmatpush1.msra.mxu0 %v716
      %877 = vmatprep.subr.mxu0 0.0
      %878 = vmatpush1.msra.mxu0 %v717
      %879 = vmatprep.subr.mxu0 0.0
      %880 = vmatpush1.msra.mxu0 %v718
      %881 = vmatprep.subr.mxu0 0.0
      %882 = vmatpush1.msra.mxu0 %v719
      %883 = vmatprep.subr.mxu0 0.0
      %884 = vmatpush1.msra.mxu0 %v720
      %885 = vmatprep.subr.mxu0 0.0
      %886 = vmatpush1.msra.mxu0 0.0
      %887 = vmatprep.subr.mxu0 0.0
      %888 = vmatpush1.msra.mxu0 0.0
      %889 = vmatprep.subr.mxu0 0.0
      %890 = vmatpush1.msra.mxu0 0.0
      %891 = vmatprep.subr.mxu0 0.0
      %892 = vmatpush1.msra.mxu0 0.0
      %893 = vmatprep.subr.mxu0 0.0
      %894 = vmatpush1.msra.mxu0 0.0
      %895 = vmatprep.subr.mxu0 0.0
      %896 = vmatpush1.msra.mxu0 0.0
      %897 = vmatprep.subr.mxu0 0.0
      %898 = vmatpush1.msra.mxu0 0.0
      %899 = vmatprep.subr.mxu0 0.0
      %900 = vmatpush1.msra.mxu0 0.0
      %901 = vmatprep.subr.mxu0 0.0
      %902 = vmatpush1.msra.mxu0 0.0
      %903 = vmatprep.subr.mxu0 0.0
      %904 = vmatpush1.msra.mxu0 0.0
      %905 = vmatprep.subr.mxu0 0.0
      %906 = vmatpush1.msra.mxu0 0.0
      %907 = vmatprep.subr.mxu0 0.0
      %908 = vmatpush1.msra.mxu0 0.0
      %909 = vmatprep.subr.mxu0 0.0
      %910 = vmatpush1.msra.mxu0 0.0
      %911 = vmatprep.subr.mxu0 0.0
      %912 = vmatpush1.msra.mxu0 0.0
      %913 = vmatprep.subr.mxu0 0.0
      %914 = vmatpush1.msra.mxu0 0.0
      %915 = vmatprep.subr.mxu0 0.0
      %916 = vmatpush1.msra.mxu0 0.0
      %917 = vmatprep.mubr.f32.mxu0 0.0
      %918 = vmatmul.mubr.f32.gmra.mrb[0].mxu0 %v697
      %v919 = vpop.f32.mrb[0].mxu0
      %v920 = vadd.f32 %v815, %v919
      %v921 = vpop.f32.mrb[0].mxu0
      %922 = vmatprep.mubr.f32.mxu0 0.0
      %923 = vmatmul.mubr.f32.gmra.mrb[0].mxu0 %v698
      %v924 = vpop.f32.mrb[0].mxu0
      %v925 = vadd.f32 %v820, %v924
      %v926 = vpop.f32.mrb[0].mxu0
      %927 = vmatprep.mubr.f32.mxu0 0.0
      %928 = vmatmul.mubr.f32.gmra.mrb[0].mxu0 %v699
      %v929 = vpop.f32.mrb[0].mxu0
      %v930 = vadd.f32 %v825, %v929
      %v931 = vpop.f32.mrb[0].mxu0
      %932 = vmatprep.mubr.f32.mxu0 0.0
      %933 = vmatmul.mubr.f32.gmra.mrb[0].mxu0 %v700
      %v934 = vpop.f32.mrb[0].mxu0
      %v935 = vadd.f32 %v830, %v934
      %v936 = vpop.f32.mrb[0].mxu0
      %937 = vmatprep.mubr.f32.mxu0 0.0
      %938 = vmatmul.mubr.f32.gmra.mrb[0].mxu0 %v701
      %v939 = vpop.f32.mrb[0].mxu0
      %v940 = vadd.f32 %v835, %v939
      %v941 = vpop.f32.mrb[0].mxu0
      %942 = vmatprep.mubr.f32.mxu0 0.0
      %943 = vmatmul.mubr.f32.gmra.mrb[0].mxu0 %v702
      %v944 = vpop.f32.mrb[0].mxu0
      %v945 = vadd.f32 %v840, %v944
      %v946 = vpop.f32.mrb[0].mxu0
      %947 = vmatprep.mubr.f32.mxu0 0.0
      %948 = vmatmul.mubr.f32.gmra.mrb[0].mxu0 %v703
      %v949 = vpop.f32.mrb[0].mxu0
      %v950 = vadd.f32 %v845, %v949
      %v951 = vpop.f32.mrb[0].mxu0
      %952 = vmatprep.mubr.f32.mxu0 0.0
      %953 = vmatmul.mubr.f32.gmra.mrb[0].mxu0 %v704
      %v954 = vpop.f32.mrb[0].mxu0
      %v955 = vadd.f32 %v850, %v954
      %v956 = vpop.f32.mrb[0].mxu0
      %957 = vdwg.mxu0
      %s958 = sadd.s32 192, %s695
      %s959 = scalar_lea.vmem [#allocation2], %s958
      %v960 = vld [vmem:[%s959] sm:$0xff]
      %v961 = vld [vmem:[%s959 + $0x8] sm:$0xff]
      %v962 = vld [vmem:[%s959 + $0x10] sm:$0xff]
      %v963 = vld [vmem:[%s959 + $0x18] sm:$0xff]
      %v964 = vld [vmem:[%s959 + $0x20] sm:$0xff]
      %v965 = vld [vmem:[%s959 + $0x28] sm:$0xff]
      %v966 = vld [vmem:[%s959 + $0x30] sm:$0xff]
      %v967 = vld [vmem:[%s959 + $0x38] sm:$0xff]
      %s968 = scalar_lea.vmem %s1, 256
      %v969 = vld [vmem:[%s968] sm:$0xff]
      %v970 = vld [vmem:[%s968 + $0x8] sm:$0xff]
      %v971 = vld [vmem:[%s968 + $0x10] sm:$0xff]
      %v972 = vld [vmem:[%s968 + $0x18] sm:$0xff]
      %v973 = vld [vmem:[%s968 + $0x20] sm:$0xff]
      %v974 = vld [vmem:[%s968 + $0x28] sm:$0xff]
      %v975 = vld [vmem:[%s968 + $0x30] sm:$0xff]
      %v976 = vld [vmem:[%s968 + $0x38] sm:$0xff]
      %v977 = vld [vmem:[%s968 + $0x40] sm:$0xff]
      %v978 = vld [vmem:[%s968 + $0x48] sm:$0xff]
      %v979 = vld [vmem:[%s968 + $0x50] sm:$0xff]
      %v980 = vld [vmem:[%s968 + $0x58] sm:$0xff]
      %v981 = vld [vmem:[%s968 + $0x60] sm:$0xff]
      %v982 = vld [vmem:[%s968 + $0x68] sm:$0xff]
      %v983 = vld [vmem:[%s968 + $0x70] sm:$0xff]
      %v984 = vld [vmem:[%s968 + $0x78] sm:$0xff]
      %985 = vmatprep.subr.mxu0 0.0
      %986 = vmatpush1.msra.mxu0 %v969
      %987 = vmatprep.subr.mxu0 0.0
      %988 = vmatpush1.msra.mxu0 %v970
      %989 = vmatprep.subr.mxu0 0.0
      %990 = vmatpush1.msra.mxu0 %v971
      %991 = vmatprep.subr.mxu0 0.0
      %992 = vmatpush1.msra.mxu0 %v972
      %993 = vmatprep.subr.mxu0 0.0
      %994 = vmatpush1.msra.mxu0 %v973
      %995 = vmatprep.subr.mxu0 0.0
      %996 = vmatpush1.msra.mxu0 %v974
      %997 = vmatprep.subr.mxu0 0.0
      %998 = vmatpush1.msra.mxu0 %v975
      %999 = vmatprep.subr.mxu0 0.0
      %1000 = vmatpush1.msra.mxu0 %v976
      %1001 = vmatprep.subr.mxu0 0.0
      %1002 = vmatpush1.msra.mxu0 %v977
      %1003 = vmatprep.subr.mxu0 0.0
      %1004 = vmatpush1.msra.mxu0 %v978
      %1005 = vmatprep.subr.mxu0 0.0
      %1006 = vmatpush1.msra.mxu0 %v979
      %1007 = vmatprep.subr.mxu0 0.0
      %1008 = vmatpush1.msra.mxu0 %v980
      %1009 = vmatprep.subr.mxu0 0.0
      %1010 = vmatpush1.msra.mxu0 %v981
      %1011 = vmatprep.subr.mxu0 0.0
      %1012 = vmatpush1.msra.mxu0 %v982
      %1013 = vmatprep.subr.mxu0 0.0
      %1014 = vmatpush1.msra.mxu0 %v983
      %1015 = vmatprep.subr.mxu0 0.0
      %1016 = vmatpush1.msra.mxu0 %v984
      %1017 = vmatprep.subr.mxu0 0.0
      %1018 = vmatpush1.msra.mxu0 0.0
      %1019 = vmatprep.subr.mxu0 0.0
      %1020 = vmatpush1.msra.mxu0 0.0
      %1021 = vmatprep.subr.mxu0 0.0
      %1022 = vmatpush1.msra.mxu0 0.0
      %1023 = vmatprep.subr.mxu0 0.0
      %1024 = vmatpush1.msra.mxu0 0.0
      %1025 = vmatprep.subr.mxu0 0.0
      %1026 = vmatpush1.msra.mxu0 0.0
      %1027 = vmatprep.subr.mxu0 0.0
      %1028 = vmatpush1.msra.mxu0 0.0
      %1029 = vmatprep.subr.mxu0 0.0
      %1030 = vmatpush1.msra.mxu0 0.0
      %1031 = vmatprep.subr.mxu0 0.0
      %1032 = vmatpush1.msra.mxu0 0.0
      %1033 = vmatprep.subr.mxu0 0.0
      %1034 = vmatpush1.msra.mxu0 0.0
      %1035 = vmatprep.subr.mxu0 0.0
      %1036 = vmatpush1.msra.mxu0 0.0
      %1037 = vmatprep.subr.mxu0 0.0
      %1038 = vmatpush1.msra.mxu0 0.0
      %1039 = vmatprep.subr.mxu0 0.0
      %1040 = vmatpush1.msra.mxu0 0.0
      %1041 = vmatprep.subr.mxu0 0.0
      %1042 = vmatpush1.msra.mxu0 0.0
      %1043 = vmatprep.subr.mxu0 0.0
      %1044 = vmatpush1.msra.mxu0 0.0
      %1045 = vmatprep.subr.mxu0 0.0
      %1046 = vmatpush1.msra.mxu0 0.0
      %1047 = vmatprep.subr.mxu0 0.0
      %1048 = vmatpush1.msra.mxu0 0.0
      %1049 = vmatprep.mubr.f32.mxu0 0.0
      %1050 = vmatmul.mubr.f32.gmra.mrb[0].mxu0 %v960
      %v1051 = vpop.f32.mrb[0].mxu0
      %v1052 = vadd.f32 0.0, %v1051
      %v1053 = vpop.f32.mrb[0].mxu0
      %1054 = vmatprep.mubr.f32.mxu0 0.0
      %1055 = vmatmul.mubr.f32.gmra.mrb[0].mxu0 %v961
      %v1056 = vpop.f32.mrb[0].mxu0
      %v1057 = vadd.f32 0.0, %v1056
      %v1058 = vpop.f32.mrb[0].mxu0
      %1059 = vmatprep.mubr.f32.mxu0 0.0
      %1060 = vmatmul.mubr.f32.gmra.mrb[0].mxu0 %v962
      %v1061 = vpop.f32.mrb[0].mxu0
      %v1062 = vadd.f32 0.0, %v1061
      %v1063 = vpop.f32.mrb[0].mxu0
      %1064 = vmatprep.mubr.f32.mxu0 0.0
      %1065 = vmatmul.mubr.f32.gmra.mrb[0].mxu0 %v963
      %v1066 = vpop.f32.mrb[0].mxu0
      %v1067 = vadd.f32 0.0, %v1066
      %v1068 = vpop.f32.mrb[0].mxu0
      %1069 = vmatprep.mubr.f32.mxu0 0.0
      %1070 = vmatmul.mubr.f32.gmra.mrb[0].mxu0 %v964
      %v1071 = vpop.f32.mrb[0].mxu0
      %v1072 = vadd.f32 0.0, %v1071
      %v1073 = vpop.f32.mrb[0].mxu0
      %1074 = vmatprep.mubr.f32.mxu0 0.0
      %1075 = vmatmul.mubr.f32.gmra.mrb[0].mxu0 %v965
      %v1076 = vpop.f32.mrb[0].mxu0
      %v1077 = vadd.f32 0.0, %v1076
      %v1078 = vpop.f32.mrb[0].mxu0
      %1079 = vmatprep.mubr.f32.mxu0 0.0
      %1080 = vmatmul.mubr.f32.gmra.mrb[0].mxu0 %v966
      %v1081 = vpop.f32.mrb[0].mxu0
      %v1082 = vadd.f32 0.0, %v1081
      %v1083 = vpop.f32.mrb[0].mxu0
      %1084 = vmatprep.mubr.f32.mxu0 0.0
      %1085 = vmatmul.mubr.f32.gmra.mrb[0].mxu0 %v967
      %v1086 = vpop.f32.mrb[0].mxu0
      %v1087 = vadd.f32 0.0, %v1086
      %v1088 = vpop.f32.mrb[0].mxu0
      %1089 = vdwg.mxu0
      %v1090 = vadd.f32 %v920, %v1052
      %v1091 = vadd.f32 %v925, %v1057
      %v1092 = vadd.f32 %v930, %v1062
      %v1093 = vadd.f32 %v935, %v1067
      %v1094 = vadd.f32 %v940, %v1072
      %v1095 = vadd.f32 %v945, %v1077
      %v1096 = vadd.f32 %v950, %v1082
      %v1097 = vadd.f32 %v955, %v1087
      %s1098 = sadd.s32 16, %s695
      %s1099 = scalar_lea.vmem [#allocation2], %s1098
      %v1100 = vld [vmem:[%s1099] sm:$0xff]
      %v1101 = vld [vmem:[%s1099 + $0x8] sm:$0xff]
      %v1102 = vld [vmem:[%s1099 + $0x10] sm:$0xff]
      %v1103 = vld [vmem:[%s1099 + $0x18] sm:$0xff]
      %v1104 = vld [vmem:[%s1099 + $0x20] sm:$0xff]
      %v1105 = vld [vmem:[%s1099 + $0x28] sm:$0xff]
      %v1106 = vld [vmem:[%s1099 + $0x30] sm:$0xff]
      %v1107 = vld [vmem:[%s1099 + $0x38] sm:$0xff]
      %s1108 = scalar_lea.vmem %s1, 384
      %v1109 = vld [vmem:[%s1108] sm:$0xff]
      %v1110 = vld [vmem:[%s1108 + $0x8] sm:$0xff]
      %v1111 = vld [vmem:[%s1108 + $0x10] sm:$0xff]
      %v1112 = vld [vmem:[%s1108 + $0x18] sm:$0xff]
      %v1113 = vld [vmem:[%s1108 + $0x20] sm:$0xff]
      %v1114 = vld [vmem:[%s1108 + $0x28] sm:$0xff]
      %v1115 = vld [vmem:[%s1108 + $0x30] sm:$0xff]
      %v1116 = vld [vmem:[%s1108 + $0x38] sm:$0xff]
      %v1117 = vld [vmem:[%s1108 + $0x40] sm:$0xff]
      %v1118 = vld [vmem:[%s1108 + $0x48] sm:$0xff]
      %v1119 = vld [vmem:[%s1108 + $0x50] sm:$0xff]
      %v1120 = vld [vmem:[%s1108 + $0x58] sm:$0xff]
      %v1121 = vld [vmem:[%s1108 + $0x60] sm:$0xff]
      %v1122 = vld [vmem:[%s1108 + $0x68] sm:$0xff]
      %v1123 = vld [vmem:[%s1108 + $0x70] sm:$0xff]
      %v1124 = vld [vmem:[%s1108 + $0x78] sm:$0xff]
      %1125 = vmatprep.subr.mxu0 0.0
      %1126 = vmatpush1.msra.mxu0 %v1109
      %1127 = vmatprep.subr.mxu0 0.0
      %1128 = vmatpush1.msra.mxu0 %v1110
      %1129 = vmatprep.subr.mxu0 0.0
      %1130 = vmatpush1.msra.mxu0 %v1111
      %1131 = vmatprep.subr.mxu0 0.0
      %1132 = vmatpush1.msra.mxu0 %v1112
      %1133 = vmatprep.subr.mxu0 0.0
      %1134 = vmatpush1.msra.mxu0 %v1113
      %1135 = vmatprep.subr.mxu0 0.0
      %1136 = vmatpush1.msra.mxu0 %v1114
      %1137 = vmatprep.subr.mxu0 0.0
      %1138 = vmatpush1.msra.mxu0 %v1115
      %1139 = vmatprep.subr.mxu0 0.0
      %1140 = vmatpush1.msra.mxu0 %v1116
      %1141 = vmatprep.subr.mxu0 0.0
      %1142 = vmatpush1.msra.mxu0 %v1117
      %1143 = vmatprep.subr.mxu0 0.0
      %1144 = vmatpush1.msra.mxu0 %v1118
      %1145 = vmatprep.subr.mxu0 0.0
      %1146 = vmatpush1.msra.mxu0 %v1119
      %1147 = vmatprep.subr.mxu0 0.0
      %1148 = vmatpush1.msra.mxu0 %v1120
      %1149 = vmatprep.subr.mxu0 0.0
      %1150 = vmatpush1.msra.mxu0 %v1121
      %1151 = vmatprep.subr.mxu0 0.0
      %1152 = vmatpush1.msra.mxu0 %v1122
      %1153 = vmatprep.subr.mxu0 0.0
      %1154 = vmatpush1.msra.mxu0 %v1123
      %1155 = vmatprep.subr.mxu0 0.0
      %1156 = vmatpush1.msra.mxu0 %v1124
      %1157 = vmatprep.subr.mxu0 0.0
      %1158 = vmatpush1.msra.mxu0 0.0
      %1159 = vmatprep.subr.mxu0 0.0
      %1160 = vmatpush1.msra.mxu0 0.0
      %1161 = vmatprep.subr.mxu0 0.0
      %1162 = vmatpush1.msra.mxu0 0.0
      %1163 = vmatprep.subr.mxu0 0.0
      %1164 = vmatpush1.msra.mxu0 0.0
      %1165 = vmatprep.subr.mxu0 0.0
      %1166 = vmatpush1.msra.mxu0 0.0
      %1167 = vmatprep.subr.mxu0 0.0
      %1168 = vmatpush1.msra.mxu0 0.0
      %1169 = vmatprep.subr.mxu0 0.0
      %1170 = vmatpush1.msra.mxu0 0.0
      %1171 = vmatprep.subr.mxu0 0.0
      %1172 = vmatpush1.msra.mxu0 0.0
      %1173 = vmatprep.subr.mxu0 0.0
      %1174 = vmatpush1.msra.mxu0 0.0
      %1175 = vmatprep.subr.mxu0 0.0
      %1176 = vmatpush1.msra.mxu0 0.0
      %1177 = vmatprep.subr.mxu0 0.0
      %1178 = vmatpush1.msra.mxu0 0.0
      %1179 = vmatprep.subr.mxu0 0.0
      %1180 = vmatpush1.msra.mxu0 0.0
      %1181 = vmatprep.subr.mxu0 0.0
      %1182 = vmatpush1.msra.mxu0 0.0
      %1183 = vmatprep.subr.mxu0 0.0
      %1184 = vmatpush1.msra.mxu0 0.0
      %1185 = vmatprep.subr.mxu0 0.0
      %1186 = vmatpush1.msra.mxu0 0.0
      %1187 = vmatprep.subr.mxu0 0.0
      %1188 = vmatpush1.msra.mxu0 0.0
      %1189 = vmatprep.mubr.f32.mxu0 0.0
      %1190 = vmatmul.mubr.f32.gmra.mrb[0].mxu0 %v1100
      %v1191 = vpop.f32.mrb[0].mxu0
      %v1192 = vadd.f32 0.0, %v1191
      %v1193 = vpop.f32.mrb[0].mxu0
      %1194 = vmatprep.mubr.f32.mxu0 0.0
      %1195 = vmatmul.mubr.f32.gmra.mrb[0].mxu0 %v1101
      %v1196 = vpop.f32.mrb[0].mxu0
      %v1197 = vadd.f32 0.0, %v1196
      %v1198 = vpop.f32.mrb[0].mxu0
      %1199 = vmatprep.mubr.f32.mxu0 0.0
      %1200 = vmatmul.mubr.f32.gmra.mrb[0].mxu0 %v1102
      %v1201 = vpop.f32.mrb[0].mxu0
      %v1202 = vadd.f32 0.0, %v1201
      %v1203 = vpop.f32.mrb[0].mxu0
      %1204 = vmatprep.mubr.f32.mxu0 0.0
      %1205 = vmatmul.mubr.f32.gmra.mrb[0].mxu0 %v1103
      %v1206 = vpop.f32.mrb[0].mxu0
      %v1207 = vadd.f32 0.0, %v1206
      %v1208 = vpop.f32.mrb[0].mxu0
      %1209 = vmatprep.mubr.f32.mxu0 0.0
      %1210 = vmatmul.mubr.f32.gmra.mrb[0].mxu0 %v1104
      %v1211 = vpop.f32.mrb[0].mxu0
      %v1212 = vadd.f32 0.0, %v1211
      %v1213 = vpop.f32.mrb[0].mxu0
      %1214 = vmatprep.mubr.f32.mxu0 0.0
      %1215 = vmatmul.mubr.f32.gmra.mrb[0].mxu0 %v1105
      %v1216 = vpop.f32.mrb[0].mxu0
      %v1217 = vadd.f32 0.0, %v1216
      %v1218 = vpop.f32.mrb[0].mxu0
      %1219 = vmatprep.mubr.f32.mxu0 0.0
      %1220 = vmatmul.mubr.f32.gmra.mrb[0].mxu0 %v1106
      %v1221 = vpop.f32.mrb[0].mxu0
      %v1222 = vadd.f32 0.0, %v1221
      %v1223 = vpop.f32.mrb[0].mxu0
      %1224 = vmatprep.mubr.f32.mxu0 0.0
      %1225 = vmatmul.mubr.f32.gmra.mrb[0].mxu0 %v1107
      %v1226 = vpop.f32.mrb[0].mxu0
      %v1227 = vadd.f32 0.0, %v1226
      %v1228 = vpop.f32.mrb[0].mxu0
      %1229 = vdwg.mxu0
      %v1230 = vadd.f32 %v1090, %v1192
      %v1231 = vadd.f32 %v1091, %v1197
      %v1232 = vadd.f32 %v1092, %v1202
      %v1233 = vadd.f32 %v1093, %v1207
      %v1234 = vadd.f32 %v1094, %v1212
      %v1235 = vadd.f32 %v1095, %v1217
      %v1236 = vadd.f32 %v1096, %v1222
      %v1237 = vadd.f32 %v1097, %v1227
      %s1238 = sadd.s32 112, %s695
      %s1239 = scalar_lea.vmem [#allocation2], %s1238
      %v1240 = vld [vmem:[%s1239] sm:$0xff]
      %v1241 = vld [vmem:[%s1239 + $0x8] sm:$0xff]
      %v1242 = vld [vmem:[%s1239 + $0x10] sm:$0xff]
      %v1243 = vld [vmem:[%s1239 + $0x18] sm:$0xff]
      %v1244 = vld [vmem:[%s1239 + $0x20] sm:$0xff]
      %v1245 = vld [vmem:[%s1239 + $0x28] sm:$0xff]
      %v1246 = vld [vmem:[%s1239 + $0x30] sm:$0xff]
      %v1247 = vld [vmem:[%s1239 + $0x38] sm:$0xff]
      %s1248 = scalar_lea.vmem %s1, 512
      %v1249 = vld [vmem:[%s1248] sm:$0xff]
      %v1250 = vld [vmem:[%s1248 + $0x8] sm:$0xff]
      %v1251 = vld [vmem:[%s1248 + $0x10] sm:$0xff]
      %v1252 = vld [vmem:[%s1248 + $0x18] sm:$0xff]
      %v1253 = vld [vmem:[%s1248 + $0x20] sm:$0xff]
      %v1254 = vld [vmem:[%s1248 + $0x28] sm:$0xff]
      %v1255 = vld [vmem:[%s1248 + $0x30] sm:$0xff]
      %v1256 = vld [vmem:[%s1248 + $0x38] sm:$0xff]
      %v1257 = vld [vmem:[%s1248 + $0x40] sm:$0xff]
      %v1258 = vld [vmem:[%s1248 + $0x48] sm:$0xff]
      %v1259 = vld [vmem:[%s1248 + $0x50] sm:$0xff]
      %v1260 = vld [vmem:[%s1248 + $0x58] sm:$0xff]
      %v1261 = vld [vmem:[%s1248 + $0x60] sm:$0xff]
      %v1262 = vld [vmem:[%s1248 + $0x68] sm:$0xff]
      %v1263 = vld [vmem:[%s1248 + $0x70] sm:$0xff]
      %v1264 = vld [vmem:[%s1248 + $0x78] sm:$0xff]
      %1265 = vmatprep.subr.mxu0 0.0
      %1266 = vmatpush1.msra.mxu0 %v1249
      %1267 = vmatprep.subr.mxu0 0.0
      %1268 = vmatpush1.msra.mxu0 %v1250
      %1269 = vmatprep.subr.mxu0 0.0
      %1270 = vmatpush1.msra.mxu0 %v1251
      %1271 = vmatprep.subr.mxu0 0.0
      %1272 = vmatpush1.msra.mxu0 %v1252
      %1273 = vmatprep.subr.mxu0 0.0
      %1274 = vmatpush1.msra.mxu0 %v1253
      %1275 = vmatprep.subr.mxu0 0.0
      %1276 = vmatpush1.msra.mxu0 %v1254
      %1277 = vmatprep.subr.mxu0 0.0
      %1278 = vmatpush1.msra.mxu0 %v1255
      %1279 = vmatprep.subr.mxu0 0.0
      %1280 = vmatpush1.msra.mxu0 %v1256
      %1281 = vmatprep.subr.mxu0 0.0
      %1282 = vmatpush1.msra.mxu0 %v1257
      %1283 = vmatprep.subr.mxu0 0.0
      %1284 = vmatpush1.msra.mxu0 %v1258
      %1285 = vmatprep.subr.mxu0 0.0
      %1286 = vmatpush1.msra.mxu0 %v1259
      %1287 = vmatprep.subr.mxu0 0.0
      %1288 = vmatpush1.msra.mxu0 %v1260
      %1289 = vmatprep.subr.mxu0 0.0
      %1290 = vmatpush1.msra.mxu0 %v1261
      %1291 = vmatprep.subr.mxu0 0.0
      %1292 = vmatpush1.msra.mxu0 %v1262
      %1293 = vmatprep.subr.mxu0 0.0
      %1294 = vmatpush1.msra.mxu0 %v1263
      %1295 = vmatprep.subr.mxu0 0.0
      %1296 = vmatpush1.msra.mxu0 %v1264
      %1297 = vmatprep.subr.mxu0 0.0
      %1298 = vmatpush1.msra.mxu0 0.0
      %1299 = vmatprep.subr.mxu0 0.0
      %1300 = vmatpush1.msra.mxu0 0.0
      %1301 = vmatprep.subr.mxu0 0.0
      %1302 = vmatpush1.msra.mxu0 0.0
      %1303 = vmatprep.subr.mxu0 0.0
      %1304 = vmatpush1.msra.mxu0 0.0
      %1305 = vmatprep.subr.mxu0 0.0
      %1306 = vmatpush1.msra.mxu0 0.0
      %1307 = vmatprep.subr.mxu0 0.0
      %1308 = vmatpush1.msra.mxu0 0.0
      %1309 = vmatprep.subr.mxu0 0.0
      %1310 = vmatpush1.msra.mxu0 0.0
      %1311 = vmatprep.subr.mxu0 0.0
      %1312 = vmatpush1.msra.mxu0 0.0
      %1313 = vmatprep.subr.mxu0 0.0
      %1314 = vmatpush1.msra.mxu0 0.0
      %1315 = vmatprep.subr.mxu0 0.0
      %1316 = vmatpush1.msra.mxu0 0.0
      %1317 = vmatprep.subr.mxu0 0.0
      %1318 = vmatpush1.msra.mxu0 0.0
      %1319 = vmatprep.subr.mxu0 0.0
      %1320 = vmatpush1.msra.mxu0 0.0
      %1321 = vmatprep.subr.mxu0 0.0
      %1322 = vmatpush1.msra.mxu0 0.0
      %1323 = vmatprep.subr.mxu0 0.0
      %1324 = vmatpush1.msra.mxu0 0.0
      %1325 = vmatprep.subr.mxu0 0.0
      %1326 = vmatpush1.msra.mxu0 0.0
      %1327 = vmatprep.subr.mxu0 0.0
      %1328 = vmatpush1.msra.mxu0 0.0
      %1329 = vmatprep.mubr.f32.mxu0 0.0
      %1330 = vmatmul.mubr.f32.gmra.mrb[0].mxu0 %v1240
      %v1331 = vpop.f32.mrb[0].mxu0
      %v1332 = vadd.f32 0.0, %v1331
      %v1333 = vpop.f32.mrb[0].mxu0
      %1334 = vmatprep.mubr.f32.mxu0 0.0
      %1335 = vmatmul.mubr.f32.gmra.mrb[0].mxu0 %v1241
      %v1336 = vpop.f32.mrb[0].mxu0
      %v1337 = vadd.f32 0.0, %v1336
      %v1338 = vpop.f32.mrb[0].mxu0
      %1339 = vmatprep.mubr.f32.mxu0 0.0
      %1340 = vmatmul.mubr.f32.gmra.mrb[0].mxu0 %v1242
      %v1341 = vpop.f32.mrb[0].mxu0
      %v1342 = vadd.f32 0.0, %v1341
      %v1343 = vpop.f32.mrb[0].mxu0
      %1344 = vmatprep.mubr.f32.mxu0 0.0
      %1345 = vmatmul.mubr.f32.gmra.mrb[0].mxu0 %v1243
      %v1346 = vpop.f32.mrb[0].mxu0
      %v1347 = vadd.f32 0.0, %v1346
      %v1348 = vpop.f32.mrb[0].mxu0
      %1349 = vmatprep.mubr.f32.mxu0 0.0
      %1350 = vmatmul.mubr.f32.gmra.mrb[0].mxu0 %v1244
      %v1351 = vpop.f32.mrb[0].mxu0
      %v1352 = vadd.f32 0.0, %v1351
      %v1353 = vpop.f32.mrb[0].mxu0
      %1354 = vmatprep.mubr.f32.mxu0 0.0
      %1355 = vmatmul.mubr.f32.gmra.mrb[0].mxu0 %v1245
      %v1356 = vpop.f32.mrb[0].mxu0
      %v1357 = vadd.f32 0.0, %v1356
      %v1358 = vpop.f32.mrb[0].mxu0
      %1359 = vmatprep.mubr.f32.mxu0 0.0
      %1360 = vmatmul.mubr.f32.gmra.mrb[0].mxu0 %v1246
      %v1361 = vpop.f32.mrb[0].mxu0
      %v1362 = vadd.f32 0.0, %v1361
      %v1363 = vpop.f32.mrb[0].mxu0
      %1364 = vmatprep.mubr.f32.mxu0 0.0
      %1365 = vmatmul.mubr.f32.gmra.mrb[0].mxu0 %v1247
      %v1366 = vpop.f32.mrb[0].mxu0
      %v1367 = vadd.f32 0.0, %v1366
      %v1368 = vpop.f32.mrb[0].mxu0
      %1369 = vdwg.mxu0
      %v1370 = vadd.f32 %v1230, %v1332
      %v1371 = vadd.f32 %v1231, %v1337
      %v1372 = vadd.f32 %v1232, %v1342
      %v1373 = vadd.f32 %v1233, %v1347
      %v1374 = vadd.f32 %v1234, %v1352
      %v1375 = vadd.f32 %v1235, %v1357
      %v1376 = vadd.f32 %v1236, %v1362
      %v1377 = vadd.f32 %v1237, %v1367
      %s1378 = sadd.s32 208, %s695
      %s1379 = scalar_lea.vmem [#allocation2], %s1378
      %v1380 = vld [vmem:[%s1379] sm:$0xff]
      %v1381 = vld [vmem:[%s1379 + $0x8] sm:$0xff]
      %v1382 = vld [vmem:[%s1379 + $0x10] sm:$0xff]
      %v1383 = vld [vmem:[%s1379 + $0x18] sm:$0xff]
      %v1384 = vld [vmem:[%s1379 + $0x20] sm:$0xff]
      %v1385 = vld [vmem:[%s1379 + $0x28] sm:$0xff]
      %v1386 = vld [vmem:[%s1379 + $0x30] sm:$0xff]
      %v1387 = vld [vmem:[%s1379 + $0x38] sm:$0xff]
      %s1388 = scalar_lea.vmem %s1, 640
      %v1389 = vld [vmem:[%s1388] sm:$0xff]
      %v1390 = vld [vmem:[%s1388 + $0x8] sm:$0xff]
      %v1391 = vld [vmem:[%s1388 + $0x10] sm:$0xff]
      %v1392 = vld [vmem:[%s1388 + $0x18] sm:$0xff]
      %v1393 = vld [vmem:[%s1388 + $0x20] sm:$0xff]
      %v1394 = vld [vmem:[%s1388 + $0x28] sm:$0xff]
      %v1395 = vld [vmem:[%s1388 + $0x30] sm:$0xff]
      %v1396 = vld [vmem:[%s1388 + $0x38] sm:$0xff]
      %v1397 = vld [vmem:[%s1388 + $0x40] sm:$0xff]
      %v1398 = vld [vmem:[%s1388 + $0x48] sm:$0xff]
      %v1399 = vld [vmem:[%s1388 + $0x50] sm:$0xff]
      %v1400 = vld [vmem:[%s1388 + $0x58] sm:$0xff]
      %v1401 = vld [vmem:[%s1388 + $0x60] sm:$0xff]
      %v1402 = vld [vmem:[%s1388 + $0x68] sm:$0xff]
      %v1403 = vld [vmem:[%s1388 + $0x70] sm:$0xff]
      %v1404 = vld [vmem:[%s1388 + $0x78] sm:$0xff]
      %1405 = vmatprep.subr.mxu0 0.0
      %1406 = vmatpush1.msra.mxu0 %v1389
      %1407 = vmatprep.subr.mxu0 0.0
      %1408 = vmatpush1.msra.mxu0 %v1390
      %1409 = vmatprep.subr.mxu0 0.0
      %1410 = vmatpush1.msra.mxu0 %v1391
      %1411 = vmatprep.subr.mxu0 0.0
      %1412 = vmatpush1.msra.mxu0 %v1392
      %1413 = vmatprep.subr.mxu0 0.0
      %1414 = vmatpush1.msra.mxu0 %v1393
      %1415 = vmatprep.subr.mxu0 0.0
      %1416 = vmatpush1.msra.mxu0 %v1394
      %1417 = vmatprep.subr.mxu0 0.0
      %1418 = vmatpush1.msra.mxu0 %v1395
      %1419 = vmatprep.subr.mxu0 0.0
      %1420 = vmatpush1.msra.mxu0 %v1396
      %1421 = vmatprep.subr.mxu0 0.0
      %1422 = vmatpush1.msra.mxu0 %v1397
      %1423 = vmatprep.subr.mxu0 0.0
      %1424 = vmatpush1.msra.mxu0 %v1398
      %1425 = vmatprep.subr.mxu0 0.0
      %1426 = vmatpush1.msra.mxu0 %v1399
      %1427 = vmatprep.subr.mxu0 0.0
      %1428 = vmatpush1.msra.mxu0 %v1400
      %1429 = vmatprep.subr.mxu0 0.0
      %1430 = vmatpush1.msra.mxu0 %v1401
      %1431 = vmatprep.subr.mxu0 0.0
      %1432 = vmatpush1.msra.mxu0 %v1402
      %1433 = vmatprep.subr.mxu0 0.0
      %1434 = vmatpush1.msra.mxu0 %v1403
      %1435 = vmatprep.subr.mxu0 0.0
      %1436 = vmatpush1.msra.mxu0 %v1404
      %1437 = vmatprep.subr.mxu0 0.0
      %1438 = vmatpush1.msra.mxu0 0.0
      %1439 = vmatprep.subr.mxu0 0.0
      %1440 = vmatpush1.msra.mxu0 0.0
      %1441 = vmatprep.subr.mxu0 0.0
      %1442 = vmatpush1.msra.mxu0 0.0
      %1443 = vmatprep.subr.mxu0 0.0
      %1444 = vmatpush1.msra.mxu0 0.0
      %1445 = vmatprep.subr.mxu0 0.0
      %1446 = vmatpush1.msra.mxu0 0.0
      %1447 = vmatprep.subr.mxu0 0.0
      %1448 = vmatpush1.msra.mxu0 0.0
      %1449 = vmatprep.subr.mxu0 0.0
      %1450 = vmatpush1.msra.mxu0 0.0
      %1451 = vmatprep.subr.mxu0 0.0
      %1452 = vmatpush1.msra.mxu0 0.0
      %1453 = vmatprep.subr.mxu0 0.0
      %1454 = vmatpush1.msra.mxu0 0.0
      %1455 = vmatprep.subr.mxu0 0.0
      %1456 = vmatpush1.msra.mxu0 0.0
      %1457 = vmatprep.subr.mxu0 0.0
      %1458 = vmatpush1.msra.mxu0 0.0
      %1459 = vmatprep.subr.mxu0 0.0
      %1460 = vmatpush1.msra.mxu0 0.0
      %1461 = vmatprep.subr.mxu0 0.0
      %1462 = vmatpush1.msra.mxu0 0.0
      %1463 = vmatprep.subr.mxu0 0.0
      %1464 = vmatpush1.msra.mxu0 0.0
      %1465 = vmatprep.subr.mxu0 0.0
      %1466 = vmatpush1.msra.mxu0 0.0
      %1467 = vmatprep.subr.mxu0 0.0
      %1468 = vmatpush1.msra.mxu0 0.0
      %1469 = vmatprep.mubr.f32.mxu0 0.0
      %1470 = vmatmul.mubr.f32.gmra.mrb[0].mxu0 %v1380
      %v1471 = vpop.f32.mrb[0].mxu0
      %v1472 = vadd.f32 0.0, %v1471
      %v1473 = vpop.f32.mrb[0].mxu0
      %1474 = vmatprep.mubr.f32.mxu0 0.0
      %1475 = vmatmul.mubr.f32.gmra.mrb[0].mxu0 %v1381
      %v1476 = vpop.f32.mrb[0].mxu0
      %v1477 = vadd.f32 0.0, %v1476
      %v1478 = vpop.f32.mrb[0].mxu0
      %1479 = vmatprep.mubr.f32.mxu0 0.0
      %1480 = vmatmul.mubr.f32.gmra.mrb[0].mxu0 %v1382
      %v1481 = vpop.f32.mrb[0].mxu0
      %v1482 = vadd.f32 0.0, %v1481
      %v1483 = vpop.f32.mrb[0].mxu0
      %1484 = vmatprep.mubr.f32.mxu0 0.0
      %1485 = vmatmul.mubr.f32.gmra.mrb[0].mxu0 %v1383
      %v1486 = vpop.f32.mrb[0].mxu0
      %v1487 = vadd.f32 0.0, %v1486
      %v1488 = vpop.f32.mrb[0].mxu0
      %1489 = vmatprep.mubr.f32.mxu0 0.0
      %1490 = vmatmul.mubr.f32.gmra.mrb[0].mxu0 %v1384
      %v1491 = vpop.f32.mrb[0].mxu0
      %v1492 = vadd.f32 0.0, %v1491
      %v1493 = vpop.f32.mrb[0].mxu0
      %1494 = vmatprep.mubr.f32.mxu0 0.0
      %1495 = vmatmul.mubr.f32.gmra.mrb[0].mxu0 %v1385
      %v1496 = vpop.f32.mrb[0].mxu0
      %v1497 = vadd.f32 0.0, %v1496
      %v1498 = vpop.f32.mrb[0].mxu0
      %1499 = vmatprep.mubr.f32.mxu0 0.0
      %1500 = vmatmul.mubr.f32.gmra.mrb[0].mxu0 %v1386
      %v1501 = vpop.f32.mrb[0].mxu0
      %v1502 = vadd.f32 0.0, %v1501
      %v1503 = vpop.f32.mrb[0].mxu0
      %1504 = vmatprep.mubr.f32.mxu0 0.0
      %1505 = vmatmul.mubr.f32.gmra.mrb[0].mxu0 %v1387
      %v1506 = vpop.f32.mrb[0].mxu0
      %v1507 = vadd.f32 0.0, %v1506
      %v1508 = vpop.f32.mrb[0].mxu0
      %1509 = vdwg.mxu0
      %v1510 = vadd.f32 %v1370, %v1472
      %v1511 = vadd.f32 %v1371, %v1477
      %v1512 = vadd.f32 %v1372, %v1482
      %v1513 = vadd.f32 %v1373, %v1487
      %v1514 = vadd.f32 %v1374, %v1492
      %v1515 = vadd.f32 %v1375, %v1497
      %v1516 = vadd.f32 %v1376, %v1502
      %v1517 = vadd.f32 %v1377, %v1507
      %s1518 = sadd.s32 32, %s695
      %s1519 = scalar_lea.vmem [#allocation2], %s1518
      %v1520 = vld [vmem:[%s1519] sm:$0xff]
      %v1521 = vld [vmem:[%s1519 + $0x8] sm:$0xff]
      %v1522 = vld [vmem:[%s1519 + $0x10] sm:$0xff]
      %v1523 = vld [vmem:[%s1519 + $0x18] sm:$0xff]
      %v1524 = vld [vmem:[%s1519 + $0x20] sm:$0xff]
      %v1525 = vld [vmem:[%s1519 + $0x28] sm:$0xff]
      %v1526 = vld [vmem:[%s1519 + $0x30] sm:$0xff]
      %v1527 = vld [vmem:[%s1519 + $0x38] sm:$0xff]
      %s1528 = scalar_lea.vmem %s1, 768
      %v1529 = vld [vmem:[%s1528] sm:$0xff]
      %v1530 = vld [vmem:[%s1528 + $0x8] sm:$0xff]
      %v1531 = vld [vmem:[%s1528 + $0x10] sm:$0xff]
      %v1532 = vld [vmem:[%s1528 + $0x18] sm:$0xff]
      %v1533 = vld [vmem:[%s1528 + $0x20] sm:$0xff]
      %v1534 = vld [vmem:[%s1528 + $0x28] sm:$0xff]
      %v1535 = vld [vmem:[%s1528 + $0x30] sm:$0xff]
      %v1536 = vld [vmem:[%s1528 + $0x38] sm:$0xff]
      %v1537 = vld [vmem:[%s1528 + $0x40] sm:$0xff]
      %v1538 = vld [vmem:[%s1528 + $0x48] sm:$0xff]
      %v1539 = vld [vmem:[%s1528 + $0x50] sm:$0xff]
      %v1540 = vld [vmem:[%s1528 + $0x58] sm:$0xff]
      %v1541 = vld [vmem:[%s1528 + $0x60] sm:$0xff]
      %v1542 = vld [vmem:[%s1528 + $0x68] sm:$0xff]
      %v1543 = vld [vmem:[%s1528 + $0x70] sm:$0xff]
      %v1544 = vld [vmem:[%s1528 + $0x78] sm:$0xff]
      %1545 = vmatprep.subr.mxu0 0.0
      %1546 = vmatpush1.msra.mxu0 %v1529
      %1547 = vmatprep.subr.mxu0 0.0
      %1548 = vmatpush1.msra.mxu0 %v1530
      %1549 = vmatprep.subr.mxu0 0.0
      %1550 = vmatpush1.msra.mxu0 %v1531
      %1551 = vmatprep.subr.mxu0 0.0
      %1552 = vmatpush1.msra.mxu0 %v1532
      %1553 = vmatprep.subr.mxu0 0.0
      %1554 = vmatpush1.msra.mxu0 %v1533
      %1555 = vmatprep.subr.mxu0 0.0
      %1556 = vmatpush1.msra.mxu0 %v1534
      %1557 = vmatprep.subr.mxu0 0.0
      %1558 = vmatpush1.msra.mxu0 %v1535
      %1559 = vmatprep.subr.mxu0 0.0
      %1560 = vmatpush1.msra.mxu0 %v1536
      %1561 = vmatprep.subr.mxu0 0.0
      %1562 = vmatpush1.msra.mxu0 %v1537
      %1563 = vmatprep.subr.mxu0 0.0
      %1564 = vmatpush1.msra.mxu0 %v1538
      %1565 = vmatprep.subr.mxu0 0.0
      %1566 = vmatpush1.msra.mxu0 %v1539
      %1567 = vmatprep.subr.mxu0 0.0
      %1568 = vmatpush1.msra.mxu0 %v1540
      %1569 = vmatprep.subr.mxu0 0.0
      %1570 = vmatpush1.msra.mxu0 %v1541
      %1571 = vmatprep.subr.mxu0 0.0
      %1572 = vmatpush1.msra.mxu0 %v1542
      %1573 = vmatprep.subr.mxu0 0.0
      %1574 = vmatpush1.msra.mxu0 %v1543
      %1575 = vmatprep.subr.mxu0 0.0
      %1576 = vmatpush1.msra.mxu0 %v1544
      %1577 = vmatprep.subr.mxu0 0.0
      %1578 = vmatpush1.msra.mxu0 0.0
      %1579 = vmatprep.subr.mxu0 0.0
      %1580 = vmatpush1.msra.mxu0 0.0
      %1581 = vmatprep.subr.mxu0 0.0
      %1582 = vmatpush1.msra.mxu0 0.0
      %1583 = vmatprep.subr.mxu0 0.0
      %1584 = vmatpush1.msra.mxu0 0.0
      %1585 = vmatprep.subr.mxu0 0.0
      %1586 = vmatpush1.msra.mxu0 0.0
      %1587 = vmatprep.subr.mxu0 0.0
      %1588 = vmatpush1.msra.mxu0 0.0
      %1589 = vmatprep.subr.mxu0 0.0
      %1590 = vmatpush1.msra.mxu0 0.0
      %1591 = vmatprep.subr.mxu0 0.0
      %1592 = vmatpush1.msra.mxu0 0.0
      %1593 = vmatprep.subr.mxu0 0.0
      %1594 = vmatpush1.msra.mxu0 0.0
      %1595 = vmatprep.subr.mxu0 0.0
      %1596 = vmatpush1.msra.mxu0 0.0
      %1597 = vmatprep.subr.mxu0 0.0
      %1598 = vmatpush1.msra.mxu0 0.0
      %1599 = vmatprep.subr.mxu0 0.0
      %1600 = vmatpush1.msra.mxu0 0.0
      %1601 = vmatprep.subr.mxu0 0.0
      %1602 = vmatpush1.msra.mxu0 0.0
      %1603 = vmatprep.subr.mxu0 0.0
      %1604 = vmatpush1.msra.mxu0 0.0
      %1605 = vmatprep.subr.mxu0 0.0
      %1606 = vmatpush1.msra.mxu0 0.0
      %1607 = vmatprep.subr.mxu0 0.0
      %1608 = vmatpush1.msra.mxu0 0.0
      %1609 = vmatprep.mubr.f32.mxu0 0.0
      %1610 = vmatmul.mubr.f32.gmra.mrb[0].mxu0 %v1520
      %v1611 = vpop.f32.mrb[0].mxu0
      %v1612 = vadd.f32 0.0, %v1611
      %v1613 = vpop.f32.mrb[0].mxu0
      %1614 = vmatprep.mubr.f32.mxu0 0.0
      %1615 = vmatmul.mubr.f32.gmra.mrb[0].mxu0 %v1521
      %v1616 = vpop.f32.mrb[0].mxu0
      %v1617 = vadd.f32 0.0, %v1616
      %v1618 = vpop.f32.mrb[0].mxu0
      %1619 = vmatprep.mubr.f32.mxu0 0.0
      %1620 = vmatmul.mubr.f32.gmra.mrb[0].mxu0 %v1522
      %v1621 = vpop.f32.mrb[0].mxu0
      %v1622 = vadd.f32 0.0, %v1621
      %v1623 = vpop.f32.mrb[0].mxu0
      %1624 = vmatprep.mubr.f32.mxu0 0.0
      %1625 = vmatmul.mubr.f32.gmra.mrb[0].mxu0 %v1523
      %v1626 = vpop.f32.mrb[0].mxu0
      %v1627 = vadd.f32 0.0, %v1626
      %v1628 = vpop.f32.mrb[0].mxu0
      %1629 = vmatprep.mubr.f32.mxu0 0.0
      %1630 = vmatmul.mubr.f32.gmra.mrb[0].mxu0 %v1524
      %v1631 = vpop.f32.mrb[0].mxu0
      %v1632 = vadd.f32 0.0, %v1631
      %v1633 = vpop.f32.mrb[0].mxu0
      %1634 = vmatprep.mubr.f32.mxu0 0.0
      %1635 = vmatmul.mubr.f32.gmra.mrb[0].mxu0 %v1525
      %v1636 = vpop.f32.mrb[0].mxu0
      %v1637 = vadd.f32 0.0, %v1636
      %v1638 = vpop.f32.mrb[0].mxu0
      %1639 = vmatprep.mubr.f32.mxu0 0.0
      %1640 = vmatmul.mubr.f32.gmra.mrb[0].mxu0 %v1526
      %v1641 = vpop.f32.mrb[0].mxu0
      %v1642 = vadd.f32 0.0, %v1641
      %v1643 = vpop.f32.mrb[0].mxu0
      %1644 = vmatprep.mubr.f32.mxu0 0.0
      %1645 = vmatmul.mubr.f32.gmra.mrb[0].mxu0 %v1527
      %v1646 = vpop.f32.mrb[0].mxu0
      %v1647 = vadd.f32 0.0, %v1646
      %v1648 = vpop.f32.mrb[0].mxu0
      %1649 = vdwg.mxu0
      %v1650 = vadd.f32 %v1510, %v1612
      %v1651 = vadd.f32 %v1511, %v1617
      %v1652 = vadd.f32 %v1512, %v1622
      %v1653 = vadd.f32 %v1513, %v1627
      %v1654 = vadd.f32 %v1514, %v1632
      %v1655 = vadd.f32 %v1515, %v1637
      %v1656 = vadd.f32 %v1516, %v1642
      %v1657 = vadd.f32 %v1517, %v1647
      %s1658 = sadd.s32 128, %s695
      %s1659 = scalar_lea.vmem [#allocation2], %s1658
      %v1660 = vld [vmem:[%s1659] sm:$0xff]
      %v1661 = vld [vmem:[%s1659 + $0x8] sm:$0xff]
      %v1662 = vld [vmem:[%s1659 + $0x10] sm:$0xff]
      %v1663 = vld [vmem:[%s1659 + $0x18] sm:$0xff]
      %v1664 = vld [vmem:[%s1659 + $0x20] sm:$0xff]
      %v1665 = vld [vmem:[%s1659 + $0x28] sm:$0xff]
      %v1666 = vld [vmem:[%s1659 + $0x30] sm:$0xff]
      %v1667 = vld [vmem:[%s1659 + $0x38] sm:$0xff]
      %s1668 = scalar_lea.vmem %s1, 896
      %v1669 = vld [vmem:[%s1668] sm:$0xff]
      %v1670 = vld [vmem:[%s1668 + $0x8] sm:$0xff]
      %v1671 = vld [vmem:[%s1668 + $0x10] sm:$0xff]
      %v1672 = vld [vmem:[%s1668 + $0x18] sm:$0xff]
      %v1673 = vld [vmem:[%s1668 + $0x20] sm:$0xff]
      %v1674 = vld [vmem:[%s1668 + $0x28] sm:$0xff]
      %v1675 = vld [vmem:[%s1668 + $0x30] sm:$0xff]
      %v1676 = vld [vmem:[%s1668 + $0x38] sm:$0xff]
      %v1677 = vld [vmem:[%s1668 + $0x40] sm:$0xff]
      %v1678 = vld [vmem:[%s1668 + $0x48] sm:$0xff]
      %v1679 = vld [vmem:[%s1668 + $0x50] sm:$0xff]
      %v1680 = vld [vmem:[%s1668 + $0x58] sm:$0xff]
      %v1681 = vld [vmem:[%s1668 + $0x60] sm:$0xff]
      %v1682 = vld [vmem:[%s1668 + $0x68] sm:$0xff]
      %v1683 = vld [vmem:[%s1668 + $0x70] sm:$0xff]
      %v1684 = vld [vmem:[%s1668 + $0x78] sm:$0xff]
      %1685 = vmatprep.subr.mxu0 0.0
      %1686 = vmatpush1.msra.mxu0 %v1669
      %1687 = vmatprep.subr.mxu0 0.0
      %1688 = vmatpush1.msra.mxu0 %v1670
      %1689 = vmatprep.subr.mxu0 0.0
      %1690 = vmatpush1.msra.mxu0 %v1671
      %1691 = vmatprep.subr.mxu0 0.0
      %1692 = vmatpush1.msra.mxu0 %v1672
      %1693 = vmatprep.subr.mxu0 0.0
      %1694 = vmatpush1.msra.mxu0 %v1673
      %1695 = vmatprep.subr.mxu0 0.0
      %1696 = vmatpush1.msra.mxu0 %v1674
      %1697 = vmatprep.subr.mxu0 0.0
      %1698 = vmatpush1.msra.mxu0 %v1675
      %1699 = vmatprep.subr.mxu0 0.0
      %1700 = vmatpush1.msra.mxu0 %v1676
      %1701 = vmatprep.subr.mxu0 0.0
      %1702 = vmatpush1.msra.mxu0 %v1677
      %1703 = vmatprep.subr.mxu0 0.0
      %1704 = vmatpush1.msra.mxu0 %v1678
      %1705 = vmatprep.subr.mxu0 0.0
      %1706 = vmatpush1.msra.mxu0 %v1679
      %1707 = vmatprep.subr.mxu0 0.0
      %1708 = vmatpush1.msra.mxu0 %v1680
      %1709 = vmatprep.subr.mxu0 0.0
      %1710 = vmatpush1.msra.mxu0 %v1681
      %1711 = vmatprep.subr.mxu0 0.0
      %1712 = vmatpush1.msra.mxu0 %v1682
      %1713 = vmatprep.subr.mxu0 0.0
      %1714 = vmatpush1.msra.mxu0 %v1683
      %1715 = vmatprep.subr.mxu0 0.0
      %1716 = vmatpush1.msra.mxu0 %v1684
      %1717 = vmatprep.subr.mxu0 0.0
      %1718 = vmatpush1.msra.mxu0 0.0
      %1719 = vmatprep.subr.mxu0 0.0
      %1720 = vmatpush1.msra.mxu0 0.0
      %1721 = vmatprep.subr.mxu0 0.0
      %1722 = vmatpush1.msra.mxu0 0.0
      %1723 = vmatprep.subr.mxu0 0.0
      %1724 = vmatpush1.msra.mxu0 0.0
      %1725 = vmatprep.subr.mxu0 0.0
      %1726 = vmatpush1.msra.mxu0 0.0
      %1727 = vmatprep.subr.mxu0 0.0
      %1728 = vmatpush1.msra.mxu0 0.0
      %1729 = vmatprep.subr.mxu0 0.0
      %1730 = vmatpush1.msra.mxu0 0.0
      %1731 = vmatprep.subr.mxu0 0.0
      %1732 = vmatpush1.msra.mxu0 0.0
      %1733 = vmatprep.subr.mxu0 0.0
      %1734 = vmatpush1.msra.mxu0 0.0
      %1735 = vmatprep.subr.mxu0 0.0
      %1736 = vmatpush1.msra.mxu0 0.0
      %1737 = vmatprep.subr.mxu0 0.0
      %1738 = vmatpush1.msra.mxu0 0.0
      %1739 = vmatprep.subr.mxu0 0.0
      %1740 = vmatpush1.msra.mxu0 0.0
      %1741 = vmatprep.subr.mxu0 0.0
      %1742 = vmatpush1.msra.mxu0 0.0
      %1743 = vmatprep.subr.mxu0 0.0
      %1744 = vmatpush1.msra.mxu0 0.0
      %1745 = vmatprep.subr.mxu0 0.0
      %1746 = vmatpush1.msra.mxu0 0.0
      %1747 = vmatprep.subr.mxu0 0.0
      %1748 = vmatpush1.msra.mxu0 0.0
      %1749 = vmatprep.mubr.f32.mxu0 0.0
      %1750 = vmatmul.mubr.f32.gmra.mrb[0].mxu0 %v1660
      %v1751 = vpop.f32.mrb[0].mxu0
      %v1752 = vadd.f32 0.0, %v1751
      %v1753 = vpop.f32.mrb[0].mxu0
      %1754 = vmatprep.mubr.f32.mxu0 0.0
      %1755 = vmatmul.mubr.f32.gmra.mrb[0].mxu0 %v1661
      %v1756 = vpop.f32.mrb[0].mxu0
      %v1757 = vadd.f32 0.0, %v1756
      %v1758 = vpop.f32.mrb[0].mxu0
      %1759 = vmatprep.mubr.f32.mxu0 0.0
      %1760 = vmatmul.mubr.f32.gmra.mrb[0].mxu0 %v1662
      %v1761 = vpop.f32.mrb[0].mxu0
      %v1762 = vadd.f32 0.0, %v1761
      %v1763 = vpop.f32.mrb[0].mxu0
      %1764 = vmatprep.mubr.f32.mxu0 0.0
      %1765 = vmatmul.mubr.f32.gmra.mrb[0].mxu0 %v1663
      %v1766 = vpop.f32.mrb[0].mxu0
      %v1767 = vadd.f32 0.0, %v1766
      %v1768 = vpop.f32.mrb[0].mxu0
      %1769 = vmatprep.mubr.f32.mxu0 0.0
      %1770 = vmatmul.mubr.f32.gmra.mrb[0].mxu0 %v1664
      %v1771 = vpop.f32.mrb[0].mxu0
      %v1772 = vadd.f32 0.0, %v1771
      %v1773 = vpop.f32.mrb[0].mxu0
      %1774 = vmatprep.mubr.f32.mxu0 0.0
      %1775 = vmatmul.mubr.f32.gmra.mrb[0].mxu0 %v1665
      %v1776 = vpop.f32.mrb[0].mxu0
      %v1777 = vadd.f32 0.0, %v1776
      %v1778 = vpop.f32.mrb[0].mxu0
      %1779 = vmatprep.mubr.f32.mxu0 0.0
      %1780 = vmatmul.mubr.f32.gmra.mrb[0].mxu0 %v1666
      %v1781 = vpop.f32.mrb[0].mxu0
      %v1782 = vadd.f32 0.0, %v1781
      %v1783 = vpop.f32.mrb[0].mxu0
      %1784 = vmatprep.mubr.f32.mxu0 0.0
      %1785 = vmatmul.mubr.f32.gmra.mrb[0].mxu0 %v1667
      %v1786 = vpop.f32.mrb[0].mxu0
      %v1787 = vadd.f32 0.0, %v1786
      %v1788 = vpop.f32.mrb[0].mxu0
      %1789 = vdwg.mxu0
      %v1790 = vadd.f32 %v1650, %v1752
      %v1791 = vadd.f32 %v1651, %v1757
      %v1792 = vadd.f32 %v1652, %v1762
      %v1793 = vadd.f32 %v1653, %v1767
      %v1794 = vadd.f32 %v1654, %v1772
      %v1795 = vadd.f32 %v1655, %v1777
      %v1796 = vadd.f32 %v1656, %v1782
      %v1797 = vadd.f32 %v1657, %v1787
      %s1798 = sadd.s32 224, %s695
      %s1799 = scalar_lea.vmem [#allocation2], %s1798
      %v1800 = vld [vmem:[%s1799] sm:$0xff]
      %v1801 = vld [vmem:[%s1799 + $0x8] sm:$0xff]
      %v1802 = vld [vmem:[%s1799 + $0x10] sm:$0xff]
      %v1803 = vld [vmem:[%s1799 + $0x18] sm:$0xff]
      %v1804 = vld [vmem:[%s1799 + $0x20] sm:$0xff]
      %v1805 = vld [vmem:[%s1799 + $0x28] sm:$0xff]
      %v1806 = vld [vmem:[%s1799 + $0x30] sm:$0xff]
      %v1807 = vld [vmem:[%s1799 + $0x38] sm:$0xff]
      %s1808 = scalar_lea.vmem %s1, 1024
      %v1809 = vld [vmem:[%s1808] sm:$0xff]
      %v1810 = vld [vmem:[%s1808 + $0x8] sm:$0xff]
      %v1811 = vld [vmem:[%s1808 + $0x10] sm:$0xff]
      %v1812 = vld [vmem:[%s1808 + $0x18] sm:$0xff]
      %v1813 = vld [vmem:[%s1808 + $0x20] sm:$0xff]
      %v1814 = vld [vmem:[%s1808 + $0x28] sm:$0xff]
      %v1815 = vld [vmem:[%s1808 + $0x30] sm:$0xff]
      %v1816 = vld [vmem:[%s1808 + $0x38] sm:$0xff]
      %v1817 = vld [vmem:[%s1808 + $0x40] sm:$0xff]
      %v1818 = vld [vmem:[%s1808 + $0x48] sm:$0xff]
      %v1819 = vld [vmem:[%s1808 + $0x50] sm:$0xff]
      %v1820 = vld [vmem:[%s1808 + $0x58] sm:$0xff]
      %v1821 = vld [vmem:[%s1808 + $0x60] sm:$0xff]
      %v1822 = vld [vmem:[%s1808 + $0x68] sm:$0xff]
      %v1823 = vld [vmem:[%s1808 + $0x70] sm:$0xff]
      %v1824 = vld [vmem:[%s1808 + $0x78] sm:$0xff]
      %1825 = vmatprep.subr.mxu0 0.0
      %1826 = vmatpush1.msra.mxu0 %v1809
      %1827 = vmatprep.subr.mxu0 0.0
      %1828 = vmatpush1.msra.mxu0 %v1810
      %1829 = vmatprep.subr.mxu0 0.0
      %1830 = vmatpush1.msra.mxu0 %v1811
      %1831 = vmatprep.subr.mxu0 0.0
      %1832 = vmatpush1.msra.mxu0 %v1812
      %1833 = vmatprep.subr.mxu0 0.0
      %1834 = vmatpush1.msra.mxu0 %v1813
      %1835 = vmatprep.subr.mxu0 0.0
      %1836 = vmatpush1.msra.mxu0 %v1814
      %1837 = vmatprep.subr.mxu0 0.0
      %1838 = vmatpush1.msra.mxu0 %v1815
      %1839 = vmatprep.subr.mxu0 0.0
      %1840 = vmatpush1.msra.mxu0 %v1816
      %1841 = vmatprep.subr.mxu0 0.0
      %1842 = vmatpush1.msra.mxu0 %v1817
      %1843 = vmatprep.subr.mxu0 0.0
      %1844 = vmatpush1.msra.mxu0 %v1818
      %1845 = vmatprep.subr.mxu0 0.0
      %1846 = vmatpush1.msra.mxu0 %v1819
      %1847 = vmatprep.subr.mxu0 0.0
      %1848 = vmatpush1.msra.mxu0 %v1820
      %1849 = vmatprep.subr.mxu0 0.0
      %1850 = vmatpush1.msra.mxu0 %v1821
      %1851 = vmatprep.subr.mxu0 0.0
      %1852 = vmatpush1.msra.mxu0 %v1822
      %1853 = vmatprep.subr.mxu0 0.0
      %1854 = vmatpush1.msra.mxu0 %v1823
      %1855 = vmatprep.subr.mxu0 0.0
      %1856 = vmatpush1.msra.mxu0 %v1824
      %1857 = vmatprep.subr.mxu0 0.0
      %1858 = vmatpush1.msra.mxu0 0.0
      %1859 = vmatprep.subr.mxu0 0.0
      %1860 = vmatpush1.msra.mxu0 0.0
      %1861 = vmatprep.subr.mxu0 0.0
      %1862 = vmatpush1.msra.mxu0 0.0
      %1863 = vmatprep.subr.mxu0 0.0
      %1864 = vmatpush1.msra.mxu0 0.0
      %1865 = vmatprep.subr.mxu0 0.0
      %1866 = vmatpush1.msra.mxu0 0.0
      %1867 = vmatprep.subr.mxu0 0.0
      %1868 = vmatpush1.msra.mxu0 0.0
      %1869 = vmatprep.subr.mxu0 0.0
      %1870 = vmatpush1.msra.mxu0 0.0
      %1871 = vmatprep.subr.mxu0 0.0
      %1872 = vmatpush1.msra.mxu0 0.0
      %1873 = vmatprep.subr.mxu0 0.0
      %1874 = vmatpush1.msra.mxu0 0.0
      %1875 = vmatprep.subr.mxu0 0.0
      %1876 = vmatpush1.msra.mxu0 0.0
      %1877 = vmatprep.subr.mxu0 0.0
      %1878 = vmatpush1.msra.mxu0 0.0
      %1879 = vmatprep.subr.mxu0 0.0
      %1880 = vmatpush1.msra.mxu0 0.0
      %1881 = vmatprep.subr.mxu0 0.0
      %1882 = vmatpush1.msra.mxu0 0.0
      %1883 = vmatprep.subr.mxu0 0.0
      %1884 = vmatpush1.msra.mxu0 0.0
      %1885 = vmatprep.subr.mxu0 0.0
      %1886 = vmatpush1.msra.mxu0 0.0
      %1887 = vmatprep.subr.mxu0 0.0
      %1888 = vmatpush1.msra.mxu0 0.0
      %1889 = vmatprep.mubr.f32.mxu0 0.0
      %1890 = vmatmul.mubr.f32.gmra.mrb[0].mxu0 %v1800
      %v1891 = vpop.f32.mrb[0].mxu0
      %v1892 = vadd.f32 0.0, %v1891
      %v1893 = vpop.f32.mrb[0].mxu0
      %1894 = vmatprep.mubr.f32.mxu0 0.0
      %1895 = vmatmul.mubr.f32.gmra.mrb[0].mxu0 %v1801
      %v1896 = vpop.f32.mrb[0].mxu0
      %v1897 = vadd.f32 0.0, %v1896
      %v1898 = vpop.f32.mrb[0].mxu0
      %1899 = vmatprep.mubr.f32.mxu0 0.0
      %1900 = vmatmul.mubr.f32.gmra.mrb[0].mxu0 %v1802
      %v1901 = vpop.f32.mrb[0].mxu0
      %v1902 = vadd.f32 0.0, %v1901
      %v1903 = vpop.f32.mrb[0].mxu0
      %1904 = vmatprep.mubr.f32.mxu0 0.0
      %1905 = vmatmul.mubr.f32.gmra.mrb[0].mxu0 %v1803
      %v1906 = vpop.f32.mrb[0].mxu0
      %v1907 = vadd.f32 0.0, %v1906
      %v1908 = vpop.f32.mrb[0].mxu0
      %1909 = vmatprep.mubr.f32.mxu0 0.0
      %1910 = vmatmul.mubr.f32.gmra.mrb[0].mxu0 %v1804
      %v1911 = vpop.f32.mrb[0].mxu0
      %v1912 = vadd.f32 0.0, %v1911
      %v1913 = vpop.f32.mrb[0].mxu0
      %1914 = vmatprep.mubr.f32.mxu0 0.0
      %1915 = vmatmul.mubr.f32.gmra.mrb[0].mxu0 %v1805
      %v1916 = vpop.f32.mrb[0].mxu0
      %v1917 = vadd.f32 0.0, %v1916
      %v1918 = vpop.f32.mrb[0].mxu0
      %1919 = vmatprep.mubr.f32.mxu0 0.0
      %1920 = vmatmul.mubr.f32.gmra.mrb[0].mxu0 %v1806
      %v1921 = vpop.f32.mrb[0].mxu0
      %v1922 = vadd.f32 0.0, %v1921
      %v1923 = vpop.f32.mrb[0].mxu0
      %1924 = vmatprep.mubr.f32.mxu0 0.0
      %1925 = vmatmul.mubr.f32.gmra.mrb[0].mxu0 %v1807
      %v1926 = vpop.f32.mrb[0].mxu0
      %v1927 = vadd.f32 0.0, %v1926
      %v1928 = vpop.f32.mrb[0].mxu0
      %1929 = vdwg.mxu0
      %v1930 = vadd.f32 %v1790, %v1892
      %v1931 = vadd.f32 %v1791, %v1897
      %v1932 = vadd.f32 %v1792, %v1902
      %v1933 = vadd.f32 %v1793, %v1907
      %v1934 = vadd.f32 %v1794, %v1912
      %v1935 = vadd.f32 %v1795, %v1917
      %v1936 = vadd.f32 %v1796, %v1922
      %v1937 = vadd.f32 %v1797, %v1927
      %v1938 = vld [vmem:[%s2] sm:$0x1]
      %v1939 = vld [vmem:[%s3] sm:$0x1]
      %v1940 = vlaneseq
      %v1941 = vand.u32 %v1940, 127
      %vm1942 = vcmp.lt.s32.totalorder %v1941, 16
      %v1943 = vsel %vm1942, %v1930, 0.0
      %v1944 = vsel %vm1942, %v1931, 0.0
      %v1945 = vsel %vm1942, %v1932, 0.0
      %v1946 = vsel %vm1942, %v1933, 0.0
      %v1947 = vsel %vm1942, %v1934, 0.0
      %v1948 = vsel %vm1942, %v1935, 0.0
      %v1949 = vsel %vm1942, %v1936, 0.0
      %v1950 = vsel %vm1942, %v1937, 0.0
      %1951 = vadd.xlane.f32.xlu0 %v1943
      %v1952 = vpop.xlane.xlu0 %1951
      %1953 = vadd.xlane.f32.xlu0 %v1944
      %v1954 = vpop.xlane.xlu0 %1953
      %1955 = vadd.xlane.f32.xlu0 %v1945
      %v1956 = vpop.xlane.xlu0 %1955
      %1957 = vadd.xlane.f32.xlu0 %v1946
      %v1958 = vpop.xlane.xlu0 %1957
      %1959 = vadd.xlane.f32.xlu0 %v1947
      %v1960 = vpop.xlane.xlu0 %1959
      %1961 = vadd.xlane.f32.xlu0 %v1948
      %v1962 = vpop.xlane.xlu0 %1961
      %1963 = vadd.xlane.f32.xlu0 %v1949
      %v1964 = vpop.xlane.xlu0 %1963
      %1965 = vadd.xlane.f32.xlu0 %v1950
      %v1966 = vpop.xlane.xlu0 %1965
      %v1967 = vmul.f32 %v1952, 0.0625
      %v1968 = vmul.f32 %v1954, 0.0625
      %v1969 = vmul.f32 %v1956, 0.0625
      %v1970 = vmul.f32 %v1958, 0.0625
      %v1971 = vmul.f32 %v1960, 0.0625
      %v1972 = vmul.f32 %v1962, 0.0625
      %v1973 = vmul.f32 %v1964, 0.0625
      %v1974 = vmul.f32 %v1966, 0.0625
      %v1975 = vsub.f32 %v1930, %v1967
      %v1976 = vsub.f32 %v1931, %v1968
      %v1977 = vsub.f32 %v1932, %v1969
      %v1978 = vsub.f32 %v1933, %v1970
      %v1979 = vsub.f32 %v1934, %v1971
      %v1980 = vsub.f32 %v1935, %v1972
      %v1981 = vsub.f32 %v1936, %v1973
      %v1982 = vsub.f32 %v1937, %v1974
      %v1983 = vsel %vm1942, %v1975, 0.0
      %v1984 = vsel %vm1942, %v1976, 0.0
      %v1985 = vsel %vm1942, %v1977, 0.0
      %v1986 = vsel %vm1942, %v1978, 0.0
      %v1987 = vsel %vm1942, %v1979, 0.0
      %v1988 = vsel %vm1942, %v1980, 0.0
      %v1989 = vsel %vm1942, %v1981, 0.0
      %v1990 = vsel %vm1942, %v1982, 0.0
      %v1991 = vmul.f32 %v1983, %v1983
      %v1992 = vmul.f32 %v1984, %v1984
      %v1993 = vmul.f32 %v1985, %v1985
      %v1994 = vmul.f32 %v1986, %v1986
      %v1995 = vmul.f32 %v1987, %v1987
      %v1996 = vmul.f32 %v1988, %v1988
      %v1997 = vmul.f32 %v1989, %v1989
      %v1998 = vmul.f32 %v1990, %v1990
      %1999 = vadd.xlane.f32.xlu0 %v1991
      %v2000 = vpop.xlane.xlu0 %1999
      %2001 = vadd.xlane.f32.xlu0 %v1992
      %v2002 = vpop.xlane.xlu0 %2001
      %2003 = vadd.xlane.f32.xlu0 %v1993
      %v2004 = vpop.xlane.xlu0 %2003
      %2005 = vadd.xlane.f32.xlu0 %v1994
      %v2006 = vpop.xlane.xlu0 %2005
      %2007 = vadd.xlane.f32.xlu0 %v1995
      %v2008 = vpop.xlane.xlu0 %2007
      %2009 = vadd.xlane.f32.xlu0 %v1996
      %v2010 = vpop.xlane.xlu0 %2009
      %2011 = vadd.xlane.f32.xlu0 %v1997
      %v2012 = vpop.xlane.xlu0 %2011
      %2013 = vadd.xlane.f32.xlu0 %v1998
      %v2014 = vpop.xlane.xlu0 %2013
      %v2015 = vmul.f32 %v2000, 0.0625
      %v2016 = vmul.f32 %v2002, 0.0625
      %v2017 = vmul.f32 %v2004, 0.0625
      %v2018 = vmul.f32 %v2006, 0.0625
      %v2019 = vmul.f32 %v2008, 0.0625
      %v2020 = vmul.f32 %v2010, 0.0625
      %v2021 = vmul.f32 %v2012, 0.0625
      %v2022 = vmul.f32 %v2014, 0.0625
      %v2023 = vadd.f32 %v2015, 1e-06
      %v2024 = vadd.f32 %v2016, 1e-06
      %v2025 = vadd.f32 %v2017, 1e-06
      %v2026 = vadd.f32 %v2018, 1e-06
      %v2027 = vadd.f32 %v2019, 1e-06
      %v2028 = vadd.f32 %v2020, 1e-06
      %v2029 = vadd.f32 %v2021, 1e-06
      %v2030 = vadd.f32 %v2022, 1e-06
      %v2031 = vrsqrt.pop %v2023
      %v2032 = vrsqrt.pop %v2024
      %v2033 = vrsqrt.pop %v2025
      %v2034 = vrsqrt.pop %v2026
      %v2035 = vrsqrt.pop %v2027
      %v2036 = vrsqrt.pop %v2028
      %v2037 = vrsqrt.pop %v2029
      %v2038 = vrsqrt.pop %v2030
      %v2039 = vmul.f32 %v1983, %v2031
      %v2040 = vmul.f32 %v1984, %v2032
      %v2041 = vmul.f32 %v1985, %v2033
      %v2042 = vmul.f32 %v1986, %v2034
      %v2043 = vmul.f32 %v1987, %v2035
      %v2044 = vmul.f32 %v1988, %v2036
      %v2045 = vmul.f32 %v1989, %v2037
      %v2046 = vmul.f32 %v1990, %v2038
      %v2048 = vlaneseq
      %v2049 = vshrl.u32 %v2048, 7
      %v2050 = vsub.s32 0, %v2049
      %v2051 = vrot.slane %v1938, %v2050
      %v2053 = vmul.f32 %v2039, %v2051
      %v2054 = vmul.f32 %v2040, %v2051
      %v2055 = vmul.f32 %v2041, %v2051
      %v2056 = vmul.f32 %v2042, %v2051
      %v2057 = vmul.f32 %v2043, %v2051
      %v2058 = vmul.f32 %v2044, %v2051
      %v2059 = vmul.f32 %v2045, %v2051
      %v2060 = vmul.f32 %v2046, %v2051
      %v2062 = vlaneseq
      %v2063 = vshrl.u32 %v2062, 7
      %v2064 = vsub.s32 0, %v2063
      %v2065 = vrot.slane %v1939, %v2064
      %v2067 = vadd.f32 %v2053, %v2065
      %v2068 = vadd.f32 %v2054, %v2065
      %v2069 = vadd.f32 %v2055, %v2065
      %v2070 = vadd.f32 %v2056, %v2065
      %v2071 = vadd.f32 %v2057, %v2065
      %v2072 = vadd.f32 %v2058, %v2065
      %v2073 = vadd.f32 %v2059, %v2065
      %v2074 = vadd.f32 %v2060, %v2065
      %v2075 = vmul.f32 %v2067, 0.5
      %v2076 = vmul.f32 %v2068, 0.5
      %v2077 = vmul.f32 %v2069, 0.5
      %v2078 = vmul.f32 %v2070, 0.5
      %v2079 = vmul.f32 %v2071, 0.5
      %v2080 = vmul.f32 %v2072, 0.5
      %v2081 = vmul.f32 %v2073, 0.5
      %v2082 = vmul.f32 %v2074, 0.5
      %v2083 = vmul.f32 %v2067, 0.70710677
      %v2084 = vmul.f32 %v2068, 0.70710677
      %v2085 = vmul.f32 %v2069, 0.70710677
      %v2086 = vmul.f32 %v2070, 0.70710677
      %v2087 = vmul.f32 %v2071, 0.70710677
      %v2088 = vmul.f32 %v2072, 0.70710677
      %v2089 = vmul.f32 %v2073, 0.70710677
      %v2090 = vmul.f32 %v2074, 0.70710677
      %v2091 = vmax.f32 %v2083, -4.0
      %v2092 = vmax.f32 %v2084, -4.0
      %v2093 = vmax.f32 %v2085, -4.0
      %v2094 = vmax.f32 %v2086, -4.0
      %v2095 = vmax.f32 %v2087, -4.0
      %v2096 = vmax.f32 %v2088, -4.0
      %v2097 = vmax.f32 %v2089, -4.0
      %v2098 = vmax.f32 %v2090, -4.0
      %v2099 = vmin.f32 %v2091, 4.0
      %v2100 = vmin.f32 %v2092, 4.0
      %v2101 = vmin.f32 %v2093, 4.0
      %v2102 = vmin.f32 %v2094, 4.0
      %v2103 = vmin.f32 %v2095, 4.0
      %v2104 = vmin.f32 %v2096, 4.0
      %v2105 = vmin.f32 %v2097, 4.0
      %v2106 = vmin.f32 %v2098, 4.0
      %v2107 = vmul.f32 %v2099, %v2099
      %v2108 = vmul.f32 %v2100, %v2100
      %v2109 = vmul.f32 %v2101, %v2101
      %v2110 = vmul.f32 %v2102, %v2102
      %v2111 = vmul.f32 %v2103, %v2103
      %v2112 = vmul.f32 %v2104, %v2104
      %v2113 = vmul.f32 %v2105, %v2105
      %v2114 = vmul.f32 %v2106, %v2106
      %v2115 = vmul.f32 %v2107, -2.7261424e-10
      %v2116 = vmul.f32 %v2108, -2.7261424e-10
      %v2117 = vmul.f32 %v2109, -2.7261424e-10
      %v2118 = vmul.f32 %v2110, -2.7261424e-10
      %v2119 = vmul.f32 %v2111, -2.7261424e-10
      %v2120 = vmul.f32 %v2112, -2.7261424e-10
      %v2121 = vmul.f32 %v2113, -2.7261424e-10
      %v2122 = vmul.f32 %v2114, -2.7261424e-10
      %v2123 = vadd.f32 %v2115, 2.7706815e-08
      %v2124 = vadd.f32 %v2116, 2.7706815e-08
      %v2125 = vadd.f32 %v2117, 2.7706815e-08
      %v2126 = vadd.f32 %v2118, 2.7706815e-08
      %v2127 = vadd.f32 %v2119, 2.7706815e-08
      %v2128 = vadd.f32 %v2120, 2.7706815e-08
      %v2129 = vadd.f32 %v2121, 2.7706815e-08
      %v2130 = vadd.f32 %v2122, 2.7706815e-08
      %v2131 = vmul.f32 %v2123, %v2107
      %v2132 = vmul.f32 %v2124, %v2108
      %v2133 = vmul.f32 %v2125, %v2109
      %v2134 = vmul.f32 %v2126, %v2110
      %v2135 = vmul.f32 %v2127, %v2111
      %v2136 = vmul.f32 %v2128, %v2112
      %v2137 = vmul.f32 %v2129, %v2113
      %v2138 = vmul.f32 %v2130, %v2114
      %v2139 = vadd.f32 %v2131, -2.101024e-06
      %v2140 = vadd.f32 %v2132, -2.101024e-06
      %v2141 = vadd.f32 %v2133, -2.101024e-06
      %v2142 = vadd.f32 %v2134, -2.101024e-06
      %v2143 = vadd.f32 %v2135, -2.101024e-06
      %v2144 = vadd.f32 %v2136, -2.101024e-06
      %v2145 = vadd.f32 %v2137, -2.101024e-06
      %v2146 = vadd.f32 %v2138, -2.101024e-06
      %v2147 = vmul.f32 %v2139, %v2107
      %v2148 = vmul.f32 %v2140, %v2108
      %v2149 = vmul.f32 %v2141, %v2109
      %v2150 = vmul.f32 %v2142, %v2110
      %v2151 = vmul.f32 %v2143, %v2111
      %v2152 = vmul.f32 %v2144, %v2112
      %v2153 = vmul.f32 %v2145, %v2113
      %v2154 = vmul.f32 %v2146, %v2114
      %v2155 = vadd.f32 %v2147, -5.6925062e-05
      %v2156 = vadd.f32 %v2148, -5.6925062e-05
      %v2157 = vadd.f32 %v2149, -5.6925062e-05
      %v2158 = vadd.f32 %v2150, -5.6925062e-05
      %v2159 = vadd.f32 %v2151, -5.6925062e-05
      %v2160 = vadd.f32 %v2152, -5.6925062e-05
      %v2161 = vadd.f32 %v2153, -5.6925062e-05
      %v2162 = vadd.f32 %v2154, -5.6925062e-05
      %v2163 = vmul.f32 %v2155, %v2107
      %v2164 = vmul.f32 %v2156, %v2108
      %v2165 = vmul.f32 %v2157, %v2109
      %v2166 = vmul.f32 %v2158, %v2110
      %v2167 = vmul.f32 %v2159, %v2111
      %v2168 = vmul.f32 %v2160, %v2112
      %v2169 = vmul.f32 %v2161, %v2113
      %v2170 = vmul.f32 %v2162, %v2114
      %v2171 = vadd.f32 %v2163, -0.00073499064
      %v2172 = vadd.f32 %v2164, -0.00073499064
      %v2173 = vadd.f32 %v2165, -0.00073499064
      %v2174 = vadd.f32 %v2166, -0.00073499064
      %v2175 = vadd.f32 %v2167, -0.00073499064
      %v2176 = vadd.f32 %v2168, -0.00073499064
      %v2177 = vadd.f32 %v2169, -0.00073499064
      %v2178 = vadd.f32 %v2170, -0.00073499064
      %v2179 = vmul.f32 %v2171, %v2107
      %v2180 = vmul.f32 %v2172, %v2108
      %v2181 = vmul.f32 %v2173, %v2109
      %v2182 = vmul.f32 %v2174, %v2110
      %v2183 = vmul.f32 %v2175, %v2111
      %v2184 = vmul.f32 %v2176, %v2112
      %v2185 = vmul.f32 %v2177, %v2113
      %v2186 = vmul.f32 %v2178, %v2114
      %v2187 = vadd.f32 %v2179, -0.0029546
      %v2188 = vadd.f32 %v2180, -0.0029546
      %v2189 = vadd.f32 %v2181, -0.0029546
      %v2190 = vadd.f32 %v2182, -0.0029546
      %v2191 = vadd.f32 %v2183, -0.0029546
      %v2192 = vadd.f32 %v2184, -0.0029546
      %v2193 = vadd.f32 %v2185, -0.0029546
      %v2194 = vadd.f32 %v2186, -0.0029546
      %v2195 = vmul.f32 %v2187, %v2107
      %v2196 = vmul.f32 %v2188, %v2108
      %v2197 = vmul.f32 %v2189, %v2109
      %v2198 = vmul.f32 %v2190, %v2110
      %v2199 = vmul.f32 %v2191, %v2111
      %v2200 = vmul.f32 %v2192, %v2112
      %v2201 = vmul.f32 %v2193, %v2113
      %v2202 = vmul.f32 %v2194, %v2114
      %v2203 = vadd.f32 %v2195, -0.016096033
      %v2204 = vadd.f32 %v2196, -0.016096033
      %v2205 = vadd.f32 %v2197, -0.016096033
      %v2206 = vadd.f32 %v2198, -0.016096033
      %v2207 = vadd.f32 %v2199, -0.016096033
      %v2208 = vadd.f32 %v2200, -0.016096033
      %v2209 = vadd.f32 %v2201, -0.016096033
      %v2210 = vadd.f32 %v2202, -0.016096033
      %v2211 = vmul.f32 %v2203, %v2099
      %v2212 = vmul.f32 %v2204, %v2100
      %v2213 = vmul.f32 %v2205, %v2101
      %v2214 = vmul.f32 %v2206, %v2102
      %v2215 = vmul.f32 %v2207, %v2103
      %v2216 = vmul.f32 %v2208, %v2104
      %v2217 = vmul.f32 %v2209, %v2105
      %v2218 = vmul.f32 %v2210, %v2106
      %v2219 = vmul.f32 %v2107, -1.45660715e-05
      %v2220 = vmul.f32 %v2108, -1.45660715e-05
      %v2221 = vmul.f32 %v2109, -1.45660715e-05
      %v2222 = vmul.f32 %v2110, -1.45660715e-05
      %v2223 = vmul.f32 %v2111, -1.45660715e-05
      %v2224 = vmul.f32 %v2112, -1.45660715e-05
      %v2225 = vmul.f32 %v2113, -1.45660715e-05
      %v2226 = vmul.f32 %v2114, -1.45660715e-05
      %v2227 = vadd.f32 %v2219, -0.00021337405
      %v2228 = vadd.f32 %v2220, -0.00021337405
      %v2229 = vadd.f32 %v2221, -0.00021337405
      %v2230 = vadd.f32 %v2222, -0.00021337405
      %v2231 = vadd.f32 %v2223, -0.00021337405
      %v2232 = vadd.f32 %v2224, -0.00021337405
      %v2233 = vadd.f32 %v2225, -0.00021337405
      %v2234 = vadd.f32 %v2226, -0.00021337405
      %v2235 = vmul.f32 %v2227, %v2107
      %v2236 = vmul.f32 %v2228, %v2108
      %v2237 = vmul.f32 %v2229, %v2109
      %v2238 = vmul.f32 %v2230, %v2110
      %v2239 = vmul.f32 %v2231, %v2111
      %v2240 = vmul.f32 %v2232, %v2112
      %v2241 = vmul.f32 %v2233, %v2113
      %v2242 = vmul.f32 %v2234, %v2114
      %v2243 = vadd.f32 %v2235, -0.001682827
      %v2244 = vadd.f32 %v2236, -0.001682827
      %v2245 = vadd.f32 %v2237, -0.001682827
      %v2246 = vadd.f32 %v2238, -0.001682827
      %v2247 = vadd.f32 %v2239, -0.001682827
      %v2248 = vadd.f32 %v2240, -0.001682827
      %v2249 = vadd.f32 %v2241, -0.001682827
      %v2250 = vadd.f32 %v2242, -0.001682827
      %v2251 = vmul.f32 %v2243, %v2107
      %v2252 = vmul.f32 %v2244, %v2108
      %v2253 = vmul.f32 %v2245, %v2109
      %v2254 = vmul.f32 %v2246, %v2110
      %v2255 = vmul.f32 %v2247, %v2111
      %v2256 = vmul.f32 %v2248, %v2112
      %v2257 = vmul.f32 %v2249, %v2113
      %v2258 = vmul.f32 %v2250, %v2114
      %v2259 = vadd.f32 %v2251, -0.0073733293
      %v2260 = vadd.f32 %v2252, -0.0073733293
      %v2261 = vadd.f32 %v2253, -0.0073733293
      %v2262 = vadd.f32 %v2254, -0.0073733293
      %v2263 = vadd.f32 %v2255, -0.0073733293
      %v2264 = vadd.f32 %v2256, -0.0073733293
      %v2265 = vadd.f32 %v2257, -0.0073733293
      %v2266 = vadd.f32 %v2258, -0.0073733293
      %v2267 = vmul.f32 %v2259, %v2107
      %v2268 = vmul.f32 %v2260, %v2108
      %v2269 = vmul.f32 %v2261, %v2109
      %v2270 = vmul.f32 %v2262, %v2110
      %v2271 = vmul.f32 %v2263, %v2111
      %v2272 = vmul.f32 %v2264, %v2112
      %v2273 = vmul.f32 %v2265, %v2113
      %v2274 = vmul.f32 %v2266, %v2114
      %v2275 = vadd.f32 %v2267, -0.014264739
      %v2276 = vadd.f32 %v2268, -0.014264739
      %v2277 = vadd.f32 %v2269, -0.014264739
      %v2278 = vadd.f32 %v2270, -0.014264739
      %v2279 = vadd.f32 %v2271, -0.014264739
      %v2280 = vadd.f32 %v2272, -0.014264739
      %v2281 = vadd.f32 %v2273, -0.014264739
      %v2282 = vadd.f32 %v2274, -0.014264739
      %v2283 = vrcp.pop %v2275
      %v2284 = vrcp.pop %v2276
      %v2285 = vrcp.pop %v2277
      %v2286 = vrcp.pop %v2278
      %v2287 = vrcp.pop %v2279
      %v2288 = vrcp.pop %v2280
      %v2289 = vrcp.pop %v2281
      %v2290 = vrcp.pop %v2282
      %v2291 = vmul.f32 %v2211, %v2283
      %v2292 = vmul.f32 %v2212, %v2284
      %v2293 = vmul.f32 %v2213, %v2285
      %v2294 = vmul.f32 %v2214, %v2286
      %v2295 = vmul.f32 %v2215, %v2287
      %v2296 = vmul.f32 %v2216, %v2288
      %v2297 = vmul.f32 %v2217, %v2289
      %v2298 = vmul.f32 %v2218, %v2290
      %v2299 = vadd.f32 %v2291, 1.0
      %v2300 = vadd.f32 %v2292, 1.0
      %v2301 = vadd.f32 %v2293, 1.0
      %v2302 = vadd.f32 %v2294, 1.0
      %v2303 = vadd.f32 %v2295, 1.0
      %v2304 = vadd.f32 %v2296, 1.0
      %v2305 = vadd.f32 %v2297, 1.0
      %v2306 = vadd.f32 %v2298, 1.0
      %v2307 = vmul.f32 %v2075, %v2299
      %v2308 = vmul.f32 %v2076, %v2300
      %v2309 = vmul.f32 %v2077, %v2301
      %v2310 = vmul.f32 %v2078, %v2302
      %v2311 = vmul.f32 %v2079, %v2303
      %v2312 = vmul.f32 %v2080, %v2304
      %v2313 = vmul.f32 %v2081, %v2305
      %v2314 = vmul.f32 %v2082, %v2306
      %2315 = vst [vmem:[%s171] sm:$0xff] %v2307
      %2316 = vst [vmem:[%s171 + $0x8] sm:$0xff] %v2308
      %2317 = vst [vmem:[%s171 + $0x10] sm:$0xff] %v2309
      %2318 = vst [vmem:[%s171 + $0x18] sm:$0xff] %v2310
      %2319 = vst [vmem:[%s171 + $0x20] sm:$0xff] %v2311
      %2320 = vst [vmem:[%s171 + $0x28] sm:$0xff] %v2312
      %2321 = vst [vmem:[%s171 + $0x30] sm:$0xff] %v2313
      %2322 = vst [vmem:[%s171 + $0x38] sm:$0xff] %v2314
      %s2323 = smul.u32 %s19, 4
      %s2324 = sadd.s32 %s2323, %s20
      %s2325 = smul.u32 8, %s2324
      %p2326 = scmp.lt.s32.totalorder %s2325, 63
      %s2327 = scalar_select %p2326, %s2325, 63
      %s2328 = smul.addr %s2327, 8
      %s2329 = scalar_lea.vmem %s4, %s2328
      // Predicated region
      $region245: #{mink_next_block.4} parent=31 // pred_check
        %p2330 = pneg %p112
      $region246: #{mink_next_block.4} parent=31 // pred_check_branch
        %2332 = sbr.rel (%p2330) target = $region248
      $region247: #{mink_next_block.4} parent=31 // pred_region
        %s2333 = smul.u32 %s19, 4
        %s2334 = sadd.s32 %s2333, %s20
        %s2335 = smul.u32 8, %s2334
      $region248: #{mink_next_block.4} parent=31 // pred_fallthru
        _
    $region32: #{mink_next_block.4} parent=5 // pred_fallthru
      _
    %p2336 = scmp.le.s32.totalorder 2, %s10
    // Predicated region
    $region249: #{mink_next_block.4} parent=5 // pred_check
      %p2337 = pneg %p2336
    $region250: #{mink_next_block.4} parent=5 // pred_check_branch
      %2339 = sbr.rel (%p2337) target = $region252
    $region251: #{mink_next_block.4} parent=5 // pred_region
      %s2340 = ssub.s32 %s10, 2
      // Predicated region
      $region253: #{mink_next_block.4} parent=251 // pred_check
        %p2341 = pneg %p118
      $region254: #{mink_next_block.4} parent=251 // pred_check_branch
        %2343 = sbr.rel (%p2341) target = $region256
      $region255: #{mink_next_block.4} parent=251 // pred_region
        %s2344 = smul.u32 %s21, 4
        %s2345 = sadd.s32 %s2344, %s22
        %s2346 = smul.u32 8, %s2345
        %p2347 = scmp.lt.s32.totalorder %s2346, 63
        %s2348 = scalar_select %p2347, %s2346, 63
        %s2349 = smul.addr %s2348, 8
        %s2350 = scalar_lea.vmem %s4, %s2349
      $region256: #{mink_next_block.4} parent=251 // pred_fallthru
        _
    $region252: #{mink_next_block.4} parent=5 // pred_fallthru
      _
  $region6: #{mink_next_block.4} parent=0 // loop_footer
    %s14 = sadd.s32 1, %s10
  $region7: #{mink_next_block.4} parent=0 // loop_footer_branch
    %9 = sbr.rel target = $region3
  $region8: #{mink_next_block.4} parent=0 // loop_exit
    _
  %2351 = vsyncmov [#allocation3]
  %s2352 = vpop.sfrf %2351
  %p2353 = scmp.eq.s32.totalorder %s2352, 0
  %p2354 = pneg %p2353
  %2356 = shalt.err (%p2354)
  %s2357 = scalar_lea.sflag [#allocation3], 1
  %2358 = vsyncmov %s2357
  %s2359 = vpop.sfrf %2358
  %p2360 = scmp.eq.s32.totalorder %s2359, 0
  %p2361 = pneg %p2360
  %2363 = shalt.err (%p2361)
  %s2364 = scalar_lea.sflag [#allocation3], 2
  %2365 = vsyncmov %s2364
  %s2366 = vpop.sfrf %2365
  %p2367 = scmp.eq.s32.totalorder %s2366, 0
  %p2368 = pneg %p2367
  %2370 = shalt.err (%p2368)
  %s2371 = scalar_lea.sflag [#allocation3], 3
  %2372 = vsyncmov %s2371
  %s2373 = vpop.sfrf %2372
  %p2374 = scmp.eq.s32.totalorder %s2373, 0
  %p2375 = pneg %p2374
  %2377 = shalt.err (%p2375)
  %s2378 = scalar_lea.sflag [#allocation3], 4
  %2379 = vsyncmov %s2378
  %s2380 = vpop.sfrf %2379
  %p2381 = scmp.eq.s32.totalorder %s2380, 0
  %p2382 = pneg %p2381
  %2384 = shalt.err (%p2382)
  %s2385 = scalar_lea.sflag [#allocation3], 5
  %2386 = vsyncmov %s2385
  %s2387 = vpop.sfrf %2386
  %p2388 = scmp.eq.s32.totalorder %s2387, 0
  %p2389 = pneg %p2388
  %2391 = shalt.err (%p2389)

// kernel: mink_next_block.5
$region0: #{mink_next_block.5}
  #allocation0 [shape = 'u32[]', space=smem, size = 0x4, offset = 0x4, fixed_abs, tag = 'smem constant byte address 0x4 - core index']
  #allocation1 [shape = 'u32[144,128]{1,0:T(1,128)}', space=vmem, size = 0x12000, scoped, tag = 'internal scratch']
  #allocation2 [shape = 'f32[2,3,6,16,128]{4,3,2,1,0:T(8,128)}', space=vmem, size = 0x48000, scoped, tag = 'scratch operand']
  #allocation3 [shape = 's32[6]{0}', space=sflag, size = 0x18, scoped, tag = 'scratch operand']
  #allocation4 [shape = 's32[]', space=sflag, size = 0x4, offset = 0, fixed_abs, tag = 'sflag constant byte address 0x0 - dummy sync flag']
  #allocation5 [shape = 's32[]', space=sflag, size = 0x4, offset = 0, fixed_abs, tag = 'sflag constant byte address 0x0 - dummy sync flag']
  #allocation6 [shape = 's32[]', space=sflag, size = 0x4, offset = 0, fixed_abs, tag = 'sflag constant byte address 0x0 - dummy sync flag']
  #allocation7 [shape = 's32[]', space=sflag, size = 0x4, offset = 0, fixed_abs, tag = 'sflag constant byte address 0x0 - dummy sync flag']
  #allocation8 [shape = 's32[]', space=sflag, size = 0x4, offset = 0, fixed_abs, tag = 'sflag constant byte address 0x0 - dummy sync flag']
  #allocation9 [shape = 's32[]', space=sflag, size = 0x4, offset = 0, fixed_abs, tag = 'sflag constant byte address 0x0 - dummy sync flag']
  %s0 = inlined_call_operand.vmem [shape: f32[2,18,18,128], index: 0, kind: input, shape index: {}]
  %s1 = inlined_call_operand.vmem [shape: f32[9,128,128], index: 1, kind: input, shape index: {}]
  %s2 = inlined_call_operand.vmem [shape: f32[1,128], index: 2, kind: input, shape index: {}]
  %s3 = inlined_call_operand.vmem [shape: f32[1,128], index: 3, kind: input, shape index: {}]
  %s4 = inlined_call_operand.vmem [shape: f32[512,128], index: 4, kind: input, shape index: {}]
  %s5 = inlined_call_operand.vmem [shape: f32[512,128], index: 5, kind: output, shape index: {}]
  %s6 = sld [smem:[#allocation0]]
  $region261: #{mink_next_block.5} parent=0
    _
  %s8 = ssub.s32 1, %s6
  %s9 = scalar_select 0, %s8, %s6
  loop: start=0, step=1, limit=10
  $region2: #{mink_next_block.5} parent=0 // loop_pre_header
    _
  $region3: #{mink_next_block.5} parent=0 // loop_header
    %s11 = sphi 0, %s15
    %p12 = scmp.ge.s32.totalorder %s11, 10
    %s18 = sphi 0, %s30
    %s19 = sphi 0, %s26
    %s20 = sphi 0, %s18
    %s21 = sphi 0, %s19
    %s22 = sphi 0, %s20
    %s23 = sphi 0, %s21
    %s31 = sphi 0, %s31
    %s33 = sphi 0, %s31
    %s34 = sphi 0, %s33
    %s48 = sphi 0, %s34
    %s52 = sphi 0, %s52
    %s54 = sphi 0, %s52
    %s55 = sphi 0, %s54
    %s69 = sphi 0, %s55
    %s73 = sphi 0, %s73
    %s75 = sphi 0, %s73
    %s76 = sphi 0, %s75
    %s90 = sphi 0, %s76
    %s100 = sphi 0, %s102
    %s103 = sphi 0, %s100
    %s104 = sphi 0, %s103
    %s120 = sphi 0, %s104
    %s130 = sphi 0, %s132
    %s133 = sphi 0, %s130
    %s134 = sphi 0, %s133
    %s150 = sphi 0, %s134
  $region4: #{mink_next_block.5} parent=0 // loop_header_branch
    %14 = sbr.rel (%p12) target = $region8
  $region5: #{mink_next_block.5} parent=0 // loop_body
    %s16 = ssub.s32 %s11, 1
    %s17 = ssub.s32 %s11, 2
    %s24 = sadd.s32 1, %s19
    %p25 = scmp.ge.s32.totalorder %s24, 4
    %s26 = scalar_select %p25, 0, %s24
    %s27 = sadd.s32 1, %s18
    %s28 = scalar_select %p25, %s27, %s18
    %p29 = scmp.ge.s32.totalorder %s28, 2
    %s30 = scalar_select %p29, 0, %s28
    %s32 = sadd.s32 %s31, 1
    %p35 = scmp.eq.s32.totalorder %s11, 7
    %p36 = scmp.ne.s32.totalorder %s31, %s33
    %p37 = scmp.eq.s32.totalorder %s11, 0
    %p38 = por %p36, %p37
    %p39 = scmp.ne.s32.totalorder %s31, %s33
    %p40 = scmp.eq.s32.totalorder %s16, 7
    %p41 = por %p39, %p40
    %p42 = scmp.ne.s32.totalorder %s33, %s34
    %p43 = scmp.eq.s32.totalorder %s16, 0
    %p44 = por %p42, %p43
    %p45 = scmp.ne.s32.totalorder %s33, %s34
    %p46 = scmp.eq.s32.totalorder %s17, 7
    %p47 = por %p45, %p46
    %p49 = scmp.ne.s32.totalorder %s34, %s48
    %p50 = scmp.eq.s32.totalorder %s17, 0
    %p51 = por %p49, %p50
    %s53 = sadd.s32 %s52, 1
    %p56 = scmp.eq.s32.totalorder %s11, 7
    %p57 = scmp.ne.s32.totalorder %s52, %s54
    %p58 = scmp.eq.s32.totalorder %s11, 0
    %p59 = por %p57, %p58
    %p60 = scmp.ne.s32.totalorder %s52, %s54
    %p61 = scmp.eq.s32.totalorder %s16, 7
    %p62 = por %p60, %p61
    %p63 = scmp.ne.s32.totalorder %s54, %s55
    %p64 = scmp.eq.s32.totalorder %s16, 0
    %p65 = por %p63, %p64
    %p66 = scmp.ne.s32.totalorder %s54, %s55
    %p67 = scmp.eq.s32.totalorder %s17, 7
    %p68 = por %p66, %p67
    %p70 = scmp.ne.s32.totalorder %s55, %s69
    %p71 = scmp.eq.s32.totalorder %s17, 0
    %p72 = por %p70, %p71
    %s74 = sadd.s32 %s73, 1
    %p77 = scmp.eq.s32.totalorder %s11, 7
    %p78 = scmp.ne.s32.totalorder %s73, %s75
    %p79 = scmp.eq.s32.totalorder %s11, 0
    %p80 = por %p78, %p79
    %p81 = scmp.ne.s32.totalorder %s73, %s75
    %p82 = scmp.eq.s32.totalorder %s16, 7
    %p83 = por %p81, %p82
    %p84 = scmp.ne.s32.totalorder %s75, %s76
    %p85 = scmp.eq.s32.totalorder %s16, 0
    %p86 = por %p84, %p85
    %p87 = scmp.ne.s32.totalorder %s75, %s76
    %p88 = scmp.eq.s32.totalorder %s17, 7
    %p89 = por %p87, %p88
    %p91 = scmp.ne.s32.totalorder %s76, %s90
    %p92 = scmp.eq.s32.totalorder %s17, 0
    %p93 = por %p91, %p92
    %s94 = smul.u32 %s18, 4
    %s95 = sadd.s32 %s94, %s19
    %s96 = smul.u32 %s30, 4
    %s97 = sadd.s32 %s96, %s26
    %s98 = ssub.s32 %s95, %s97
    %p99 = scmp.eq.s32.totalorder %s98, 0
    %s101 = sadd.s32 %s100, 1
    %s102 = scalar_select %p99, %s100, %s101
    %p105 = pneg %p99
    %p106 = scmp.eq.s32.totalorder %s11, 7
    %p107 = por %p105, %p106
    %p108 = scmp.ne.s32.totalorder %s100, %s103
    %p109 = scmp.eq.s32.totalorder %s11, 0
    %p110 = por %p108, %p109
    %p111 = scmp.ne.s32.totalorder %s100, %s103
    %p112 = scmp.eq.s32.totalorder %s16, 7
    %p113 = por %p111, %p112
    %p114 = scmp.ne.s32.totalorder %s103, %s104
    %p115 = scmp.eq.s32.totalorder %s16, 0
    %p116 = por %p114, %p115
    %p117 = scmp.ne.s32.totalorder %s103, %s104
    %p118 = scmp.eq.s32.totalorder %s17, 7
    %p119 = por %p117, %p118
    %p121 = scmp.ne.s32.totalorder %s104, %s120
    %p122 = scmp.eq.s32.totalorder %s17, 0
    %p123 = por %p121, %p122
    %s124 = smul.u32 %s18, 4
    %s125 = sadd.s32 %s124, %s19
    %s126 = smul.u32 %s30, 4
    %s127 = sadd.s32 %s126, %s26
    %s128 = ssub.s32 %s125, %s127
    %p129 = scmp.eq.s32.totalorder %s128, 0
    %s131 = sadd.s32 %s130, 1
    %s132 = scalar_select %p129, %s130, %s131
    %p135 = pneg %p129
    %p136 = scmp.eq.s32.totalorder %s11, 7
    %p137 = por %p135, %p136
    %p138 = scmp.ne.s32.totalorder %s130, %s133
    %p139 = scmp.eq.s32.totalorder %s11, 0
    %p140 = por %p138, %p139
    %p141 = scmp.ne.s32.totalorder %s130, %s133
    %p142 = scmp.eq.s32.totalorder %s16, 7
    %p143 = por %p141, %p142
    %p144 = scmp.ne.s32.totalorder %s133, %s134
    %p145 = scmp.eq.s32.totalorder %s16, 0
    %p146 = por %p144, %p145
    %p147 = scmp.ne.s32.totalorder %s133, %s134
    %p148 = scmp.eq.s32.totalorder %s17, 7
    %p149 = por %p147, %p148
    %p151 = scmp.ne.s32.totalorder %s134, %s150
    %p152 = scmp.eq.s32.totalorder %s17, 0
    %p153 = por %p151, %p152
    %p154 = scmp.le.s32.totalorder 1, %s11
    %p155 = scmp.lt.s32.totalorder %s11, 9
    %p156 = pnand %p154, %p155
    %p157 = pneg %p156
    // Predicated region
    $region9: #{mink_next_block.5} parent=5 // pred_check
      _
    $region10: #{mink_next_block.5} parent=5 // pred_check_branch
      %159 = sbr.rel (%p156) target = $region12
    $region11: #{mink_next_block.5} parent=5 // pred_region
      %s160 = ssub.s32 %s11, 1
      // Predicated region
      $region13: #{mink_next_block.5} parent=11 // pred_check
        %p161 = pneg %p44
      $region14: #{mink_next_block.5} parent=11 // pred_check_branch
        %163 = sbr.rel (%p161) target = $region16
      $region15: #{mink_next_block.5} parent=11 // pred_region
        _
      $region16: #{mink_next_block.5} parent=11 // pred_fallthru
        _
      // Predicated region
      $region17: #{mink_next_block.5} parent=11 // pred_check
        %p164 = pneg %p65
      $region18: #{mink_next_block.5} parent=11 // pred_check_branch
        %166 = sbr.rel (%p164) target = $region20
      $region19: #{mink_next_block.5} parent=11 // pred_region
        _
      $region20: #{mink_next_block.5} parent=11 // pred_fallthru
        _
      // Predicated region
      $region21: #{mink_next_block.5} parent=11 // pred_check
        %p167 = pneg %p86
      $region22: #{mink_next_block.5} parent=11 // pred_check_branch
        %169 = sbr.rel (%p167) target = $region24
      $region23: #{mink_next_block.5} parent=11 // pred_region
        _
      $region24: #{mink_next_block.5} parent=11 // pred_fallthru
        _
    $region12: #{mink_next_block.5} parent=5 // pred_fallthru
      _
    %p170 = scmp.lt.s32.totalorder %s11, 8
    // Predicated region
    $region25: #{mink_next_block.5} parent=5 // pred_check
      %p171 = pneg %p170
    $region26: #{mink_next_block.5} parent=5 // pred_check_branch
      %173 = sbr.rel (%p171) target = $region28
    $region27: #{mink_next_block.5} parent=5 // pred_region
      // Predicated region
      $region29: #{mink_next_block.5} parent=27 // pred_check
        %p174 = pneg %p110
      $region30: #{mink_next_block.5} parent=27 // pred_check_branch
        %176 = sbr.rel (%p174) target = $region32
      $region31: #{mink_next_block.5} parent=27 // pred_region
        %s177 = smul.u32 %s18, 4
        %s178 = sadd.s32 %s177, %s19
        %s179 = smul.u32 8, %s178
        %p180 = scmp.lt.s32.totalorder %s179, 63
        %s181 = scalar_select %p180, %s179, 63
        %s182 = smul.addr %s181, 8
        %s183 = scalar_lea.vmem %s4, %s182
        %s184 = smul.u32 %s18, 4
        %s185 = sadd.s32 %s184, %s19
        %s186 = smul.u32 8, %s185
      $region32: #{mink_next_block.5} parent=27 // pred_fallthru
        _
    $region28: #{mink_next_block.5} parent=5 // pred_fallthru
      _
    %p187 = scmp.le.s32.totalorder 1, %s11
    %p188 = scmp.lt.s32.totalorder %s11, 9
    %p189 = pnand %p187, %p188
    %p190 = pneg %p189
    // Predicated region
    $region33: #{mink_next_block.5} parent=5 // pred_check
      _
    $region34: #{mink_next_block.5} parent=5 // pred_check_branch
      %192 = sbr.rel (%p189) target = $region36
    $region35: #{mink_next_block.5} parent=5 // pred_region
      %s193 = ssub.s32 %s11, 1
      %p194 = pneg %p44
      %p195 = pneg %p41
      %p196 = pneg %p65
      %p197 = pneg %p62
      %p198 = pneg %p86
      %p199 = pneg %p83
      %s200 = smul.u32 %s20, 4
      %s201 = sadd.s32 %s200, %s21
      %s202 = smul.u32 8, %s201
      %p203 = scmp.lt.s32.totalorder %s202, 63
      %s204 = scalar_select %p203, %s202, 63
      %s205 = smul.addr %s204, 8
      %s206 = scalar_lea.vmem %s4, %s205
      %p207 = pneg %p116
      %p208 = pneg %p113
      %p209 = pneg %p146
      %p210 = pneg %p143
      %s211 = smul.u32 %s20, 4
      %s212 = sadd.s32 %s211, %s21
      %s213 = smul.u32 8, %s212
      %p214 = scmp.lt.s32.totalorder %s213, 63
      %s215 = scalar_select %p214, %s213, 63
      %s216 = smul.addr %s215, 8
      %s217 = scalar_lea.vmem %s5, %s216
      %s218 = smul.u32 %s20, 4
      %s219 = sadd.s32 %s218, %s21
      %s220 = smul.u32 8, %s219
      %p221 = scmp.lt.s32.totalorder %s220, 63
      %s222 = scalar_select %p221, %s220, 63
      %s223 = smul.addr %s222, 8
      %s224 = scalar_lea.vmem %s4, %s223
      %s225 = smul.u32 %s20, 4
      %s226 = sadd.s32 %s225, %s21
      %s227 = smul.u32 8, %s226
      %s228 = smul.u32 %s20, 4
      %s229 = sadd.s32 %s228, %s21
      %s230 = smul.u32 8, %s229
      %p231 = scmp.lt.s32.totalorder %s230, 63
      %s232 = scalar_select %p231, %s230, 63
      %s233 = smul.addr %s232, 8
      %s234 = scalar_lea.vmem %s5, %s233
      %s235 = smul.u32 %s20, 4
      %s236 = sadd.s32 %s235, %s21
      %s237 = smul.u32 8, %s236
      %p238 = scmp.lt.s32.totalorder %s21, 0
      %s239 = ssub.s32 0, %s21
      %s240 = scalar_select %p238, %s239, %s21
      %s241 = sand.u32 %s240, 1
      %s242 = ssub.s32 0, %s241
      %s243 = scalar_select %p238, %s242, %s241
      %p244 = scmp.eq.s32.totalorder %s21, 0
      // Predicated region
      $region37: #{mink_next_block.5} parent=35 // pred_check
        %p245 = pneg %p244
      $region38: #{mink_next_block.5} parent=35 // pred_check_branch
        %247 = sbr.rel (%p245) target = $region40
      $region39: #{mink_next_block.5} parent=35 // pred_region
        %s248 = smul.u32 %s21, 4
        %s249 = smul.u32 %s248, 24
        %s250 = smul.u32 %s20, 432
        %s251 = sadd.s32 %s249, %s250
        %s252 = scalar_lea.vmem %s0, %s251
        %s253 = smul.u32 %s243, 288
        %s254 = scalar_lea.vmem [#allocation2], %s253
        %s255 = smul.u32 %s243, 3
        %s256 = scalar_lea.sflag [#allocation3], %s255
        %p258 = scmp.lt.u32.totalorder 16, 8
        %p259 = pneg %p258
        // Predicated region
        $region41: #{mink_next_block.5} parent=39 // pred_check
          _
        $region42: #{mink_next_block.5} parent=39 // pred_check_branch
          %261 = sbr.rel (%p258) target = $region44
        $region43: #{mink_next_block.5} parent=39 // pred_region
          %s286 = sand.u32 16, 7
          %p287 = scmp.eq.s32.totalorder %s286, 0
          // Predicated region
          $region56: #{mink_next_block.5} parent=43 // pred_check
            %p288 = pneg %p287
          $region57: #{mink_next_block.5} parent=43 // pred_check_branch
            %290 = sbr.rel (%p288) target = $region59
          $region58: #{mink_next_block.5} parent=43 // pred_region
            loop: start=0, step=1, limit=1
            $region60: #{mink_next_block.5} parent=58 // loop_pre_header
              _
            $region61: #{mink_next_block.5} parent=58 // loop_header
              %s292 = sphi 0, %s296
              %p293 = scmp.ge.s32.totalorder %s292, 1
              %s297 = sphi %s252, %s252
              %s298 = sphi %s254, %s254
            $region62: #{mink_next_block.5} parent=58 // loop_header_branch
              %295 = sbr.rel (%p293) target = $region66
            $region63: #{mink_next_block.5} parent=58 // loop_body
              %v299 = vld [vmem:[%s297] sm:$0xff]
              %300 = vst [vmem:[%s298] sm:$0xff] %v299
              %v301 = vld [vmem:[%s297 + $0x8] sm:$0xff]
              %302 = vst [vmem:[%s298 + $0x8] sm:$0xff] %v301
              %v303 = vld [vmem:[%s297 + $0x18] sm:$0xff]
              %304 = vst [vmem:[%s298 + $0x10] sm:$0xff] %v303
              %v305 = vld [vmem:[%s297 + $0x20] sm:$0xff]
              %306 = vst [vmem:[%s298 + $0x18] sm:$0xff] %v305
              %v307 = vld [vmem:[%s297 + $0x30] sm:$0xff]
              %308 = vst [vmem:[%s298 + $0x20] sm:$0xff] %v307
              %v309 = vld [vmem:[%s297 + $0x38] sm:$0xff]
              %310 = vst [vmem:[%s298 + $0x28] sm:$0xff] %v309
              %v311 = vld [vmem:[%s297 + $0x48] sm:$0xff]
              %312 = vst [vmem:[%s298 + $0x30] sm:$0xff] %v311
              %v313 = vld [vmem:[%s297 + $0x50] sm:$0xff]
              %314 = vst [vmem:[%s298 + $0x38] sm:$0xff] %v313
              %v315 = vld [vmem:[%s297 + $0x60] sm:$0xff]
              %316 = vst [vmem:[%s298 + $0x40] sm:$0xff] %v315
              %v317 = vld [vmem:[%s297 + $0x68] sm:$0xff]
              %318 = vst [vmem:[%s298 + $0x48] sm:$0xff] %v317
              %v319 = vld [vmem:[%s297 + $0x78] sm:$0xff]
              %320 = vst [vmem:[%s298 + $0x50] sm:$0xff] %v319
              %v321 = vld [vmem:[%s297 + $0x80] sm:$0xff]
              %322 = vst [vmem:[%s298 + $0x58] sm:$0xff] %v321
            $region64: #{mink_next_block.5} parent=58 // loop_footer
              %s296 = sadd.s32 1, %s292
            $region65: #{mink_next_block.5} parent=58 // loop_footer_branch
              %291 = sbr.rel target = $region61
            $region66: #{mink_next_block.5} parent=58 // loop_exit
              _
          $region59: #{mink_next_block.5} parent=43 // pred_fallthru
            _
          %p323 = pneg %p287
          // Predicated region
          $region67: #{mink_next_block.5} parent=43 // pred_check
            _
          $region68: #{mink_next_block.5} parent=43 // pred_check_branch
            %325 = sbr.rel (%p287) target = $region70
          $region69: #{mink_next_block.5} parent=43 // pred_region
            %s326 = sand.u32 16, 7
          $region70: #{mink_next_block.5} parent=43 // pred_fallthru
            _
        $region44: #{mink_next_block.5} parent=39 // pred_fallthru
          _
        // Predicated region
        $region45: #{mink_next_block.5} parent=39 // pred_check
          %p262 = pneg %p258
        $region46: #{mink_next_block.5} parent=39 // pred_check_branch
          %264 = sbr.rel (%p262) target = $region48
        $region47: #{mink_next_block.5} parent=39 // pred_region
          %s265 = sshllo.u32 0, 16
          loop: start=0, step=1, limit=1
          $region49: #{mink_next_block.5} parent=47 // loop_pre_header
            _
          $region50: #{mink_next_block.5} parent=47 // loop_header
            %s267 = sphi 0, %s271
            %p268 = scmp.ge.s32.totalorder %s267, 1
            %s272 = sphi %s252, %s252
            %s273 = sphi %s254, %s254
          $region51: #{mink_next_block.5} parent=47 // loop_header_branch
            %270 = sbr.rel (%p268) target = $region55
          $region52: #{mink_next_block.5} parent=47 // loop_body
            %v274 = vld [vmem:[%s272] sm:%s265]
            %275 = vst [vmem:[%s273] sm:%s265] %v274
            %v276 = vld [vmem:[%s272 + $0x18] sm:%s265]
            %277 = vst [vmem:[%s273 + $0x10] sm:%s265] %v276
            %v278 = vld [vmem:[%s272 + $0x30] sm:%s265]
            %279 = vst [vmem:[%s273 + $0x20] sm:%s265] %v278
            %v280 = vld [vmem:[%s272 + $0x48] sm:%s265]
            %281 = vst [vmem:[%s273 + $0x30] sm:%s265] %v280
            %v282 = vld [vmem:[%s272 + $0x60] sm:%s265]
            %283 = vst [vmem:[%s273 + $0x40] sm:%s265] %v282
            %v284 = vld [vmem:[%s272 + $0x78] sm:%s265]
            %285 = vst [vmem:[%s273 + $0x50] sm:%s265] %v284
          $region53: #{mink_next_block.5} parent=47 // loop_footer
            %s271 = sadd.s32 1, %s267
          $region54: #{mink_next_block.5} parent=47 // loop_footer_branch
            %266 = sbr.rel target = $region50
          $region55: #{mink_next_block.5} parent=47 // loop_exit
            _
        $region48: #{mink_next_block.5} parent=39 // pred_fallthru
          _
        // Predicated region
        $region71: #{mink_next_block.5} parent=39 // pred_check
          _
        $region72: #{mink_next_block.5} parent=39 // pred_check_branch
          %329 = sbr.rel (0) target = $region74
        $region73: #{mink_next_block.5} parent=39 // pred_region
          %330 = vsyncadd %s256, 1536
        $region74: #{mink_next_block.5} parent=39 // pred_fallthru
          _
        %s331 = sadd.s32 1, %s249
        %s332 = sadd.s32 %s331, %s250
        %s333 = scalar_lea.vmem %s0, %s332
        %s334 = sadd.s32 96, %s253
        %s335 = scalar_lea.vmem [#allocation2], %s334
        %s336 = sadd.s32 1, %s255
        %s337 = scalar_lea.sflag [#allocation3], %s336
        %p339 = scmp.lt.u32.totalorder 16, 8
        %p340 = pneg %p339
        // Predicated region
        $region75: #{mink_next_block.5} parent=39 // pred_check
          _
        $region76: #{mink_next_block.5} parent=39 // pred_check_branch
          %342 = sbr.rel (%p339) target = $region78
        $region77: #{mink_next_block.5} parent=39 // pred_region
          %s367 = sand.u32 16, 7
          %p368 = scmp.eq.s32.totalorder %s367, 0
          // Predicated region
          $region90: #{mink_next_block.5} parent=77 // pred_check
            %p369 = pneg %p368
          $region91: #{mink_next_block.5} parent=77 // pred_check_branch
            %371 = sbr.rel (%p369) target = $region93
          $region92: #{mink_next_block.5} parent=77 // pred_region
            loop: start=0, step=1, limit=1
            $region94: #{mink_next_block.5} parent=92 // loop_pre_header
              _
            $region95: #{mink_next_block.5} parent=92 // loop_header
              %s373 = sphi 0, %s377
              %p374 = scmp.ge.s32.totalorder %s373, 1
              %s378 = sphi %s333, %s333
              %s379 = sphi %s335, %s335
            $region96: #{mink_next_block.5} parent=92 // loop_header_branch
              %376 = sbr.rel (%p374) target = $region100
            $region97: #{mink_next_block.5} parent=92 // loop_body
              %v380 = vld [vmem:[%s378] sm:$0xff]
              %381 = vst [vmem:[%s379] sm:$0xff] %v380
              %v382 = vld [vmem:[%s378 + $0x8] sm:$0xff]
              %383 = vst [vmem:[%s379 + $0x8] sm:$0xff] %v382
              %v384 = vld [vmem:[%s378 + $0x18] sm:$0xff]
              %385 = vst [vmem:[%s379 + $0x10] sm:$0xff] %v384
              %v386 = vld [vmem:[%s378 + $0x20] sm:$0xff]
              %387 = vst [vmem:[%s379 + $0x18] sm:$0xff] %v386
              %v388 = vld [vmem:[%s378 + $0x30] sm:$0xff]
              %389 = vst [vmem:[%s379 + $0x20] sm:$0xff] %v388
              %v390 = vld [vmem:[%s378 + $0x38] sm:$0xff]
              %391 = vst [vmem:[%s379 + $0x28] sm:$0xff] %v390
              %v392 = vld [vmem:[%s378 + $0x48] sm:$0xff]
              %393 = vst [vmem:[%s379 + $0x30] sm:$0xff] %v392
              %v394 = vld [vmem:[%s378 + $0x50] sm:$0xff]
              %395 = vst [vmem:[%s379 + $0x38] sm:$0xff] %v394
              %v396 = vld [vmem:[%s378 + $0x60] sm:$0xff]
              %397 = vst [vmem:[%s379 + $0x40] sm:$0xff] %v396
              %v398 = vld [vmem:[%s378 + $0x68] sm:$0xff]
              %399 = vst [vmem:[%s379 + $0x48] sm:$0xff] %v398
              %v400 = vld [vmem:[%s378 + $0x78] sm:$0xff]
              %401 = vst [vmem:[%s379 + $0x50] sm:$0xff] %v400
              %v402 = vld [vmem:[%s378 + $0x80] sm:$0xff]
              %403 = vst [vmem:[%s379 + $0x58] sm:$0xff] %v402
            $region98: #{mink_next_block.5} parent=92 // loop_footer
              %s377 = sadd.s32 1, %s373
            $region99: #{mink_next_block.5} parent=92 // loop_footer_branch
              %372 = sbr.rel target = $region95
            $region100: #{mink_next_block.5} parent=92 // loop_exit
              _
          $region93: #{mink_next_block.5} parent=77 // pred_fallthru
            _
          %p404 = pneg %p368
          // Predicated region
          $region101: #{mink_next_block.5} parent=77 // pred_check
            _
          $region102: #{mink_next_block.5} parent=77 // pred_check_branch
            %406 = sbr.rel (%p368) target = $region104
          $region103: #{mink_next_block.5} parent=77 // pred_region
            %s407 = sand.u32 16, 7
          $region104: #{mink_next_block.5} parent=77 // pred_fallthru
            _
        $region78: #{mink_next_block.5} parent=39 // pred_fallthru
          _
        // Predicated region
        $region79: #{mink_next_block.5} parent=39 // pred_check
          %p343 = pneg %p339
        $region80: #{mink_next_block.5} parent=39 // pred_check_branch
          %345 = sbr.rel (%p343) target = $region82
        $region81: #{mink_next_block.5} parent=39 // pred_region
          %s346 = sshllo.u32 0, 16
          loop: start=0, step=1, limit=1
          $region83: #{mink_next_block.5} parent=81 // loop_pre_header
            _
          $region84: #{mink_next_block.5} parent=81 // loop_header
            %s348 = sphi 0, %s352
            %p349 = scmp.ge.s32.totalorder %s348, 1
            %s353 = sphi %s333, %s333
            %s354 = sphi %s335, %s335
          $region85: #{mink_next_block.5} parent=81 // loop_header_branch
            %351 = sbr.rel (%p349) target = $region89
          $region86: #{mink_next_block.5} parent=81 // loop_body
            %v355 = vld [vmem:[%s353] sm:%s346]
            %356 = vst [vmem:[%s354] sm:%s346] %v355
            %v357 = vld [vmem:[%s353 + $0x18] sm:%s346]
            %358 = vst [vmem:[%s354 + $0x10] sm:%s346] %v357
            %v359 = vld [vmem:[%s353 + $0x30] sm:%s346]
            %360 = vst [vmem:[%s354 + $0x20] sm:%s346] %v359
            %v361 = vld [vmem:[%s353 + $0x48] sm:%s346]
            %362 = vst [vmem:[%s354 + $0x30] sm:%s346] %v361
            %v363 = vld [vmem:[%s353 + $0x60] sm:%s346]
            %364 = vst [vmem:[%s354 + $0x40] sm:%s346] %v363
            %v365 = vld [vmem:[%s353 + $0x78] sm:%s346]
            %366 = vst [vmem:[%s354 + $0x50] sm:%s346] %v365
          $region87: #{mink_next_block.5} parent=81 // loop_footer
            %s352 = sadd.s32 1, %s348
          $region88: #{mink_next_block.5} parent=81 // loop_footer_branch
            %347 = sbr.rel target = $region84
          $region89: #{mink_next_block.5} parent=81 // loop_exit
            _
        $region82: #{mink_next_block.5} parent=39 // pred_fallthru
          _
        // Predicated region
        $region105: #{mink_next_block.5} parent=39 // pred_check
          _
        $region106: #{mink_next_block.5} parent=39 // pred_check_branch
          %410 = sbr.rel (0) target = $region108
        $region107: #{mink_next_block.5} parent=39 // pred_region
          %411 = vsyncadd %s337, 1536
        $region108: #{mink_next_block.5} parent=39 // pred_fallthru
          _
        %s412 = sadd.s32 2, %s249
        %s413 = sadd.s32 %s412, %s250
        %s414 = scalar_lea.vmem %s0, %s413
        %s415 = sadd.s32 192, %s253
        %s416 = scalar_lea.vmem [#allocation2], %s415
        %s417 = sadd.s32 2, %s255
        %s418 = scalar_lea.sflag [#allocation3], %s417
        %p420 = scmp.lt.u32.totalorder 16, 8
        %p421 = pneg %p420
        // Predicated region
        $region109: #{mink_next_block.5} parent=39 // pred_check
          _
        $region110: #{mink_next_block.5} parent=39 // pred_check_branch
          %423 = sbr.rel (%p420) target = $region112
        $region111: #{mink_next_block.5} parent=39 // pred_region
          %s448 = sand.u32 16, 7
          %p449 = scmp.eq.s32.totalorder %s448, 0
          // Predicated region
          $region124: #{mink_next_block.5} parent=111 // pred_check
            %p450 = pneg %p449
          $region125: #{mink_next_block.5} parent=111 // pred_check_branch
            %452 = sbr.rel (%p450) target = $region127
          $region126: #{mink_next_block.5} parent=111 // pred_region
            loop: start=0, step=1, limit=1
            $region128: #{mink_next_block.5} parent=126 // loop_pre_header
              _
            $region129: #{mink_next_block.5} parent=126 // loop_header
              %s454 = sphi 0, %s458
              %p455 = scmp.ge.s32.totalorder %s454, 1
              %s459 = sphi %s414, %s414
              %s460 = sphi %s416, %s416
            $region130: #{mink_next_block.5} parent=126 // loop_header_branch
              %457 = sbr.rel (%p455) target = $region134
            $region131: #{mink_next_block.5} parent=126 // loop_body
              %v461 = vld [vmem:[%s459] sm:$0xff]
              %462 = vst [vmem:[%s460] sm:$0xff] %v461
              %v463 = vld [vmem:[%s459 + $0x8] sm:$0xff]
              %464 = vst [vmem:[%s460 + $0x8] sm:$0xff] %v463
              %v465 = vld [vmem:[%s459 + $0x18] sm:$0xff]
              %466 = vst [vmem:[%s460 + $0x10] sm:$0xff] %v465
              %v467 = vld [vmem:[%s459 + $0x20] sm:$0xff]
              %468 = vst [vmem:[%s460 + $0x18] sm:$0xff] %v467
              %v469 = vld [vmem:[%s459 + $0x30] sm:$0xff]
              %470 = vst [vmem:[%s460 + $0x20] sm:$0xff] %v469
              %v471 = vld [vmem:[%s459 + $0x38] sm:$0xff]
              %472 = vst [vmem:[%s460 + $0x28] sm:$0xff] %v471
              %v473 = vld [vmem:[%s459 + $0x48] sm:$0xff]
              %474 = vst [vmem:[%s460 + $0x30] sm:$0xff] %v473
              %v475 = vld [vmem:[%s459 + $0x50] sm:$0xff]
              %476 = vst [vmem:[%s460 + $0x38] sm:$0xff] %v475
              %v477 = vld [vmem:[%s459 + $0x60] sm:$0xff]
              %478 = vst [vmem:[%s460 + $0x40] sm:$0xff] %v477
              %v479 = vld [vmem:[%s459 + $0x68] sm:$0xff]
              %480 = vst [vmem:[%s460 + $0x48] sm:$0xff] %v479
              %v481 = vld [vmem:[%s459 + $0x78] sm:$0xff]
              %482 = vst [vmem:[%s460 + $0x50] sm:$0xff] %v481
              %v483 = vld [vmem:[%s459 + $0x80] sm:$0xff]
              %484 = vst [vmem:[%s460 + $0x58] sm:$0xff] %v483
            $region132: #{mink_next_block.5} parent=126 // loop_footer
              %s458 = sadd.s32 1, %s454
            $region133: #{mink_next_block.5} parent=126 // loop_footer_branch
              %453 = sbr.rel target = $region129
            $region134: #{mink_next_block.5} parent=126 // loop_exit
              _
          $region127: #{mink_next_block.5} parent=111 // pred_fallthru
            _
          %p485 = pneg %p449
          // Predicated region
          $region135: #{mink_next_block.5} parent=111 // pred_check
            _
          $region136: #{mink_next_block.5} parent=111 // pred_check_branch
            %487 = sbr.rel (%p449) target = $region138
          $region137: #{mink_next_block.5} parent=111 // pred_region
            %s488 = sand.u32 16, 7
          $region138: #{mink_next_block.5} parent=111 // pred_fallthru
            _
        $region112: #{mink_next_block.5} parent=39 // pred_fallthru
          _
        // Predicated region
        $region113: #{mink_next_block.5} parent=39 // pred_check
          %p424 = pneg %p420
        $region114: #{mink_next_block.5} parent=39 // pred_check_branch
          %426 = sbr.rel (%p424) target = $region116
        $region115: #{mink_next_block.5} parent=39 // pred_region
          %s427 = sshllo.u32 0, 16
          loop: start=0, step=1, limit=1
          $region117: #{mink_next_block.5} parent=115 // loop_pre_header
            _
          $region118: #{mink_next_block.5} parent=115 // loop_header
            %s429 = sphi 0, %s433
            %p430 = scmp.ge.s32.totalorder %s429, 1
            %s434 = sphi %s414, %s414
            %s435 = sphi %s416, %s416
          $region119: #{mink_next_block.5} parent=115 // loop_header_branch
            %432 = sbr.rel (%p430) target = $region123
          $region120: #{mink_next_block.5} parent=115 // loop_body
            %v436 = vld [vmem:[%s434] sm:%s427]
            %437 = vst [vmem:[%s435] sm:%s427] %v436
            %v438 = vld [vmem:[%s434 + $0x18] sm:%s427]
            %439 = vst [vmem:[%s435 + $0x10] sm:%s427] %v438
            %v440 = vld [vmem:[%s434 + $0x30] sm:%s427]
            %441 = vst [vmem:[%s435 + $0x20] sm:%s427] %v440
            %v442 = vld [vmem:[%s434 + $0x48] sm:%s427]
            %443 = vst [vmem:[%s435 + $0x30] sm:%s427] %v442
            %v444 = vld [vmem:[%s434 + $0x60] sm:%s427]
            %445 = vst [vmem:[%s435 + $0x40] sm:%s427] %v444
            %v446 = vld [vmem:[%s434 + $0x78] sm:%s427]
            %447 = vst [vmem:[%s435 + $0x50] sm:%s427] %v446
          $region121: #{mink_next_block.5} parent=115 // loop_footer
            %s433 = sadd.s32 1, %s429
          $region122: #{mink_next_block.5} parent=115 // loop_footer_branch
            %428 = sbr.rel target = $region118
          $region123: #{mink_next_block.5} parent=115 // loop_exit
            _
        $region116: #{mink_next_block.5} parent=39 // pred_fallthru
          _
        // Predicated region
        $region139: #{mink_next_block.5} parent=39 // pred_check
          _
        $region140: #{mink_next_block.5} parent=39 // pred_check_branch
          %491 = sbr.rel (0) target = $region142
        $region141: #{mink_next_block.5} parent=39 // pred_region
          %492 = vsyncadd %s418, 1536
        $region142: #{mink_next_block.5} parent=39 // pred_fallthru
          _
      $region40: #{mink_next_block.5} parent=35 // pred_fallthru
        _
      %s493 = sadd.s32 %s21, 1
      %p494 = scmp.lt.s32.totalorder %s493, 4
      // Predicated region
      $region143: #{mink_next_block.5} parent=35 // pred_check
        %p495 = pneg %p494
      $region144: #{mink_next_block.5} parent=35 // pred_check_branch
        %497 = sbr.rel (%p495) target = $region146
      $region145: #{mink_next_block.5} parent=35 // pred_region
        %s498 = ssub.s32 1, %s243
        %s499 = smul.u32 %s493, 4
        %s500 = smul.u32 %s499, 24
        %s501 = smul.u32 %s20, 432
        %s502 = sadd.s32 %s500, %s501
        %s503 = scalar_lea.vmem %s0, %s502
        %s504 = smul.u32 %s498, 288
        %s505 = scalar_lea.vmem [#allocation2], %s504
        %s506 = smul.u32 %s498, 3
        %s507 = scalar_lea.sflag [#allocation3], %s506
        %p509 = scmp.lt.u32.totalorder 16, 8
        %p510 = pneg %p509
        // Predicated region
        $region147: #{mink_next_block.5} parent=145 // pred_check
          _
        $region148: #{mink_next_block.5} parent=145 // pred_check_branch
          %512 = sbr.rel (%p509) target = $region150
        $region149: #{mink_next_block.5} parent=145 // pred_region
          %s537 = sand.u32 16, 7
          %p538 = scmp.eq.s32.totalorder %s537, 0
          // Predicated region
          $region162: #{mink_next_block.5} parent=149 // pred_check
            %p539 = pneg %p538
          $region163: #{mink_next_block.5} parent=149 // pred_check_branch
            %541 = sbr.rel (%p539) target = $region165
          $region164: #{mink_next_block.5} parent=149 // pred_region
            loop: start=0, step=1, limit=1
            $region166: #{mink_next_block.5} parent=164 // loop_pre_header
              _
            $region167: #{mink_next_block.5} parent=164 // loop_header
              %s543 = sphi 0, %s547
              %p544 = scmp.ge.s32.totalorder %s543, 1
              %s548 = sphi %s503, %s503
              %s549 = sphi %s505, %s505
            $region168: #{mink_next_block.5} parent=164 // loop_header_branch
              %546 = sbr.rel (%p544) target = $region172
            $region169: #{mink_next_block.5} parent=164 // loop_body
              %v550 = vld [vmem:[%s548] sm:$0xff]
              %551 = vst [vmem:[%s549] sm:$0xff] %v550
              %v552 = vld [vmem:[%s548 + $0x8] sm:$0xff]
              %553 = vst [vmem:[%s549 + $0x8] sm:$0xff] %v552
              %v554 = vld [vmem:[%s548 + $0x18] sm:$0xff]
              %555 = vst [vmem:[%s549 + $0x10] sm:$0xff] %v554
              %v556 = vld [vmem:[%s548 + $0x20] sm:$0xff]
              %557 = vst [vmem:[%s549 + $0x18] sm:$0xff] %v556
              %v558 = vld [vmem:[%s548 + $0x30] sm:$0xff]
              %559 = vst [vmem:[%s549 + $0x20] sm:$0xff] %v558
              %v560 = vld [vmem:[%s548 + $0x38] sm:$0xff]
              %561 = vst [vmem:[%s549 + $0x28] sm:$0xff] %v560
              %v562 = vld [vmem:[%s548 + $0x48] sm:$0xff]
              %563 = vst [vmem:[%s549 + $0x30] sm:$0xff] %v562
              %v564 = vld [vmem:[%s548 + $0x50] sm:$0xff]
              %565 = vst [vmem:[%s549 + $0x38] sm:$0xff] %v564
              %v566 = vld [vmem:[%s548 + $0x60] sm:$0xff]
              %567 = vst [vmem:[%s549 + $0x40] sm:$0xff] %v566
              %v568 = vld [vmem:[%s548 + $0x68] sm:$0xff]
              %569 = vst [vmem:[%s549 + $0x48] sm:$0xff] %v568
              %v570 = vld [vmem:[%s548 + $0x78] sm:$0xff]
              %571 = vst [vmem:[%s549 + $0x50] sm:$0xff] %v570
              %v572 = vld [vmem:[%s548 + $0x80] sm:$0xff]
              %573 = vst [vmem:[%s549 + $0x58] sm:$0xff] %v572
            $region170: #{mink_next_block.5} parent=164 // loop_footer
              %s547 = sadd.s32 1, %s543
            $region171: #{mink_next_block.5} parent=164 // loop_footer_branch
              %542 = sbr.rel target = $region167
            $region172: #{mink_next_block.5} parent=164 // loop_exit
              _
          $region165: #{mink_next_block.5} parent=149 // pred_fallthru
            _
          %p574 = pneg %p538
          // Predicated region
          $region173: #{mink_next_block.5} parent=149 // pred_check
            _
          $region174: #{mink_next_block.5} parent=149 // pred_check_branch
            %576 = sbr.rel (%p538) target = $region176
          $region175: #{mink_next_block.5} parent=149 // pred_region
            %s577 = sand.u32 16, 7
          $region176: #{mink_next_block.5} parent=149 // pred_fallthru
            _
        $region150: #{mink_next_block.5} parent=145 // pred_fallthru
          _
        // Predicated region
        $region151: #{mink_next_block.5} parent=145 // pred_check
          %p513 = pneg %p509
        $region152: #{mink_next_block.5} parent=145 // pred_check_branch
          %515 = sbr.rel (%p513) target = $region154
        $region153: #{mink_next_block.5} parent=145 // pred_region
          %s516 = sshllo.u32 0, 16
          loop: start=0, step=1, limit=1
          $region155: #{mink_next_block.5} parent=153 // loop_pre_header
            _
          $region156: #{mink_next_block.5} parent=153 // loop_header
            %s518 = sphi 0, %s522
            %p519 = scmp.ge.s32.totalorder %s518, 1
            %s523 = sphi %s503, %s503
            %s524 = sphi %s505, %s505
          $region157: #{mink_next_block.5} parent=153 // loop_header_branch
            %521 = sbr.rel (%p519) target = $region161
          $region158: #{mink_next_block.5} parent=153 // loop_body
            %v525 = vld [vmem:[%s523] sm:%s516]
            %526 = vst [vmem:[%s524] sm:%s516] %v525
            %v527 = vld [vmem:[%s523 + $0x18] sm:%s516]
            %528 = vst [vmem:[%s524 + $0x10] sm:%s516] %v527
            %v529 = vld [vmem:[%s523 + $0x30] sm:%s516]
            %530 = vst [vmem:[%s524 + $0x20] sm:%s516] %v529
            %v531 = vld [vmem:[%s523 + $0x48] sm:%s516]
            %532 = vst [vmem:[%s524 + $0x30] sm:%s516] %v531
            %v533 = vld [vmem:[%s523 + $0x60] sm:%s516]
            %534 = vst [vmem:[%s524 + $0x40] sm:%s516] %v533
            %v535 = vld [vmem:[%s523 + $0x78] sm:%s516]
            %536 = vst [vmem:[%s524 + $0x50] sm:%s516] %v535
          $region159: #{mink_next_block.5} parent=153 // loop_footer
            %s522 = sadd.s32 1, %s518
          $region160: #{mink_next_block.5} parent=153 // loop_footer_branch
            %517 = sbr.rel target = $region156
          $region161: #{mink_next_block.5} parent=153 // loop_exit
            _
        $region154: #{mink_next_block.5} parent=145 // pred_fallthru
          _
        // Predicated region
        $region177: #{mink_next_block.5} parent=145 // pred_check
          _
        $region178: #{mink_next_block.5} parent=145 // pred_check_branch
          %580 = sbr.rel (0) target = $region180
        $region179: #{mink_next_block.5} parent=145 // pred_region
          %581 = vsyncadd %s507, 1536
        $region180: #{mink_next_block.5} parent=145 // pred_fallthru
          _
        %s582 = sadd.s32 1, %s500
        %s583 = sadd.s32 %s582, %s501
        %s584 = scalar_lea.vmem %s0, %s583
        %s585 = sadd.s32 96, %s504
        %s586 = scalar_lea.vmem [#allocation2], %s585
        %s587 = sadd.s32 1, %s506
        %s588 = scalar_lea.sflag [#allocation3], %s587
        %p590 = scmp.lt.u32.totalorder 16, 8
        %p591 = pneg %p590
        // Predicated region
        $region181: #{mink_next_block.5} parent=145 // pred_check
          _
        $region182: #{mink_next_block.5} parent=145 // pred_check_branch
          %593 = sbr.rel (%p590) target = $region184
        $region183: #{mink_next_block.5} parent=145 // pred_region
          %s618 = sand.u32 16, 7
          %p619 = scmp.eq.s32.totalorder %s618, 0
          // Predicated region
          $region196: #{mink_next_block.5} parent=183 // pred_check
            %p620 = pneg %p619
          $region197: #{mink_next_block.5} parent=183 // pred_check_branch
            %622 = sbr.rel (%p620) target = $region199
          $region198: #{mink_next_block.5} parent=183 // pred_region
            loop: start=0, step=1, limit=1
            $region200: #{mink_next_block.5} parent=198 // loop_pre_header
              _
            $region201: #{mink_next_block.5} parent=198 // loop_header
              %s624 = sphi 0, %s628
              %p625 = scmp.ge.s32.totalorder %s624, 1
              %s629 = sphi %s584, %s584
              %s630 = sphi %s586, %s586
            $region202: #{mink_next_block.5} parent=198 // loop_header_branch
              %627 = sbr.rel (%p625) target = $region206
            $region203: #{mink_next_block.5} parent=198 // loop_body
              %v631 = vld [vmem:[%s629] sm:$0xff]
              %632 = vst [vmem:[%s630] sm:$0xff] %v631
              %v633 = vld [vmem:[%s629 + $0x8] sm:$0xff]
              %634 = vst [vmem:[%s630 + $0x8] sm:$0xff] %v633
              %v635 = vld [vmem:[%s629 + $0x18] sm:$0xff]
              %636 = vst [vmem:[%s630 + $0x10] sm:$0xff] %v635
              %v637 = vld [vmem:[%s629 + $0x20] sm:$0xff]
              %638 = vst [vmem:[%s630 + $0x18] sm:$0xff] %v637
              %v639 = vld [vmem:[%s629 + $0x30] sm:$0xff]
              %640 = vst [vmem:[%s630 + $0x20] sm:$0xff] %v639
              %v641 = vld [vmem:[%s629 + $0x38] sm:$0xff]
              %642 = vst [vmem:[%s630 + $0x28] sm:$0xff] %v641
              %v643 = vld [vmem:[%s629 + $0x48] sm:$0xff]
              %644 = vst [vmem:[%s630 + $0x30] sm:$0xff] %v643
              %v645 = vld [vmem:[%s629 + $0x50] sm:$0xff]
              %646 = vst [vmem:[%s630 + $0x38] sm:$0xff] %v645
              %v647 = vld [vmem:[%s629 + $0x60] sm:$0xff]
              %648 = vst [vmem:[%s630 + $0x40] sm:$0xff] %v647
              %v649 = vld [vmem:[%s629 + $0x68] sm:$0xff]
              %650 = vst [vmem:[%s630 + $0x48] sm:$0xff] %v649
              %v651 = vld [vmem:[%s629 + $0x78] sm:$0xff]
              %652 = vst [vmem:[%s630 + $0x50] sm:$0xff] %v651
              %v653 = vld [vmem:[%s629 + $0x80] sm:$0xff]
              %654 = vst [vmem:[%s630 + $0x58] sm:$0xff] %v653
            $region204: #{mink_next_block.5} parent=198 // loop_footer
              %s628 = sadd.s32 1, %s624
            $region205: #{mink_next_block.5} parent=198 // loop_footer_branch
              %623 = sbr.rel target = $region201
            $region206: #{mink_next_block.5} parent=198 // loop_exit
              _
          $region199: #{mink_next_block.5} parent=183 // pred_fallthru
            _
          %p655 = pneg %p619
          // Predicated region
          $region207: #{mink_next_block.5} parent=183 // pred_check
            _
          $region208: #{mink_next_block.5} parent=183 // pred_check_branch
            %657 = sbr.rel (%p619) target = $region210
          $region209: #{mink_next_block.5} parent=183 // pred_region
            %s658 = sand.u32 16, 7
          $region210: #{mink_next_block.5} parent=183 // pred_fallthru
            _
        $region184: #{mink_next_block.5} parent=145 // pred_fallthru
          _
        // Predicated region
        $region185: #{mink_next_block.5} parent=145 // pred_check
          %p594 = pneg %p590
        $region186: #{mink_next_block.5} parent=145 // pred_check_branch
          %596 = sbr.rel (%p594) target = $region188
        $region187: #{mink_next_block.5} parent=145 // pred_region
          %s597 = sshllo.u32 0, 16
          loop: start=0, step=1, limit=1
          $region189: #{mink_next_block.5} parent=187 // loop_pre_header
            _
          $region190: #{mink_next_block.5} parent=187 // loop_header
            %s599 = sphi 0, %s603
            %p600 = scmp.ge.s32.totalorder %s599, 1
            %s604 = sphi %s584, %s584
            %s605 = sphi %s586, %s586
          $region191: #{mink_next_block.5} parent=187 // loop_header_branch
            %602 = sbr.rel (%p600) target = $region195
          $region192: #{mink_next_block.5} parent=187 // loop_body
            %v606 = vld [vmem:[%s604] sm:%s597]
            %607 = vst [vmem:[%s605] sm:%s597] %v606
            %v608 = vld [vmem:[%s604 + $0x18] sm:%s597]
            %609 = vst [vmem:[%s605 + $0x10] sm:%s597] %v608
            %v610 = vld [vmem:[%s604 + $0x30] sm:%s597]
            %611 = vst [vmem:[%s605 + $0x20] sm:%s597] %v610
            %v612 = vld [vmem:[%s604 + $0x48] sm:%s597]
            %613 = vst [vmem:[%s605 + $0x30] sm:%s597] %v612
            %v614 = vld [vmem:[%s604 + $0x60] sm:%s597]
            %615 = vst [vmem:[%s605 + $0x40] sm:%s597] %v614
            %v616 = vld [vmem:[%s604 + $0x78] sm:%s597]
            %617 = vst [vmem:[%s605 + $0x50] sm:%s597] %v616
          $region193: #{mink_next_block.5} parent=187 // loop_footer
            %s603 = sadd.s32 1, %s599
          $region194: #{mink_next_block.5} parent=187 // loop_footer_branch
            %598 = sbr.rel target = $region190
          $region195: #{mink_next_block.5} parent=187 // loop_exit
            _
        $region188: #{mink_next_block.5} parent=145 // pred_fallthru
          _
        // Predicated region
        $region211: #{mink_next_block.5} parent=145 // pred_check
          _
        $region212: #{mink_next_block.5} parent=145 // pred_check_branch
          %661 = sbr.rel (0) target = $region214
        $region213: #{mink_next_block.5} parent=145 // pred_region
          %662 = vsyncadd %s588, 1536
        $region214: #{mink_next_block.5} parent=145 // pred_fallthru
          _
        %s663 = sadd.s32 2, %s500
        %s664 = sadd.s32 %s663, %s501
        %s665 = scalar_lea.vmem %s0, %s664
        %s666 = sadd.s32 192, %s504
        %s667 = scalar_lea.vmem [#allocation2], %s666
        %s668 = sadd.s32 2, %s506
        %s669 = scalar_lea.sflag [#allocation3], %s668
        %p671 = scmp.lt.u32.totalorder 16, 8
        %p672 = pneg %p671
        // Predicated region
        $region215: #{mink_next_block.5} parent=145 // pred_check
          _
        $region216: #{mink_next_block.5} parent=145 // pred_check_branch
          %674 = sbr.rel (%p671) target = $region218
        $region217: #{mink_next_block.5} parent=145 // pred_region
          %s699 = sand.u32 16, 7
          %p700 = scmp.eq.s32.totalorder %s699, 0
          // Predicated region
          $region230: #{mink_next_block.5} parent=217 // pred_check
            %p701 = pneg %p700
          $region231: #{mink_next_block.5} parent=217 // pred_check_branch
            %703 = sbr.rel (%p701) target = $region233
          $region232: #{mink_next_block.5} parent=217 // pred_region
            loop: start=0, step=1, limit=1
            $region234: #{mink_next_block.5} parent=232 // loop_pre_header
              _
            $region235: #{mink_next_block.5} parent=232 // loop_header
              %s705 = sphi 0, %s709
              %p706 = scmp.ge.s32.totalorder %s705, 1
              %s710 = sphi %s665, %s665
              %s711 = sphi %s667, %s667
            $region236: #{mink_next_block.5} parent=232 // loop_header_branch
              %708 = sbr.rel (%p706) target = $region240
            $region237: #{mink_next_block.5} parent=232 // loop_body
              %v712 = vld [vmem:[%s710] sm:$0xff]
              %713 = vst [vmem:[%s711] sm:$0xff] %v712
              %v714 = vld [vmem:[%s710 + $0x8] sm:$0xff]
              %715 = vst [vmem:[%s711 + $0x8] sm:$0xff] %v714
              %v716 = vld [vmem:[%s710 + $0x18] sm:$0xff]
              %717 = vst [vmem:[%s711 + $0x10] sm:$0xff] %v716
              %v718 = vld [vmem:[%s710 + $0x20] sm:$0xff]
              %719 = vst [vmem:[%s711 + $0x18] sm:$0xff] %v718
              %v720 = vld [vmem:[%s710 + $0x30] sm:$0xff]
              %721 = vst [vmem:[%s711 + $0x20] sm:$0xff] %v720
              %v722 = vld [vmem:[%s710 + $0x38] sm:$0xff]
              %723 = vst [vmem:[%s711 + $0x28] sm:$0xff] %v722
              %v724 = vld [vmem:[%s710 + $0x48] sm:$0xff]
              %725 = vst [vmem:[%s711 + $0x30] sm:$0xff] %v724
              %v726 = vld [vmem:[%s710 + $0x50] sm:$0xff]
              %727 = vst [vmem:[%s711 + $0x38] sm:$0xff] %v726
              %v728 = vld [vmem:[%s710 + $0x60] sm:$0xff]
              %729 = vst [vmem:[%s711 + $0x40] sm:$0xff] %v728
              %v730 = vld [vmem:[%s710 + $0x68] sm:$0xff]
              %731 = vst [vmem:[%s711 + $0x48] sm:$0xff] %v730
              %v732 = vld [vmem:[%s710 + $0x78] sm:$0xff]
              %733 = vst [vmem:[%s711 + $0x50] sm:$0xff] %v732
              %v734 = vld [vmem:[%s710 + $0x80] sm:$0xff]
              %735 = vst [vmem:[%s711 + $0x58] sm:$0xff] %v734
            $region238: #{mink_next_block.5} parent=232 // loop_footer
              %s709 = sadd.s32 1, %s705
            $region239: #{mink_next_block.5} parent=232 // loop_footer_branch
              %704 = sbr.rel target = $region235
            $region240: #{mink_next_block.5} parent=232 // loop_exit
              _
          $region233: #{mink_next_block.5} parent=217 // pred_fallthru
            _
          %p736 = pneg %p700
          // Predicated region
          $region241: #{mink_next_block.5} parent=217 // pred_check
            _
          $region242: #{mink_next_block.5} parent=217 // pred_check_branch
            %738 = sbr.rel (%p700) target = $region244
          $region243: #{mink_next_block.5} parent=217 // pred_region
            %s739 = sand.u32 16, 7
          $region244: #{mink_next_block.5} parent=217 // pred_fallthru
            _
        $region218: #{mink_next_block.5} parent=145 // pred_fallthru
          _
        // Predicated region
        $region219: #{mink_next_block.5} parent=145 // pred_check
          %p675 = pneg %p671
        $region220: #{mink_next_block.5} parent=145 // pred_check_branch
          %677 = sbr.rel (%p675) target = $region222
        $region221: #{mink_next_block.5} parent=145 // pred_region
          %s678 = sshllo.u32 0, 16
          loop: start=0, step=1, limit=1
          $region223: #{mink_next_block.5} parent=221 // loop_pre_header
            _
          $region224: #{mink_next_block.5} parent=221 // loop_header
            %s680 = sphi 0, %s684
            %p681 = scmp.ge.s32.totalorder %s680, 1
            %s685 = sphi %s665, %s665
            %s686 = sphi %s667, %s667
          $region225: #{mink_next_block.5} parent=221 // loop_header_branch
            %683 = sbr.rel (%p681) target = $region229
          $region226: #{mink_next_block.5} parent=221 // loop_body
            %v687 = vld [vmem:[%s685] sm:%s678]
            %688 = vst [vmem:[%s686] sm:%s678] %v687
            %v689 = vld [vmem:[%s685 + $0x18] sm:%s678]
            %690 = vst [vmem:[%s686 + $0x10] sm:%s678] %v689
            %v691 = vld [vmem:[%s685 + $0x30] sm:%s678]
            %692 = vst [vmem:[%s686 + $0x20] sm:%s678] %v691
            %v693 = vld [vmem:[%s685 + $0x48] sm:%s678]
            %694 = vst [vmem:[%s686 + $0x30] sm:%s678] %v693
            %v695 = vld [vmem:[%s685 + $0x60] sm:%s678]
            %696 = vst [vmem:[%s686 + $0x40] sm:%s678] %v695
            %v697 = vld [vmem:[%s685 + $0x78] sm:%s678]
            %698 = vst [vmem:[%s686 + $0x50] sm:%s678] %v697
          $region227: #{mink_next_block.5} parent=221 // loop_footer
            %s684 = sadd.s32 1, %s680
          $region228: #{mink_next_block.5} parent=221 // loop_footer_branch
            %679 = sbr.rel target = $region224
          $region229: #{mink_next_block.5} parent=221 // loop_exit
            _
        $region222: #{mink_next_block.5} parent=145 // pred_fallthru
          _
        // Predicated region
        $region245: #{mink_next_block.5} parent=145 // pred_check
          _
        $region246: #{mink_next_block.5} parent=145 // pred_check_branch
          %742 = sbr.rel (0) target = $region248
        $region247: #{mink_next_block.5} parent=145 // pred_region
          %743 = vsyncadd %s669, 1536
        $region248: #{mink_next_block.5} parent=145 // pred_fallthru
          _
      $region146: #{mink_next_block.5} parent=35 // pred_fallthru
        _
      %s744 = smul.u32 %s243, 3
      %s745 = scalar_lea.sflag [#allocation3], %s744
      %s746 = smul.u32 6, 16
      %s747 = smul.u32 %s746, 1
      %s748 = sshll.u32 %s747, 4
      %749 = dma.done %s745, %s748
      %s750 = sadd.s32 1, %s744
      %s751 = scalar_lea.sflag [#allocation3], %s750
      %s752 = sshll.u32 %s747, 4
      %753 = dma.done %s751, %s752
      %s754 = sadd.s32 2, %s744
      %s755 = scalar_lea.sflag [#allocation3], %s754
      %s756 = sshll.u32 %s747, 4
      %757 = dma.done %s755, %s756
      %s758 = smul.u32 %s243, 288
      %s759 = scalar_lea.vmem [#allocation2], %s758
      %v760 = vld [vmem:[%s759] sm:$0xff]
      %v761 = vld [vmem:[%s759 + $0x8] sm:$0xff]
      %v762 = vld [vmem:[%s759 + $0x10] sm:$0xff]
      %v763 = vld [vmem:[%s759 + $0x18] sm:$0xff]
      %v764 = vld [vmem:[%s759 + $0x20] sm:$0xff]
      %v765 = vld [vmem:[%s759 + $0x28] sm:$0xff]
      %v766 = vld [vmem:[%s759 + $0x30] sm:$0xff]
      %v767 = vld [vmem:[%s759 + $0x38] sm:$0xff]
      %v768 = vld [vmem:[%s1] sm:$0xff]
      %v769 = vld [vmem:[%s1 + $0x8] sm:$0xff]
      %v770 = vld [vmem:[%s1 + $0x10] sm:$0xff]
      %v771 = vld [vmem:[%s1 + $0x18] sm:$0xff]
      %v772 = vld [vmem:[%s1 + $0x20] sm:$0xff]
      %v773 = vld [vmem:[%s1 + $0x28] sm:$0xff]
      %v774 = vld [vmem:[%s1 + $0x30] sm:$0xff]
      %v775 = vld [vmem:[%s1 + $0x38] sm:$0xff]
      %v776 = vld [vmem:[%s1 + $0x40] sm:$0xff]
      %v777 = vld [vmem:[%s1 + $0x48] sm:$0xff]
      %v778 = vld [vmem:[%s1 + $0x50] sm:$0xff]
      %v779 = vld [vmem:[%s1 + $0x58] sm:$0xff]
      %v780 = vld [vmem:[%s1 + $0x60] sm:$0xff]
      %v781 = vld [vmem:[%s1 + $0x68] sm:$0xff]
      %v782 = vld [vmem:[%s1 + $0x70] sm:$0xff]
      %v783 = vld [vmem:[%s1 + $0x78] sm:$0xff]
      %s784 = sadd.s32 96, %s758
      %s785 = scalar_lea.vmem [#allocation2], %s784
      %v786 = vld [vmem:[%s785] sm:$0xff]
      %v787 = vld [vmem:[%s785 + $0x8] sm:$0xff]
      %v788 = vld [vmem:[%s785 + $0x10] sm:$0xff]
      %v789 = vld [vmem:[%s785 + $0x18] sm:$0xff]
      %v790 = vld [vmem:[%s785 + $0x20] sm:$0xff]
      %v791 = vld [vmem:[%s785 + $0x28] sm:$0xff]
      %v792 = vld [vmem:[%s785 + $0x30] sm:$0xff]
      %v793 = vld [vmem:[%s785 + $0x38] sm:$0xff]
      %s794 = scalar_lea.vmem %s1, 128
      %v795 = vld [vmem:[%s794] sm:$0xff]
      %v796 = vld [vmem:[%s794 + $0x8] sm:$0xff]
      %v797 = vld [vmem:[%s794 + $0x10] sm:$0xff]
      %v798 = vld [vmem:[%s794 + $0x18] sm:$0xff]
      %v799 = vld [vmem:[%s794 + $0x20] sm:$0xff]
      %v800 = vld [vmem:[%s794 + $0x28] sm:$0xff]
      %v801 = vld [vmem:[%s794 + $0x30] sm:$0xff]
      %v802 = vld [vmem:[%s794 + $0x38] sm:$0xff]
      %v803 = vld [vmem:[%s794 + $0x40] sm:$0xff]
      %v804 = vld [vmem:[%s794 + $0x48] sm:$0xff]
      %v805 = vld [vmem:[%s794 + $0x50] sm:$0xff]
      %v806 = vld [vmem:[%s794 + $0x58] sm:$0xff]
      %v807 = vld [vmem:[%s794 + $0x60] sm:$0xff]
      %v808 = vld [vmem:[%s794 + $0x68] sm:$0xff]
      %v809 = vld [vmem:[%s794 + $0x70] sm:$0xff]
      %v810 = vld [vmem:[%s794 + $0x78] sm:$0xff]
      %811 = vmatprep.subr.mxu0 0.0
      %812 = vmatpush1.msra.mxu0 %v795
      %813 = vmatprep.subr.mxu0 0.0
      %814 = vmatpush1.msra.mxu0 %v796
      %815 = vmatprep.subr.mxu0 0.0
      %816 = vmatpush1.msra.mxu0 %v797
      %817 = vmatprep.subr.mxu0 0.0
      %818 = vmatpush1.msra.mxu0 %v798
      %819 = vmatprep.subr.mxu0 0.0
      %820 = vmatpush1.msra.mxu0 %v799
      %821 = vmatprep.subr.mxu0 0.0
      %822 = vmatpush1.msra.mxu0 %v800
      %823 = vmatprep.subr.mxu0 0.0
      %824 = vmatpush1.msra.mxu0 %v801
      %825 = vmatprep.subr.mxu0 0.0
      %826 = vmatpush1.msra.mxu0 %v802
      %827 = vmatprep.subr.mxu0 0.0
      %828 = vmatpush1.msra.mxu0 %v803
      %829 = vmatprep.subr.mxu0 0.0
      %830 = vmatpush1.msra.mxu0 %v804
      %831 = vmatprep.subr.mxu0 0.0
      %832 = vmatpush1.msra.mxu0 %v805
      %833 = vmatprep.subr.mxu0 0.0
      %834 = vmatpush1.msra.mxu0 %v806
      %835 = vmatprep.subr.mxu0 0.0
      %836 = vmatpush1.msra.mxu0 %v807
      %837 = vmatprep.subr.mxu0 0.0
      %838 = vmatpush1.msra.mxu0 %v808
      %839 = vmatprep.subr.mxu0 0.0
      %840 = vmatpush1.msra.mxu0 %v809
      %841 = vmatprep.subr.mxu0 0.0
      %842 = vmatpush1.msra.mxu0 %v810
      %843 = vmatprep.subr.mxu0 0.0
      %844 = vmatpush1.msra.mxu0 0.0
      %845 = vmatprep.subr.mxu0 0.0
      %846 = vmatpush1.msra.mxu0 0.0
      %847 = vmatprep.subr.mxu0 0.0
      %848 = vmatpush1.msra.mxu0 0.0
      %849 = vmatprep.subr.mxu0 0.0
      %850 = vmatpush1.msra.mxu0 0.0
      %851 = vmatprep.subr.mxu0 0.0
      %852 = vmatpush1.msra.mxu0 0.0
      %853 = vmatprep.subr.mxu0 0.0
      %854 = vmatpush1.msra.mxu0 0.0
      %855 = vmatprep.subr.mxu0 0.0
      %856 = vmatpush1.msra.mxu0 0.0
      %857 = vmatprep.subr.mxu0 0.0
      %858 = vmatpush1.msra.mxu0 0.0
      %859 = vmatprep.subr.mxu0 0.0
      %860 = vmatpush1.msra.mxu0 0.0
      %861 = vmatprep.subr.mxu0 0.0
      %862 = vmatpush1.msra.mxu0 0.0
      %863 = vmatprep.subr.mxu0 0.0
      %864 = vmatpush1.msra.mxu0 0.0
      %865 = vmatprep.subr.mxu0 0.0
      %866 = vmatpush1.msra.mxu0 0.0
      %867 = vmatprep.subr.mxu0 0.0
      %868 = vmatpush1.msra.mxu0 0.0
      %869 = vmatprep.subr.mxu0 0.0
      %870 = vmatpush1.msra.mxu0 0.0
      %871 = vmatprep.subr.mxu0 0.0
      %872 = vmatpush1.msra.mxu0 0.0
      %873 = vmatprep.subr.mxu0 0.0
      %874 = vmatpush1.msra.mxu0 0.0
      %875 = vmatprep.mubr.f32.mxu0 0.0
      %876 = vmatmul.mubr.f32.gmra.mrb[0].mxu0 %v786
      %v877 = vpop.f32.mrb[0].mxu0
      %v878 = vadd.f32 0.0, %v877
      %v879 = vpop.f32.mrb[0].mxu0
      %880 = vmatprep.mubr.f32.mxu0 0.0
      %881 = vmatmul.mubr.f32.gmra.mrb[0].mxu0 %v787
      %v882 = vpop.f32.mrb[0].mxu0
      %v883 = vadd.f32 0.0, %v882
      %v884 = vpop.f32.mrb[0].mxu0
      %885 = vmatprep.mubr.f32.mxu0 0.0
      %886 = vmatmul.mubr.f32.gmra.mrb[0].mxu0 %v788
      %v887 = vpop.f32.mrb[0].mxu0
      %v888 = vadd.f32 0.0, %v887
      %v889 = vpop.f32.mrb[0].mxu0
      %890 = vmatprep.mubr.f32.mxu0 0.0
      %891 = vmatmul.mubr.f32.gmra.mrb[0].mxu0 %v789
      %v892 = vpop.f32.mrb[0].mxu0
      %v893 = vadd.f32 0.0, %v892
      %v894 = vpop.f32.mrb[0].mxu0
      %895 = vmatprep.mubr.f32.mxu0 0.0
      %896 = vmatmul.mubr.f32.gmra.mrb[0].mxu0 %v790
      %v897 = vpop.f32.mrb[0].mxu0
      %v898 = vadd.f32 0.0, %v897
      %v899 = vpop.f32.mrb[0].mxu0
      %900 = vmatprep.mubr.f32.mxu0 0.0
      %901 = vmatmul.mubr.f32.gmra.mrb[0].mxu0 %v791
      %v902 = vpop.f32.mrb[0].mxu0
      %v903 = vadd.f32 0.0, %v902
      %v904 = vpop.f32.mrb[0].mxu0
      %905 = vmatprep.mubr.f32.mxu0 0.0
      %906 = vmatmul.mubr.f32.gmra.mrb[0].mxu0 %v792
      %v907 = vpop.f32.mrb[0].mxu0
      %v908 = vadd.f32 0.0, %v907
      %v909 = vpop.f32.mrb[0].mxu0
      %910 = vmatprep.mubr.f32.mxu0 0.0
      %911 = vmatmul.mubr.f32.gmra.mrb[0].mxu0 %v793
      %v912 = vpop.f32.mrb[0].mxu0
      %v913 = vadd.f32 0.0, %v912
      %v914 = vpop.f32.mrb[0].mxu0
      %915 = vdwg.mxu0
      %916 = vmatprep.subr.mxu0 0.0
      %917 = vmatpush1.msra.mxu0 %v768
      %918 = vmatprep.subr.mxu0 0.0
      %919 = vmatpush1.msra.mxu0 %v769
      %920 = vmatprep.subr.mxu0 0.0
      %921 = vmatpush1.msra.mxu0 %v770
      %922 = vmatprep.subr.mxu0 0.0
      %923 = vmatpush1.msra.mxu0 %v771
      %924 = vmatprep.subr.mxu0 0.0
      %925 = vmatpush1.msra.mxu0 %v772
      %926 = vmatprep.subr.mxu0 0.0
      %927 = vmatpush1.msra.mxu0 %v773
      %928 = vmatprep.subr.mxu0 0.0
      %929 = vmatpush1.msra.mxu0 %v774
      %930 = vmatprep.subr.mxu0 0.0
      %931 = vmatpush1.msra.mxu0 %v775
      %932 = vmatprep.subr.mxu0 0.0
      %933 = vmatpush1.msra.mxu0 %v776
      %934 = vmatprep.subr.mxu0 0.0
      %935 = vmatpush1.msra.mxu0 %v777
      %936 = vmatprep.subr.mxu0 0.0
      %937 = vmatpush1.msra.mxu0 %v778
      %938 = vmatprep.subr.mxu0 0.0
      %939 = vmatpush1.msra.mxu0 %v779
      %940 = vmatprep.subr.mxu0 0.0
      %941 = vmatpush1.msra.mxu0 %v780
      %942 = vmatprep.subr.mxu0 0.0
      %943 = vmatpush1.msra.mxu0 %v781
      %944 = vmatprep.subr.mxu0 0.0
      %945 = vmatpush1.msra.mxu0 %v782
      %946 = vmatprep.subr.mxu0 0.0
      %947 = vmatpush1.msra.mxu0 %v783
      %948 = vmatprep.subr.mxu0 0.0
      %949 = vmatpush1.msra.mxu0 0.0
      %950 = vmatprep.subr.mxu0 0.0
      %951 = vmatpush1.msra.mxu0 0.0
      %952 = vmatprep.subr.mxu0 0.0
      %953 = vmatpush1.msra.mxu0 0.0
      %954 = vmatprep.subr.mxu0 0.0
      %955 = vmatpush1.msra.mxu0 0.0
      %956 = vmatprep.subr.mxu0 0.0
      %957 = vmatpush1.msra.mxu0 0.0
      %958 = vmatprep.subr.mxu0 0.0
      %959 = vmatpush1.msra.mxu0 0.0
      %960 = vmatprep.subr.mxu0 0.0
      %961 = vmatpush1.msra.mxu0 0.0
      %962 = vmatprep.subr.mxu0 0.0
      %963 = vmatpush1.msra.mxu0 0.0
      %964 = vmatprep.subr.mxu0 0.0
      %965 = vmatpush1.msra.mxu0 0.0
      %966 = vmatprep.subr.mxu0 0.0
      %967 = vmatpush1.msra.mxu0 0.0
      %968 = vmatprep.subr.mxu0 0.0
      %969 = vmatpush1.msra.mxu0 0.0
      %970 = vmatprep.subr.mxu0 0.0
      %971 = vmatpush1.msra.mxu0 0.0
      %972 = vmatprep.subr.mxu0 0.0
      %973 = vmatpush1.msra.mxu0 0.0
      %974 = vmatprep.subr.mxu0 0.0
      %975 = vmatpush1.msra.mxu0 0.0
      %976 = vmatprep.subr.mxu0 0.0
      %977 = vmatpush1.msra.mxu0 0.0
      %978 = vmatprep.subr.mxu0 0.0
      %979 = vmatpush1.msra.mxu0 0.0
      %980 = vmatprep.mubr.f32.mxu0 0.0
      %981 = vmatmul.mubr.f32.gmra.mrb[0].mxu0 %v760
      %v982 = vpop.f32.mrb[0].mxu0
      %v983 = vadd.f32 %v878, %v982
      %v984 = vpop.f32.mrb[0].mxu0
      %985 = vmatprep.mubr.f32.mxu0 0.0
      %986 = vmatmul.mubr.f32.gmra.mrb[0].mxu0 %v761
      %v987 = vpop.f32.mrb[0].mxu0
      %v988 = vadd.f32 %v883, %v987
      %v989 = vpop.f32.mrb[0].mxu0
      %990 = vmatprep.mubr.f32.mxu0 0.0
      %991 = vmatmul.mubr.f32.gmra.mrb[0].mxu0 %v762
      %v992 = vpop.f32.mrb[0].mxu0
      %v993 = vadd.f32 %v888, %v992
      %v994 = vpop.f32.mrb[0].mxu0
      %995 = vmatprep.mubr.f32.mxu0 0.0
      %996 = vmatmul.mubr.f32.gmra.mrb[0].mxu0 %v763
      %v997 = vpop.f32.mrb[0].mxu0
      %v998 = vadd.f32 %v893, %v997
      %v999 = vpop.f32.mrb[0].mxu0
      %1000 = vmatprep.mubr.f32.mxu0 0.0
      %1001 = vmatmul.mubr.f32.gmra.mrb[0].mxu0 %v764
      %v1002 = vpop.f32.mrb[0].mxu0
      %v1003 = vadd.f32 %v898, %v1002
      %v1004 = vpop.f32.mrb[0].mxu0
      %1005 = vmatprep.mubr.f32.mxu0 0.0
      %1006 = vmatmul.mubr.f32.gmra.mrb[0].mxu0 %v765
      %v1007 = vpop.f32.mrb[0].mxu0
      %v1008 = vadd.f32 %v903, %v1007
      %v1009 = vpop.f32.mrb[0].mxu0
      %1010 = vmatprep.mubr.f32.mxu0 0.0
      %1011 = vmatmul.mubr.f32.gmra.mrb[0].mxu0 %v766
      %v1012 = vpop.f32.mrb[0].mxu0
      %v1013 = vadd.f32 %v908, %v1012
      %v1014 = vpop.f32.mrb[0].mxu0
      %1015 = vmatprep.mubr.f32.mxu0 0.0
      %1016 = vmatmul.mubr.f32.gmra.mrb[0].mxu0 %v767
      %v1017 = vpop.f32.mrb[0].mxu0
      %v1018 = vadd.f32 %v913, %v1017
      %v1019 = vpop.f32.mrb[0].mxu0
      %1020 = vdwg.mxu0
      %s1021 = sadd.s32 192, %s758
      %s1022 = scalar_lea.vmem [#allocation2], %s1021
      %v1023 = vld [vmem:[%s1022] sm:$0xff]
      %v1024 = vld [vmem:[%s1022 + $0x8] sm:$0xff]
      %v1025 = vld [vmem:[%s1022 + $0x10] sm:$0xff]
      %v1026 = vld [vmem:[%s1022 + $0x18] sm:$0xff]
      %v1027 = vld [vmem:[%s1022 + $0x20] sm:$0xff]
      %v1028 = vld [vmem:[%s1022 + $0x28] sm:$0xff]
      %v1029 = vld [vmem:[%s1022 + $0x30] sm:$0xff]
      %v1030 = vld [vmem:[%s1022 + $0x38] sm:$0xff]
      %s1031 = scalar_lea.vmem %s1, 256
      %v1032 = vld [vmem:[%s1031] sm:$0xff]
      %v1033 = vld [vmem:[%s1031 + $0x8] sm:$0xff]
      %v1034 = vld [vmem:[%s1031 + $0x10] sm:$0xff]
      %v1035 = vld [vmem:[%s1031 + $0x18] sm:$0xff]
      %v1036 = vld [vmem:[%s1031 + $0x20] sm:$0xff]
      %v1037 = vld [vmem:[%s1031 + $0x28] sm:$0xff]
      %v1038 = vld [vmem:[%s1031 + $0x30] sm:$0xff]
      %v1039 = vld [vmem:[%s1031 + $0x38] sm:$0xff]
      %v1040 = vld [vmem:[%s1031 + $0x40] sm:$0xff]
      %v1041 = vld [vmem:[%s1031 + $0x48] sm:$0xff]
      %v1042 = vld [vmem:[%s1031 + $0x50] sm:$0xff]
      %v1043 = vld [vmem:[%s1031 + $0x58] sm:$0xff]
      %v1044 = vld [vmem:[%s1031 + $0x60] sm:$0xff]
      %v1045 = vld [vmem:[%s1031 + $0x68] sm:$0xff]
      %v1046 = vld [vmem:[%s1031 + $0x70] sm:$0xff]
      %v1047 = vld [vmem:[%s1031 + $0x78] sm:$0xff]
      %1048 = vmatprep.subr.mxu0 0.0
      %1049 = vmatpush1.msra.mxu0 %v1032
      %1050 = vmatprep.subr.mxu0 0.0
      %1051 = vmatpush1.msra.mxu0 %v1033
      %1052 = vmatprep.subr.mxu0 0.0
      %1053 = vmatpush1.msra.mxu0 %v1034
      %1054 = vmatprep.subr.mxu0 0.0
      %1055 = vmatpush1.msra.mxu0 %v1035
      %1056 = vmatprep.subr.mxu0 0.0
      %1057 = vmatpush1.msra.mxu0 %v1036
      %1058 = vmatprep.subr.mxu0 0.0
      %1059 = vmatpush1.msra.mxu0 %v1037
      %1060 = vmatprep.subr.mxu0 0.0
      %1061 = vmatpush1.msra.mxu0 %v1038
      %1062 = vmatprep.subr.mxu0 0.0
      %1063 = vmatpush1.msra.mxu0 %v1039
      %1064 = vmatprep.subr.mxu0 0.0
      %1065 = vmatpush1.msra.mxu0 %v1040
      %1066 = vmatprep.subr.mxu0 0.0
      %1067 = vmatpush1.msra.mxu0 %v1041
      %1068 = vmatprep.subr.mxu0 0.0
      %1069 = vmatpush1.msra.mxu0 %v1042
      %1070 = vmatprep.subr.mxu0 0.0
      %1071 = vmatpush1.msra.mxu0 %v1043
      %1072 = vmatprep.subr.mxu0 0.0
      %1073 = vmatpush1.msra.mxu0 %v1044
      %1074 = vmatprep.subr.mxu0 0.0
      %1075 = vmatpush1.msra.mxu0 %v1045
      %1076 = vmatprep.subr.mxu0 0.0
      %1077 = vmatpush1.msra.mxu0 %v1046
      %1078 = vmatprep.subr.mxu0 0.0
      %1079 = vmatpush1.msra.mxu0 %v1047
      %1080 = vmatprep.subr.mxu0 0.0
      %1081 = vmatpush1.msra.mxu0 0.0
      %1082 = vmatprep.subr.mxu0 0.0
      %1083 = vmatpush1.msra.mxu0 0.0
      %1084 = vmatprep.subr.mxu0 0.0
      %1085 = vmatpush1.msra.mxu0 0.0
      %1086 = vmatprep.subr.mxu0 0.0
      %1087 = vmatpush1.msra.mxu0 0.0
      %1088 = vmatprep.subr.mxu0 0.0
      %1089 = vmatpush1.msra.mxu0 0.0
      %1090 = vmatprep.subr.mxu0 0.0
      %1091 = vmatpush1.msra.mxu0 0.0
      %1092 = vmatprep.subr.mxu0 0.0
      %1093 = vmatpush1.msra.mxu0 0.0
      %1094 = vmatprep.subr.mxu0 0.0
      %1095 = vmatpush1.msra.mxu0 0.0
      %1096 = vmatprep.subr.mxu0 0.0
      %1097 = vmatpush1.msra.mxu0 0.0
      %1098 = vmatprep.subr.mxu0 0.0
      %1099 = vmatpush1.msra.mxu0 0.0
      %1100 = vmatprep.subr.mxu0 0.0
      %1101 = vmatpush1.msra.mxu0 0.0
      %1102 = vmatprep.subr.mxu0 0.0
      %1103 = vmatpush1.msra.mxu0 0.0
      %1104 = vmatprep.subr.mxu0 0.0
      %1105 = vmatpush1.msra.mxu0 0.0
      %1106 = vmatprep.subr.mxu0 0.0
      %1107 = vmatpush1.msra.mxu0 0.0
      %1108 = vmatprep.subr.mxu0 0.0
      %1109 = vmatpush1.msra.mxu0 0.0
      %1110 = vmatprep.subr.mxu0 0.0
      %1111 = vmatpush1.msra.mxu0 0.0
      %1112 = vmatprep.mubr.f32.mxu0 0.0
      %1113 = vmatmul.mubr.f32.gmra.mrb[0].mxu0 %v1023
      %v1114 = vpop.f32.mrb[0].mxu0
      %v1115 = vadd.f32 0.0, %v1114
      %v1116 = vpop.f32.mrb[0].mxu0
      %1117 = vmatprep.mubr.f32.mxu0 0.0
      %1118 = vmatmul.mubr.f32.gmra.mrb[0].mxu0 %v1024
      %v1119 = vpop.f32.mrb[0].mxu0
      %v1120 = vadd.f32 0.0, %v1119
      %v1121 = vpop.f32.mrb[0].mxu0
      %1122 = vmatprep.mubr.f32.mxu0 0.0
      %1123 = vmatmul.mubr.f32.gmra.mrb[0].mxu0 %v1025
      %v1124 = vpop.f32.mrb[0].mxu0
      %v1125 = vadd.f32 0.0, %v1124
      %v1126 = vpop.f32.mrb[0].mxu0
      %1127 = vmatprep.mubr.f32.mxu0 0.0
      %1128 = vmatmul.mubr.f32.gmra.mrb[0].mxu0 %v1026
      %v1129 = vpop.f32.mrb[0].mxu0
      %v1130 = vadd.f32 0.0, %v1129
      %v1131 = vpop.f32.mrb[0].mxu0
      %1132 = vmatprep.mubr.f32.mxu0 0.0
      %1133 = vmatmul.mubr.f32.gmra.mrb[0].mxu0 %v1027
      %v1134 = vpop.f32.mrb[0].mxu0
      %v1135 = vadd.f32 0.0, %v1134
      %v1136 = vpop.f32.mrb[0].mxu0
      %1137 = vmatprep.mubr.f32.mxu0 0.0
      %1138 = vmatmul.mubr.f32.gmra.mrb[0].mxu0 %v1028
      %v1139 = vpop.f32.mrb[0].mxu0
      %v1140 = vadd.f32 0.0, %v1139
      %v1141 = vpop.f32.mrb[0].mxu0
      %1142 = vmatprep.mubr.f32.mxu0 0.0
      %1143 = vmatmul.mubr.f32.gmra.mrb[0].mxu0 %v1029
      %v1144 = vpop.f32.mrb[0].mxu0
      %v1145 = vadd.f32 0.0, %v1144
      %v1146 = vpop.f32.mrb[0].mxu0
      %1147 = vmatprep.mubr.f32.mxu0 0.0
      %1148 = vmatmul.mubr.f32.gmra.mrb[0].mxu0 %v1030
      %v1149 = vpop.f32.mrb[0].mxu0
      %v1150 = vadd.f32 0.0, %v1149
      %v1151 = vpop.f32.mrb[0].mxu0
      %1152 = vdwg.mxu0
      %v1153 = vadd.f32 %v983, %v1115
      %v1154 = vadd.f32 %v988, %v1120
      %v1155 = vadd.f32 %v993, %v1125
      %v1156 = vadd.f32 %v998, %v1130
      %v1157 = vadd.f32 %v1003, %v1135
      %v1158 = vadd.f32 %v1008, %v1140
      %v1159 = vadd.f32 %v1013, %v1145
      %v1160 = vadd.f32 %v1018, %v1150
      %s1161 = sadd.s32 16, %s758
      %s1162 = scalar_lea.vmem [#allocation2], %s1161
      %v1163 = vld [vmem:[%s1162] sm:$0xff]
      %v1164 = vld [vmem:[%s1162 + $0x8] sm:$0xff]
      %v1165 = vld [vmem:[%s1162 + $0x10] sm:$0xff]
      %v1166 = vld [vmem:[%s1162 + $0x18] sm:$0xff]
      %v1167 = vld [vmem:[%s1162 + $0x20] sm:$0xff]
      %v1168 = vld [vmem:[%s1162 + $0x28] sm:$0xff]
      %v1169 = vld [vmem:[%s1162 + $0x30] sm:$0xff]
      %v1170 = vld [vmem:[%s1162 + $0x38] sm:$0xff]
      %s1171 = scalar_lea.vmem %s1, 384
      %v1172 = vld [vmem:[%s1171] sm:$0xff]
      %v1173 = vld [vmem:[%s1171 + $0x8] sm:$0xff]
      %v1174 = vld [vmem:[%s1171 + $0x10] sm:$0xff]
      %v1175 = vld [vmem:[%s1171 + $0x18] sm:$0xff]
      %v1176 = vld [vmem:[%s1171 + $0x20] sm:$0xff]
      %v1177 = vld [vmem:[%s1171 + $0x28] sm:$0xff]
      %v1178 = vld [vmem:[%s1171 + $0x30] sm:$0xff]
      %v1179 = vld [vmem:[%s1171 + $0x38] sm:$0xff]
      %v1180 = vld [vmem:[%s1171 + $0x40] sm:$0xff]
      %v1181 = vld [vmem:[%s1171 + $0x48] sm:$0xff]
      %v1182 = vld [vmem:[%s1171 + $0x50] sm:$0xff]
      %v1183 = vld [vmem:[%s1171 + $0x58] sm:$0xff]
      %v1184 = vld [vmem:[%s1171 + $0x60] sm:$0xff]
      %v1185 = vld [vmem:[%s1171 + $0x68] sm:$0xff]
      %v1186 = vld [vmem:[%s1171 + $0x70] sm:$0xff]
      %v1187 = vld [vmem:[%s1171 + $0x78] sm:$0xff]
      %1188 = vmatprep.subr.mxu0 0.0
      %1189 = vmatpush1.msra.mxu0 %v1172
      %1190 = vmatprep.subr.mxu0 0.0
      %1191 = vmatpush1.msra.mxu0 %v1173
      %1192 = vmatprep.subr.mxu0 0.0
      %1193 = vmatpush1.msra.mxu0 %v1174
      %1194 = vmatprep.subr.mxu0 0.0
      %1195 = vmatpush1.msra.mxu0 %v1175
      %1196 = vmatprep.subr.mxu0 0.0
      %1197 = vmatpush1.msra.mxu0 %v1176
      %1198 = vmatprep.subr.mxu0 0.0
      %1199 = vmatpush1.msra.mxu0 %v1177
      %1200 = vmatprep.subr.mxu0 0.0
      %1201 = vmatpush1.msra.mxu0 %v1178
      %1202 = vmatprep.subr.mxu0 0.0
      %1203 = vmatpush1.msra.mxu0 %v1179
      %1204 = vmatprep.subr.mxu0 0.0
      %1205 = vmatpush1.msra.mxu0 %v1180
      %1206 = vmatprep.subr.mxu0 0.0
      %1207 = vmatpush1.msra.mxu0 %v1181
      %1208 = vmatprep.subr.mxu0 0.0
      %1209 = vmatpush1.msra.mxu0 %v1182
      %1210 = vmatprep.subr.mxu0 0.0
      %1211 = vmatpush1.msra.mxu0 %v1183
      %1212 = vmatprep.subr.mxu0 0.0
      %1213 = vmatpush1.msra.mxu0 %v1184
      %1214 = vmatprep.subr.mxu0 0.0
      %1215 = vmatpush1.msra.mxu0 %v1185
      %1216 = vmatprep.subr.mxu0 0.0
      %1217 = vmatpush1.msra.mxu0 %v1186
      %1218 = vmatprep.subr.mxu0 0.0
      %1219 = vmatpush1.msra.mxu0 %v1187
      %1220 = vmatprep.subr.mxu0 0.0
      %1221 = vmatpush1.msra.mxu0 0.0
      %1222 = vmatprep.subr.mxu0 0.0
      %1223 = vmatpush1.msra.mxu0 0.0
      %1224 = vmatprep.subr.mxu0 0.0
      %1225 = vmatpush1.msra.mxu0 0.0
      %1226 = vmatprep.subr.mxu0 0.0
      %1227 = vmatpush1.msra.mxu0 0.0
      %1228 = vmatprep.subr.mxu0 0.0
      %1229 = vmatpush1.msra.mxu0 0.0
      %1230 = vmatprep.subr.mxu0 0.0
      %1231 = vmatpush1.msra.mxu0 0.0
      %1232 = vmatprep.subr.mxu0 0.0
      %1233 = vmatpush1.msra.mxu0 0.0
      %1234 = vmatprep.subr.mxu0 0.0
      %1235 = vmatpush1.msra.mxu0 0.0
      %1236 = vmatprep.subr.mxu0 0.0
      %1237 = vmatpush1.msra.mxu0 0.0
      %1238 = vmatprep.subr.mxu0 0.0
      %1239 = vmatpush1.msra.mxu0 0.0
      %1240 = vmatprep.subr.mxu0 0.0
      %1241 = vmatpush1.msra.mxu0 0.0
      %1242 = vmatprep.subr.mxu0 0.0
      %1243 = vmatpush1.msra.mxu0 0.0
      %1244 = vmatprep.subr.mxu0 0.0
      %1245 = vmatpush1.msra.mxu0 0.0
      %1246 = vmatprep.subr.mxu0 0.0
      %1247 = vmatpush1.msra.mxu0 0.0
      %1248 = vmatprep.subr.mxu0 0.0
      %1249 = vmatpush1.msra.mxu0 0.0
      %1250 = vmatprep.subr.mxu0 0.0
      %1251 = vmatpush1.msra.mxu0 0.0
      %1252 = vmatprep.mubr.f32.mxu0 0.0
      %1253 = vmatmul.mubr.f32.gmra.mrb[0].mxu0 %v1163
      %v1254 = vpop.f32.mrb[0].mxu0
      %v1255 = vadd.f32 0.0, %v1254
      %v1256 = vpop.f32.mrb[0].mxu0
      %1257 = vmatprep.mubr.f32.mxu0 0.0
      %1258 = vmatmul.mubr.f32.gmra.mrb[0].mxu0 %v1164
      %v1259 = vpop.f32.mrb[0].mxu0
      %v1260 = vadd.f32 0.0, %v1259
      %v1261 = vpop.f32.mrb[0].mxu0
      %1262 = vmatprep.mubr.f32.mxu0 0.0
      %1263 = vmatmul.mubr.f32.gmra.mrb[0].mxu0 %v1165
      %v1264 = vpop.f32.mrb[0].mxu0
      %v1265 = vadd.f32 0.0, %v1264
      %v1266 = vpop.f32.mrb[0].mxu0
      %1267 = vmatprep.mubr.f32.mxu0 0.0
      %1268 = vmatmul.mubr.f32.gmra.mrb[0].mxu0 %v1166
      %v1269 = vpop.f32.mrb[0].mxu0
      %v1270 = vadd.f32 0.0, %v1269
      %v1271 = vpop.f32.mrb[0].mxu0
      %1272 = vmatprep.mubr.f32.mxu0 0.0
      %1273 = vmatmul.mubr.f32.gmra.mrb[0].mxu0 %v1167
      %v1274 = vpop.f32.mrb[0].mxu0
      %v1275 = vadd.f32 0.0, %v1274
      %v1276 = vpop.f32.mrb[0].mxu0
      %1277 = vmatprep.mubr.f32.mxu0 0.0
      %1278 = vmatmul.mubr.f32.gmra.mrb[0].mxu0 %v1168
      %v1279 = vpop.f32.mrb[0].mxu0
      %v1280 = vadd.f32 0.0, %v1279
      %v1281 = vpop.f32.mrb[0].mxu0
      %1282 = vmatprep.mubr.f32.mxu0 0.0
      %1283 = vmatmul.mubr.f32.gmra.mrb[0].mxu0 %v1169
      %v1284 = vpop.f32.mrb[0].mxu0
      %v1285 = vadd.f32 0.0, %v1284
      %v1286 = vpop.f32.mrb[0].mxu0
      %1287 = vmatprep.mubr.f32.mxu0 0.0
      %1288 = vmatmul.mubr.f32.gmra.mrb[0].mxu0 %v1170
      %v1289 = vpop.f32.mrb[0].mxu0
      %v1290 = vadd.f32 0.0, %v1289
      %v1291 = vpop.f32.mrb[0].mxu0
      %1292 = vdwg.mxu0
      %v1293 = vadd.f32 %v1153, %v1255
      %v1294 = vadd.f32 %v1154, %v1260
      %v1295 = vadd.f32 %v1155, %v1265
      %v1296 = vadd.f32 %v1156, %v1270
      %v1297 = vadd.f32 %v1157, %v1275
      %v1298 = vadd.f32 %v1158, %v1280
      %v1299 = vadd.f32 %v1159, %v1285
      %v1300 = vadd.f32 %v1160, %v1290
      %s1301 = sadd.s32 112, %s758
      %s1302 = scalar_lea.vmem [#allocation2], %s1301
      %v1303 = vld [vmem:[%s1302] sm:$0xff]
      %v1304 = vld [vmem:[%s1302 + $0x8] sm:$0xff]
      %v1305 = vld [vmem:[%s1302 + $0x10] sm:$0xff]
      %v1306 = vld [vmem:[%s1302 + $0x18] sm:$0xff]
      %v1307 = vld [vmem:[%s1302 + $0x20] sm:$0xff]
      %v1308 = vld [vmem:[%s1302 + $0x28] sm:$0xff]
      %v1309 = vld [vmem:[%s1302 + $0x30] sm:$0xff]
      %v1310 = vld [vmem:[%s1302 + $0x38] sm:$0xff]
      %s1311 = scalar_lea.vmem %s1, 512
      %v1312 = vld [vmem:[%s1311] sm:$0xff]
      %v1313 = vld [vmem:[%s1311 + $0x8] sm:$0xff]
      %v1314 = vld [vmem:[%s1311 + $0x10] sm:$0xff]
      %v1315 = vld [vmem:[%s1311 + $0x18] sm:$0xff]
      %v1316 = vld [vmem:[%s1311 + $0x20] sm:$0xff]
      %v1317 = vld [vmem:[%s1311 + $0x28] sm:$0xff]
      %v1318 = vld [vmem:[%s1311 + $0x30] sm:$0xff]
      %v1319 = vld [vmem:[%s1311 + $0x38] sm:$0xff]
      %v1320 = vld [vmem:[%s1311 + $0x40] sm:$0xff]
      %v1321 = vld [vmem:[%s1311 + $0x48] sm:$0xff]
      %v1322 = vld [vmem:[%s1311 + $0x50] sm:$0xff]
      %v1323 = vld [vmem:[%s1311 + $0x58] sm:$0xff]
      %v1324 = vld [vmem:[%s1311 + $0x60] sm:$0xff]
      %v1325 = vld [vmem:[%s1311 + $0x68] sm:$0xff]
      %v1326 = vld [vmem:[%s1311 + $0x70] sm:$0xff]
      %v1327 = vld [vmem:[%s1311 + $0x78] sm:$0xff]
      %1328 = vmatprep.subr.mxu0 0.0
      %1329 = vmatpush1.msra.mxu0 %v1312
      %1330 = vmatprep.subr.mxu0 0.0
      %1331 = vmatpush1.msra.mxu0 %v1313
      %1332 = vmatprep.subr.mxu0 0.0
      %1333 = vmatpush1.msra.mxu0 %v1314
      %1334 = vmatprep.subr.mxu0 0.0
      %1335 = vmatpush1.msra.mxu0 %v1315
      %1336 = vmatprep.subr.mxu0 0.0
      %1337 = vmatpush1.msra.mxu0 %v1316
      %1338 = vmatprep.subr.mxu0 0.0
      %1339 = vmatpush1.msra.mxu0 %v1317
      %1340 = vmatprep.subr.mxu0 0.0
      %1341 = vmatpush1.msra.mxu0 %v1318
      %1342 = vmatprep.subr.mxu0 0.0
      %1343 = vmatpush1.msra.mxu0 %v1319
      %1344 = vmatprep.subr.mxu0 0.0
      %1345 = vmatpush1.msra.mxu0 %v1320
      %1346 = vmatprep.subr.mxu0 0.0
      %1347 = vmatpush1.msra.mxu0 %v1321
      %1348 = vmatprep.subr.mxu0 0.0
      %1349 = vmatpush1.msra.mxu0 %v1322
      %1350 = vmatprep.subr.mxu0 0.0
      %1351 = vmatpush1.msra.mxu0 %v1323
      %1352 = vmatprep.subr.mxu0 0.0
      %1353 = vmatpush1.msra.mxu0 %v1324
      %1354 = vmatprep.subr.mxu0 0.0
      %1355 = vmatpush1.msra.mxu0 %v1325
      %1356 = vmatprep.subr.mxu0 0.0
      %1357 = vmatpush1.msra.mxu0 %v1326
      %1358 = vmatprep.subr.mxu0 0.0
      %1359 = vmatpush1.msra.mxu0 %v1327
      %1360 = vmatprep.subr.mxu0 0.0
      %1361 = vmatpush1.msra.mxu0 0.0
      %1362 = vmatprep.subr.mxu0 0.0
      %1363 = vmatpush1.msra.mxu0 0.0
      %1364 = vmatprep.subr.mxu0 0.0
      %1365 = vmatpush1.msra.mxu0 0.0
      %1366 = vmatprep.subr.mxu0 0.0
      %1367 = vmatpush1.msra.mxu0 0.0
      %1368 = vmatprep.subr.mxu0 0.0
      %1369 = vmatpush1.msra.mxu0 0.0
      %1370 = vmatprep.subr.mxu0 0.0
      %1371 = vmatpush1.msra.mxu0 0.0
      %1372 = vmatprep.subr.mxu0 0.0
      %1373 = vmatpush1.msra.mxu0 0.0
      %1374 = vmatprep.subr.mxu0 0.0
      %1375 = vmatpush1.msra.mxu0 0.0
      %1376 = vmatprep.subr.mxu0 0.0
      %1377 = vmatpush1.msra.mxu0 0.0
      %1378 = vmatprep.subr.mxu0 0.0
      %1379 = vmatpush1.msra.mxu0 0.0
      %1380 = vmatprep.subr.mxu0 0.0
      %1381 = vmatpush1.msra.mxu0 0.0
      %1382 = vmatprep.subr.mxu0 0.0
      %1383 = vmatpush1.msra.mxu0 0.0
      %1384 = vmatprep.subr.mxu0 0.0
      %1385 = vmatpush1.msra.mxu0 0.0
      %1386 = vmatprep.subr.mxu0 0.0
      %1387 = vmatpush1.msra.mxu0 0.0
      %1388 = vmatprep.subr.mxu0 0.0
      %1389 = vmatpush1.msra.mxu0 0.0
      %1390 = vmatprep.subr.mxu0 0.0
      %1391 = vmatpush1.msra.mxu0 0.0
      %1392 = vmatprep.mubr.f32.mxu0 0.0
      %1393 = vmatmul.mubr.f32.gmra.mrb[0].mxu0 %v1303
      %v1394 = vpop.f32.mrb[0].mxu0
      %v1395 = vadd.f32 0.0, %v1394
      %v1396 = vpop.f32.mrb[0].mxu0
      %1397 = vmatprep.mubr.f32.mxu0 0.0
      %1398 = vmatmul.mubr.f32.gmra.mrb[0].mxu0 %v1304
      %v1399 = vpop.f32.mrb[0].mxu0
      %v1400 = vadd.f32 0.0, %v1399
      %v1401 = vpop.f32.mrb[0].mxu0
      %1402 = vmatprep.mubr.f32.mxu0 0.0
      %1403 = vmatmul.mubr.f32.gmra.mrb[0].mxu0 %v1305
      %v1404 = vpop.f32.mrb[0].mxu0
      %v1405 = vadd.f32 0.0, %v1404
      %v1406 = vpop.f32.mrb[0].mxu0
      %1407 = vmatprep.mubr.f32.mxu0 0.0
      %1408 = vmatmul.mubr.f32.gmra.mrb[0].mxu0 %v1306
      %v1409 = vpop.f32.mrb[0].mxu0
      %v1410 = vadd.f32 0.0, %v1409
      %v1411 = vpop.f32.mrb[0].mxu0
      %1412 = vmatprep.mubr.f32.mxu0 0.0
      %1413 = vmatmul.mubr.f32.gmra.mrb[0].mxu0 %v1307
      %v1414 = vpop.f32.mrb[0].mxu0
      %v1415 = vadd.f32 0.0, %v1414
      %v1416 = vpop.f32.mrb[0].mxu0
      %1417 = vmatprep.mubr.f32.mxu0 0.0
      %1418 = vmatmul.mubr.f32.gmra.mrb[0].mxu0 %v1308
      %v1419 = vpop.f32.mrb[0].mxu0
      %v1420 = vadd.f32 0.0, %v1419
      %v1421 = vpop.f32.mrb[0].mxu0
      %1422 = vmatprep.mubr.f32.mxu0 0.0
      %1423 = vmatmul.mubr.f32.gmra.mrb[0].mxu0 %v1309
      %v1424 = vpop.f32.mrb[0].mxu0
      %v1425 = vadd.f32 0.0, %v1424
      %v1426 = vpop.f32.mrb[0].mxu0
      %1427 = vmatprep.mubr.f32.mxu0 0.0
      %1428 = vmatmul.mubr.f32.gmra.mrb[0].mxu0 %v1310
      %v1429 = vpop.f32.mrb[0].mxu0
      %v1430 = vadd.f32 0.0, %v1429
      %v1431 = vpop.f32.mrb[0].mxu0
      %1432 = vdwg.mxu0
      %v1433 = vadd.f32 %v1293, %v1395
      %v1434 = vadd.f32 %v1294, %v1400
      %v1435 = vadd.f32 %v1295, %v1405
      %v1436 = vadd.f32 %v1296, %v1410
      %v1437 = vadd.f32 %v1297, %v1415
      %v1438 = vadd.f32 %v1298, %v1420
      %v1439 = vadd.f32 %v1299, %v1425
      %v1440 = vadd.f32 %v1300, %v1430
      %s1441 = sadd.s32 208, %s758
      %s1442 = scalar_lea.vmem [#allocation2], %s1441
      %v1443 = vld [vmem:[%s1442] sm:$0xff]
      %v1444 = vld [vmem:[%s1442 + $0x8] sm:$0xff]
      %v1445 = vld [vmem:[%s1442 + $0x10] sm:$0xff]
      %v1446 = vld [vmem:[%s1442 + $0x18] sm:$0xff]
      %v1447 = vld [vmem:[%s1442 + $0x20] sm:$0xff]
      %v1448 = vld [vmem:[%s1442 + $0x28] sm:$0xff]
      %v1449 = vld [vmem:[%s1442 + $0x30] sm:$0xff]
      %v1450 = vld [vmem:[%s1442 + $0x38] sm:$0xff]
      %s1451 = scalar_lea.vmem %s1, 640
      %v1452 = vld [vmem:[%s1451] sm:$0xff]
      %v1453 = vld [vmem:[%s1451 + $0x8] sm:$0xff]
      %v1454 = vld [vmem:[%s1451 + $0x10] sm:$0xff]
      %v1455 = vld [vmem:[%s1451 + $0x18] sm:$0xff]
      %v1456 = vld [vmem:[%s1451 + $0x20] sm:$0xff]
      %v1457 = vld [vmem:[%s1451 + $0x28] sm:$0xff]
      %v1458 = vld [vmem:[%s1451 + $0x30] sm:$0xff]
      %v1459 = vld [vmem:[%s1451 + $0x38] sm:$0xff]
      %v1460 = vld [vmem:[%s1451 + $0x40] sm:$0xff]
      %v1461 = vld [vmem:[%s1451 + $0x48] sm:$0xff]
      %v1462 = vld [vmem:[%s1451 + $0x50] sm:$0xff]
      %v1463 = vld [vmem:[%s1451 + $0x58] sm:$0xff]
      %v1464 = vld [vmem:[%s1451 + $0x60] sm:$0xff]
      %v1465 = vld [vmem:[%s1451 + $0x68] sm:$0xff]
      %v1466 = vld [vmem:[%s1451 + $0x70] sm:$0xff]
      %v1467 = vld [vmem:[%s1451 + $0x78] sm:$0xff]
      %1468 = vmatprep.subr.mxu0 0.0
      %1469 = vmatpush1.msra.mxu0 %v1452
      %1470 = vmatprep.subr.mxu0 0.0
      %1471 = vmatpush1.msra.mxu0 %v1453
      %1472 = vmatprep.subr.mxu0 0.0
      %1473 = vmatpush1.msra.mxu0 %v1454
      %1474 = vmatprep.subr.mxu0 0.0
      %1475 = vmatpush1.msra.mxu0 %v1455
      %1476 = vmatprep.subr.mxu0 0.0
      %1477 = vmatpush1.msra.mxu0 %v1456
      %1478 = vmatprep.subr.mxu0 0.0
      %1479 = vmatpush1.msra.mxu0 %v1457
      %1480 = vmatprep.subr.mxu0 0.0
      %1481 = vmatpush1.msra.mxu0 %v1458
      %1482 = vmatprep.subr.mxu0 0.0
      %1483 = vmatpush1.msra.mxu0 %v1459
      %1484 = vmatprep.subr.mxu0 0.0
      %1485 = vmatpush1.msra.mxu0 %v1460
      %1486 = vmatprep.subr.mxu0 0.0
      %1487 = vmatpush1.msra.mxu0 %v1461
      %1488 = vmatprep.subr.mxu0 0.0
      %1489 = vmatpush1.msra.mxu0 %v1462
      %1490 = vmatprep.subr.mxu0 0.0
      %1491 = vmatpush1.msra.mxu0 %v1463
      %1492 = vmatprep.subr.mxu0 0.0
      %1493 = vmatpush1.msra.mxu0 %v1464
      %1494 = vmatprep.subr.mxu0 0.0
      %1495 = vmatpush1.msra.mxu0 %v1465
      %1496 = vmatprep.subr.mxu0 0.0
      %1497 = vmatpush1.msra.mxu0 %v1466
      %1498 = vmatprep.subr.mxu0 0.0
      %1499 = vmatpush1.msra.mxu0 %v1467
      %1500 = vmatprep.subr.mxu0 0.0
      %1501 = vmatpush1.msra.mxu0 0.0
      %1502 = vmatprep.subr.mxu0 0.0
      %1503 = vmatpush1.msra.mxu0 0.0
      %1504 = vmatprep.subr.mxu0 0.0
      %1505 = vmatpush1.msra.mxu0 0.0
      %1506 = vmatprep.subr.mxu0 0.0
      %1507 = vmatpush1.msra.mxu0 0.0
      %1508 = vmatprep.subr.mxu0 0.0
      %1509 = vmatpush1.msra.mxu0 0.0
      %1510 = vmatprep.subr.mxu0 0.0
      %1511 = vmatpush1.msra.mxu0 0.0
      %1512 = vmatprep.subr.mxu0 0.0
      %1513 = vmatpush1.msra.mxu0 0.0
      %1514 = vmatprep.subr.mxu0 0.0
      %1515 = vmatpush1.msra.mxu0 0.0
      %1516 = vmatprep.subr.mxu0 0.0
      %1517 = vmatpush1.msra.mxu0 0.0
      %1518 = vmatprep.subr.mxu0 0.0
      %1519 = vmatpush1.msra.mxu0 0.0
      %1520 = vmatprep.subr.mxu0 0.0
      %1521 = vmatpush1.msra.mxu0 0.0
      %1522 = vmatprep.subr.mxu0 0.0
      %1523 = vmatpush1.msra.mxu0 0.0
      %1524 = vmatprep.subr.mxu0 0.0
      %1525 = vmatpush1.msra.mxu0 0.0
      %1526 = vmatprep.subr.mxu0 0.0
      %1527 = vmatpush1.msra.mxu0 0.0
      %1528 = vmatprep.subr.mxu0 0.0
      %1529 = vmatpush1.msra.mxu0 0.0
      %1530 = vmatprep.subr.mxu0 0.0
      %1531 = vmatpush1.msra.mxu0 0.0
      %1532 = vmatprep.mubr.f32.mxu0 0.0
      %1533 = vmatmul.mubr.f32.gmra.mrb[0].mxu0 %v1443
      %v1534 = vpop.f32.mrb[0].mxu0
      %v1535 = vadd.f32 0.0, %v1534
      %v1536 = vpop.f32.mrb[0].mxu0
      %1537 = vmatprep.mubr.f32.mxu0 0.0
      %1538 = vmatmul.mubr.f32.gmra.mrb[0].mxu0 %v1444
      %v1539 = vpop.f32.mrb[0].mxu0
      %v1540 = vadd.f32 0.0, %v1539
      %v1541 = vpop.f32.mrb[0].mxu0
      %1542 = vmatprep.mubr.f32.mxu0 0.0
      %1543 = vmatmul.mubr.f32.gmra.mrb[0].mxu0 %v1445
      %v1544 = vpop.f32.mrb[0].mxu0
      %v1545 = vadd.f32 0.0, %v1544
      %v1546 = vpop.f32.mrb[0].mxu0
      %1547 = vmatprep.mubr.f32.mxu0 0.0
      %1548 = vmatmul.mubr.f32.gmra.mrb[0].mxu0 %v1446
      %v1549 = vpop.f32.mrb[0].mxu0
      %v1550 = vadd.f32 0.0, %v1549
      %v1551 = vpop.f32.mrb[0].mxu0
      %1552 = vmatprep.mubr.f32.mxu0 0.0
      %1553 = vmatmul.mubr.f32.gmra.mrb[0].mxu0 %v1447
      %v1554 = vpop.f32.mrb[0].mxu0
      %v1555 = vadd.f32 0.0, %v1554
      %v1556 = vpop.f32.mrb[0].mxu0
      %1557 = vmatprep.mubr.f32.mxu0 0.0
      %1558 = vmatmul.mubr.f32.gmra.mrb[0].mxu0 %v1448
      %v1559 = vpop.f32.mrb[0].mxu0
      %v1560 = vadd.f32 0.0, %v1559
      %v1561 = vpop.f32.mrb[0].mxu0
      %1562 = vmatprep.mubr.f32.mxu0 0.0
      %1563 = vmatmul.mubr.f32.gmra.mrb[0].mxu0 %v1449
      %v1564 = vpop.f32.mrb[0].mxu0
      %v1565 = vadd.f32 0.0, %v1564
      %v1566 = vpop.f32.mrb[0].mxu0
      %1567 = vmatprep.mubr.f32.mxu0 0.0
      %1568 = vmatmul.mubr.f32.gmra.mrb[0].mxu0 %v1450
      %v1569 = vpop.f32.mrb[0].mxu0
      %v1570 = vadd.f32 0.0, %v1569
      %v1571 = vpop.f32.mrb[0].mxu0
      %1572 = vdwg.mxu0
      %v1573 = vadd.f32 %v1433, %v1535
      %v1574 = vadd.f32 %v1434, %v1540
      %v1575 = vadd.f32 %v1435, %v1545
      %v1576 = vadd.f32 %v1436, %v1550
      %v1577 = vadd.f32 %v1437, %v1555
      %v1578 = vadd.f32 %v1438, %v1560
      %v1579 = vadd.f32 %v1439, %v1565
      %v1580 = vadd.f32 %v1440, %v1570
      %s1581 = sadd.s32 32, %s758
      %s1582 = scalar_lea.vmem [#allocation2], %s1581
      %v1583 = vld [vmem:[%s1582] sm:$0xff]
      %v1584 = vld [vmem:[%s1582 + $0x8] sm:$0xff]
      %v1585 = vld [vmem:[%s1582 + $0x10] sm:$0xff]
      %v1586 = vld [vmem:[%s1582 + $0x18] sm:$0xff]
      %v1587 = vld [vmem:[%s1582 + $0x20] sm:$0xff]
      %v1588 = vld [vmem:[%s1582 + $0x28] sm:$0xff]
      %v1589 = vld [vmem:[%s1582 + $0x30] sm:$0xff]
      %v1590 = vld [vmem:[%s1582 + $0x38] sm:$0xff]
      %s1591 = scalar_lea.vmem %s1, 768
      %v1592 = vld [vmem:[%s1591] sm:$0xff]
      %v1593 = vld [vmem:[%s1591 + $0x8] sm:$0xff]
      %v1594 = vld [vmem:[%s1591 + $0x10] sm:$0xff]
      %v1595 = vld [vmem:[%s1591 + $0x18] sm:$0xff]
      %v1596 = vld [vmem:[%s1591 + $0x20] sm:$0xff]
      %v1597 = vld [vmem:[%s1591 + $0x28] sm:$0xff]
      %v1598 = vld [vmem:[%s1591 + $0x30] sm:$0xff]
      %v1599 = vld [vmem:[%s1591 + $0x38] sm:$0xff]
      %v1600 = vld [vmem:[%s1591 + $0x40] sm:$0xff]
      %v1601 = vld [vmem:[%s1591 + $0x48] sm:$0xff]
      %v1602 = vld [vmem:[%s1591 + $0x50] sm:$0xff]
      %v1603 = vld [vmem:[%s1591 + $0x58] sm:$0xff]
      %v1604 = vld [vmem:[%s1591 + $0x60] sm:$0xff]
      %v1605 = vld [vmem:[%s1591 + $0x68] sm:$0xff]
      %v1606 = vld [vmem:[%s1591 + $0x70] sm:$0xff]
      %v1607 = vld [vmem:[%s1591 + $0x78] sm:$0xff]
      %1608 = vmatprep.subr.mxu0 0.0
      %1609 = vmatpush1.msra.mxu0 %v1592
      %1610 = vmatprep.subr.mxu0 0.0
      %1611 = vmatpush1.msra.mxu0 %v1593
      %1612 = vmatprep.subr.mxu0 0.0
      %1613 = vmatpush1.msra.mxu0 %v1594
      %1614 = vmatprep.subr.mxu0 0.0
      %1615 = vmatpush1.msra.mxu0 %v1595
      %1616 = vmatprep.subr.mxu0 0.0
      %1617 = vmatpush1.msra.mxu0 %v1596
      %1618 = vmatprep.subr.mxu0 0.0
      %1619 = vmatpush1.msra.mxu0 %v1597
      %1620 = vmatprep.subr.mxu0 0.0
      %1621 = vmatpush1.msra.mxu0 %v1598
      %1622 = vmatprep.subr.mxu0 0.0
      %1623 = vmatpush1.msra.mxu0 %v1599
      %1624 = vmatprep.subr.mxu0 0.0
      %1625 = vmatpush1.msra.mxu0 %v1600
      %1626 = vmatprep.subr.mxu0 0.0
      %1627 = vmatpush1.msra.mxu0 %v1601
      %1628 = vmatprep.subr.mxu0 0.0
      %1629 = vmatpush1.msra.mxu0 %v1602
      %1630 = vmatprep.subr.mxu0 0.0
      %1631 = vmatpush1.msra.mxu0 %v1603
      %1632 = vmatprep.subr.mxu0 0.0
      %1633 = vmatpush1.msra.mxu0 %v1604
      %1634 = vmatprep.subr.mxu0 0.0
      %1635 = vmatpush1.msra.mxu0 %v1605
      %1636 = vmatprep.subr.mxu0 0.0
      %1637 = vmatpush1.msra.mxu0 %v1606
      %1638 = vmatprep.subr.mxu0 0.0
      %1639 = vmatpush1.msra.mxu0 %v1607
      %1640 = vmatprep.subr.mxu0 0.0
      %1641 = vmatpush1.msra.mxu0 0.0
      %1642 = vmatprep.subr.mxu0 0.0
      %1643 = vmatpush1.msra.mxu0 0.0
      %1644 = vmatprep.subr.mxu0 0.0
      %1645 = vmatpush1.msra.mxu0 0.0
      %1646 = vmatprep.subr.mxu0 0.0
      %1647 = vmatpush1.msra.mxu0 0.0
      %1648 = vmatprep.subr.mxu0 0.0
      %1649 = vmatpush1.msra.mxu0 0.0
      %1650 = vmatprep.subr.mxu0 0.0
      %1651 = vmatpush1.msra.mxu0 0.0
      %1652 = vmatprep.subr.mxu0 0.0
      %1653 = vmatpush1.msra.mxu0 0.0
      %1654 = vmatprep.subr.mxu0 0.0
      %1655 = vmatpush1.msra.mxu0 0.0
      %1656 = vmatprep.subr.mxu0 0.0
      %1657 = vmatpush1.msra.mxu0 0.0
      %1658 = vmatprep.subr.mxu0 0.0
      %1659 = vmatpush1.msra.mxu0 0.0
      %1660 = vmatprep.subr.mxu0 0.0
      %1661 = vmatpush1.msra.mxu0 0.0
      %1662 = vmatprep.subr.mxu0 0.0
      %1663 = vmatpush1.msra.mxu0 0.0
      %1664 = vmatprep.subr.mxu0 0.0
      %1665 = vmatpush1.msra.mxu0 0.0
      %1666 = vmatprep.subr.mxu0 0.0
      %1667 = vmatpush1.msra.mxu0 0.0
      %1668 = vmatprep.subr.mxu0 0.0
      %1669 = vmatpush1.msra.mxu0 0.0
      %1670 = vmatprep.subr.mxu0 0.0
      %1671 = vmatpush1.msra.mxu0 0.0
      %1672 = vmatprep.mubr.f32.mxu0 0.0
      %1673 = vmatmul.mubr.f32.gmra.mrb[0].mxu0 %v1583
      %v1674 = vpop.f32.mrb[0].mxu0
      %v1675 = vadd.f32 0.0, %v1674
      %v1676 = vpop.f32.mrb[0].mxu0
      %1677 = vmatprep.mubr.f32.mxu0 0.0
      %1678 = vmatmul.mubr.f32.gmra.mrb[0].mxu0 %v1584
      %v1679 = vpop.f32.mrb[0].mxu0
      %v1680 = vadd.f32 0.0, %v1679
      %v1681 = vpop.f32.mrb[0].mxu0
      %1682 = vmatprep.mubr.f32.mxu0 0.0
      %1683 = vmatmul.mubr.f32.gmra.mrb[0].mxu0 %v1585
      %v1684 = vpop.f32.mrb[0].mxu0
      %v1685 = vadd.f32 0.0, %v1684
      %v1686 = vpop.f32.mrb[0].mxu0
      %1687 = vmatprep.mubr.f32.mxu0 0.0
      %1688 = vmatmul.mubr.f32.gmra.mrb[0].mxu0 %v1586
      %v1689 = vpop.f32.mrb[0].mxu0
      %v1690 = vadd.f32 0.0, %v1689
      %v1691 = vpop.f32.mrb[0].mxu0
      %1692 = vmatprep.mubr.f32.mxu0 0.0
      %1693 = vmatmul.mubr.f32.gmra.mrb[0].mxu0 %v1587
      %v1694 = vpop.f32.mrb[0].mxu0
      %v1695 = vadd.f32 0.0, %v1694
      %v1696 = vpop.f32.mrb[0].mxu0
      %1697 = vmatprep.mubr.f32.mxu0 0.0
      %1698 = vmatmul.mubr.f32.gmra.mrb[0].mxu0 %v1588
      %v1699 = vpop.f32.mrb[0].mxu0
      %v1700 = vadd.f32 0.0, %v1699
      %v1701 = vpop.f32.mrb[0].mxu0
      %1702 = vmatprep.mubr.f32.mxu0 0.0
      %1703 = vmatmul.mubr.f32.gmra.mrb[0].mxu0 %v1589
      %v1704 = vpop.f32.mrb[0].mxu0
      %v1705 = vadd.f32 0.0, %v1704
      %v1706 = vpop.f32.mrb[0].mxu0
      %1707 = vmatprep.mubr.f32.mxu0 0.0
      %1708 = vmatmul.mubr.f32.gmra.mrb[0].mxu0 %v1590
      %v1709 = vpop.f32.mrb[0].mxu0
      %v1710 = vadd.f32 0.0, %v1709
      %v1711 = vpop.f32.mrb[0].mxu0
      %1712 = vdwg.mxu0
      %v1713 = vadd.f32 %v1573, %v1675
      %v1714 = vadd.f32 %v1574, %v1680
      %v1715 = vadd.f32 %v1575, %v1685
      %v1716 = vadd.f32 %v1576, %v1690
      %v1717 = vadd.f32 %v1577, %v1695
      %v1718 = vadd.f32 %v1578, %v1700
      %v1719 = vadd.f32 %v1579, %v1705
      %v1720 = vadd.f32 %v1580, %v1710
      %s1721 = sadd.s32 128, %s758
      %s1722 = scalar_lea.vmem [#allocation2], %s1721
      %v1723 = vld [vmem:[%s1722] sm:$0xff]
      %v1724 = vld [vmem:[%s1722 + $0x8] sm:$0xff]
      %v1725 = vld [vmem:[%s1722 + $0x10] sm:$0xff]
      %v1726 = vld [vmem:[%s1722 + $0x18] sm:$0xff]
      %v1727 = vld [vmem:[%s1722 + $0x20] sm:$0xff]
      %v1728 = vld [vmem:[%s1722 + $0x28] sm:$0xff]
      %v1729 = vld [vmem:[%s1722 + $0x30] sm:$0xff]
      %v1730 = vld [vmem:[%s1722 + $0x38] sm:$0xff]
      %s1731 = scalar_lea.vmem %s1, 896
      %v1732 = vld [vmem:[%s1731] sm:$0xff]
      %v1733 = vld [vmem:[%s1731 + $0x8] sm:$0xff]
      %v1734 = vld [vmem:[%s1731 + $0x10] sm:$0xff]
      %v1735 = vld [vmem:[%s1731 + $0x18] sm:$0xff]
      %v1736 = vld [vmem:[%s1731 + $0x20] sm:$0xff]
      %v1737 = vld [vmem:[%s1731 + $0x28] sm:$0xff]
      %v1738 = vld [vmem:[%s1731 + $0x30] sm:$0xff]
      %v1739 = vld [vmem:[%s1731 + $0x38] sm:$0xff]
      %v1740 = vld [vmem:[%s1731 + $0x40] sm:$0xff]
      %v1741 = vld [vmem:[%s1731 + $0x48] sm:$0xff]
      %v1742 = vld [vmem:[%s1731 + $0x50] sm:$0xff]
      %v1743 = vld [vmem:[%s1731 + $0x58] sm:$0xff]
      %v1744 = vld [vmem:[%s1731 + $0x60] sm:$0xff]
      %v1745 = vld [vmem:[%s1731 + $0x68] sm:$0xff]
      %v1746 = vld [vmem:[%s1731 + $0x70] sm:$0xff]
      %v1747 = vld [vmem:[%s1731 + $0x78] sm:$0xff]
      %1748 = vmatprep.subr.mxu0 0.0
      %1749 = vmatpush1.msra.mxu0 %v1732
      %1750 = vmatprep.subr.mxu0 0.0
      %1751 = vmatpush1.msra.mxu0 %v1733
      %1752 = vmatprep.subr.mxu0 0.0
      %1753 = vmatpush1.msra.mxu0 %v1734
      %1754 = vmatprep.subr.mxu0 0.0
      %1755 = vmatpush1.msra.mxu0 %v1735
      %1756 = vmatprep.subr.mxu0 0.0
      %1757 = vmatpush1.msra.mxu0 %v1736
      %1758 = vmatprep.subr.mxu0 0.0
      %1759 = vmatpush1.msra.mxu0 %v1737
      %1760 = vmatprep.subr.mxu0 0.0
      %1761 = vmatpush1.msra.mxu0 %v1738
      %1762 = vmatprep.subr.mxu0 0.0
      %1763 = vmatpush1.msra.mxu0 %v1739
      %1764 = vmatprep.subr.mxu0 0.0
      %1765 = vmatpush1.msra.mxu0 %v1740
      %1766 = vmatprep.subr.mxu0 0.0
      %1767 = vmatpush1.msra.mxu0 %v1741
      %1768 = vmatprep.subr.mxu0 0.0
      %1769 = vmatpush1.msra.mxu0 %v1742
      %1770 = vmatprep.subr.mxu0 0.0
      %1771 = vmatpush1.msra.mxu0 %v1743
      %1772 = vmatprep.subr.mxu0 0.0
      %1773 = vmatpush1.msra.mxu0 %v1744
      %1774 = vmatprep.subr.mxu0 0.0
      %1775 = vmatpush1.msra.mxu0 %v1745
      %1776 = vmatprep.subr.mxu0 0.0
      %1777 = vmatpush1.msra.mxu0 %v1746
      %1778 = vmatprep.subr.mxu0 0.0
      %1779 = vmatpush1.msra.mxu0 %v1747
      %1780 = vmatprep.subr.mxu0 0.0
      %1781 = vmatpush1.msra.mxu0 0.0
      %1782 = vmatprep.subr.mxu0 0.0
      %1783 = vmatpush1.msra.mxu0 0.0
      %1784 = vmatprep.subr.mxu0 0.0
      %1785 = vmatpush1.msra.mxu0 0.0
      %1786 = vmatprep.subr.mxu0 0.0
      %1787 = vmatpush1.msra.mxu0 0.0
      %1788 = vmatprep.subr.mxu0 0.0
      %1789 = vmatpush1.msra.mxu0 0.0
      %1790 = vmatprep.subr.mxu0 0.0
      %1791 = vmatpush1.msra.mxu0 0.0
      %1792 = vmatprep.subr.mxu0 0.0
      %1793 = vmatpush1.msra.mxu0 0.0
      %1794 = vmatprep.subr.mxu0 0.0
      %1795 = vmatpush1.msra.mxu0 0.0
      %1796 = vmatprep.subr.mxu0 0.0
      %1797 = vmatpush1.msra.mxu0 0.0
      %1798 = vmatprep.subr.mxu0 0.0
      %1799 = vmatpush1.msra.mxu0 0.0
      %1800 = vmatprep.subr.mxu0 0.0
      %1801 = vmatpush1.msra.mxu0 0.0
      %1802 = vmatprep.subr.mxu0 0.0
      %1803 = vmatpush1.msra.mxu0 0.0
      %1804 = vmatprep.subr.mxu0 0.0
      %1805 = vmatpush1.msra.mxu0 0.0
      %1806 = vmatprep.subr.mxu0 0.0
      %1807 = vmatpush1.msra.mxu0 0.0
      %1808 = vmatprep.subr.mxu0 0.0
      %1809 = vmatpush1.msra.mxu0 0.0
      %1810 = vmatprep.subr.mxu0 0.0
      %1811 = vmatpush1.msra.mxu0 0.0
      %1812 = vmatprep.mubr.f32.mxu0 0.0
      %1813 = vmatmul.mubr.f32.gmra.mrb[0].mxu0 %v1723
      %v1814 = vpop.f32.mrb[0].mxu0
      %v1815 = vadd.f32 0.0, %v1814
      %v1816 = vpop.f32.mrb[0].mxu0
      %1817 = vmatprep.mubr.f32.mxu0 0.0
      %1818 = vmatmul.mubr.f32.gmra.mrb[0].mxu0 %v1724
      %v1819 = vpop.f32.mrb[0].mxu0
      %v1820 = vadd.f32 0.0, %v1819
      %v1821 = vpop.f32.mrb[0].mxu0
      %1822 = vmatprep.mubr.f32.mxu0 0.0
      %1823 = vmatmul.mubr.f32.gmra.mrb[0].mxu0 %v1725
      %v1824 = vpop.f32.mrb[0].mxu0
      %v1825 = vadd.f32 0.0, %v1824
      %v1826 = vpop.f32.mrb[0].mxu0
      %1827 = vmatprep.mubr.f32.mxu0 0.0
      %1828 = vmatmul.mubr.f32.gmra.mrb[0].mxu0 %v1726
      %v1829 = vpop.f32.mrb[0].mxu0
      %v1830 = vadd.f32 0.0, %v1829
      %v1831 = vpop.f32.mrb[0].mxu0
      %1832 = vmatprep.mubr.f32.mxu0 0.0
      %1833 = vmatmul.mubr.f32.gmra.mrb[0].mxu0 %v1727
      %v1834 = vpop.f32.mrb[0].mxu0
      %v1835 = vadd.f32 0.0, %v1834
      %v1836 = vpop.f32.mrb[0].mxu0
      %1837 = vmatprep.mubr.f32.mxu0 0.0
      %1838 = vmatmul.mubr.f32.gmra.mrb[0].mxu0 %v1728
      %v1839 = vpop.f32.mrb[0].mxu0
      %v1840 = vadd.f32 0.0, %v1839
      %v1841 = vpop.f32.mrb[0].mxu0
      %1842 = vmatprep.mubr.f32.mxu0 0.0
      %1843 = vmatmul.mubr.f32.gmra.mrb[0].mxu0 %v1729
      %v1844 = vpop.f32.mrb[0].mxu0
      %v1845 = vadd.f32 0.0, %v1844
      %v1846 = vpop.f32.mrb[0].mxu0
      %1847 = vmatprep.mubr.f32.mxu0 0.0
      %1848 = vmatmul.mubr.f32.gmra.mrb[0].mxu0 %v1730
      %v1849 = vpop.f32.mrb[0].mxu0
      %v1850 = vadd.f32 0.0, %v1849
      %v1851 = vpop.f32.mrb[0].mxu0
      %1852 = vdwg.mxu0
      %v1853 = vadd.f32 %v1713, %v1815
      %v1854 = vadd.f32 %v1714, %v1820
      %v1855 = vadd.f32 %v1715, %v1825
      %v1856 = vadd.f32 %v1716, %v1830
      %v1857 = vadd.f32 %v1717, %v1835
      %v1858 = vadd.f32 %v1718, %v1840
      %v1859 = vadd.f32 %v1719, %v1845
      %v1860 = vadd.f32 %v1720, %v1850
      %s1861 = sadd.s32 224, %s758
      %s1862 = scalar_lea.vmem [#allocation2], %s1861
      %v1863 = vld [vmem:[%s1862] sm:$0xff]
      %v1864 = vld [vmem:[%s1862 + $0x8] sm:$0xff]
      %v1865 = vld [vmem:[%s1862 + $0x10] sm:$0xff]
      %v1866 = vld [vmem:[%s1862 + $0x18] sm:$0xff]
      %v1867 = vld [vmem:[%s1862 + $0x20] sm:$0xff]
      %v1868 = vld [vmem:[%s1862 + $0x28] sm:$0xff]
      %v1869 = vld [vmem:[%s1862 + $0x30] sm:$0xff]
      %v1870 = vld [vmem:[%s1862 + $0x38] sm:$0xff]
      %s1871 = scalar_lea.vmem %s1, 1024
      %v1872 = vld [vmem:[%s1871] sm:$0xff]
      %v1873 = vld [vmem:[%s1871 + $0x8] sm:$0xff]
      %v1874 = vld [vmem:[%s1871 + $0x10] sm:$0xff]
      %v1875 = vld [vmem:[%s1871 + $0x18] sm:$0xff]
      %v1876 = vld [vmem:[%s1871 + $0x20] sm:$0xff]
      %v1877 = vld [vmem:[%s1871 + $0x28] sm:$0xff]
      %v1878 = vld [vmem:[%s1871 + $0x30] sm:$0xff]
      %v1879 = vld [vmem:[%s1871 + $0x38] sm:$0xff]
      %v1880 = vld [vmem:[%s1871 + $0x40] sm:$0xff]
      %v1881 = vld [vmem:[%s1871 + $0x48] sm:$0xff]
      %v1882 = vld [vmem:[%s1871 + $0x50] sm:$0xff]
      %v1883 = vld [vmem:[%s1871 + $0x58] sm:$0xff]
      %v1884 = vld [vmem:[%s1871 + $0x60] sm:$0xff]
      %v1885 = vld [vmem:[%s1871 + $0x68] sm:$0xff]
      %v1886 = vld [vmem:[%s1871 + $0x70] sm:$0xff]
      %v1887 = vld [vmem:[%s1871 + $0x78] sm:$0xff]
      %1888 = vmatprep.subr.mxu0 0.0
      %1889 = vmatpush1.msra.mxu0 %v1872
      %1890 = vmatprep.subr.mxu0 0.0
      %1891 = vmatpush1.msra.mxu0 %v1873
      %1892 = vmatprep.subr.mxu0 0.0
      %1893 = vmatpush1.msra.mxu0 %v1874
      %1894 = vmatprep.subr.mxu0 0.0
      %1895 = vmatpush1.msra.mxu0 %v1875
      %1896 = vmatprep.subr.mxu0 0.0
      %1897 = vmatpush1.msra.mxu0 %v1876
      %1898 = vmatprep.subr.mxu0 0.0
      %1899 = vmatpush1.msra.mxu0 %v1877
      %1900 = vmatprep.subr.mxu0 0.0
      %1901 = vmatpush1.msra.mxu0 %v1878
      %1902 = vmatprep.subr.mxu0 0.0
      %1903 = vmatpush1.msra.mxu0 %v1879
      %1904 = vmatprep.subr.mxu0 0.0
      %1905 = vmatpush1.msra.mxu0 %v1880
      %1906 = vmatprep.subr.mxu0 0.0
      %1907 = vmatpush1.msra.mxu0 %v1881
      %1908 = vmatprep.subr.mxu0 0.0
      %1909 = vmatpush1.msra.mxu0 %v1882
      %1910 = vmatprep.subr.mxu0 0.0
      %1911 = vmatpush1.msra.mxu0 %v1883
      %1912 = vmatprep.subr.mxu0 0.0
      %1913 = vmatpush1.msra.mxu0 %v1884
      %1914 = vmatprep.subr.mxu0 0.0
      %1915 = vmatpush1.msra.mxu0 %v1885
      %1916 = vmatprep.subr.mxu0 0.0
      %1917 = vmatpush1.msra.mxu0 %v1886
      %1918 = vmatprep.subr.mxu0 0.0
      %1919 = vmatpush1.msra.mxu0 %v1887
      %1920 = vmatprep.subr.mxu0 0.0
      %1921 = vmatpush1.msra.mxu0 0.0
      %1922 = vmatprep.subr.mxu0 0.0
      %1923 = vmatpush1.msra.mxu0 0.0
      %1924 = vmatprep.subr.mxu0 0.0
      %1925 = vmatpush1.msra.mxu0 0.0
      %1926 = vmatprep.subr.mxu0 0.0
      %1927 = vmatpush1.msra.mxu0 0.0
      %1928 = vmatprep.subr.mxu0 0.0
      %1929 = vmatpush1.msra.mxu0 0.0
      %1930 = vmatprep.subr.mxu0 0.0
      %1931 = vmatpush1.msra.mxu0 0.0
      %1932 = vmatprep.subr.mxu0 0.0
      %1933 = vmatpush1.msra.mxu0 0.0
      %1934 = vmatprep.subr.mxu0 0.0
      %1935 = vmatpush1.msra.mxu0 0.0
      %1936 = vmatprep.subr.mxu0 0.0
      %1937 = vmatpush1.msra.mxu0 0.0
      %1938 = vmatprep.subr.mxu0 0.0
      %1939 = vmatpush1.msra.mxu0 0.0
      %1940 = vmatprep.subr.mxu0 0.0
      %1941 = vmatpush1.msra.mxu0 0.0
      %1942 = vmatprep.subr.mxu0 0.0
      %1943 = vmatpush1.msra.mxu0 0.0
      %1944 = vmatprep.subr.mxu0 0.0
      %1945 = vmatpush1.msra.mxu0 0.0
      %1946 = vmatprep.subr.mxu0 0.0
      %1947 = vmatpush1.msra.mxu0 0.0
      %1948 = vmatprep.subr.mxu0 0.0
      %1949 = vmatpush1.msra.mxu0 0.0
      %1950 = vmatprep.subr.mxu0 0.0
      %1951 = vmatpush1.msra.mxu0 0.0
      %1952 = vmatprep.mubr.f32.mxu0 0.0
      %1953 = vmatmul.mubr.f32.gmra.mrb[0].mxu0 %v1863
      %v1954 = vpop.f32.mrb[0].mxu0
      %v1955 = vadd.f32 0.0, %v1954
      %v1956 = vpop.f32.mrb[0].mxu0
      %1957 = vmatprep.mubr.f32.mxu0 0.0
      %1958 = vmatmul.mubr.f32.gmra.mrb[0].mxu0 %v1864
      %v1959 = vpop.f32.mrb[0].mxu0
      %v1960 = vadd.f32 0.0, %v1959
      %v1961 = vpop.f32.mrb[0].mxu0
      %1962 = vmatprep.mubr.f32.mxu0 0.0
      %1963 = vmatmul.mubr.f32.gmra.mrb[0].mxu0 %v1865
      %v1964 = vpop.f32.mrb[0].mxu0
      %v1965 = vadd.f32 0.0, %v1964
      %v1966 = vpop.f32.mrb[0].mxu0
      %1967 = vmatprep.mubr.f32.mxu0 0.0
      %1968 = vmatmul.mubr.f32.gmra.mrb[0].mxu0 %v1866
      %v1969 = vpop.f32.mrb[0].mxu0
      %v1970 = vadd.f32 0.0, %v1969
      %v1971 = vpop.f32.mrb[0].mxu0
      %1972 = vmatprep.mubr.f32.mxu0 0.0
      %1973 = vmatmul.mubr.f32.gmra.mrb[0].mxu0 %v1867
      %v1974 = vpop.f32.mrb[0].mxu0
      %v1975 = vadd.f32 0.0, %v1974
      %v1976 = vpop.f32.mrb[0].mxu0
      %1977 = vmatprep.mubr.f32.mxu0 0.0
      %1978 = vmatmul.mubr.f32.gmra.mrb[0].mxu0 %v1868
      %v1979 = vpop.f32.mrb[0].mxu0
      %v1980 = vadd.f32 0.0, %v1979
      %v1981 = vpop.f32.mrb[0].mxu0
      %1982 = vmatprep.mubr.f32.mxu0 0.0
      %1983 = vmatmul.mubr.f32.gmra.mrb[0].mxu0 %v1869
      %v1984 = vpop.f32.mrb[0].mxu0
      %v1985 = vadd.f32 0.0, %v1984
      %v1986 = vpop.f32.mrb[0].mxu0
      %1987 = vmatprep.mubr.f32.mxu0 0.0
      %1988 = vmatmul.mubr.f32.gmra.mrb[0].mxu0 %v1870
      %v1989 = vpop.f32.mrb[0].mxu0
      %v1990 = vadd.f32 0.0, %v1989
      %v1991 = vpop.f32.mrb[0].mxu0
      %1992 = vdwg.mxu0
      %v1993 = vadd.f32 %v1853, %v1955
      %v1994 = vadd.f32 %v1854, %v1960
      %v1995 = vadd.f32 %v1855, %v1965
      %v1996 = vadd.f32 %v1856, %v1970
      %v1997 = vadd.f32 %v1857, %v1975
      %v1998 = vadd.f32 %v1858, %v1980
      %v1999 = vadd.f32 %v1859, %v1985
      %v2000 = vadd.f32 %v1860, %v1990
      %v2001 = vld [vmem:[%s2] sm:$0x1]
      %v2002 = vld [vmem:[%s3] sm:$0x1]
      %v2003 = vlaneseq
      %v2004 = vand.u32 %v2003, 127
      %vm2005 = vcmp.lt.s32.totalorder %v2004, 4
      %v2006 = vsel %vm2005, %v1993, 0.0
      %v2007 = vsel %vm2005, %v1994, 0.0
      %v2008 = vsel %vm2005, %v1995, 0.0
      %v2009 = vsel %vm2005, %v1996, 0.0
      %v2010 = vsel %vm2005, %v1997, 0.0
      %v2011 = vsel %vm2005, %v1998, 0.0
      %v2012 = vsel %vm2005, %v1999, 0.0
      %v2013 = vsel %vm2005, %v2000, 0.0
      %2014 = vadd.xlane.f32.xlu0 %v2006
      %v2015 = vpop.xlane.xlu0 %2014
      %2016 = vadd.xlane.f32.xlu0 %v2007
      %v2017 = vpop.xlane.xlu0 %2016
      %2018 = vadd.xlane.f32.xlu0 %v2008
      %v2019 = vpop.xlane.xlu0 %2018
      %2020 = vadd.xlane.f32.xlu0 %v2009
      %v2021 = vpop.xlane.xlu0 %2020
      %2022 = vadd.xlane.f32.xlu0 %v2010
      %v2023 = vpop.xlane.xlu0 %2022
      %2024 = vadd.xlane.f32.xlu0 %v2011
      %v2025 = vpop.xlane.xlu0 %2024
      %2026 = vadd.xlane.f32.xlu0 %v2012
      %v2027 = vpop.xlane.xlu0 %2026
      %2028 = vadd.xlane.f32.xlu0 %v2013
      %v2029 = vpop.xlane.xlu0 %2028
      %v2030 = vmul.f32 %v2015, 0.25
      %v2031 = vmul.f32 %v2017, 0.25
      %v2032 = vmul.f32 %v2019, 0.25
      %v2033 = vmul.f32 %v2021, 0.25
      %v2034 = vmul.f32 %v2023, 0.25
      %v2035 = vmul.f32 %v2025, 0.25
      %v2036 = vmul.f32 %v2027, 0.25
      %v2037 = vmul.f32 %v2029, 0.25
      %v2038 = vsub.f32 %v1993, %v2030
      %v2039 = vsub.f32 %v1994, %v2031
      %v2040 = vsub.f32 %v1995, %v2032
      %v2041 = vsub.f32 %v1996, %v2033
      %v2042 = vsub.f32 %v1997, %v2034
      %v2043 = vsub.f32 %v1998, %v2035
      %v2044 = vsub.f32 %v1999, %v2036
      %v2045 = vsub.f32 %v2000, %v2037
      %v2046 = vsel %vm2005, %v2038, 0.0
      %v2047 = vsel %vm2005, %v2039, 0.0
      %v2048 = vsel %vm2005, %v2040, 0.0
      %v2049 = vsel %vm2005, %v2041, 0.0
      %v2050 = vsel %vm2005, %v2042, 0.0
      %v2051 = vsel %vm2005, %v2043, 0.0
      %v2052 = vsel %vm2005, %v2044, 0.0
      %v2053 = vsel %vm2005, %v2045, 0.0
      %v2054 = vmul.f32 %v2046, %v2046
      %v2055 = vmul.f32 %v2047, %v2047
      %v2056 = vmul.f32 %v2048, %v2048
      %v2057 = vmul.f32 %v2049, %v2049
      %v2058 = vmul.f32 %v2050, %v2050
      %v2059 = vmul.f32 %v2051, %v2051
      %v2060 = vmul.f32 %v2052, %v2052
      %v2061 = vmul.f32 %v2053, %v2053
      %2062 = vadd.xlane.f32.xlu0 %v2054
      %v2063 = vpop.xlane.xlu0 %2062
      %2064 = vadd.xlane.f32.xlu0 %v2055
      %v2065 = vpop.xlane.xlu0 %2064
      %2066 = vadd.xlane.f32.xlu0 %v2056
      %v2067 = vpop.xlane.xlu0 %2066
      %2068 = vadd.xlane.f32.xlu0 %v2057
      %v2069 = vpop.xlane.xlu0 %2068
      %2070 = vadd.xlane.f32.xlu0 %v2058
      %v2071 = vpop.xlane.xlu0 %2070
      %2072 = vadd.xlane.f32.xlu0 %v2059
      %v2073 = vpop.xlane.xlu0 %2072
      %2074 = vadd.xlane.f32.xlu0 %v2060
      %v2075 = vpop.xlane.xlu0 %2074
      %2076 = vadd.xlane.f32.xlu0 %v2061
      %v2077 = vpop.xlane.xlu0 %2076
      %v2078 = vmul.f32 %v2063, 0.25
      %v2079 = vmul.f32 %v2065, 0.25
      %v2080 = vmul.f32 %v2067, 0.25
      %v2081 = vmul.f32 %v2069, 0.25
      %v2082 = vmul.f32 %v2071, 0.25
      %v2083 = vmul.f32 %v2073, 0.25
      %v2084 = vmul.f32 %v2075, 0.25
      %v2085 = vmul.f32 %v2077, 0.25
      %v2086 = vadd.f32 %v2078, 1e-06
      %v2087 = vadd.f32 %v2079, 1e-06
      %v2088 = vadd.f32 %v2080, 1e-06
      %v2089 = vadd.f32 %v2081, 1e-06
      %v2090 = vadd.f32 %v2082, 1e-06
      %v2091 = vadd.f32 %v2083, 1e-06
      %v2092 = vadd.f32 %v2084, 1e-06
      %v2093 = vadd.f32 %v2085, 1e-06
      %v2094 = vrsqrt.pop %v2086
      %v2095 = vrsqrt.pop %v2087
      %v2096 = vrsqrt.pop %v2088
      %v2097 = vrsqrt.pop %v2089
      %v2098 = vrsqrt.pop %v2090
      %v2099 = vrsqrt.pop %v2091
      %v2100 = vrsqrt.pop %v2092
      %v2101 = vrsqrt.pop %v2093
      %v2102 = vmul.f32 %v2046, %v2094
      %v2103 = vmul.f32 %v2047, %v2095
      %v2104 = vmul.f32 %v2048, %v2096
      %v2105 = vmul.f32 %v2049, %v2097
      %v2106 = vmul.f32 %v2050, %v2098
      %v2107 = vmul.f32 %v2051, %v2099
      %v2108 = vmul.f32 %v2052, %v2100
      %v2109 = vmul.f32 %v2053, %v2101
      %v2111 = vlaneseq
      %v2112 = vshrl.u32 %v2111, 7
      %v2113 = vsub.s32 0, %v2112
      %v2114 = vrot.slane %v2001, %v2113
      %v2116 = vmul.f32 %v2102, %v2114
      %v2117 = vmul.f32 %v2103, %v2114
      %v2118 = vmul.f32 %v2104, %v2114
      %v2119 = vmul.f32 %v2105, %v2114
      %v2120 = vmul.f32 %v2106, %v2114
      %v2121 = vmul.f32 %v2107, %v2114
      %v2122 = vmul.f32 %v2108, %v2114
      %v2123 = vmul.f32 %v2109, %v2114
      %v2125 = vlaneseq
      %v2126 = vshrl.u32 %v2125, 7
      %v2127 = vsub.s32 0, %v2126
      %v2128 = vrot.slane %v2002, %v2127
      %v2130 = vadd.f32 %v2116, %v2128
      %v2131 = vadd.f32 %v2117, %v2128
      %v2132 = vadd.f32 %v2118, %v2128
      %v2133 = vadd.f32 %v2119, %v2128
      %v2134 = vadd.f32 %v2120, %v2128
      %v2135 = vadd.f32 %v2121, %v2128
      %v2136 = vadd.f32 %v2122, %v2128
      %v2137 = vadd.f32 %v2123, %v2128
      %v2138 = vld [vmem:[%s224] sm:$0xff]
      %v2139 = vld [vmem:[%s224 + $0x8] sm:$0xff]
      %v2140 = vld [vmem:[%s224 + $0x10] sm:$0xff]
      %v2141 = vld [vmem:[%s224 + $0x18] sm:$0xff]
      %v2142 = vld [vmem:[%s224 + $0x20] sm:$0xff]
      %v2143 = vld [vmem:[%s224 + $0x28] sm:$0xff]
      %v2144 = vld [vmem:[%s224 + $0x30] sm:$0xff]
      %v2145 = vld [vmem:[%s224 + $0x38] sm:$0xff]
      %v2146 = vadd.f32 %v2130, %v2138
      %v2147 = vadd.f32 %v2131, %v2139
      %v2148 = vadd.f32 %v2132, %v2140
      %v2149 = vadd.f32 %v2133, %v2141
      %v2150 = vadd.f32 %v2134, %v2142
      %v2151 = vadd.f32 %v2135, %v2143
      %v2152 = vadd.f32 %v2136, %v2144
      %v2153 = vadd.f32 %v2137, %v2145
      %v2154 = vmul.f32 %v2146, 0.5
      %v2155 = vmul.f32 %v2147, 0.5
      %v2156 = vmul.f32 %v2148, 0.5
      %v2157 = vmul.f32 %v2149, 0.5
      %v2158 = vmul.f32 %v2150, 0.5
      %v2159 = vmul.f32 %v2151, 0.5
      %v2160 = vmul.f32 %v2152, 0.5
      %v2161 = vmul.f32 %v2153, 0.5
      %v2162 = vmul.f32 %v2146, 0.70710677
      %v2163 = vmul.f32 %v2147, 0.70710677
      %v2164 = vmul.f32 %v2148, 0.70710677
      %v2165 = vmul.f32 %v2149, 0.70710677
      %v2166 = vmul.f32 %v2150, 0.70710677
      %v2167 = vmul.f32 %v2151, 0.70710677
      %v2168 = vmul.f32 %v2152, 0.70710677
      %v2169 = vmul.f32 %v2153, 0.70710677
      %v2170 = vmax.f32 %v2162, -4.0
      %v2171 = vmax.f32 %v2163, -4.0
      %v2172 = vmax.f32 %v2164, -4.0
      %v2173 = vmax.f32 %v2165, -4.0
      %v2174 = vmax.f32 %v2166, -4.0
      %v2175 = vmax.f32 %v2167, -4.0
      %v2176 = vmax.f32 %v2168, -4.0
      %v2177 = vmax.f32 %v2169, -4.0
      %v2178 = vmin.f32 %v2170, 4.0
      %v2179 = vmin.f32 %v2171, 4.0
      %v2180 = vmin.f32 %v2172, 4.0
      %v2181 = vmin.f32 %v2173, 4.0
      %v2182 = vmin.f32 %v2174, 4.0
      %v2183 = vmin.f32 %v2175, 4.0
      %v2184 = vmin.f32 %v2176, 4.0
      %v2185 = vmin.f32 %v2177, 4.0
      %v2186 = vmul.f32 %v2178, %v2178
      %v2187 = vmul.f32 %v2179, %v2179
      %v2188 = vmul.f32 %v2180, %v2180
      %v2189 = vmul.f32 %v2181, %v2181
      %v2190 = vmul.f32 %v2182, %v2182
      %v2191 = vmul.f32 %v2183, %v2183
      %v2192 = vmul.f32 %v2184, %v2184
      %v2193 = vmul.f32 %v2185, %v2185
      %v2194 = vmul.f32 %v2186, -2.7261424e-10
      %v2195 = vmul.f32 %v2187, -2.7261424e-10
      %v2196 = vmul.f32 %v2188, -2.7261424e-10
      %v2197 = vmul.f32 %v2189, -2.7261424e-10
      %v2198 = vmul.f32 %v2190, -2.7261424e-10
      %v2199 = vmul.f32 %v2191, -2.7261424e-10
      %v2200 = vmul.f32 %v2192, -2.7261424e-10
      %v2201 = vmul.f32 %v2193, -2.7261424e-10
      %v2202 = vadd.f32 %v2194, 2.7706815e-08
      %v2203 = vadd.f32 %v2195, 2.7706815e-08
      %v2204 = vadd.f32 %v2196, 2.7706815e-08
      %v2205 = vadd.f32 %v2197, 2.7706815e-08
      %v2206 = vadd.f32 %v2198, 2.7706815e-08
      %v2207 = vadd.f32 %v2199, 2.7706815e-08
      %v2208 = vadd.f32 %v2200, 2.7706815e-08
      %v2209 = vadd.f32 %v2201, 2.7706815e-08
      %v2210 = vmul.f32 %v2202, %v2186
      %v2211 = vmul.f32 %v2203, %v2187
      %v2212 = vmul.f32 %v2204, %v2188
      %v2213 = vmul.f32 %v2205, %v2189
      %v2214 = vmul.f32 %v2206, %v2190
      %v2215 = vmul.f32 %v2207, %v2191
      %v2216 = vmul.f32 %v2208, %v2192
      %v2217 = vmul.f32 %v2209, %v2193
      %v2218 = vadd.f32 %v2210, -2.101024e-06
      %v2219 = vadd.f32 %v2211, -2.101024e-06
      %v2220 = vadd.f32 %v2212, -2.101024e-06
      %v2221 = vadd.f32 %v2213, -2.101024e-06
      %v2222 = vadd.f32 %v2214, -2.101024e-06
      %v2223 = vadd.f32 %v2215, -2.101024e-06
      %v2224 = vadd.f32 %v2216, -2.101024e-06
      %v2225 = vadd.f32 %v2217, -2.101024e-06
      %v2226 = vmul.f32 %v2218, %v2186
      %v2227 = vmul.f32 %v2219, %v2187
      %v2228 = vmul.f32 %v2220, %v2188
      %v2229 = vmul.f32 %v2221, %v2189
      %v2230 = vmul.f32 %v2222, %v2190
      %v2231 = vmul.f32 %v2223, %v2191
      %v2232 = vmul.f32 %v2224, %v2192
      %v2233 = vmul.f32 %v2225, %v2193
      %v2234 = vadd.f32 %v2226, -5.6925062e-05
      %v2235 = vadd.f32 %v2227, -5.6925062e-05
      %v2236 = vadd.f32 %v2228, -5.6925062e-05
      %v2237 = vadd.f32 %v2229, -5.6925062e-05
      %v2238 = vadd.f32 %v2230, -5.6925062e-05
      %v2239 = vadd.f32 %v2231, -5.6925062e-05
      %v2240 = vadd.f32 %v2232, -5.6925062e-05
      %v2241 = vadd.f32 %v2233, -5.6925062e-05
      %v2242 = vmul.f32 %v2234, %v2186
      %v2243 = vmul.f32 %v2235, %v2187
      %v2244 = vmul.f32 %v2236, %v2188
      %v2245 = vmul.f32 %v2237, %v2189
      %v2246 = vmul.f32 %v2238, %v2190
      %v2247 = vmul.f32 %v2239, %v2191
      %v2248 = vmul.f32 %v2240, %v2192
      %v2249 = vmul.f32 %v2241, %v2193
      %v2250 = vadd.f32 %v2242, -0.00073499064
      %v2251 = vadd.f32 %v2243, -0.00073499064
      %v2252 = vadd.f32 %v2244, -0.00073499064
      %v2253 = vadd.f32 %v2245, -0.00073499064
      %v2254 = vadd.f32 %v2246, -0.00073499064
      %v2255 = vadd.f32 %v2247, -0.00073499064
      %v2256 = vadd.f32 %v2248, -0.00073499064
      %v2257 = vadd.f32 %v2249, -0.00073499064
      %v2258 = vmul.f32 %v2250, %v2186
      %v2259 = vmul.f32 %v2251, %v2187
      %v2260 = vmul.f32 %v2252, %v2188
      %v2261 = vmul.f32 %v2253, %v2189
      %v2262 = vmul.f32 %v2254, %v2190
      %v2263 = vmul.f32 %v2255, %v2191
      %v2264 = vmul.f32 %v2256, %v2192
      %v2265 = vmul.f32 %v2257, %v2193
      %v2266 = vadd.f32 %v2258, -0.0029546
      %v2267 = vadd.f32 %v2259, -0.0029546
      %v2268 = vadd.f32 %v2260, -0.0029546
      %v2269 = vadd.f32 %v2261, -0.0029546
      %v2270 = vadd.f32 %v2262, -0.0029546
      %v2271 = vadd.f32 %v2263, -0.0029546
      %v2272 = vadd.f32 %v2264, -0.0029546
      %v2273 = vadd.f32 %v2265, -0.0029546
      %v2274 = vmul.f32 %v2266, %v2186
      %v2275 = vmul.f32 %v2267, %v2187
      %v2276 = vmul.f32 %v2268, %v2188
      %v2277 = vmul.f32 %v2269, %v2189
      %v2278 = vmul.f32 %v2270, %v2190
      %v2279 = vmul.f32 %v2271, %v2191
      %v2280 = vmul.f32 %v2272, %v2192
      %v2281 = vmul.f32 %v2273, %v2193
      %v2282 = vadd.f32 %v2274, -0.016096033
      %v2283 = vadd.f32 %v2275, -0.016096033
      %v2284 = vadd.f32 %v2276, -0.016096033
      %v2285 = vadd.f32 %v2277, -0.016096033
      %v2286 = vadd.f32 %v2278, -0.016096033
      %v2287 = vadd.f32 %v2279, -0.016096033
      %v2288 = vadd.f32 %v2280, -0.016096033
      %v2289 = vadd.f32 %v2281, -0.016096033
      %v2290 = vmul.f32 %v2282, %v2178
      %v2291 = vmul.f32 %v2283, %v2179
      %v2292 = vmul.f32 %v2284, %v2180
      %v2293 = vmul.f32 %v2285, %v2181
      %v2294 = vmul.f32 %v2286, %v2182
      %v2295 = vmul.f32 %v2287, %v2183
      %v2296 = vmul.f32 %v2288, %v2184
      %v2297 = vmul.f32 %v2289, %v2185
      %v2298 = vmul.f32 %v2186, -1.45660715e-05
      %v2299 = vmul.f32 %v2187, -1.45660715e-05
      %v2300 = vmul.f32 %v2188, -1.45660715e-05
      %v2301 = vmul.f32 %v2189, -1.45660715e-05
      %v2302 = vmul.f32 %v2190, -1.45660715e-05
      %v2303 = vmul.f32 %v2191, -1.45660715e-05
      %v2304 = vmul.f32 %v2192, -1.45660715e-05
      %v2305 = vmul.f32 %v2193, -1.45660715e-05
      %v2306 = vadd.f32 %v2298, -0.00021337405
      %v2307 = vadd.f32 %v2299, -0.00021337405
      %v2308 = vadd.f32 %v2300, -0.00021337405
      %v2309 = vadd.f32 %v2301, -0.00021337405
      %v2310 = vadd.f32 %v2302, -0.00021337405
      %v2311 = vadd.f32 %v2303, -0.00021337405
      %v2312 = vadd.f32 %v2304, -0.00021337405
      %v2313 = vadd.f32 %v2305, -0.00021337405
      %v2314 = vmul.f32 %v2306, %v2186
      %v2315 = vmul.f32 %v2307, %v2187
      %v2316 = vmul.f32 %v2308, %v2188
      %v2317 = vmul.f32 %v2309, %v2189
      %v2318 = vmul.f32 %v2310, %v2190
      %v2319 = vmul.f32 %v2311, %v2191
      %v2320 = vmul.f32 %v2312, %v2192
      %v2321 = vmul.f32 %v2313, %v2193
      %v2322 = vadd.f32 %v2314, -0.001682827
      %v2323 = vadd.f32 %v2315, -0.001682827
      %v2324 = vadd.f32 %v2316, -0.001682827
      %v2325 = vadd.f32 %v2317, -0.001682827
      %v2326 = vadd.f32 %v2318, -0.001682827
      %v2327 = vadd.f32 %v2319, -0.001682827
      %v2328 = vadd.f32 %v2320, -0.001682827
      %v2329 = vadd.f32 %v2321, -0.001682827
      %v2330 = vmul.f32 %v2322, %v2186
      %v2331 = vmul.f32 %v2323, %v2187
      %v2332 = vmul.f32 %v2324, %v2188
      %v2333 = vmul.f32 %v2325, %v2189
      %v2334 = vmul.f32 %v2326, %v2190
      %v2335 = vmul.f32 %v2327, %v2191
      %v2336 = vmul.f32 %v2328, %v2192
      %v2337 = vmul.f32 %v2329, %v2193
      %v2338 = vadd.f32 %v2330, -0.0073733293
      %v2339 = vadd.f32 %v2331, -0.0073733293
      %v2340 = vadd.f32 %v2332, -0.0073733293
      %v2341 = vadd.f32 %v2333, -0.0073733293
      %v2342 = vadd.f32 %v2334, -0.0073733293
      %v2343 = vadd.f32 %v2335, -0.0073733293
      %v2344 = vadd.f32 %v2336, -0.0073733293
      %v2345 = vadd.f32 %v2337, -0.0073733293
      %v2346 = vmul.f32 %v2338, %v2186
      %v2347 = vmul.f32 %v2339, %v2187
      %v2348 = vmul.f32 %v2340, %v2188
      %v2349 = vmul.f32 %v2341, %v2189
      %v2350 = vmul.f32 %v2342, %v2190
      %v2351 = vmul.f32 %v2343, %v2191
      %v2352 = vmul.f32 %v2344, %v2192
      %v2353 = vmul.f32 %v2345, %v2193
      %v2354 = vadd.f32 %v2346, -0.014264739
      %v2355 = vadd.f32 %v2347, -0.014264739
      %v2356 = vadd.f32 %v2348, -0.014264739
      %v2357 = vadd.f32 %v2349, -0.014264739
      %v2358 = vadd.f32 %v2350, -0.014264739
      %v2359 = vadd.f32 %v2351, -0.014264739
      %v2360 = vadd.f32 %v2352, -0.014264739
      %v2361 = vadd.f32 %v2353, -0.014264739
      %v2362 = vrcp.pop %v2354
      %v2363 = vrcp.pop %v2355
      %v2364 = vrcp.pop %v2356
      %v2365 = vrcp.pop %v2357
      %v2366 = vrcp.pop %v2358
      %v2367 = vrcp.pop %v2359
      %v2368 = vrcp.pop %v2360
      %v2369 = vrcp.pop %v2361
      %v2370 = vmul.f32 %v2290, %v2362
      %v2371 = vmul.f32 %v2291, %v2363
      %v2372 = vmul.f32 %v2292, %v2364
      %v2373 = vmul.f32 %v2293, %v2365
      %v2374 = vmul.f32 %v2294, %v2366
      %v2375 = vmul.f32 %v2295, %v2367
      %v2376 = vmul.f32 %v2296, %v2368
      %v2377 = vmul.f32 %v2297, %v2369
      %v2378 = vadd.f32 %v2370, 1.0
      %v2379 = vadd.f32 %v2371, 1.0
      %v2380 = vadd.f32 %v2372, 1.0
      %v2381 = vadd.f32 %v2373, 1.0
      %v2382 = vadd.f32 %v2374, 1.0
      %v2383 = vadd.f32 %v2375, 1.0
      %v2384 = vadd.f32 %v2376, 1.0
      %v2385 = vadd.f32 %v2377, 1.0
      %v2386 = vmul.f32 %v2154, %v2378
      %v2387 = vmul.f32 %v2155, %v2379
      %v2388 = vmul.f32 %v2156, %v2380
      %v2389 = vmul.f32 %v2157, %v2381
      %v2390 = vmul.f32 %v2158, %v2382
      %v2391 = vmul.f32 %v2159, %v2383
      %v2392 = vmul.f32 %v2160, %v2384
      %v2393 = vmul.f32 %v2161, %v2385
      %2394 = vst [vmem:[%s234] sm:$0xff] %v2386
      %2395 = vst [vmem:[%s234 + $0x8] sm:$0xff] %v2387
      %2396 = vst [vmem:[%s234 + $0x10] sm:$0xff] %v2388
      %2397 = vst [vmem:[%s234 + $0x18] sm:$0xff] %v2389
      %2398 = vst [vmem:[%s234 + $0x20] sm:$0xff] %v2390
      %2399 = vst [vmem:[%s234 + $0x28] sm:$0xff] %v2391
      %2400 = vst [vmem:[%s234 + $0x30] sm:$0xff] %v2392
      %2401 = vst [vmem:[%s234 + $0x38] sm:$0xff] %v2393
      %s2402 = smul.u32 %s20, 4
      %s2403 = sadd.s32 %s2402, %s21
      %s2404 = smul.u32 8, %s2403
      %p2405 = scmp.lt.s32.totalorder %s2404, 63
      %s2406 = scalar_select %p2405, %s2404, 63
      %s2407 = smul.addr %s2406, 8
      %s2408 = scalar_lea.vmem %s5, %s2407
      // Predicated region
      $region249: #{mink_next_block.5} parent=35 // pred_check
        %p2409 = pneg %p143
      $region250: #{mink_next_block.5} parent=35 // pred_check_branch
        %2411 = sbr.rel (%p2409) target = $region252
      $region251: #{mink_next_block.5} parent=35 // pred_region
        %s2412 = smul.u32 %s20, 4
        %s2413 = sadd.s32 %s2412, %s21
        %s2414 = smul.u32 8, %s2413
      $region252: #{mink_next_block.5} parent=35 // pred_fallthru
        _
    $region36: #{mink_next_block.5} parent=5 // pred_fallthru
      _
    %p2415 = scmp.le.s32.totalorder 2, %s11
    // Predicated region
    $region253: #{mink_next_block.5} parent=5 // pred_check
      %p2416 = pneg %p2415
    $region254: #{mink_next_block.5} parent=5 // pred_check_branch
      %2418 = sbr.rel (%p2416) target = $region256
    $region255: #{mink_next_block.5} parent=5 // pred_region
      %s2419 = ssub.s32 %s11, 2
      // Predicated region
      $region257: #{mink_next_block.5} parent=255 // pred_check
        %p2420 = pneg %p149
      $region258: #{mink_next_block.5} parent=255 // pred_check_branch
        %2422 = sbr.rel (%p2420) target = $region260
      $region259: #{mink_next_block.5} parent=255 // pred_region
        %s2423 = smul.u32 %s22, 4
        %s2424 = sadd.s32 %s2423, %s23
        %s2425 = smul.u32 8, %s2424
        %p2426 = scmp.lt.s32.totalorder %s2425, 63
        %s2427 = scalar_select %p2426, %s2425, 63
        %s2428 = smul.addr %s2427, 8
        %s2429 = scalar_lea.vmem %s5, %s2428
      $region260: #{mink_next_block.5} parent=255 // pred_fallthru
        _
    $region256: #{mink_next_block.5} parent=5 // pred_fallthru
      _
  $region6: #{mink_next_block.5} parent=0 // loop_footer
    %s15 = sadd.s32 1, %s11
  $region7: #{mink_next_block.5} parent=0 // loop_footer_branch
    %10 = sbr.rel target = $region3
  $region8: #{mink_next_block.5} parent=0 // loop_exit
    _
  %2430 = vsyncmov [#allocation3]
  %s2431 = vpop.sfrf %2430
  %p2432 = scmp.eq.s32.totalorder %s2431, 0
  %p2433 = pneg %p2432
  %2435 = shalt.err (%p2433)
  %s2436 = scalar_lea.sflag [#allocation3], 1
  %2437 = vsyncmov %s2436
  %s2438 = vpop.sfrf %2437
  %p2439 = scmp.eq.s32.totalorder %s2438, 0
  %p2440 = pneg %p2439
  %2442 = shalt.err (%p2440)
  %s2443 = scalar_lea.sflag [#allocation3], 2
  %2444 = vsyncmov %s2443
  %s2445 = vpop.sfrf %2444
  %p2446 = scmp.eq.s32.totalorder %s2445, 0
  %p2447 = pneg %p2446
  %2449 = shalt.err (%p2447)
  %s2450 = scalar_lea.sflag [#allocation3], 3
  %2451 = vsyncmov %s2450
  %s2452 = vpop.sfrf %2451
  %p2453 = scmp.eq.s32.totalorder %s2452, 0
  %p2454 = pneg %p2453
  %2456 = shalt.err (%p2454)
  %s2457 = scalar_lea.sflag [#allocation3], 4
  %2458 = vsyncmov %s2457
  %s2459 = vpop.sfrf %2458
  %p2460 = scmp.eq.s32.totalorder %s2459, 0
  %p2461 = pneg %p2460
  %2463 = shalt.err (%p2461)
  %s2464 = scalar_lea.sflag [#allocation3], 5
  %2465 = vsyncmov %s2464
  %s2466 = vpop.sfrf %2465
  %p2467 = scmp.eq.s32.totalorder %s2466, 0
  %p2468 = pneg %p2467
  %2470 = shalt.err (%p2468)

</llo_original>
